<compile_context>
chip_gen: v6e
topology: v6e:2x2x1
jax: 0.10.0
libtpu: 0.0.40
codegen_flags: <defaults>
</compile_context>

<pallas_src>
import functools

import jax
import jax.numpy as jnp
import numpy as np
from jax.experimental import pallas as pl
from jax.experimental.pallas import tpu as pltpu

_VMEM_LIMIT = 48 * 1024 * 1024      # safe on v7x (64 MiB physical), > default scoped limit
_COMPUTE_DTYPE = jnp.bfloat16


# ----------------------------------------------------------------------------------
# small helpers
# ----------------------------------------------------------------------------------
def _round_up(n, m):
    return ((n + m - 1) // m) * m


def _pick_tm(M, tile_m, align=8):
    """Pick an M tile; expose >=2 blocks when possible (v7x has 2 TensorCores)."""
    Ma = _round_up(M, align)
    if Ma > tile_m:
        return tile_m
    if Ma >= 2 * align:
        return _round_up((M + 1) // 2, align)
    return Ma


def get_window_size(x_size, window_size, shift_size=None):
    use_ws = list(window_size)
    use_ss = list(shift_size) if shift_size is not None else None
    for i in range(len(x_size)):
        if x_size[i] <= window_size[i]:
            use_ws[i] = x_size[i]
            if shift_size is not None:
                use_ss[i] = 0
    if shift_size is None:
        return tuple(use_ws)
    return tuple(use_ws), tuple(use_ss)


def window_partition_jax(x, window_size):
    B, D, H, W, C = x.shape
    wd, wh, ww = window_size
    x = x.reshape(B, D // wd, wd, H // wh, wh, W // ww, ww, C)
    x = x.transpose(0, 1, 3, 5, 2, 4, 6, 7)
    return x.reshape(-1, wd * wh * ww, C)


def window_reverse_jax(windows, window_size, B, D, H, W):
    wd, wh, ww = window_size
    x = windows.reshape(B, D // wd, H // wh, W // ww, wd, wh, ww, -1)
    x = x.transpose(0, 1, 4, 2, 5, 3, 6, 7)
    return x.reshape(B, D, H, W, -1)


def _relative_position_index(window_size):
    wd, wh, ww = window_size
    coords = np.stack(np.meshgrid(np.arange(wd), np.arange(wh), np.arange(ww),
                                  indexing="ij"))
    coords_flat = coords.reshape(3, -1)
    rel = coords_flat[:, :, None] - coords_flat[:, None, :]
    rel = rel.transpose(1, 2, 0).astype(np.int64)
    rel[:, :, 0] += wd - 1
    rel[:, :, 1] += wh - 1
    rel[:, :, 2] += ww - 1
    rel[:, :, 0] *= (2 * wh - 1) * (2 * ww - 1)
    rel[:, :, 1] *= 2 * ww - 1
    return jnp.asarray(rel.sum(-1))


def compute_mask(Dp, Hp, Wp, window_size, shift_size):
    """Attention mask for shifted windows (same as video-Swin's compute_mask)."""
    img_mask = np.zeros((1, Dp, Hp, Wp, 1), dtype=np.float32)
    cnt = 0
    d_slices = (slice(-window_size[0]), slice(-window_size[0], -shift_size[0]),
                slice(-shift_size[0], None))
    h_slices = (slice(-window_size[1]), slice(-window_size[1], -shift_size[1]),
                slice(-shift_size[1], None))
    w_slices = (slice(-window_size[2]), slice(-window_size[2], -shift_size[2]),
                slice(-shift_size[2], None))
    for d in d_slices:
        for h in h_slices:
            for w in w_slices:
                img_mask[:, d, h, w, :] = cnt
                cnt += 1
    mask_windows = window_partition_jax(jnp.asarray(img_mask), window_size)[..., 0]
    attn_mask = mask_windows[:, None, :] - mask_windows[:, :, None]
    return jnp.where(attn_mask != 0, jnp.float32(-100.0), jnp.float32(0.0))


# ----------------------------------------------------------------------------------
# LayerNorm kernel (bf16 output for downstream matmuls)
# ----------------------------------------------------------------------------------
def _layernorm_kernel(x_ref, g_ref, b_ref, o_ref, *, eps):
    x = x_ref[...].astype(jnp.float32)
    mu = jnp.mean(x, axis=-1, keepdims=True)
    xc = x - mu
    var = jnp.mean(xc * xc, axis=-1, keepdims=True)
    y = xc * jax.lax.rsqrt(var + eps) * g_ref[...] + b_ref[...]
    o_ref[...] = y.astype(o_ref.dtype)


def layernorm_pallas(x2d, gamma, beta, *, eps=1e-5, tile_m=512, out_dtype=None):
    M, C = x2d.shape
    out_dtype = out_dtype or x2d.dtype
    tm = _pick_tm(M, tile_m, align=8)
    Mp = _round_up(M, tm)
    xp = jnp.pad(x2d, ((0, Mp - M), (0, 0))) if Mp != M else x2d
    g2 = gamma.reshape(1, C).astype(jnp.float32)
    b2 = beta.reshape(1, C).astype(jnp.float32)

    out = pl.pallas_call(
        functools.partial(_layernorm_kernel, eps=eps),
        out_shape=jax.ShapeDtypeStruct((Mp, C), out_dtype),
        grid_spec=pltpu.PrefetchScalarGridSpec(
            num_scalar_prefetch=0,
            grid=(Mp // tm,),
            in_specs=[
                pl.BlockSpec((tm, C), lambda i: (i, 0)),
                pl.BlockSpec((1, C), lambda i: (0, 0)),
                pl.BlockSpec((1, C), lambda i: (0, 0)),
            ],
            out_specs=pl.BlockSpec((tm, C), lambda i: (i, 0)),
        ),
        compiler_params=pltpu.CompilerParams(
            dimension_semantics=("parallel",),
            vmem_limit_bytes=_VMEM_LIMIT),
    )(xp, g2, b2)
    return out[:M] if Mp != M else out


# ----------------------------------------------------------------------------------
# Linear (x @ W + b) kernel — used for the (scale-folded) QKV projection
# ----------------------------------------------------------------------------------
def _linear_kernel(x_ref, w_ref, b_ref, o_ref):
    acc = jnp.dot(x_ref[...], w_ref[...], preferred_element_type=jnp.float32)
    o_ref[...] = (acc + b_ref[...]).astype(o_ref.dtype)


def linear_pallas(x2d, w, b, *, tile_m=256, out_dtype=None, pad_n=True,
                  compute_dtype=_COMPUTE_DTYPE):
    """Returns (M, Np) with Np = round_up(Nout, 128) when pad_n (no crop — caller
    slices the real lanes), avoiding an extra HBM crop pass."""
    M, K = x2d.shape
    N0 = w.shape[1]
    out_dtype = out_dtype or x2d.dtype
    Np = _round_up(N0, 128) if pad_n else N0
    tm = _pick_tm(M, tile_m, align=8)
    Mp = _round_up(M, tm)

    xp = x2d.astype(compute_dtype)
    if Mp != M:
        xp = jnp.pad(xp, ((0, Mp - M), (0, 0)))
    wp = jnp.pad(w.astype(compute_dtype), ((0, 0), (0, Np - N0)))
    bp = jnp.pad(b.astype(jnp.float32), (0, Np - N0)).reshape(1, Np)

    cost = pl.CostEstimate(
        flops=int(2 * Mp * K * Np),
        transcendentals=0,
        bytes_accessed=int(Mp * K * 2 + K * Np * 2 + Mp * Np * 2),
    )
    out = pl.pallas_call(
        _linear_kernel,
        out_shape=jax.ShapeDtypeStruct((Mp, Np), out_dtype),
        grid_spec=pltpu.PrefetchScalarGridSpec(
            num_scalar_prefetch=0,
            grid=(Mp // tm,),
            in_specs=[
                pl.BlockSpec((tm, K), lambda i: (i, 0)),
                pl.BlockSpec((K, Np), lambda i: (0, 0)),
                pl.BlockSpec((1, Np), lambda i: (0, 0)),
            ],
            out_specs=pl.BlockSpec((tm, Np), lambda i: (i, 0)),
        ),
        compiler_params=pltpu.CompilerParams(
            dimension_semantics=("parallel",),
            vmem_limit_bytes=_VMEM_LIMIT),
        cost_estimate=cost,
    )(xp, wp, bp)
    return out[:M] if Mp != M else out


# ----------------------------------------------------------------------------------
# Window attention kernel: packed QKV in, rel-pos bias (+mask) added in-kernel,
# EUP-reciprocal softmax, fused output projection, (B_, N, C) bf16 out.
# ----------------------------------------------------------------------------------
def _window_attn_kernel(*refs, nH, Dh, C, has_mask):
    if has_mask:
        qkv_ref, rpb_ref, mask_ref, pw_ref, pb_ref, o_ref = refs
    else:
        qkv_ref, rpb_ref, pw_ref, pb_ref, o_ref = refs
        mask_ref = None

    tw, N, _ = qkv_ref.shape
    qkv = qkv_ref[...]                                     # (tw, N, Np3) bf16
    mask = mask_ref[...] if has_mask else None             # (tw, N, N) f32

    head_outs = []
    for h in range(nH):                                    # trace-time unroll over heads
        qh = qkv[:, :, h * Dh:(h + 1) * Dh]                # (tw, N, Dh), scale pre-folded
        kh = qkv[:, :, C + h * Dh:C + (h + 1) * Dh]
        vh = qkv[:, :, 2 * C + h * Dh:2 * C + (h + 1) * Dh]

        s = jnp.einsum("wnd,wmd->wnm", qh, kh,
                       preferred_element_type=jnp.float32)  # (tw, N, N)
        s = s + rpb_ref[h][None, :, :]
        if has_mask:
            s = s + mask
        s = s - jnp.max(s, axis=-1, keepdims=True)
        p = jnp.exp(s)
        p = p * pl.reciprocal(jnp.sum(p, axis=-1, keepdims=True), approx=True)
        oh = jnp.einsum("wnm,wmd->wnd", p.astype(vh.dtype), vh,
                        preferred_element_type=jnp.float32)  # (tw, N, Dh)
        head_outs.append(oh)

    o = jnp.concatenate(head_outs, axis=-1)                 # (tw, N, C) f32
    o2 = o.reshape(tw * N, C).astype(pw_ref.dtype)
    proj = jnp.dot(o2, pw_ref[...], preferred_element_type=jnp.float32)
    proj = proj + pb_ref[...]
    o_ref[...] = proj.reshape(tw, N, C).astype(o_ref.dtype)


def _pick_window_tile(nW, nH, N, Np3, budget_bytes=6 << 20):
    # f32 score/prob live values dominate; qkv tile double-buffered in bf16.
    per_window = nH * N * N * 8 + N * Np3 * 4 + N * N * 8
    tw = max(1, min(nW, budget_bytes // max(per_window, 1)))
    while nW % tw:
        tw -= 1
    return tw


def window_attention_pallas(xw, params, *, num_heads, cfg_window_size, nW, mask=None,
                            compute_dtype=_COMPUTE_DTYPE):
    B_, N, C = xw.shape
    nH = num_heads
    Dh = C // nH
    scale = Dh ** (-0.5)

    # Fold 1/sqrt(Dh) into the Q columns of the QKV projection (numerically exact).
    col_scale = jnp.concatenate([jnp.full((C,), scale, jnp.float32),
                                 jnp.ones((2 * C,), jnp.float32)])
    qkv_w = params["qkv_w"].astype(jnp.float32) * col_scale[None, :]
    qkv_b = params["qkv_b"].astype(jnp.float32) * col_scale

    qkv = linear_pallas(xw.reshape(B_ * N, C), qkv_w, qkv_b,
                        out_dtype=compute_dtype, pad_n=True)      # (B_*N, Np3) bf16
    Np3 = qkv.shape[1]
    qkv = qkv.reshape(B_, N, Np3)

    # relative position bias (tiny gather, done once outside the kernel)
    rpi = _relative_position_index(cfg_window_size)
    rpb = params["rpb_table"][rpi[:N, :N].reshape(-1)].reshape(N, N, nH)
    rpb = jnp.transpose(rpb, (2, 0, 1)).astype(jnp.float32)       # (nH, N, N)

    B = B_ // nW
    tw = _pick_window_tile(nW, nH, N, Np3)
    nWt = nW // tw

    pw = params["proj_w"].astype(compute_dtype)                   # (C, C), resident
    pb = params["proj_b"].astype(jnp.float32).reshape(1, C)

    kern = functools.partial(_window_attn_kernel, nH=nH, Dh=Dh, C=C,
                             has_mask=mask is not None)
    in_specs = [pl.BlockSpec((tw, N, Np3), lambda w, b: (b * nWt + w, 0, 0)),
                pl.BlockSpec((nH, N, N), lambda w, b: (0, 0, 0))]
    inputs = [qkv, rpb]
    if mask is not None:
        # per-window mask tile; block index independent of inner (batch) axis -> resident
        in_specs.append(pl.BlockSpec((tw, N, N), lambda w, b: (w, 0, 0)))
        inputs.append(mask.astype(jnp.float32))
    in_specs += [pl.BlockSpec((C, C), lambda w, b: (0, 0)),
                 pl.BlockSpec((1, C), lambda w, b: (0, 0))]
    inputs += [pw, pb]

    out = pl.pallas_call(
        kern,
        out_shape=jax.ShapeDtypeStruct((B_, N, C), compute_dtype),
        grid_spec=pltpu.PrefetchScalarGridSpec(
            num_scalar_prefetch=0,
            grid=(nWt, B),        # batch innermost: rpb/mask/proj tiles stay resident
            in_specs=in_specs,
            out_specs=pl.BlockSpec((tw, N, C), lambda w, b: (b * nWt + w, 0, 0)),
        ),
        compiler_params=pltpu.CompilerParams(
            dimension_semantics=("parallel", "parallel"),
            vmem_limit_bytes=_VMEM_LIMIT),
    )(*inputs)
    return out                                                     # (B_, N, C) bf16


# ----------------------------------------------------------------------------------
# Fused LN2 + MLP + residual kernel: LN once per M-tile into VMEM scratch, H-tiled
# fc1 -> GELU -> fc2 reduction into a VMEM f32 accumulator, residual added at store.
# ----------------------------------------------------------------------------------
def _ln_mlp_kernel(x_ref, g_ref, b_ref, w1_ref, b1_ref, w2_ref, b2_ref, o_ref,
                   xn_ref, acc_ref, *, eps):
    k = pl.program_id(1)

    @pl.when(k == 0)
    def _init():
        xv = x_ref[...].astype(jnp.float32)
        mu = jnp.mean(xv, axis=-1, keepdims=True)
        xc = xv - mu
        var = jnp.mean(xc * xc, axis=-1, keepdims=True)
        y = xc * jax.lax.rsqrt(var + eps) * g_ref[...] + b_ref[...]
        xn_ref[...] = y.astype(xn_ref.dtype)
        acc_ref[...] = jnp.zeros_like(acc_ref)

    h = jnp.dot(xn_ref[...], w1_ref[...], preferred_element_type=jnp.float32)
    h = h + b1_ref[...]
    h = jax.nn.gelu(h, approximate=True)          # EUP tanh path (see TODO at top)
    acc_ref[...] += jnp.dot(h.astype(w2_ref.dtype), w2_ref[...],
                            preferred_element_type=jnp.float32)

    @pl.when(k == pl.num_programs(1) - 1)
    def _store():
        res = x_ref[...].astype(jnp.float32)
        o_ref[...] = (res + acc_ref[...] + b2_ref[...]).astype(o_ref.dtype)


def ln_mlp_pallas(x2d, norm_w, norm_b, w1, b1, w2, b2, *, eps=1e-5,
                  tile_m=256, tile_h=512, compute_dtype=_COMPUTE_DTYPE):
    M, C = x2d.shape
    Hd = w1.shape[1]
    out_dtype = x2d.dtype

    th = min(tile_h, _round_up(Hd, 128))
    Hp = _round_up(Hd, th)
    tm = _pick_tm(M, tile_m, align=8)
    Mp = _round_up(M, tm)

    xp = jnp.pad(x2d, ((0, Mp - M), (0, 0))) if Mp != M else x2d
    g2 = norm_w.reshape(1, C).astype(jnp.float32)
    be2 = norm_b.reshape(1, C).astype(jnp.float32)
    # zero padding of the hidden dim keeps the math exact
    w1p = jnp.pad(w1.astype(compute_dtype), ((0, 0), (0, Hp - Hd)))
    b1p = jnp.pad(b1.astype(jnp.float32), (0, Hp - Hd)).reshape(1, Hp)
    w2p = jnp.pad(w2.astype(compute_dtype), ((0, Hp - Hd), (0, 0)))
    b2p = b2.astype(jnp.float32).reshape(1, C)

    cost = pl.CostEstimate(
        flops=int(2 * Mp * (C * Hp + Hp * C)),
        transcendentals=int(Mp * Hp),
        bytes_accessed=int(Mp * C * 8 + C * Hp * 4 + Mp * C * 4),
    )
    out = pl.pallas_call(
        functools.partial(_ln_mlp_kernel, eps=eps),
        out_shape=jax.ShapeDtypeStruct((Mp, C), out_dtype),
        grid_spec=pltpu.PrefetchScalarGridSpec(
            num_scalar_prefetch=0,
            grid=(Mp // tm, Hp // th),
            in_specs=[
                pl.BlockSpec((tm, C), lambda i, k: (i, 0)),    # x tile (resident over k)
                pl.BlockSpec((1, C), lambda i, k: (0, 0)),     # norm2 gamma
                pl.BlockSpec((1, C), lambda i, k: (0, 0)),     # norm2 beta
                pl.BlockSpec((C, th), lambda i, k: (0, k)),    # fc1 weight slab
                pl.BlockSpec((1, th), lambda i, k: (0, k)),    # fc1 bias slab
                pl.BlockSpec((th, C), lambda i, k: (k, 0)),    # fc2 weight slab
                pl.BlockSpec((1, C), lambda i, k: (0, 0)),     # fc2 bias
            ],
            out_specs=pl.BlockSpec((tm, C), lambda i, k: (i, 0)),
            scratch_shapes=[pltpu.VMEM((tm, C), compute_dtype),   # LN2(x) tile
                            pltpu.VMEM((tm, C), jnp.float32)],    # fc2 accumulator
        ),
        compiler_params=pltpu.CompilerParams(
            dimension_semantics=("parallel", "arbitrary"),
            vmem_limit_bytes=_VMEM_LIMIT),
        cost_estimate=cost,
    )(xp, g2, be2, w1p, b1p, w2p, b2p)
    return out[:M] if Mp != M else out


# ----------------------------------------------------------------------------------
# Full SwinTransformerBlock3D forward (inference: dropout / DropPath are identities)
# ----------------------------------------------------------------------------------
def swin_block_forward(x, params, *, num_heads, window_size=(2, 7, 7),
                       shift_size=(0, 0, 0), mask_matrix=None):
    B, D, H, W, C = x.shape
    ws, ss = get_window_size((D, H, W), window_size, shift_size)
    shortcut = x

    # ---- part 1: norm1 (bf16) + (shifted) window attention with fused projection ----
    xn = layernorm_pallas(x.reshape(-1, C), params["norm1_w"], params["norm1_b"],
                          out_dtype=_COMPUTE_DTYPE).reshape(B, D, H, W, C)
    pad_d1 = (-D) % ws[0]
    pad_b = (-H) % ws[1]
    pad_r = (-W) % ws[2]
    xn = jnp.pad(xn, ((0, 0), (0, pad_d1), (0, pad_b), (0, pad_r), (0, 0)))
    _, Dp, Hp, Wp, _ = xn.shape

    if any(s > 0 for s in ss):
        shifted = jnp.roll(xn, shift=(-ss[0], -ss[1], -ss[2]), axis=(1, 2, 3))
        attn_mask = mask_matrix
    else:
        shifted, attn_mask = xn, None

    nW = (Dp // ws[0]) * (Hp // ws[1]) * (Wp // ws[2])
    xw = window_partition_jax(shifted, ws)                    # (B*nW, N, C) bf16
    aw = window_attention_pallas(xw, params, num_heads=num_heads,
                                 cfg_window_size=window_size, nW=nW,
                                 mask=attn_mask)              # (B*nW, N, C) bf16
    shifted = window_reverse_jax(aw, ws, B, Dp, Hp, Wp)

    if any(s > 0 for s in ss):
        xf = jnp.roll(shifted, shift=ss, axis=(1, 2, 3))
    else:
        xf = shifted
    xf = xf[:, :D, :H, :W, :]
    x1 = shortcut + xf.astype(shortcut.dtype)                 # drop_path = identity

    # ---- part 2: fused norm2 + MLP + residual ----
    out = ln_mlp_pallas(x1.reshape(-1, C), params["norm2_w"], params["norm2_b"],
                        params["fc1_w"], params["fc1_b"],
                        params["fc2_w"], params["fc2_b"])
    return out.reshape(B, D, H, W, C)


# ----------------------------------------------------------------------------------
# Pure-jnp reference (mirrors the PyTorch module, all f32) for correctness checks
# ----------------------------------------------------------------------------------
def _layernorm_ref(x, gamma, beta, eps=1e-5):
    mu = jnp.mean(x, axis=-1, keepdims=True)
    var = jnp.mean((x - mu) ** 2, axis=-1, keepdims=True)
    return (x - mu) * jax.lax.rsqrt(var + eps) * gamma + beta


def _window_attention_ref(xw, params, *, num_heads, window_size, mask):
    B_, N, C = xw.shape
    nH = num_heads
    Dh = C // nH
    qkv = xw @ params["qkv_w"] + params["qkv_b"]
    qkv = qkv.reshape(B_, N, 3, nH, Dh).transpose(2, 0, 3, 1, 4)
    q, k, v = qkv[0], qkv[1], qkv[2]
    q = q * (Dh ** (-0.5))
    attn = jnp.einsum("bhnd,bhmd->bhnm", q, k)
    rpi = _relative_position_index(window_size)
    rpb = params["rpb_table"][rpi[:N, :N].reshape(-1)].reshape(N, N, nH)
    attn = attn + jnp.transpose(rpb, (2, 0, 1))[None]
    if mask is not None:
        nW = mask.shape[0]
        attn = attn.reshape(B_ // nW, nW, nH, N, N) + mask[None, :, None]
        attn = attn.reshape(B_, nH, N, N)
    attn = jax.nn.softmax(attn, axis=-1)
    out = jnp.einsum("bhnm,bhmd->bhnd", attn, v)
    out = out.transpose(0, 2, 1, 3).reshape(B_, N, C)
    return out @ params["proj_w"] + params["proj_b"]


def swin_block_reference(x, params, *, num_heads, window_size, shift_size,
                         mask_matrix=None):
    B, D, H, W, C = x.shape
    ws, ss = get_window_size((D, H, W), window_size, shift_size)
    shortcut = x
    xf = _layernorm_ref(x, params["norm1_w"], params["norm1_b"])
    pad_d1 = (-D) % ws[0]
    pad_b = (-H) % ws[1]
    pad_r = (-W) % ws[2]
    xf = jnp.pad(xf, ((0, 0), (0, pad_d1), (0, pad_b), (0, pad_r), (0, 0)))
    _, Dp, Hp, Wp, _ = xf.shape
    if any(s > 0 for s in ss):
        shifted = jnp.roll(xf, shift=(-ss[0], -ss[1], -ss[2]), axis=(1, 2, 3))
        attn_mask = mask_matrix
    else:
        shifted, attn_mask = xf, None
    xw = window_partition_jax(shifted, ws)
    aw = _window_attention_ref(xw, params, num_heads=num_heads,
                               window_size=window_size, mask=attn_mask)
    shifted = window_reverse_jax(aw, ws, B, Dp, Hp, Wp)
    if any(s > 0 for s in ss):
        xf = jnp.roll(shifted, shift=ss, axis=(1, 2, 3))
    else:
        xf = shifted
    xf = xf[:, :D, :H, :W, :]
    x = shortcut + xf
    y = _layernorm_ref(x, params["norm2_w"], params["norm2_b"])
    y = jax.nn.gelu(y @ params["fc1_w"] + params["fc1_b"], approximate=False)
    y = y @ params["fc2_w"] + params["fc2_b"]
    return x + y


# ----------------------------------------------------------------------------------
# demo / self-test
# ----------------------------------------------------------------------------------
if __name__ == "__main__":
    B, D, H, W, C = 2, 4, 8, 8, 32
    num_heads = 4
    window_size = (2, 4, 4)
    mlp_hidden = int(C * 4.0)

    key = jax.random.PRNGKey(0)
    ks = jax.random.split(key, 14)

    def init(k, shape, scale=0.02):
        return jax.random.normal(k, shape, jnp.float32) * scale

    x = jax.random.normal(ks[0], (B, D, H, W, C), jnp.float32)
    n_rpb = ((2 * window_size[0] - 1) * (2 * window_size[1] - 1)
             * (2 * window_size[2] - 1))
    params = {
        "norm1_w": 1.0 + init(ks[1], (C,), 0.1),
        "norm1_b": init(ks[2], (C,), 0.1),
        "qkv_w": init(ks[3], (C, 3 * C)),
        "qkv_b": init(ks[4], (3 * C,)),
        "rpb_table": init(ks[5], (n_rpb, num_heads)),
        "proj_w": init(ks[6], (C, C)),
        "proj_b": init(ks[7], (C,)),
        "norm2_w": 1.0 + init(ks[8], (C,), 0.1),
        "norm2_b": init(ks[9], (C,), 0.1),
        "fc1_w": init(ks[10], (C, mlp_hidden)),
        "fc1_b": init(ks[11], (mlp_hidden,)),
        "fc2_w": init(ks[12], (mlp_hidden, C)),
        "fc2_b": init(ks[13], (C,)),
    }

    # ---- test 1: non-shifted windows (mask = None) ----
    fwd0 = jax.jit(functools.partial(swin_block_forward, num_heads=num_heads,
                                     window_size=window_size, shift_size=(0, 0, 0)))
    out0 = jax.block_until_ready(fwd0(x, params))
    ref0 = swin_block_reference(x, params, num_heads=num_heads,
                                window_size=window_size, shift_size=(0, 0, 0))
    assert out0.shape == x.shape
    err0 = float(jnp.max(jnp.abs(out0 - ref0)))
    assert jnp.allclose(out0, ref0, atol=2e-2, rtol=2e-2), f"no-shift max err {err0}"

    # ---- test 2: shifted windows with attention mask ----
    shift_size = (1, 2, 2)
    ws, ss = get_window_size((D, H, W), window_size, shift_size)
    Dp, Hp, Wp = _round_up(D, ws[0]), _round_up(H, ws[1]), _round_up(W, ws[2])
    mask = compute_mask(Dp, Hp, Wp, ws, ss)
    fwd1 = jax.jit(functools.partial(swin_block_forward, num_heads=num_heads,
                                     window_size=window_size, shift_size=shift_size))
    out1 = jax.block_until_ready(fwd1(x, params, mask_matrix=mask))
    ref1 = swin_block_reference(x, params, num_heads=num_heads,
                                window_size=window_size, shift_size=shift_size,
                                mask_matrix=mask)
    err1 = float(jnp.max(jnp.abs(out1 - ref1)))
    assert jnp.allclose(out1, ref1, atol=2e-2, rtol=2e-2), f"shifted max err {err1}"

    print("KERNEL_OK")
</pallas_src>

<mosaic_0001>
module attributes {stable_mosaic.version = 11 : i64} {
  func.func @_layernorm_kernel(%arg0: i32, %arg1: memref<256x32xf32, #tpu.memory_space<vmem>>, %arg2: memref<1x32xf32, #tpu.memory_space<vmem>>, %arg3: memref<1x32xf32, #tpu.memory_space<vmem>>, %arg4: memref<256x32xbf16, #tpu.memory_space<vmem>>) attributes {dimension_semantics = [#tpu.dimension_semantics<parallel>], iteration_bounds = array<i64: 2>, scalar_prefetch = 0 : i64, scratch_operands = 0 : i64, tpu.core_type = #tpu.core_type<tc>, window_params = [{transform_indices = @transform_0, window_bounds = array<i64: 256, 32>}, {pipeline_mode = #tpu.pipeline_mode<synchronous>, transform_indices = @transform_1, window_bounds = array<i64: 1, 32>}, {pipeline_mode = #tpu.pipeline_mode<synchronous>, transform_indices = @transform_2, window_bounds = array<i64: 1, 32>}, {transform_indices = @transform_3, window_bounds = array<i64: 256, 32>}]} {
    %c0 = arith.constant 0 : index
    %c0_0 = arith.constant 0 : index
    %0 = vector.load %arg1[%c0, %c0_0] : memref<256x32xf32, #tpu.memory_space<vmem>>, vector<256x32xf32>
    %cst = arith.constant dense<0.000000e+00> : vector<256xf32>
    %1 = vector.multi_reduction <add>, %0, %cst [1] : vector<256x32xf32> to vector<256xf32>
    %2 = vector.shape_cast %1 : vector<256xf32> to vector<256x1xf32>
    %cst_1 = arith.constant 3.200000e+01 : f32
    %3 = vector.broadcast %cst_1 : f32 to vector<256x1xf32>
    %4 = arith.divf %2, %3 : vector<256x1xf32>
    %5 = vector.broadcast %4 : vector<256x1xf32> to vector<256x32xf32>
    %6 = arith.subf %0, %5 : vector<256x32xf32>
    %7 = arith.mulf %6, %6 : vector<256x32xf32>
    %cst_2 = arith.constant dense<0.000000e+00> : vector<256xf32>
    %8 = vector.multi_reduction <add>, %7, %cst_2 [1] : vector<256x32xf32> to vector<256xf32>
    %9 = vector.shape_cast %8 : vector<256xf32> to vector<256x1xf32>
    %cst_3 = arith.constant 3.200000e+01 : f32
    %10 = vector.broadcast %cst_3 : f32 to vector<256x1xf32>
    %11 = arith.divf %9, %10 : vector<256x1xf32>
    %cst_4 = arith.constant 9.99999974E-6 : f32
    %12 = vector.broadcast %cst_4 : f32 to vector<256x1xf32>
    %13 = arith.addf %11, %12 : vector<256x1xf32>
    %14 = math.rsqrt %13 : vector<256x1xf32>
    %15 = vector.broadcast %14 : vector<256x1xf32> to vector<256x32xf32>
    %16 = arith.mulf %6, %15 : vector<256x32xf32>
    %c0_5 = arith.constant 0 : index
    %c0_6 = arith.constant 0 : index
    %17 = vector.load %arg2[%c0_5, %c0_6] : memref<1x32xf32, #tpu.memory_space<vmem>>, vector<1x32xf32>
    %18 = vector.broadcast %17 : vector<1x32xf32> to vector<256x32xf32>
    %19 = arith.mulf %16, %18 : vector<256x32xf32>
    %c0_7 = arith.constant 0 : index
    %c0_8 = arith.constant 0 : index
    %20 = vector.load %arg3[%c0_7, %c0_8] : memref<1x32xf32, #tpu.memory_space<vmem>>, vector<1x32xf32>
    %21 = vector.broadcast %20 : vector<1x32xf32> to vector<256x32xf32>
    %22 = arith.addf %19, %21 : vector<256x32xf32>
    %23 = arith.truncf %22 : vector<256x32xf32> to vector<256x32xbf16>
    %c0_9 = arith.constant 0 : index
    %c0_10 = arith.constant 0 : index
    %24 = vector.load %arg4[%c0_9, %c0_10] : memref<256x32xbf16, #tpu.memory_space<vmem>>, vector<256x32xbf16>
    tpu.vector_store %arg4[%c0_9, %c0_10], %23 {strides = array<i32>} : memref<256x32xbf16, #tpu.memory_space<vmem>>, vector<256x32xbf16>,
    return
  }
  func.func @transform_0(%arg0: i32) -> (i32, i32) {
    %c0_i32 = arith.constant 0 : i32
    %c0_i32_0 = arith.constant 0 : i32
    return %arg0, %c0_i32 : i32, i32
  }
  func.func @transform_1(%arg0: i32) -> (i32, i32) {
    %c0_i32 = arith.constant 0 : i32
    %c0_i32_0 = arith.constant 0 : i32
    %c0_i32_1 = arith.constant 0 : i32
    return %c0_i32, %c0_i32_0 : i32, i32
  }
  func.func @transform_2(%arg0: i32) -> (i32, i32) {
    %c0_i32 = arith.constant 0 : i32
    %c0_i32_0 = arith.constant 0 : i32
    %c0_i32_1 = arith.constant 0 : i32
    return %c0_i32, %c0_i32_0 : i32, i32
  }
  func.func @transform_3(%arg0: i32) -> (i32, i32) {
    %c0_i32 = arith.constant 0 : i32
    %c0_i32_0 = arith.constant 0 : i32
    return %arg0, %c0_i32 : i32, i32
  }
}

module attributes {stable_mosaic.version = 11 : i64} {
  func.func @_linear_kernel(%arg0: i32, %arg1: memref<256x32xbf16, #tpu.memory_space<vmem>>, %arg2: memref<32x128xbf16, #tpu.memory_space<vmem>>, %arg3: memref<1x128xf32, #tpu.memory_space<vmem>>, %arg4: memref<256x128xbf16, #tpu.memory_space<vmem>>) attributes {dimension_semantics = [#tpu.dimension_semantics<parallel>], iteration_bounds = array<i64: 2>, scalar_prefetch = 0 : i64, scratch_operands = 0 : i64, tpu.core_type = #tpu.core_type<tc>, window_params = [{transform_indices = @transform_0, window_bounds = array<i64: 256, 32>}, {pipeline_mode = #tpu.pipeline_mode<synchronous>, transform_indices = @transform_1, window_bounds = array<i64: 32, 128>}, {pipeline_mode = #tpu.pipeline_mode<synchronous>, transform_indices = @transform_2, window_bounds = array<i64: 1, 128>}, {transform_indices = @transform_3, window_bounds = array<i64: 256, 128>}]} {
    %c0 = arith.constant 0 : index
    %c0_0 = arith.constant 0 : index
    %0 = vector.load %arg1[%c0, %c0_0] : memref<256x32xbf16, #tpu.memory_space<vmem>>, vector<256x32xbf16>
    %c0_1 = arith.constant 0 : index
    %c0_2 = arith.constant 0 : index
    %1 = vector.load %arg2[%c0_1, %c0_2] : memref<32x128xbf16, #tpu.memory_space<vmem>>, vector<32x128xbf16>
    %cst = arith.constant dense<0.000000e+00> : vector<256x128xf32>
    %2 = tpu.matmul %0, %1, %cst {dimension_numbers = #tpu.dot_dimension_numbers<[1], [0], [0], [1], [0, 0, 1, 1], [], []>} : vector<256x32xbf16>, vector<32x128xbf16>, vector<256x128xf32> -> vector<256x128xf32>
    %c0_3 = arith.constant 0 : index
    %c0_4 = arith.constant 0 : index
    %3 = vector.load %arg3[%c0_3, %c0_4] : memref<1x128xf32, #tpu.memory_space<vmem>>, vector<1x128xf32>
    %4 = vector.broadcast %3 : vector<1x128xf32> to vector<256x128xf32>
    %5 = arith.addf %2, %4 : vector<256x128xf32>
    %6 = arith.truncf %5 : vector<256x128xf32> to vector<256x128xbf16>
    %c0_5 = arith.constant 0 : index
    %c0_6 = arith.constant 0 : index
    %7 = vector.load %arg4[%c0_5, %c0_6] : memref<256x128xbf16, #tpu.memory_space<vmem>>, vector<256x128xbf16>
    tpu.vector_store %arg4[%c0_5, %c0_6], %6 {strides = array<i32>} : memref<256x128xbf16, #tpu.memory_space<vmem>>, vector<256x128xbf16>,
    return
  }
  func.func @transform_0(%arg0: i32) -> (i32, i32) {
    %c0_i32 = arith.constant 0 : i32
    %c0_i32_0 = arith.constant 0 : i32
    return %arg0, %c0_i32 : i32, i32
  }
  func.func @transform_1(%arg0: i32) -> (i32, i32) {
    %c0_i32 = arith.constant 0 : i32
    %c0_i32_0 = arith.constant 0 : i32
    %c0_i32_1 = arith.constant 0 : i32
    return %c0_i32, %c0_i32_0 : i32, i32
  }
  func.func @transform_2(%arg0: i32) -> (i32, i32) {
    %c0_i32 = arith.constant 0 : i32
    %c0_i32_0 = arith.constant 0 : i32
    %c0_i32_1 = arith.constant 0 : i32
    return %c0_i32, %c0_i32_0 : i32, i32
  }
  func.func @transform_3(%arg0: i32) -> (i32, i32) {
    %c0_i32 = arith.constant 0 : i32
    %c0_i32_0 = arith.constant 0 : i32
    return %arg0, %c0_i32 : i32, i32
  }
}

module attributes {stable_mosaic.version = 11 : i64} {
  func.func @_window_attn_kernel(%arg0: i32, %arg1: i32, %arg2: memref<8x32x128xbf16, #tpu.memory_space<vmem>>, %arg3: memref<4x32x32xf32, #tpu.memory_space<vmem>>, %arg4: memref<32x32xbf16, #tpu.memory_space<vmem>>, %arg5: memref<1x32xf32, #tpu.memory_space<vmem>>, %arg6: memref<8x32x32xbf16, #tpu.memory_space<vmem>>) attributes {dimension_semantics = [#tpu.dimension_semantics<parallel>, #tpu.dimension_semantics<parallel>], iteration_bounds = array<i64: 1, 2>, scalar_prefetch = 0 : i64, scratch_operands = 0 : i64, tpu.core_type = #tpu.core_type<tc>, window_params = [{transform_indices = @transform_0, window_bounds = array<i64: 8, 32, 128>}, {pipeline_mode = #tpu.pipeline_mode<synchronous>, transform_indices = @transform_1, window_bounds = array<i64: 4, 32, 32>}, {pipeline_mode = #tpu.pipeline_mode<synchronous>, transform_indices = @transform_2, window_bounds = array<i64: 32, 32>}, {pipeline_mode = #tpu.pipeline_mode<synchronous>, transform_indices = @transform_3, window_bounds = array<i64: 1, 32>}, {transform_indices = @transform_4, window_bounds = array<i64: 8, 32, 32>}]} {
    %c0 = arith.constant 0 : index
    %c0_0 = arith.constant 0 : index
    %c0_1 = arith.constant 0 : index
    %0 = vector.load %arg2[%c0, %c0_0, %c0_1] : memref<8x32x128xbf16, #tpu.memory_space<vmem>>, vector<8x32x128xbf16>
    %1 = vector.extract_strided_slice %0 {offsets = [0, 0, 0], sizes = [8, 32, 8], strides = [1, 1, 1]} : vector<8x32x128xbf16> to vector<8x32x8xbf16>
    %2 = vector.extract_strided_slice %0 {offsets = [0, 0, 32], sizes = [8, 32, 8], strides = [1, 1, 1]} : vector<8x32x128xbf16> to vector<8x32x8xbf16>
    %3 = vector.extract_strided_slice %0 {offsets = [0, 0, 64], sizes = [8, 32, 8], strides = [1, 1, 1]} : vector<8x32x128xbf16> to vector<8x32x8xbf16>
    "tpu.trace_start"() <{level = 10 : i32, message = "wnd,wmd->wnm"}> : () -> ()
    %cst = arith.constant dense<0.000000e+00> : vector<8x32x32xf32>
    %4 = tpu.matmul %1, %2, %cst {dimension_numbers = #tpu.dot_dimension_numbers<[2], [2], [1], [1], [0, 0, 0, 1, 1, 1], [0], [0]>} : vector<8x32x8xbf16>, vector<8x32x8xbf16>, vector<8x32x32xf32> -> vector<8x32x32xf32>
    "tpu.trace_stop"() : () -> ()
    %c0_2 = arith.constant 0 : index
    %c0_3 = arith.constant 0 : index
    %c0_4 = arith.constant 0 : index
    %5 = vector.load %arg3[%c0_2, %c0_3, %c0_4] : memref<4x32x32xf32, #tpu.memory_space<vmem>>, vector<1x32x32xf32>
    %6 = vector.shape_cast %5 : vector<1x32x32xf32> to vector<32x32xf32>
    %7 = vector.shape_cast %6 : vector<32x32xf32> to vector<1x32x32xf32>
    %8 = vector.broadcast %7 : vector<1x32x32xf32> to vector<8x32x32xf32>
    %9 = arith.addf %4, %8 : vector<8x32x32xf32>
    %cst_5 = arith.constant dense<0xFF800000> : vector<8x32xf32>
    %10 = vector.multi_reduction <maximumf>, %9, %cst_5 [2] : vector<8x32x32xf32> to vector<8x32xf32>
    %11 = vector.shape_cast %10 : vector<8x32xf32> to vector<8x32x1xf32>
    %12 = vector.broadcast %11 : vector<8x32x1xf32> to vector<8x32x32xf32>
    %13 = arith.subf %9, %12 : vector<8x32x32xf32>
    %14 = math.exp %13 : vector<8x32x32xf32>
    %cst_6 = arith.constant dense<0.000000e+00> : vector<8x32xf32>
    %15 = vector.multi_reduction <add>, %14, %cst_6 [2] : vector<8x32x32xf32> to vector<8x32xf32>
    %16 = vector.shape_cast %15 : vector<8x32xf32> to vector<8x32x1xf32>
    %17 = tpu.reciprocal %16 {approx = true} : vector<8x32x1xf32> -> vector<8x32x1xf32>
    %18 = vector.broadcast %17 : vector<8x32x1xf32> to vector<8x32x32xf32>
    %19 = arith.mulf %14, %18 : vector<8x32x32xf32>
    %20 = arith.truncf %19 : vector<8x32x32xf32> to vector<8x32x32xbf16>
    "tpu.trace_start"() <{level = 10 : i32, message = "wnm,wmd->wnd"}> : () -> ()
    %cst_7 = arith.constant dense<0.000000e+00> : vector<8x32x8xf32>
    %21 = tpu.matmul %20, %3, %cst_7 {dimension_numbers = #tpu.dot_dimension_numbers<[2], [1], [1], [2], [0, 0, 0, 1, 1, 2], [0], [0]>} : vector<8x32x32xbf16>, vector<8x32x8xbf16>, vector<8x32x8xf32> -> vector<8x32x8xf32>
    "tpu.trace_stop"() : () -> ()
    %22 = vector.extract_strided_slice %0 {offsets = [0, 0, 8], sizes = [8, 32, 8], strides = [1, 1, 1]} : vector<8x32x128xbf16> to vector<8x32x8xbf16>
    %23 = vector.extract_strided_slice %0 {offsets = [0, 0, 40], sizes = [8, 32, 8], strides = [1, 1, 1]} : vector<8x32x128xbf16> to vector<8x32x8xbf16>
    %24 = vector.extract_strided_slice %0 {offsets = [0, 0, 72], sizes = [8, 32, 8], strides = [1, 1, 1]} : vector<8x32x128xbf16> to vector<8x32x8xbf16>
    "tpu.trace_start"() <{level = 10 : i32, message = "wnd,wmd->wnm"}> : () -> ()
    %cst_8 = arith.constant dense<0.000000e+00> : vector<8x32x32xf32>
    %25 = tpu.matmul %22, %23, %cst_8 {dimension_numbers = #tpu.dot_dimension_numbers<[2], [2], [1], [1], [0, 0, 0, 1, 1, 1], [0], [0]>} : vector<8x32x8xbf16>, vector<8x32x8xbf16>, vector<8x32x32xf32> -> vector<8x32x32xf32>
    "tpu.trace_stop"() : () -> ()
    %c1 = arith.constant 1 : index
    %c0_9 = arith.constant 0 : index
    %c0_10 = arith.constant 0 : index
    %26 = vector.load %arg3[%c1, %c0_9, %c0_10] : memref<4x32x32xf32, #tpu.memory_space<vmem>>, vector<1x32x32xf32>
    %27 = vector.shape_cast %26 : vector<1x32x32xf32> to vector<32x32xf32>
    %28 = vector.shape_cast %27 : vector<32x32xf32> to vector<1x32x32xf32>
    %29 = vector.broadcast %28 : vector<1x32x32xf32> to vector<8x32x32xf32>
    %30 = arith.addf %25, %29 : vector<8x32x32xf32>
    %cst_11 = arith.constant dense<0xFF800000> : vector<8x32xf32>
    %31 = vector.multi_reduction <maximumf>, %30, %cst_11 [2] : vector<8x32x32xf32> to vector<8x32xf32>
    %32 = vector.shape_cast %31 : vector<8x32xf32> to vector<8x32x1xf32>
    %33 = vector.broadcast %32 : vector<8x32x1xf32> to vector<8x32x32xf32>
    %34 = arith.subf %30, %33 : vector<8x32x32xf32>
    %35 = math.exp %34 : vector<8x32x32xf32>
    %cst_12 = arith.constant dense<0.000000e+00> : vector<8x32xf32>
    %36 = vector.multi_reduction <add>, %35, %cst_12 [2] : vector<8x32x32xf32> to vector<8x32xf32>
    %37 = vector.shape_cast %36 : vector<8x32xf32> to vector<8x32x1xf32>
    %38 = tpu.reciprocal %37 {approx = true} : vector<8x32x1xf32> -> vector<8x32x1xf32>
    %39 = vector.broadcast %38 : vector<8x32x1xf32> to vector<8x32x32xf32>
    %40 = arith.mulf %35, %39 : vector<8x32x32xf32>
    %41 = arith.truncf %40 : vector<8x32x32xf32> to vector<8x32x32xbf16>
    "tpu.trace_start"() <{level = 10 : i32, message = "wnm,wmd->wnd"}> : () -> ()
    %cst_13 = arith.constant dense<0.000000e+00> : vector<8x32x8xf32>
    %42 = tpu.matmul %41, %24, %cst_13 {dimension_numbers = #tpu.dot_dimension_numbers<[2], [1], [1], [2], [0, 0, 0, 1, 1, 2], [0], [0]>} : vector<8x32x32xbf16>, vector<8x32x8xbf16>, vector<8x32x8xf32> -> vector<8x32x8xf32>
    "tpu.trace_stop"() : () -> ()
    %43 = vector.extract_strided_slice %0 {offsets = [0, 0, 16], sizes = [8, 32, 8], strides = [1, 1, 1]} : vector<8x32x128xbf16> to vector<8x32x8xbf16>
    %44 = vector.extract_strided_slice %0 {offsets = [0, 0, 48], sizes = [8, 32, 8], strides = [1, 1, 1]} : vector<8x32x128xbf16> to vector<8x32x8xbf16>
    %45 = vector.extract_strided_slice %0 {offsets = [0, 0, 80], sizes = [8, 32, 8], strides = [1, 1, 1]} : vector<8x32x128xbf16> to vector<8x32x8xbf16>
    "tpu.trace_start"() <{level = 10 : i32, message = "wnd,wmd->wnm"}> : () -> ()
    %cst_14 = arith.constant dense<0.000000e+00> : vector<8x32x32xf32>
    %46 = tpu.matmul %43, %44, %cst_14 {dimension_numbers = #tpu.dot_dimension_numbers<[2], [2], [1], [1], [0, 0, 0, 1, 1, 1], [0], [0]>} : vector<8x32x8xbf16>, vector<8x32x8xbf16>, vector<8x32x32xf32> -> vector<8x32x32xf32>
    "tpu.trace_stop"() : () -> ()
    %c2 = arith.constant 2 : index
    %c0_15 = arith.constant 0 : index
    %c0_16 = arith.constant 0 : index
    %47 = vector.load %arg3[%c2, %c0_15, %c0_16] : memref<4x32x32xf32, #tpu.memory_space<vmem>>, vector<1x32x32xf32>
    %48 = vector.shape_cast %47 : vector<1x32x32xf32> to vector<32x32xf32>
    %49 = vector.shape_cast %48 : vector<32x32xf32> to vector<1x32x32xf32>
    %50 = vector.broadcast %49 : vector<1x32x32xf32> to vector<8x32x32xf32>
    %51 = arith.addf %46, %50 : vector<8x32x32xf32>
    %cst_17 = arith.constant dense<0xFF800000> : vector<8x32xf32>
    %52 = vector.multi_reduction <maximumf>, %51, %cst_17 [2] : vector<8x32x32xf32> to vector<8x32xf32>
    %53 = vector.shape_cast %52 : vector<8x32xf32> to vector<8x32x1xf32>
    %54 = vector.broadcast %53 : vector<8x32x1xf32> to vector<8x32x32xf32>
    %55 = arith.subf %51, %54 : vector<8x32x32xf32>
    %56 = math.exp %55 : vector<8x32x32xf32>
    %cst_18 = arith.constant dense<0.000000e+00> : vector<8x32xf32>
    %57 = vector.multi_reduction <add>, %56, %cst_18 [2] : vector<8x32x32xf32> to vector<8x32xf32>
    %58 = vector.shape_cast %57 : vector<8x32xf32> to vector<8x32x1xf32>
    %59 = tpu.reciprocal %58 {approx = true} : vector<8x32x1xf32> -> vector<8x32x1xf32>
    %60 = vector.broadcast %59 : vector<8x32x1xf32> to vector<8x32x32xf32>
    %61 = arith.mulf %56, %60 : vector<8x32x32xf32>
    %62 = arith.truncf %61 : vector<8x32x32xf32> to vector<8x32x32xbf16>
    "tpu.trace_start"() <{level = 10 : i32, message = "wnm,wmd->wnd"}> : () -> ()
    %cst_19 = arith.constant dense<0.000000e+00> : vector<8x32x8xf32>
    %63 = tpu.matmul %62, %45, %cst_19 {dimension_numbers = #tpu.dot_dimension_numbers<[2], [1], [1], [2], [0, 0, 0, 1, 1, 2], [0], [0]>} : vector<8x32x32xbf16>, vector<8x32x8xbf16>, vector<8x32x8xf32> -> vector<8x32x8xf32>
    "tpu.trace_stop"() : () -> ()
    %64 = vector.extract_strided_slice %0 {offsets = [0, 0, 24], sizes = [8, 32, 8], strides = [1, 1, 1]} : vector<8x32x128xbf16> to vector<8x32x8xbf16>
    %65 = vector.extract_strided_slice %0 {offsets = [0, 0, 56], sizes = [8, 32, 8], strides = [1, 1, 1]} : vector<8x32x128xbf16> to vector<8x32x8xbf16>
    %66 = vector.extract_strided_slice %0 {offsets = [0, 0, 88], sizes = [8, 32, 8], strides = [1, 1, 1]} : vector<8x32x128xbf16> to vector<8x32x8xbf16>
    "tpu.trace_start"() <{level = 10 : i32, message = "wnd,wmd->wnm"}> : () -> ()
    %cst_20 = arith.constant dense<0.000000e+00> : vector<8x32x32xf32>
    %67 = tpu.matmul %64, %65, %cst_20 {dimension_numbers = #tpu.dot_dimension_numbers<[2], [2], [1], [1], [0, 0, 0, 1, 1, 1], [0], [0]>} : vector<8x32x8xbf16>, vector<8x32x8xbf16>, vector<8x32x32xf32> -> vector<8x32x32xf32>
    "tpu.trace_stop"() : () -> ()
    %c3 = arith.constant 3 : index
    %c0_21 = arith.constant 0 : index
    %c0_22 = arith.constant 0 : index
    %68 = vector.load %arg3[%c3, %c0_21, %c0_22] : memref<4x32x32xf32, #tpu.memory_space<vmem>>, vector<1x32x32xf32>
    %69 = vector.shape_cast %68 : vector<1x32x32xf32> to vector<32x32xf32>
    %70 = vector.shape_cast %69 : vector<32x32xf32> to vector<1x32x32xf32>
    %71 = vector.broadcast %70 : vector<1x32x32xf32> to vector<8x32x32xf32>
    %72 = arith.addf %67, %71 : vector<8x32x32xf32>
    %cst_23 = arith.constant dense<0xFF800000> : vector<8x32xf32>
    %73 = vector.multi_reduction <maximumf>, %72, %cst_23 [2] : vector<8x32x32xf32> to vector<8x32xf32>
    %74 = vector.shape_cast %73 : vector<8x32xf32> to vector<8x32x1xf32>
    %75 = vector.broadcast %74 : vector<8x32x1xf32> to vector<8x32x32xf32>
    %76 = arith.subf %72, %75 : vector<8x32x32xf32>
    %77 = math.exp %76 : vector<8x32x32xf32>
    %cst_24 = arith.constant dense<0.000000e+00> : vector<8x32xf32>
    %78 = vector.multi_reduction <add>, %77, %cst_24 [2] : vector<8x32x32xf32> to vector<8x32xf32>
    %79 = vector.shape_cast %78 : vector<8x32xf32> to vector<8x32x1xf32>
    %80 = tpu.reciprocal %79 {approx = true} : vector<8x32x1xf32> -> vector<8x32x1xf32>
    %81 = vector.broadcast %80 : vector<8x32x1xf32> to vector<8x32x32xf32>
    %82 = arith.mulf %77, %81 : vector<8x32x32xf32>
    %83 = arith.truncf %82 : vector<8x32x32xf32> to vector<8x32x32xbf16>
    "tpu.trace_start"() <{level = 10 : i32, message = "wnm,wmd->wnd"}> : () -> ()
    %cst_25 = arith.constant dense<0.000000e+00> : vector<8x32x8xf32>
    %84 = tpu.matmul %83, %66, %cst_25 {dimension_numbers = #tpu.dot_dimension_numbers<[2], [1], [1], [2], [0, 0, 0, 1, 1, 2], [0], [0]>} : vector<8x32x32xbf16>, vector<8x32x8xbf16>, vector<8x32x8xf32> -> vector<8x32x8xf32>
    "tpu.trace_stop"() : () -> ()
    %85 = tpu.concatenate %21, %42, %63, %84 in 2 : vector<8x32x8xf32>, vector<8x32x8xf32>, vector<8x32x8xf32>, vector<8x32x8xf32> -> vector<8x32x32xf32>
    %86 = vector.shape_cast %85 : vector<8x32x32xf32> to vector<256x32xf32>
    %87 = arith.truncf %86 : vector<256x32xf32> to vector<256x32xbf16>
    %c0_26 = arith.constant 0 : index
    %c0_27 = arith.constant 0 : index
    %88 = vector.load %arg4[%c0_26, %c0_27] : memref<32x32xbf16, #tpu.memory_space<vmem>>, vector<32x32xbf16>
    %cst_28 = arith.constant dense<0.000000e+00> : vector<256x32xf32>
    %89 = tpu.matmul %87, %88, %cst_28 {dimension_numbers = #tpu.dot_dimension_numbers<[1], [0], [0], [1], [0, 0, 1, 1], [], []>} : vector<256x32xbf16>, vector<32x32xbf16>, vector<256x32xf32> -> vector<256x32xf32>
    %c0_29 = arith.constant 0 : index
    %c0_30 = arith.constant 0 : index
    %90 = vector.load %arg5[%c0_29, %c0_30] : memref<1x32xf32, #tpu.memory_space<vmem>>, vector<1x32xf32>
    %91 = vector.broadcast %90 : vector<1x32xf32> to vector<256x32xf32>
    %92 = arith.addf %89, %91 : vector<256x32xf32>
    %93 = vector.shape_cast %92 : vector<256x32xf32> to vector<8x32x32xf32>
    %94 = arith.truncf %93 : vector<8x32x32xf32> to vector<8x32x32xbf16>
    %c0_31 = arith.constant 0 : index
    %c0_32 = arith.constant 0 : index
    %c0_33 = arith.constant 0 : index
    %95 = vector.load %arg6[%c0_31, %c0_32, %c0_33] : memref<8x32x32xbf16, #tpu.memory_space<vmem>>, vector<8x32x32xbf16>
    tpu.vector_store %arg6[%c0_31, %c0_32, %c0_33], %94 {strides = array<i32>} : memref<8x32x32xbf16, #tpu.memory_space<vmem>>, vector<8x32x32xbf16>,
    return
  }
  func.func @transform_0(%arg0: i32, %arg1: i32) -> (i32, i32, i32) {
    %c1_i32 = arith.constant 1 : i32
    %0 = arith.muli %arg1, %c1_i32 : i32
    %1 = arith.addi %0, %arg0 : i32
    %c0_i32 = arith.constant 0 : i32
    %c0_i32_0 = arith.constant 0 : i32
    %c0_i32_1 = arith.constant 0 : i32
    return %1, %c0_i32, %c0_i32_0 : i32, i32, i32
  }
  func.func @transform_1(%arg0: i32, %arg1: i32) -> (i32, i32, i32) {
    %c0_i32 = arith.constant 0 : i32
    %c0_i32_0 = arith.constant 0 : i32
    %c0_i32_1 = arith.constant 0 : i32
    %c0_i32_2 = arith.constant 0 : i32
    return %c0_i32, %c0_i32_0, %c0_i32_1 : i32, i32, i32
  }
  func.func @transform_2(%arg0: i32, %arg1: i32) -> (i32, i32) {
    %c0_i32 = arith.constant 0 : i32
    %c0_i32_0 = arith.constant 0 : i32
    %c0_i32_1 = arith.constant 0 : i32
    return %c0_i32, %c0_i32_0 : i32, i32
  }
  func.func @transform_3(%arg0: i32, %arg1: i32) -> (i32, i32) {
    %c0_i32 = arith.constant 0 : i32
    %c0_i32_0 = arith.constant 0 : i32
    %c0_i32_1 = arith.constant 0 : i32
    return %c0_i32, %c0_i32_0 : i32, i32
  }
  func.func @transform_4(%arg0: i32, %arg1: i32) -> (i32, i32, i32) {
    %c1_i32 = arith.constant 1 : i32
    %0 = arith.muli %arg1, %c1_i32 : i32
    %1 = arith.addi %0, %arg0 : i32
    %c0_i32 = arith.constant 0 : i32
    %c0_i32_0 = arith.constant 0 : i32
    %c0_i32_1 = arith.constant 0 : i32
    return %1, %c0_i32, %c0_i32_0 : i32, i32, i32
  }
}

module attributes {stable_mosaic.version = 11 : i64} {
  func.func @_ln_mlp_kernel(%arg0: i32, %arg1: i32, %arg2: memref<256x32xf32, #tpu.memory_space<vmem>>, %arg3: memref<1x32xf32, #tpu.memory_space<vmem>>, %arg4: memref<1x32xf32, #tpu.memory_space<vmem>>, %arg5: memref<32x128xbf16, #tpu.memory_space<vmem>>, %arg6: memref<1x128xf32, #tpu.memory_space<vmem>>, %arg7: memref<128x32xbf16, #tpu.memory_space<vmem>>, %arg8: memref<1x32xf32, #tpu.memory_space<vmem>>, %arg9: memref<256x32xf32, #tpu.memory_space<vmem>>, %arg10: memref<256x32xbf16, #tpu.memory_space<vmem>>, %arg11: memref<256x32xf32, #tpu.memory_space<vmem>>) attributes {dimension_semantics = [#tpu.dimension_semantics<parallel>, #tpu.dimension_semantics<arbitrary>], iteration_bounds = array<i64: 2, 1>, scalar_prefetch = 0 : i64, scratch_operands = 2 : i64, tpu.core_type = #tpu.core_type<tc>, window_params = [{transform_indices = @transform_0, window_bounds = array<i64: 256, 32>}, {pipeline_mode = #tpu.pipeline_mode<synchronous>, transform_indices = @transform_1, window_bounds = array<i64: 1, 32>}, {pipeline_mode = #tpu.pipeline_mode<synchronous>, transform_indices = @transform_2, window_bounds = array<i64: 1, 32>}, {transform_indices = @transform_3, window_bounds = array<i64: 32, 128>}, {transform_indices = @transform_4, window_bounds = array<i64: 1, 128>}, {transform_indices = @transform_5, window_bounds = array<i64: 128, 32>}, {pipeline_mode = #tpu.pipeline_mode<synchronous>, transform_indices = @transform_6, window_bounds = array<i64: 1, 32>}, {transform_indices = @transform_7, window_bounds = array<i64: 256, 32>}]} {
    %c0_i32 = arith.constant 0 : i32
    %0 = arith.cmpi eq, %arg1, %c0_i32 : i32
    %1 = arith.extui %0 : i1 to i32
    %c0_i32_0 = arith.constant 0 : i32
    %2 = arith.cmpi ne, %1, %c0_i32_0 : i32
    scf.if %2 {
      %c0_19 = arith.constant 0 : index
      %c0_20 = arith.constant 0 : index
      %31 = vector.load %arg2[%c0_19, %c0_20] : memref<256x32xf32, #tpu.memory_space<vmem>>, vector<256x32xf32>
      %cst_21 = arith.constant dense<0.000000e+00> : vector<256xf32>
      %32 = vector.multi_reduction <add>, %31, %cst_21 [1] : vector<256x32xf32> to vector<256xf32>
      %33 = vector.shape_cast %32 : vector<256xf32> to vector<256x1xf32>
      %cst_22 = arith.constant 3.200000e+01 : f32
      %34 = vector.broadcast %cst_22 : f32 to vector<256x1xf32>
      %35 = arith.divf %33, %34 : vector<256x1xf32>
      %36 = vector.broadcast %35 : vector<256x1xf32> to vector<256x32xf32>
      %37 = arith.subf %31, %36 : vector<256x32xf32>
      %38 = arith.mulf %37, %37 : vector<256x32xf32>
      %cst_23 = arith.constant dense<0.000000e+00> : vector<256xf32>
      %39 = vector.multi_reduction <add>, %38, %cst_23 [1] : vector<256x32xf32> to vector<256xf32>
      %40 = vector.shape_cast %39 : vector<256xf32> to vector<256x1xf32>
      %cst_24 = arith.constant 3.200000e+01 : f32
      %41 = vector.broadcast %cst_24 : f32 to vector<256x1xf32>
      %42 = arith.divf %40, %41 : vector<256x1xf32>
      %cst_25 = arith.constant 9.99999974E-6 : f32
      %43 = vector.broadcast %cst_25 : f32 to vector<256x1xf32>
      %44 = arith.addf %42, %43 : vector<256x1xf32>
      %45 = math.rsqrt %44 : vector<256x1xf32>
      %46 = vector.broadcast %45 : vector<256x1xf32> to vector<256x32xf32>
      %47 = arith.mulf %37, %46 : vector<256x32xf32>
      %c0_26 = arith.constant 0 : index
      %c0_27 = arith.constant 0 : index
      %48 = vector.load %arg3[%c0_26, %c0_27] : memref<1x32xf32, #tpu.memory_space<vmem>>, vector<1x32xf32>
      %49 = vector.broadcast %48 : vector<1x32xf32> to vector<256x32xf32>
      %50 = arith.mulf %47, %49 : vector<256x32xf32>
      %c0_28 = arith.constant 0 : index
      %c0_29 = arith.constant 0 : index
      %51 = vector.load %arg4[%c0_28, %c0_29] : memref<1x32xf32, #tpu.memory_space<vmem>>, vector<1x32xf32>
      %52 = vector.broadcast %51 : vector<1x32xf32> to vector<256x32xf32>
      %53 = arith.addf %50, %52 : vector<256x32xf32>
      %54 = arith.truncf %53 : vector<256x32xf32> to vector<256x32xbf16>
      %c0_30 = arith.constant 0 : index
      %c0_31 = arith.constant 0 : index
      %55 = vector.load %arg10[%c0_30, %c0_31] : memref<256x32xbf16, #tpu.memory_space<vmem>>, vector<256x32xbf16>
      tpu.vector_store %arg10[%c0_30, %c0_31], %54 {strides = array<i32>} : memref<256x32xbf16, #tpu.memory_space<vmem>>, vector<256x32xbf16>,
      %cst_32 = arith.constant 0.000000e+00 : f32
      %56 = vector.broadcast %cst_32 : f32 to vector<256x32xf32>
      %c0_33 = arith.constant 0 : index
      %c0_34 = arith.constant 0 : index
      %57 = vector.load %arg11[%c0_33, %c0_34] : memref<256x32xf32, #tpu.memory_space<vmem>>, vector<256x32xf32>
      tpu.vector_store %arg11[%c0_33, %c0_34], %56 {strides = array<i32>} : memref<256x32xf32, #tpu.memory_space<vmem>>, vector<256x32xf32>,
    } else {
    }
    %c0 = arith.constant 0 : index
    %c0_1 = arith.constant 0 : index
    %3 = vector.load %arg10[%c0, %c0_1] : memref<256x32xbf16, #tpu.memory_space<vmem>>, vector<256x32xbf16>
    %c0_2 = arith.constant 0 : index
    %c0_3 = arith.constant 0 : index
    %4 = vector.load %arg5[%c0_2, %c0_3] : memref<32x128xbf16, #tpu.memory_space<vmem>>, vector<32x128xbf16>
    %cst = arith.constant dense<0.000000e+00> : vector<256x128xf32>
    %5 = tpu.matmul %3, %4, %cst {dimension_numbers = #tpu.dot_dimension_numbers<[1], [0], [0], [1], [0, 0, 1, 1], [], []>} : vector<256x32xbf16>, vector<32x128xbf16>, vector<256x128xf32> -> vector<256x128xf32>
    %c0_4 = arith.constant 0 : index
    %c0_5 = arith.constant 0 : index
    %6 = vector.load %arg6[%c0_4, %c0_5] : memref<1x128xf32, #tpu.memory_space<vmem>>, vector<1x128xf32>
    %7 = vector.broadcast %6 : vector<1x128xf32> to vector<256x128xf32>
    %8 = arith.addf %5, %7 : vector<256x128xf32>
    %9 = arith.mulf %8, %8 : vector<256x128xf32>
    %10 = arith.mulf %8, %9 : vector<256x128xf32>
    %cst_6 = arith.constant 4.471500e-02 : f32
    %11 = vector.broadcast %cst_6 : f32 to vector<256x128xf32>
    %12 = arith.mulf %11, %10 : vector<256x128xf32>
    %13 = arith.addf %8, %12 : vector<256x128xf32>
    %cst_7 = arith.constant 0.797884583 : f32
    %14 = vector.broadcast %cst_7 : f32 to vector<256x128xf32>
    %15 = arith.mulf %14, %13 : vector<256x128xf32>
    %16 = math.tanh %15 : vector<256x128xf32>
    %cst_8 = arith.constant 1.000000e+00 : f32
    %17 = vector.broadcast %cst_8 : f32 to vector<256x128xf32>
    %18 = arith.addf %17, %16 : vector<256x128xf32>
    %cst_9 = arith.constant 5.000000e-01 : f32
    %19 = vector.broadcast %cst_9 : f32 to vector<256x128xf32>
    %20 = arith.mulf %19, %18 : vector<256x128xf32>
    %21 = arith.mulf %8, %20 : vector<256x128xf32>
    %c0_10 = arith.constant 0 : index
    %c0_11 = arith.constant 0 : index
    %22 = vector.load %arg11[%c0_10, %c0_11] : memref<256x32xf32, #tpu.memory_space<vmem>>, vector<256x32xf32>
    %23 = arith.truncf %21 : vector<256x128xf32> to vector<256x128xbf16>
    %c0_12 = arith.constant 0 : index
    %c0_13 = arith.constant 0 : index
    %24 = vector.load %arg7[%c0_12, %c0_13] : memref<128x32xbf16, #tpu.memory_space<vmem>>, vector<128x32xbf16>
    %cst_14 = arith.constant dense<0.000000e+00> : vector<256x32xf32>
    %25 = tpu.matmul %23, %24, %cst_14 {dimension_numbers = #tpu.dot_dimension_numbers<[1], [0], [0], [1], [0, 0, 1, 1], [], []>} : vector<256x128xbf16>, vector<128x32xbf16>, vector<256x32xf32> -> vector<256x32xf32>
    %26 = arith.addf %22, %25 : vector<256x32xf32>
    %c0_15 = arith.constant 0 : index
    %c0_16 = arith.constant 0 : index
    %27 = vector.load %arg11[%c0_15, %c0_16] : memref<256x32xf32, #tpu.memory_space<vmem>>, vector<256x32xf32>
    tpu.vector_store %arg11[%c0_15, %c0_16], %26 {strides = array<i32>} : memref<256x32xf32, #tpu.memory_space<vmem>>, vector<256x32xf32>,
    %c0_i32_17 = arith.constant 0 : i32
    %28 = arith.cmpi eq, %arg1, %c0_i32_17 : i32
    %29 = arith.extui %28 : i1 to i32
    %c0_i32_18 = arith.constant 0 : i32
    %30 = arith.cmpi ne, %29, %c0_i32_18 : i32
    scf.if %30 {
      %c0_19 = arith.constant 0 : index
      %c0_20 = arith.constant 0 : index
      %31 = vector.load %arg2[%c0_19, %c0_20] : memref<256x32xf32, #tpu.memory_space<vmem>>, vector<256x32xf32>
      %c0_21 = arith.constant 0 : index
      %c0_22 = arith.constant 0 : index
      %32 = vector.load %arg11[%c0_21, %c0_22] : memref<256x32xf32, #tpu.memory_space<vmem>>, vector<256x32xf32>
      %33 = arith.addf %31, %32 : vector<256x32xf32>
      %c0_23 = arith.constant 0 : index
      %c0_24 = arith.constant 0 : index
      %34 = vector.load %arg8[%c0_23, %c0_24] : memref<1x32xf32, #tpu.memory_space<vmem>>, vector<1x32xf32>
      %35 = vector.broadcast %34 : vector<1x32xf32> to vector<256x32xf32>
      %36 = arith.addf %33, %35 : vector<256x32xf32>
      %c0_25 = arith.constant 0 : index
      %c0_26 = arith.constant 0 : index
      %37 = vector.load %arg9[%c0_25, %c0_26] : memref<256x32xf32, #tpu.memory_space<vmem>>, vector<256x32xf32>
      tpu.vector_store %arg9[%c0_25, %c0_26], %36 {strides = array<i32>} : memref<256x32xf32, #tpu.memory_space<vmem>>, vector<256x32xf32>,
    } else {
    }
    return
  }
  func.func @transform_0(%arg0: i32, %arg1: i32) -> (i32, i32) {
    %c0_i32 = arith.constant 0 : i32
    %c0_i32_0 = arith.constant 0 : i32
    return %arg0, %c0_i32 : i32, i32
  }
  func.func @transform_1(%arg0: i32, %arg1: i32) -> (i32, i32) {
    %c0_i32 = arith.constant 0 : i32
    %c0_i32_0 = arith.constant 0 : i32
    %c0_i32_1 = arith.constant 0 : i32
    return %c0_i32, %c0_i32_0 : i32, i32
  }
  func.func @transform_2(%arg0: i32, %arg1: i32) -> (i32, i32) {
    %c0_i32 = arith.constant 0 : i32
    %c0_i32_0 = arith.constant 0 : i32
    %c0_i32_1 = arith.constant 0 : i32
    return %c0_i32, %c0_i32_0 : i32, i32
  }
  func.func @transform_3(%arg0: i32, %arg1: i32) -> (i32, i32) {
    %c0_i32 = arith.constant 0 : i32
    %c0_i32_0 = arith.constant 0 : i32
    return %c0_i32, %arg1 : i32, i32
  }
  func.func @transform_4(%arg0: i32, %arg1: i32) -> (i32, i32) {
    %c0_i32 = arith.constant 0 : i32
    %c0_i32_0 = arith.constant 0 : i32
    return %c0_i32, %arg1 : i32, i32
  }
  func.func @transform_5(%arg0: i32, %arg1: i32) -> (i32, i32) {
    %c0_i32 = arith.constant 0 : i32
    %c0_i32_0 = arith.constant 0 : i32
    return %arg1, %c0_i32 : i32, i32
  }
  func.func @transform_6(%arg0: i32, %arg1: i32) -> (i32, i32) {
    %c0_i32 = arith.constant 0 : i32
    %c0_i32_0 = arith.constant 0 : i32
    %c0_i32_1 = arith.constant 0 : i32
    return %c0_i32, %c0_i32_0 : i32, i32
  }
  func.func @transform_7(%arg0: i32, %arg1: i32) -> (i32, i32) {
    %c0_i32 = arith.constant 0 : i32
    %c0_i32_0 = arith.constant 0 : i32
    return %arg0, %c0_i32 : i32, i32
  }
}

</mosaic_0001>

<llo_original>
// kernel: mul.9
$region0: #{mul.9}
  #allocation0 [shape = 's32[1]{0}', space=sflag, size = 0x4, scoped, tag = 'scoped memory for mul.9']
  %s0 = inlined_call_operand.vmem [shape: f32[96], index: 0, kind: input, shape index: {}]
  %s1 = inlined_call_operand.vmem [shape: f32[96], index: 1, kind: input, shape index: {}]
  %s2 = inlined_call_operand.vmem [shape: f32[96], index: 2, kind: output, shape index: {}]
  %v3 = vld [vmem:[%s0] sm:$0x1]
  %v4 = vld [vmem:[%s1] sm:$0x1]
  %5 = xla_tuple %v3, %v4
  %6 = xla_tuple %5
  %v7 = vmul.f32 %v3, %v4
  %8 = xla_tuple %v7
  %9 = vst [vmem:[%s2] sm:$0x1] %v7

// kernel: swin_block_forward.4
$region0: #{swin_block_forward.4}
  #allocation0 [shape = 'u32[]', space=smem, size = 0x4, offset = 0x4, fixed_abs, tag = 'smem constant byte address 0x4 - core index']
  #allocation1 [shape = 'u32[144,128]{1,0:T(1,128)}', space=vmem, size = 0x12000, scoped, tag = 'internal scratch']
  %s0 = inlined_call_operand.vmem [shape: f32[512,32], index: 0, kind: input, shape index: {}]
  %s1 = inlined_call_operand.vmem [shape: f32[1,32], index: 1, kind: input, shape index: {}]
  %s2 = inlined_call_operand.vmem [shape: f32[1,32], index: 2, kind: input, shape index: {}]
  %s3 = inlined_call_operand.vmem [shape: bf16[512,32], index: 3, kind: output, shape index: {}]
  %s4 = sld [smem:[#allocation0]]
  $region45: #{swin_block_forward.4} parent=0
    _
  %s6 = ssub.s32 1, %s4
  %s7 = scalar_select 0, %s6, %s4
  loop: start=0, step=1, limit=4
  $region2: #{swin_block_forward.4} parent=0 // loop_pre_header
    _
  $region3: #{swin_block_forward.4} parent=0 // loop_header
    %s9 = sphi 0, %s13
    %p10 = scmp.ge.s32.totalorder %s9, 4
    %s19 = sphi 0, %s21
    %s22 = sphi 0, %s19
    %s23 = sphi 0, %s22
    %s39 = sphi 0, %s23
    %s43 = sphi 0, %s43
    %s45 = sphi 0, %s43
    %s46 = sphi 0, %s45
    %s60 = sphi 0, %s46
    %s64 = sphi 0, %s64
    %s66 = sphi 0, %s64
    %s67 = sphi 0, %s66
    %s81 = sphi 0, %s67
    %s87 = sphi 0, %s89
    %s90 = sphi 0, %s87
    %s91 = sphi 0, %s90
    %s107 = sphi 0, %s91
  $region4: #{swin_block_forward.4} parent=0 // loop_header_branch
    %12 = sbr.rel (%p10) target = $region8
  $region5: #{swin_block_forward.4} parent=0 // loop_body
    %s14 = ssub.s32 %s9, 1
    %s15 = ssub.s32 %s9, 2
    %s16 = sadd.s32 %s9, 1
    %s17 = ssub.s32 %s9, %s16
    %p18 = scmp.eq.s32.totalorder %s17, 0
    %s20 = sadd.s32 %s19, 1
    %s21 = scalar_select %p18, %s19, %s20
    %p24 = pneg %p18
    %p25 = scmp.eq.s32.totalorder %s9, 1
    %p26 = por %p24, %p25
    %p27 = scmp.ne.s32.totalorder %s19, %s22
    %p28 = scmp.eq.s32.totalorder %s9, 0
    %p29 = por %p27, %p28
    %p30 = scmp.ne.s32.totalorder %s19, %s22
    %p31 = scmp.eq.s32.totalorder %s14, 1
    %p32 = por %p30, %p31
    %p33 = scmp.ne.s32.totalorder %s22, %s23
    %p34 = scmp.eq.s32.totalorder %s14, 0
    %p35 = por %p33, %p34
    %p36 = scmp.ne.s32.totalorder %s22, %s23
    %p37 = scmp.eq.s32.totalorder %s15, 1
    %p38 = por %p36, %p37
    %p40 = scmp.ne.s32.totalorder %s23, %s39
    %p41 = scmp.eq.s32.totalorder %s15, 0
    %p42 = por %p40, %p41
    %s44 = sadd.s32 %s43, 1
    %p47 = scmp.eq.s32.totalorder %s9, 1
    %p48 = scmp.ne.s32.totalorder %s43, %s45
    %p49 = scmp.eq.s32.totalorder %s9, 0
    %p50 = por %p48, %p49
    %p51 = scmp.ne.s32.totalorder %s43, %s45
    %p52 = scmp.eq.s32.totalorder %s14, 1
    %p53 = por %p51, %p52
    %p54 = scmp.ne.s32.totalorder %s45, %s46
    %p55 = scmp.eq.s32.totalorder %s14, 0
    %p56 = por %p54, %p55
    %p57 = scmp.ne.s32.totalorder %s45, %s46
    %p58 = scmp.eq.s32.totalorder %s15, 1
    %p59 = por %p57, %p58
    %p61 = scmp.ne.s32.totalorder %s46, %s60
    %p62 = scmp.eq.s32.totalorder %s15, 0
    %p63 = por %p61, %p62
    %s65 = sadd.s32 %s64, 1
    %p68 = scmp.eq.s32.totalorder %s9, 1
    %p69 = scmp.ne.s32.totalorder %s64, %s66
    %p70 = scmp.eq.s32.totalorder %s9, 0
    %p71 = por %p69, %p70
    %p72 = scmp.ne.s32.totalorder %s64, %s66
    %p73 = scmp.eq.s32.totalorder %s14, 1
    %p74 = por %p72, %p73
    %p75 = scmp.ne.s32.totalorder %s66, %s67
    %p76 = scmp.eq.s32.totalorder %s14, 0
    %p77 = por %p75, %p76
    %p78 = scmp.ne.s32.totalorder %s66, %s67
    %p79 = scmp.eq.s32.totalorder %s15, 1
    %p80 = por %p78, %p79
    %p82 = scmp.ne.s32.totalorder %s67, %s81
    %p83 = scmp.eq.s32.totalorder %s15, 0
    %p84 = por %p82, %p83
    %s85 = ssub.s32 %s9, %s16
    %p86 = scmp.eq.s32.totalorder %s85, 0
    %s88 = sadd.s32 %s87, 1
    %s89 = scalar_select %p86, %s87, %s88
    %p92 = pneg %p86
    %p93 = scmp.eq.s32.totalorder %s9, 1
    %p94 = por %p92, %p93
    %p95 = scmp.ne.s32.totalorder %s87, %s90
    %p96 = scmp.eq.s32.totalorder %s9, 0
    %p97 = por %p95, %p96
    %p98 = scmp.ne.s32.totalorder %s87, %s90
    %p99 = scmp.eq.s32.totalorder %s14, 1
    %p100 = por %p98, %p99
    %p101 = scmp.ne.s32.totalorder %s90, %s91
    %p102 = scmp.eq.s32.totalorder %s14, 0
    %p103 = por %p101, %p102
    %p104 = scmp.ne.s32.totalorder %s90, %s91
    %p105 = scmp.eq.s32.totalorder %s15, 1
    %p106 = por %p104, %p105
    %p108 = scmp.ne.s32.totalorder %s91, %s107
    %p109 = scmp.eq.s32.totalorder %s15, 0
    %p110 = por %p108, %p109
    %p111 = scmp.le.s32.totalorder 1, %s9
    %p112 = scmp.lt.s32.totalorder %s9, 3
    %p113 = pnand %p111, %p112
    %p114 = pneg %p113
    // Predicated region
    $region9: #{swin_block_forward.4} parent=5 // pred_check
      _
    $region10: #{swin_block_forward.4} parent=5 // pred_check_branch
      %116 = sbr.rel (%p113) target = $region12
    $region11: #{swin_block_forward.4} parent=5 // pred_region
      %s117 = ssub.s32 %s9, 1
      // Predicated region
      $region13: #{swin_block_forward.4} parent=11 // pred_check
        %p118 = pneg %p56
      $region14: #{swin_block_forward.4} parent=11 // pred_check_branch
        %120 = sbr.rel (%p118) target = $region16
      $region15: #{swin_block_forward.4} parent=11 // pred_region
        _
      $region16: #{swin_block_forward.4} parent=11 // pred_fallthru
        _
      // Predicated region
      $region17: #{swin_block_forward.4} parent=11 // pred_check
        %p121 = pneg %p77
      $region18: #{swin_block_forward.4} parent=11 // pred_check_branch
        %123 = sbr.rel (%p121) target = $region20
      $region19: #{swin_block_forward.4} parent=11 // pred_region
        _
      $region20: #{swin_block_forward.4} parent=11 // pred_fallthru
        _
    $region12: #{swin_block_forward.4} parent=5 // pred_fallthru
      _
    %p124 = scmp.lt.s32.totalorder %s9, 2
    // Predicated region
    $region21: #{swin_block_forward.4} parent=5 // pred_check
      %p125 = pneg %p124
    $region22: #{swin_block_forward.4} parent=5 // pred_check_branch
      %127 = sbr.rel (%p125) target = $region24
    $region23: #{swin_block_forward.4} parent=5 // pred_region
      // Predicated region
      $region25: #{swin_block_forward.4} parent=23 // pred_check
        %p128 = pneg %p29
      $region26: #{swin_block_forward.4} parent=23 // pred_check_branch
        %130 = sbr.rel (%p128) target = $region28
      $region27: #{swin_block_forward.4} parent=23 // pred_region
        %s131 = smul.u32 32, %s9
        %p132 = scmp.lt.s32.totalorder %s131, 63
        %s133 = scalar_select %p132, %s131, 63
        %s134 = smul.addr %s133, 8
        %s135 = scalar_lea.vmem %s0, %s134
        %s136 = smul.u32 32, %s9
      $region28: #{swin_block_forward.4} parent=23 // pred_fallthru
        _
    $region24: #{swin_block_forward.4} parent=5 // pred_fallthru
      _
    %p137 = scmp.le.s32.totalorder 1, %s9
    %p138 = scmp.lt.s32.totalorder %s9, 3
    %p139 = pnand %p137, %p138
    %p140 = pneg %p139
    // Predicated region
    $region29: #{swin_block_forward.4} parent=5 // pred_check
      _
    $region30: #{swin_block_forward.4} parent=5 // pred_check_branch
      %142 = sbr.rel (%p139) target = $region32
    $region31: #{swin_block_forward.4} parent=5 // pred_region
      %s143 = ssub.s32 %s9, 1
      %s144 = smul.u32 32, %s14
      %p145 = scmp.lt.s32.totalorder %s144, 63
      %s146 = scalar_select %p145, %s144, 63
      %s147 = smul.addr %s146, 8
      %s148 = scalar_lea.vmem %s0, %s147
      %p149 = pneg %p35
      %p150 = pneg %p32
      %p151 = pneg %p56
      %p152 = pneg %p53
      %p153 = pneg %p77
      %p154 = pneg %p74
      %p155 = pneg %p103
      %p156 = pneg %p100
      %s157 = smul.u32 32, %s14
      %p158 = scmp.lt.s32.totalorder %s157, 63
      %s159 = scalar_select %p158, %s157, 63
      %s160 = smul.addr %s159, 4
      %s161 = scalar_lea.vmem %s3, %s160
      %s162 = smul.u32 32, %s14
      %p163 = scmp.lt.s32.totalorder %s162, 63
      %s164 = scalar_select %p163, %s162, 63
      %s165 = smul.addr %s164, 8
      %s166 = scalar_lea.vmem %s0, %s165
      %s167 = smul.u32 32, %s14
      %s168 = smul.u32 32, %s14
      %p169 = scmp.lt.s32.totalorder %s168, 63
      %s170 = scalar_select %p169, %s168, 63
      %s171 = smul.addr %s170, 4
      %s172 = scalar_lea.vmem %s3, %s171
      %s173 = smul.u32 32, %s14
      %v174 = vld [vmem:[%s166] sm:$0xff]
      %v175 = vld [vmem:[%s166 + $0x8] sm:$0xff]
      %v176 = vld [vmem:[%s166 + $0x10] sm:$0xff]
      %v177 = vld [vmem:[%s166 + $0x18] sm:$0xff]
      %v178 = vld [vmem:[%s166 + $0x20] sm:$0xff]
      %v179 = vld [vmem:[%s166 + $0x28] sm:$0xff]
      %v180 = vld [vmem:[%s166 + $0x30] sm:$0xff]
      %v181 = vld [vmem:[%s166 + $0x38] sm:$0xff]
      %v182 = vld [vmem:[%s166 + $0x40] sm:$0xff]
      %v183 = vld [vmem:[%s166 + $0x48] sm:$0xff]
      %v184 = vld [vmem:[%s166 + $0x50] sm:$0xff]
      %v185 = vld [vmem:[%s166 + $0x58] sm:$0xff]
      %v186 = vld [vmem:[%s166 + $0x60] sm:$0xff]
      %v187 = vld [vmem:[%s166 + $0x68] sm:$0xff]
      %v188 = vld [vmem:[%s166 + $0x70] sm:$0xff]
      %v189 = vld [vmem:[%s166 + $0x78] sm:$0xff]
      %v190 = vld [vmem:[%s166 + $0x80] sm:$0xff]
      %v191 = vld [vmem:[%s166 + $0x88] sm:$0xff]
      %v192 = vld [vmem:[%s166 + $0x90] sm:$0xff]
      %v193 = vld [vmem:[%s166 + $0x98] sm:$0xff]
      %v194 = vld [vmem:[%s166 + $0xa0] sm:$0xff]
      %v195 = vld [vmem:[%s166 + $0xa8] sm:$0xff]
      %v196 = vld [vmem:[%s166 + $0xb0] sm:$0xff]
      %v197 = vld [vmem:[%s166 + $0xb8] sm:$0xff]
      %v198 = vld [vmem:[%s166 + $0xc0] sm:$0xff]
      %v199 = vld [vmem:[%s166 + $0xc8] sm:$0xff]
      %v200 = vld [vmem:[%s166 + $0xd0] sm:$0xff]
      %v201 = vld [vmem:[%s166 + $0xd8] sm:$0xff]
      %v202 = vld [vmem:[%s166 + $0xe0] sm:$0xff]
      %v203 = vld [vmem:[%s166 + $0xe8] sm:$0xff]
      %v204 = vld [vmem:[%s166 + $0xf0] sm:$0xff]
      %v205 = vld [vmem:[%s166 + $0xf8] sm:$0xff]
      %vm206 = vcmask 261120
      %v207 = vsel %vm206, %v174, 0.0
      %208 = vadd.xlane.f32.xlu0 %v207
      %v209 = vpop.xlane.xlu0 %208
      %v210 = vsel %vm206, %v175, 0.0
      %211 = vadd.xlane.f32.xlu0 %v210
      %v212 = vpop.xlane.xlu0 %211
      %v213 = vsel %vm206, %v176, 0.0
      %214 = vadd.xlane.f32.xlu0 %v213
      %v215 = vpop.xlane.xlu0 %214
      %v216 = vsel %vm206, %v177, 0.0
      %217 = vadd.xlane.f32.xlu0 %v216
      %v218 = vpop.xlane.xlu0 %217
      %v219 = vsel %vm206, %v178, 0.0
      %220 = vadd.xlane.f32.xlu0 %v219
      %v221 = vpop.xlane.xlu0 %220
      %v222 = vsel %vm206, %v179, 0.0
      %223 = vadd.xlane.f32.xlu0 %v222
      %v224 = vpop.xlane.xlu0 %223
      %v225 = vsel %vm206, %v180, 0.0
      %226 = vadd.xlane.f32.xlu0 %v225
      %v227 = vpop.xlane.xlu0 %226
      %v228 = vsel %vm206, %v181, 0.0
      %229 = vadd.xlane.f32.xlu0 %v228
      %v230 = vpop.xlane.xlu0 %229
      %v231 = vsel %vm206, %v182, 0.0
      %232 = vadd.xlane.f32.xlu0 %v231
      %v233 = vpop.xlane.xlu0 %232
      %v234 = vsel %vm206, %v183, 0.0
      %235 = vadd.xlane.f32.xlu0 %v234
      %v236 = vpop.xlane.xlu0 %235
      %v237 = vsel %vm206, %v184, 0.0
      %238 = vadd.xlane.f32.xlu0 %v237
      %v239 = vpop.xlane.xlu0 %238
      %v240 = vsel %vm206, %v185, 0.0
      %241 = vadd.xlane.f32.xlu0 %v240
      %v242 = vpop.xlane.xlu0 %241
      %v243 = vsel %vm206, %v186, 0.0
      %244 = vadd.xlane.f32.xlu0 %v243
      %v245 = vpop.xlane.xlu0 %244
      %v246 = vsel %vm206, %v187, 0.0
      %247 = vadd.xlane.f32.xlu0 %v246
      %v248 = vpop.xlane.xlu0 %247
      %v249 = vsel %vm206, %v188, 0.0
      %250 = vadd.xlane.f32.xlu0 %v249
      %v251 = vpop.xlane.xlu0 %250
      %v252 = vsel %vm206, %v189, 0.0
      %253 = vadd.xlane.f32.xlu0 %v252
      %v254 = vpop.xlane.xlu0 %253
      %v255 = vsel %vm206, %v190, 0.0
      %256 = vadd.xlane.f32.xlu0 %v255
      %v257 = vpop.xlane.xlu0 %256
      %v258 = vsel %vm206, %v191, 0.0
      %259 = vadd.xlane.f32.xlu0 %v258
      %v260 = vpop.xlane.xlu0 %259
      %v261 = vsel %vm206, %v192, 0.0
      %262 = vadd.xlane.f32.xlu0 %v261
      %v263 = vpop.xlane.xlu0 %262
      %v264 = vsel %vm206, %v193, 0.0
      %265 = vadd.xlane.f32.xlu0 %v264
      %v266 = vpop.xlane.xlu0 %265
      %v267 = vsel %vm206, %v194, 0.0
      %268 = vadd.xlane.f32.xlu0 %v267
      %v269 = vpop.xlane.xlu0 %268
      %v270 = vsel %vm206, %v195, 0.0
      %271 = vadd.xlane.f32.xlu0 %v270
      %v272 = vpop.xlane.xlu0 %271
      %v273 = vsel %vm206, %v196, 0.0
      %274 = vadd.xlane.f32.xlu0 %v273
      %v275 = vpop.xlane.xlu0 %274
      %v276 = vsel %vm206, %v197, 0.0
      %277 = vadd.xlane.f32.xlu0 %v276
      %v278 = vpop.xlane.xlu0 %277
      %v279 = vsel %vm206, %v198, 0.0
      %280 = vadd.xlane.f32.xlu0 %v279
      %v281 = vpop.xlane.xlu0 %280
      %v282 = vsel %vm206, %v199, 0.0
      %283 = vadd.xlane.f32.xlu0 %v282
      %v284 = vpop.xlane.xlu0 %283
      %v285 = vsel %vm206, %v200, 0.0
      %286 = vadd.xlane.f32.xlu0 %v285
      %v287 = vpop.xlane.xlu0 %286
      %v288 = vsel %vm206, %v201, 0.0
      %289 = vadd.xlane.f32.xlu0 %v288
      %v290 = vpop.xlane.xlu0 %289
      %v291 = vsel %vm206, %v202, 0.0
      %292 = vadd.xlane.f32.xlu0 %v291
      %v293 = vpop.xlane.xlu0 %292
      %v294 = vsel %vm206, %v203, 0.0
      %295 = vadd.xlane.f32.xlu0 %v294
      %v296 = vpop.xlane.xlu0 %295
      %v297 = vsel %vm206, %v204, 0.0
      %298 = vadd.xlane.f32.xlu0 %v297
      %v299 = vpop.xlane.xlu0 %298
      %v300 = vsel %vm206, %v205, 0.0
      %301 = vadd.xlane.f32.xlu0 %v300
      %v302 = vpop.xlane.xlu0 %301
      %v303 = vrcp.pop 32.0
      %v304 = vmul.f32 %v209, %v303
      %v305 = vmul.f32 %v212, %v303
      %v306 = vmul.f32 %v215, %v303
      %v307 = vmul.f32 %v218, %v303
      %v308 = vmul.f32 %v221, %v303
      %v309 = vmul.f32 %v224, %v303
      %v310 = vmul.f32 %v227, %v303
      %v311 = vmul.f32 %v230, %v303
      %v312 = vmul.f32 %v233, %v303
      %v313 = vmul.f32 %v236, %v303
      %v314 = vmul.f32 %v239, %v303
      %v315 = vmul.f32 %v242, %v303
      %v316 = vmul.f32 %v245, %v303
      %v317 = vmul.f32 %v248, %v303
      %v318 = vmul.f32 %v251, %v303
      %v319 = vmul.f32 %v254, %v303
      %v320 = vmul.f32 %v257, %v303
      %v321 = vmul.f32 %v260, %v303
      %v322 = vmul.f32 %v263, %v303
      %v323 = vmul.f32 %v266, %v303
      %v324 = vmul.f32 %v269, %v303
      %v325 = vmul.f32 %v272, %v303
      %v326 = vmul.f32 %v275, %v303
      %v327 = vmul.f32 %v278, %v303
      %v328 = vmul.f32 %v281, %v303
      %v329 = vmul.f32 %v284, %v303
      %v330 = vmul.f32 %v287, %v303
      %v331 = vmul.f32 %v290, %v303
      %v332 = vmul.f32 %v293, %v303
      %v333 = vmul.f32 %v296, %v303
      %v334 = vmul.f32 %v299, %v303
      %v335 = vmul.f32 %v302, %v303
      %v336 = vsub.f32 %v174, %v304
      %v337 = vsub.f32 %v175, %v305
      %v338 = vsub.f32 %v176, %v306
      %v339 = vsub.f32 %v177, %v307
      %v340 = vsub.f32 %v178, %v308
      %v341 = vsub.f32 %v179, %v309
      %v342 = vsub.f32 %v180, %v310
      %v343 = vsub.f32 %v181, %v311
      %v344 = vsub.f32 %v182, %v312
      %v345 = vsub.f32 %v183, %v313
      %v346 = vsub.f32 %v184, %v314
      %v347 = vsub.f32 %v185, %v315
      %v348 = vsub.f32 %v186, %v316
      %v349 = vsub.f32 %v187, %v317
      %v350 = vsub.f32 %v188, %v318
      %v351 = vsub.f32 %v189, %v319
      %v352 = vsub.f32 %v190, %v320
      %v353 = vsub.f32 %v191, %v321
      %v354 = vsub.f32 %v192, %v322
      %v355 = vsub.f32 %v193, %v323
      %v356 = vsub.f32 %v194, %v324
      %v357 = vsub.f32 %v195, %v325
      %v358 = vsub.f32 %v196, %v326
      %v359 = vsub.f32 %v197, %v327
      %v360 = vsub.f32 %v198, %v328
      %v361 = vsub.f32 %v199, %v329
      %v362 = vsub.f32 %v200, %v330
      %v363 = vsub.f32 %v201, %v331
      %v364 = vsub.f32 %v202, %v332
      %v365 = vsub.f32 %v203, %v333
      %v366 = vsub.f32 %v204, %v334
      %v367 = vsub.f32 %v205, %v335
      %v368 = vmul.f32 %v336, %v336
      %v369 = vmul.f32 %v337, %v337
      %v370 = vmul.f32 %v338, %v338
      %v371 = vmul.f32 %v339, %v339
      %v372 = vmul.f32 %v340, %v340
      %v373 = vmul.f32 %v341, %v341
      %v374 = vmul.f32 %v342, %v342
      %v375 = vmul.f32 %v343, %v343
      %v376 = vmul.f32 %v344, %v344
      %v377 = vmul.f32 %v345, %v345
      %v378 = vmul.f32 %v346, %v346
      %v379 = vmul.f32 %v347, %v347
      %v380 = vmul.f32 %v348, %v348
      %v381 = vmul.f32 %v349, %v349
      %v382 = vmul.f32 %v350, %v350
      %v383 = vmul.f32 %v351, %v351
      %v384 = vmul.f32 %v352, %v352
      %v385 = vmul.f32 %v353, %v353
      %v386 = vmul.f32 %v354, %v354
      %v387 = vmul.f32 %v355, %v355
      %v388 = vmul.f32 %v356, %v356
      %v389 = vmul.f32 %v357, %v357
      %v390 = vmul.f32 %v358, %v358
      %v391 = vmul.f32 %v359, %v359
      %v392 = vmul.f32 %v360, %v360
      %v393 = vmul.f32 %v361, %v361
      %v394 = vmul.f32 %v362, %v362
      %v395 = vmul.f32 %v363, %v363
      %v396 = vmul.f32 %v364, %v364
      %v397 = vmul.f32 %v365, %v365
      %v398 = vmul.f32 %v366, %v366
      %v399 = vmul.f32 %v367, %v367
      %v400 = vsel %vm206, %v368, 0.0
      %401 = vadd.xlane.f32.xlu0 %v400
      %v402 = vpop.xlane.xlu0 %401
      %v403 = vsel %vm206, %v369, 0.0
      %404 = vadd.xlane.f32.xlu0 %v403
      %v405 = vpop.xlane.xlu0 %404
      %v406 = vsel %vm206, %v370, 0.0
      %407 = vadd.xlane.f32.xlu0 %v406
      %v408 = vpop.xlane.xlu0 %407
      %v409 = vsel %vm206, %v371, 0.0
      %410 = vadd.xlane.f32.xlu0 %v409
      %v411 = vpop.xlane.xlu0 %410
      %v412 = vsel %vm206, %v372, 0.0
      %413 = vadd.xlane.f32.xlu0 %v412
      %v414 = vpop.xlane.xlu0 %413
      %v415 = vsel %vm206, %v373, 0.0
      %416 = vadd.xlane.f32.xlu0 %v415
      %v417 = vpop.xlane.xlu0 %416
      %v418 = vsel %vm206, %v374, 0.0
      %419 = vadd.xlane.f32.xlu0 %v418
      %v420 = vpop.xlane.xlu0 %419
      %v421 = vsel %vm206, %v375, 0.0
      %422 = vadd.xlane.f32.xlu0 %v421
      %v423 = vpop.xlane.xlu0 %422
      %v424 = vsel %vm206, %v376, 0.0
      %425 = vadd.xlane.f32.xlu0 %v424
      %v426 = vpop.xlane.xlu0 %425
      %v427 = vsel %vm206, %v377, 0.0
      %428 = vadd.xlane.f32.xlu0 %v427
      %v429 = vpop.xlane.xlu0 %428
      %v430 = vsel %vm206, %v378, 0.0
      %431 = vadd.xlane.f32.xlu0 %v430
      %v432 = vpop.xlane.xlu0 %431
      %v433 = vsel %vm206, %v379, 0.0
      %434 = vadd.xlane.f32.xlu0 %v433
      %v435 = vpop.xlane.xlu0 %434
      %v436 = vsel %vm206, %v380, 0.0
      %437 = vadd.xlane.f32.xlu0 %v436
      %v438 = vpop.xlane.xlu0 %437
      %v439 = vsel %vm206, %v381, 0.0
      %440 = vadd.xlane.f32.xlu0 %v439
      %v441 = vpop.xlane.xlu0 %440
      %v442 = vsel %vm206, %v382, 0.0
      %443 = vadd.xlane.f32.xlu0 %v442
      %v444 = vpop.xlane.xlu0 %443
      %v445 = vsel %vm206, %v383, 0.0
      %446 = vadd.xlane.f32.xlu0 %v445
      %v447 = vpop.xlane.xlu0 %446
      %v448 = vsel %vm206, %v384, 0.0
      %449 = vadd.xlane.f32.xlu0 %v448
      %v450 = vpop.xlane.xlu0 %449
      %v451 = vsel %vm206, %v385, 0.0
      %452 = vadd.xlane.f32.xlu0 %v451
      %v453 = vpop.xlane.xlu0 %452
      %v454 = vsel %vm206, %v386, 0.0
      %455 = vadd.xlane.f32.xlu0 %v454
      %v456 = vpop.xlane.xlu0 %455
      %v457 = vsel %vm206, %v387, 0.0
      %458 = vadd.xlane.f32.xlu0 %v457
      %v459 = vpop.xlane.xlu0 %458
      %v460 = vsel %vm206, %v388, 0.0
      %461 = vadd.xlane.f32.xlu0 %v460
      %v462 = vpop.xlane.xlu0 %461
      %v463 = vsel %vm206, %v389, 0.0
      %464 = vadd.xlane.f32.xlu0 %v463
      %v465 = vpop.xlane.xlu0 %464
      %v466 = vsel %vm206, %v390, 0.0
      %467 = vadd.xlane.f32.xlu0 %v466
      %v468 = vpop.xlane.xlu0 %467
      %v469 = vsel %vm206, %v391, 0.0
      %470 = vadd.xlane.f32.xlu0 %v469
      %v471 = vpop.xlane.xlu0 %470
      %v472 = vsel %vm206, %v392, 0.0
      %473 = vadd.xlane.f32.xlu0 %v472
      %v474 = vpop.xlane.xlu0 %473
      %v475 = vsel %vm206, %v393, 0.0
      %476 = vadd.xlane.f32.xlu0 %v475
      %v477 = vpop.xlane.xlu0 %476
      %v478 = vsel %vm206, %v394, 0.0
      %479 = vadd.xlane.f32.xlu0 %v478
      %v480 = vpop.xlane.xlu0 %479
      %v481 = vsel %vm206, %v395, 0.0
      %482 = vadd.xlane.f32.xlu0 %v481
      %v483 = vpop.xlane.xlu0 %482
      %v484 = vsel %vm206, %v396, 0.0
      %485 = vadd.xlane.f32.xlu0 %v484
      %v486 = vpop.xlane.xlu0 %485
      %v487 = vsel %vm206, %v397, 0.0
      %488 = vadd.xlane.f32.xlu0 %v487
      %v489 = vpop.xlane.xlu0 %488
      %v490 = vsel %vm206, %v398, 0.0
      %491 = vadd.xlane.f32.xlu0 %v490
      %v492 = vpop.xlane.xlu0 %491
      %v493 = vsel %vm206, %v399, 0.0
      %494 = vadd.xlane.f32.xlu0 %v493
      %v495 = vpop.xlane.xlu0 %494
      %v496 = vmul.f32 %v402, %v303
      %v497 = vmul.f32 %v405, %v303
      %v498 = vmul.f32 %v408, %v303
      %v499 = vmul.f32 %v411, %v303
      %v500 = vmul.f32 %v414, %v303
      %v501 = vmul.f32 %v417, %v303
      %v502 = vmul.f32 %v420, %v303
      %v503 = vmul.f32 %v423, %v303
      %v504 = vmul.f32 %v426, %v303
      %v505 = vmul.f32 %v429, %v303
      %v506 = vmul.f32 %v432, %v303
      %v507 = vmul.f32 %v435, %v303
      %v508 = vmul.f32 %v438, %v303
      %v509 = vmul.f32 %v441, %v303
      %v510 = vmul.f32 %v444, %v303
      %v511 = vmul.f32 %v447, %v303
      %v512 = vmul.f32 %v450, %v303
      %v513 = vmul.f32 %v453, %v303
      %v514 = vmul.f32 %v456, %v303
      %v515 = vmul.f32 %v459, %v303
      %v516 = vmul.f32 %v462, %v303
      %v517 = vmul.f32 %v465, %v303
      %v518 = vmul.f32 %v468, %v303
      %v519 = vmul.f32 %v471, %v303
      %v520 = vmul.f32 %v474, %v303
      %v521 = vmul.f32 %v477, %v303
      %v522 = vmul.f32 %v480, %v303
      %v523 = vmul.f32 %v483, %v303
      %v524 = vmul.f32 %v486, %v303
      %v525 = vmul.f32 %v489, %v303
      %v526 = vmul.f32 %v492, %v303
      %v527 = vmul.f32 %v495, %v303
      %v528 = vadd.f32 %v496, 1e-05
      %v529 = vadd.f32 %v497, 1e-05
      %v530 = vadd.f32 %v498, 1e-05
      %v531 = vadd.f32 %v499, 1e-05
      %v532 = vadd.f32 %v500, 1e-05
      %v533 = vadd.f32 %v501, 1e-05
      %v534 = vadd.f32 %v502, 1e-05
      %v535 = vadd.f32 %v503, 1e-05
      %v536 = vadd.f32 %v504, 1e-05
      %v537 = vadd.f32 %v505, 1e-05
      %v538 = vadd.f32 %v506, 1e-05
      %v539 = vadd.f32 %v507, 1e-05
      %v540 = vadd.f32 %v508, 1e-05
      %v541 = vadd.f32 %v509, 1e-05
      %v542 = vadd.f32 %v510, 1e-05
      %v543 = vadd.f32 %v511, 1e-05
      %v544 = vadd.f32 %v512, 1e-05
      %v545 = vadd.f32 %v513, 1e-05
      %v546 = vadd.f32 %v514, 1e-05
      %v547 = vadd.f32 %v515, 1e-05
      %v548 = vadd.f32 %v516, 1e-05
      %v549 = vadd.f32 %v517, 1e-05
      %v550 = vadd.f32 %v518, 1e-05
      %v551 = vadd.f32 %v519, 1e-05
      %v552 = vadd.f32 %v520, 1e-05
      %v553 = vadd.f32 %v521, 1e-05
      %v554 = vadd.f32 %v522, 1e-05
      %v555 = vadd.f32 %v523, 1e-05
      %v556 = vadd.f32 %v524, 1e-05
      %v557 = vadd.f32 %v525, 1e-05
      %v558 = vadd.f32 %v526, 1e-05
      %v559 = vadd.f32 %v527, 1e-05
      %v560 = vrsqrt.pop %v528
      %v561 = vrsqrt.pop %v529
      %v562 = vrsqrt.pop %v530
      %v563 = vrsqrt.pop %v531
      %v564 = vrsqrt.pop %v532
      %v565 = vrsqrt.pop %v533
      %v566 = vrsqrt.pop %v534
      %v567 = vrsqrt.pop %v535
      %v568 = vrsqrt.pop %v536
      %v569 = vrsqrt.pop %v537
      %v570 = vrsqrt.pop %v538
      %v571 = vrsqrt.pop %v539
      %v572 = vrsqrt.pop %v540
      %v573 = vrsqrt.pop %v541
      %v574 = vrsqrt.pop %v542
      %v575 = vrsqrt.pop %v543
      %v576 = vrsqrt.pop %v544
      %v577 = vrsqrt.pop %v545
      %v578 = vrsqrt.pop %v546
      %v579 = vrsqrt.pop %v547
      %v580 = vrsqrt.pop %v548
      %v581 = vrsqrt.pop %v549
      %v582 = vrsqrt.pop %v550
      %v583 = vrsqrt.pop %v551
      %v584 = vrsqrt.pop %v552
      %v585 = vrsqrt.pop %v553
      %v586 = vrsqrt.pop %v554
      %v587 = vrsqrt.pop %v555
      %v588 = vrsqrt.pop %v556
      %v589 = vrsqrt.pop %v557
      %v590 = vrsqrt.pop %v558
      %v591 = vrsqrt.pop %v559
      %v592 = vmul.f32 %v336, %v560
      %v593 = vmul.f32 %v337, %v561
      %v594 = vmul.f32 %v338, %v562
      %v595 = vmul.f32 %v339, %v563
      %v596 = vmul.f32 %v340, %v564
      %v597 = vmul.f32 %v341, %v565
      %v598 = vmul.f32 %v342, %v566
      %v599 = vmul.f32 %v343, %v567
      %v600 = vmul.f32 %v344, %v568
      %v601 = vmul.f32 %v345, %v569
      %v602 = vmul.f32 %v346, %v570
      %v603 = vmul.f32 %v347, %v571
      %v604 = vmul.f32 %v348, %v572
      %v605 = vmul.f32 %v349, %v573
      %v606 = vmul.f32 %v350, %v574
      %v607 = vmul.f32 %v351, %v575
      %v608 = vmul.f32 %v352, %v576
      %v609 = vmul.f32 %v353, %v577
      %v610 = vmul.f32 %v354, %v578
      %v611 = vmul.f32 %v355, %v579
      %v612 = vmul.f32 %v356, %v580
      %v613 = vmul.f32 %v357, %v581
      %v614 = vmul.f32 %v358, %v582
      %v615 = vmul.f32 %v359, %v583
      %v616 = vmul.f32 %v360, %v584
      %v617 = vmul.f32 %v361, %v585
      %v618 = vmul.f32 %v362, %v586
      %v619 = vmul.f32 %v363, %v587
      %v620 = vmul.f32 %v364, %v588
      %v621 = vmul.f32 %v365, %v589
      %v622 = vmul.f32 %v366, %v590
      %v623 = vmul.f32 %v367, %v591
      %v624 = vld [vmem:[%s1] sm:$0x1]
      %v626 = vlaneseq
      %v627 = vshrl.u32 %v626, 7
      %v628 = vsub.s32 0, %v627
      %v629 = vrot.slane %v624, %v628
      %v631 = vmul.f32 %v592, %v629
      %v632 = vmul.f32 %v593, %v629
      %v633 = vmul.f32 %v594, %v629
      %v634 = vmul.f32 %v595, %v629
      %v635 = vmul.f32 %v596, %v629
      %v636 = vmul.f32 %v597, %v629
      %v637 = vmul.f32 %v598, %v629
      %v638 = vmul.f32 %v599, %v629
      %v639 = vmul.f32 %v600, %v629
      %v640 = vmul.f32 %v601, %v629
      %v641 = vmul.f32 %v602, %v629
      %v642 = vmul.f32 %v603, %v629
      %v643 = vmul.f32 %v604, %v629
      %v644 = vmul.f32 %v605, %v629
      %v645 = vmul.f32 %v606, %v629
      %v646 = vmul.f32 %v607, %v629
      %v647 = vmul.f32 %v608, %v629
      %v648 = vmul.f32 %v609, %v629
      %v649 = vmul.f32 %v610, %v629
      %v650 = vmul.f32 %v611, %v629
      %v651 = vmul.f32 %v612, %v629
      %v652 = vmul.f32 %v613, %v629
      %v653 = vmul.f32 %v614, %v629
      %v654 = vmul.f32 %v615, %v629
      %v655 = vmul.f32 %v616, %v629
      %v656 = vmul.f32 %v617, %v629
      %v657 = vmul.f32 %v618, %v629
      %v658 = vmul.f32 %v619, %v629
      %v659 = vmul.f32 %v620, %v629
      %v660 = vmul.f32 %v621, %v629
      %v661 = vmul.f32 %v622, %v629
      %v662 = vmul.f32 %v623, %v629
      %v663 = vld [vmem:[%s2] sm:$0x1]
      %v665 = vlaneseq
      %v666 = vshrl.u32 %v665, 7
      %v667 = vsub.s32 0, %v666
      %v668 = vrot.slane %v663, %v667
      %v670 = vadd.f32 %v631, %v668
      %v671 = vadd.f32 %v632, %v668
      %v672 = vadd.f32 %v633, %v668
      %v673 = vadd.f32 %v634, %v668
      %v674 = vadd.f32 %v635, %v668
      %v675 = vadd.f32 %v636, %v668
      %v676 = vadd.f32 %v637, %v668
      %v677 = vadd.f32 %v638, %v668
      %v678 = vadd.f32 %v639, %v668
      %v679 = vadd.f32 %v640, %v668
      %v680 = vadd.f32 %v641, %v668
      %v681 = vadd.f32 %v642, %v668
      %v682 = vadd.f32 %v643, %v668
      %v683 = vadd.f32 %v644, %v668
      %v684 = vadd.f32 %v645, %v668
      %v685 = vadd.f32 %v646, %v668
      %v686 = vadd.f32 %v647, %v668
      %v687 = vadd.f32 %v648, %v668
      %v688 = vadd.f32 %v649, %v668
      %v689 = vadd.f32 %v650, %v668
      %v690 = vadd.f32 %v651, %v668
      %v691 = vadd.f32 %v652, %v668
      %v692 = vadd.f32 %v653, %v668
      %v693 = vadd.f32 %v654, %v668
      %v694 = vadd.f32 %v655, %v668
      %v695 = vadd.f32 %v656, %v668
      %v696 = vadd.f32 %v657, %v668
      %v697 = vadd.f32 %v658, %v668
      %v698 = vadd.f32 %v659, %v668
      %v699 = vadd.f32 %v660, %v668
      %v700 = vadd.f32 %v661, %v668
      %v701 = vadd.f32 %v662, %v668
      %v702 = vpack.c.bf16 %v671, %v670
      %v703 = vpack.c.bf16 %v673, %v672
      %v704 = vpack.c.bf16 %v675, %v674
      %v705 = vpack.c.bf16 %v677, %v676
      %v706 = vpack.c.bf16 %v679, %v678
      %v707 = vpack.c.bf16 %v681, %v680
      %v708 = vpack.c.bf16 %v683, %v682
      %v709 = vpack.c.bf16 %v685, %v684
      %v710 = vpack.c.bf16 %v687, %v686
      %v711 = vpack.c.bf16 %v689, %v688
      %v712 = vpack.c.bf16 %v691, %v690
      %v713 = vpack.c.bf16 %v693, %v692
      %v714 = vpack.c.bf16 %v695, %v694
      %v715 = vpack.c.bf16 %v697, %v696
      %v716 = vpack.c.bf16 %v699, %v698
      %v717 = vpack.c.bf16 %v701, %v700
      %v734 = vunpack.c.l.b16 %v702
      %v735 = vunpack.c.h.b16 %v702
      %v736 = vunpack.c.l.b16 %v703
      %v737 = vunpack.c.h.b16 %v703
      %v738 = vunpack.c.l.b16 %v704
      %v739 = vunpack.c.h.b16 %v704
      %v740 = vunpack.c.l.b16 %v705
      %v741 = vunpack.c.h.b16 %v705
      %v742 = vunpack.c.l.b16 %v706
      %v743 = vunpack.c.h.b16 %v706
      %v744 = vunpack.c.l.b16 %v707
      %v745 = vunpack.c.h.b16 %v707
      %v746 = vunpack.c.l.b16 %v708
      %v747 = vunpack.c.h.b16 %v708
      %v748 = vunpack.c.l.b16 %v709
      %v749 = vunpack.c.h.b16 %v709
      %v750 = vunpack.c.l.b16 %v710
      %v751 = vunpack.c.h.b16 %v710
      %v752 = vunpack.c.l.b16 %v711
      %v753 = vunpack.c.h.b16 %v711
      %v754 = vunpack.c.l.b16 %v712
      %v755 = vunpack.c.h.b16 %v712
      %v756 = vunpack.c.l.b16 %v713
      %v757 = vunpack.c.h.b16 %v713
      %v758 = vunpack.c.l.b16 %v714
      %v759 = vunpack.c.h.b16 %v714
      %v760 = vunpack.c.l.b16 %v715
      %v761 = vunpack.c.h.b16 %v715
      %v762 = vunpack.c.l.b16 %v716
      %v763 = vunpack.c.h.b16 %v716
      %v764 = vunpack.c.l.b16 %v717
      %v765 = vunpack.c.h.b16 %v717
      %v766 = vpack.c.b16 %v734, %v734
      %v767 = vpack.c.b16 %v735, %v735
      %v768 = vpack.c.b16 %v736, %v736
      %v769 = vpack.c.b16 %v737, %v737
      %v770 = vpack.c.b16 %v738, %v738
      %v771 = vpack.c.b16 %v739, %v739
      %v772 = vpack.c.b16 %v740, %v740
      %v773 = vpack.c.b16 %v741, %v741
      %v774 = vpack.c.b16 %v742, %v742
      %v775 = vpack.c.b16 %v743, %v743
      %v776 = vpack.c.b16 %v744, %v744
      %v777 = vpack.c.b16 %v745, %v745
      %v778 = vpack.c.b16 %v746, %v746
      %v779 = vpack.c.b16 %v747, %v747
      %v780 = vpack.c.b16 %v748, %v748
      %v781 = vpack.c.b16 %v749, %v749
      %v782 = vpack.c.b16 %v750, %v750
      %v783 = vpack.c.b16 %v751, %v751
      %v784 = vpack.c.b16 %v752, %v752
      %v785 = vpack.c.b16 %v753, %v753
      %v786 = vpack.c.b16 %v754, %v754
      %v787 = vpack.c.b16 %v755, %v755
      %v788 = vpack.c.b16 %v756, %v756
      %v789 = vpack.c.b16 %v757, %v757
      %v790 = vpack.c.b16 %v758, %v758
      %v791 = vpack.c.b16 %v759, %v759
      %v792 = vpack.c.b16 %v760, %v760
      %v793 = vpack.c.b16 %v761, %v761
      %v794 = vpack.c.b16 %v762, %v762
      %v795 = vpack.c.b16 %v763, %v763
      %v796 = vpack.c.b16 %v764, %v764
      %v797 = vpack.c.b16 %v765, %v765
      %vm830 = vcmask 257024
      %831 = vst.msk [vmem:[%s172] sm:$0xf] %vm830, %v766
      %832 = vst.msk [vmem:[%s172 + $0x4] sm:$0xf] %vm830, %v767
      %833 = vst.msk [vmem:[%s172 + $0x8] sm:$0xf] %vm830, %v768
      %834 = vst.msk [vmem:[%s172 + $0xc] sm:$0xf] %vm830, %v769
      %835 = vst.msk [vmem:[%s172 + $0x10] sm:$0xf] %vm830, %v770
      %836 = vst.msk [vmem:[%s172 + $0x14] sm:$0xf] %vm830, %v771
      %837 = vst.msk [vmem:[%s172 + $0x18] sm:$0xf] %vm830, %v772
      %838 = vst.msk [vmem:[%s172 + $0x1c] sm:$0xf] %vm830, %v773
      %839 = vst.msk [vmem:[%s172 + $0x20] sm:$0xf] %vm830, %v774
      %840 = vst.msk [vmem:[%s172 + $0x24] sm:$0xf] %vm830, %v775
      %841 = vst.msk [vmem:[%s172 + $0x28] sm:$0xf] %vm830, %v776
      %842 = vst.msk [vmem:[%s172 + $0x2c] sm:$0xf] %vm830, %v777
      %843 = vst.msk [vmem:[%s172 + $0x30] sm:$0xf] %vm830, %v778
      %844 = vst.msk [vmem:[%s172 + $0x34] sm:$0xf] %vm830, %v779
      %845 = vst.msk [vmem:[%s172 + $0x38] sm:$0xf] %vm830, %v780
      %846 = vst.msk [vmem:[%s172 + $0x3c] sm:$0xf] %vm830, %v781
      %847 = vst.msk [vmem:[%s172 + $0x40] sm:$0xf] %vm830, %v782
      %848 = vst.msk [vmem:[%s172 + $0x44] sm:$0xf] %vm830, %v783
      %849 = vst.msk [vmem:[%s172 + $0x48] sm:$0xf] %vm830, %v784
      %850 = vst.msk [vmem:[%s172 + $0x4c] sm:$0xf] %vm830, %v785
      %851 = vst.msk [vmem:[%s172 + $0x50] sm:$0xf] %vm830, %v786
      %852 = vst.msk [vmem:[%s172 + $0x54] sm:$0xf] %vm830, %v787
      %853 = vst.msk [vmem:[%s172 + $0x58] sm:$0xf] %vm830, %v788
      %854 = vst.msk [vmem:[%s172 + $0x5c] sm:$0xf] %vm830, %v789
      %855 = vst.msk [vmem:[%s172 + $0x60] sm:$0xf] %vm830, %v790
      %856 = vst.msk [vmem:[%s172 + $0x64] sm:$0xf] %vm830, %v791
      %857 = vst.msk [vmem:[%s172 + $0x68] sm:$0xf] %vm830, %v792
      %858 = vst.msk [vmem:[%s172 + $0x6c] sm:$0xf] %vm830, %v793
      %859 = vst.msk [vmem:[%s172 + $0x70] sm:$0xf] %vm830, %v794
      %860 = vst.msk [vmem:[%s172 + $0x74] sm:$0xf] %vm830, %v795
      %861 = vst.msk [vmem:[%s172 + $0x78] sm:$0xf] %vm830, %v796
      %862 = vst.msk [vmem:[%s172 + $0x7c] sm:$0xf] %vm830, %v797
      %s863 = smul.u32 32, %s14
      %p864 = scmp.lt.s32.totalorder %s863, 63
      %s865 = scalar_select %p864, %s863, 63
      %s866 = smul.addr %s865, 4
      %s867 = scalar_lea.vmem %s3, %s866
      // Predicated region
      $region33: #{swin_block_forward.4} parent=31 // pred_check
        %p868 = pneg %p100
      $region34: #{swin_block_forward.4} parent=31 // pred_check_branch
        %870 = sbr.rel (%p868) target = $region36
      $region35: #{swin_block_forward.4} parent=31 // pred_region
        %s871 = smul.u32 32, %s14
      $region36: #{swin_block_forward.4} parent=31 // pred_fallthru
        _
    $region32: #{swin_block_forward.4} parent=5 // pred_fallthru
      _
    %p872 = scmp.le.s32.totalorder 2, %s9
    // Predicated region
    $region37: #{swin_block_forward.4} parent=5 // pred_check
      %p873 = pneg %p872
    $region38: #{swin_block_forward.4} parent=5 // pred_check_branch
      %875 = sbr.rel (%p873) target = $region40
    $region39: #{swin_block_forward.4} parent=5 // pred_region
      %s876 = ssub.s32 %s9, 2
      // Predicated region
      $region41: #{swin_block_forward.4} parent=39 // pred_check
        %p877 = pneg %p106
      $region42: #{swin_block_forward.4} parent=39 // pred_check_branch
        %879 = sbr.rel (%p877) target = $region44
      $region43: #{swin_block_forward.4} parent=39 // pred_region
        %s880 = smul.u32 32, %s15
        %p881 = scmp.lt.s32.totalorder %s880, 63
        %s882 = scalar_select %p881, %s880, 63
        %s883 = smul.addr %s882, 4
        %s884 = scalar_lea.vmem %s3, %s883
      $region44: #{swin_block_forward.4} parent=39 // pred_fallthru
        _
    $region40: #{swin_block_forward.4} parent=5 // pred_fallthru
      _
  $region6: #{swin_block_forward.4} parent=0 // loop_footer
    %s13 = sadd.s32 1, %s9
  $region7: #{swin_block_forward.4} parent=0 // loop_footer_branch
    %8 = sbr.rel target = $region3
  $region8: #{swin_block_forward.4} parent=0 // loop_exit
    _

// kernel: swin_block_forward.5
$region0: #{swin_block_forward.5}
  #allocation0 [shape = 'u32[]', space=smem, size = 0x4, offset = 0x4, fixed_abs, tag = 'smem constant byte address 0x4 - core index']
  #allocation1 [shape = 'u32[144,128]{1,0:T(1,128)}', space=vmem, size = 0x12000, scoped, tag = 'internal scratch']
  %s0 = inlined_call_operand.vmem [shape: bf16[512,32], index: 0, kind: input, shape index: {}]
  %s1 = inlined_call_operand.vmem [shape: bf16[32,128], index: 1, kind: input, shape index: {}]
  %s2 = inlined_call_operand.vmem [shape: f32[1,128], index: 2, kind: input, shape index: {}]
  %s3 = inlined_call_operand.vmem [shape: bf16[512,128], index: 3, kind: output, shape index: {}]
  %s4 = sld [smem:[#allocation0]]
  $region45: #{swin_block_forward.5} parent=0
    _
  %s6 = ssub.s32 1, %s4
  %s7 = scalar_select 0, %s6, %s4
  loop: start=0, step=1, limit=4
  $region2: #{swin_block_forward.5} parent=0 // loop_pre_header
    _
  $region3: #{swin_block_forward.5} parent=0 // loop_header
    %s9 = sphi 0, %s13
    %p10 = scmp.ge.s32.totalorder %s9, 4
    %s19 = sphi 0, %s21
    %s22 = sphi 0, %s19
    %s23 = sphi 0, %s22
    %s39 = sphi 0, %s23
    %s43 = sphi 0, %s43
    %s45 = sphi 0, %s43
    %s46 = sphi 0, %s45
    %s60 = sphi 0, %s46
    %s64 = sphi 0, %s64
    %s66 = sphi 0, %s64
    %s67 = sphi 0, %s66
    %s81 = sphi 0, %s67
    %s87 = sphi 0, %s89
    %s90 = sphi 0, %s87
    %s91 = sphi 0, %s90
    %s107 = sphi 0, %s91
  $region4: #{swin_block_forward.5} parent=0 // loop_header_branch
    %12 = sbr.rel (%p10) target = $region8
  $region5: #{swin_block_forward.5} parent=0 // loop_body
    %s14 = ssub.s32 %s9, 1
    %s15 = ssub.s32 %s9, 2
    %s16 = sadd.s32 %s9, 1
    %s17 = ssub.s32 %s9, %s16
    %p18 = scmp.eq.s32.totalorder %s17, 0
    %s20 = sadd.s32 %s19, 1
    %s21 = scalar_select %p18, %s19, %s20
    %p24 = pneg %p18
    %p25 = scmp.eq.s32.totalorder %s9, 1
    %p26 = por %p24, %p25
    %p27 = scmp.ne.s32.totalorder %s19, %s22
    %p28 = scmp.eq.s32.totalorder %s9, 0
    %p29 = por %p27, %p28
    %p30 = scmp.ne.s32.totalorder %s19, %s22
    %p31 = scmp.eq.s32.totalorder %s14, 1
    %p32 = por %p30, %p31
    %p33 = scmp.ne.s32.totalorder %s22, %s23
    %p34 = scmp.eq.s32.totalorder %s14, 0
    %p35 = por %p33, %p34
    %p36 = scmp.ne.s32.totalorder %s22, %s23
    %p37 = scmp.eq.s32.totalorder %s15, 1
    %p38 = por %p36, %p37
    %p40 = scmp.ne.s32.totalorder %s23, %s39
    %p41 = scmp.eq.s32.totalorder %s15, 0
    %p42 = por %p40, %p41
    %s44 = sadd.s32 %s43, 1
    %p47 = scmp.eq.s32.totalorder %s9, 1
    %p48 = scmp.ne.s32.totalorder %s43, %s45
    %p49 = scmp.eq.s32.totalorder %s9, 0
    %p50 = por %p48, %p49
    %p51 = scmp.ne.s32.totalorder %s43, %s45
    %p52 = scmp.eq.s32.totalorder %s14, 1
    %p53 = por %p51, %p52
    %p54 = scmp.ne.s32.totalorder %s45, %s46
    %p55 = scmp.eq.s32.totalorder %s14, 0
    %p56 = por %p54, %p55
    %p57 = scmp.ne.s32.totalorder %s45, %s46
    %p58 = scmp.eq.s32.totalorder %s15, 1
    %p59 = por %p57, %p58
    %p61 = scmp.ne.s32.totalorder %s46, %s60
    %p62 = scmp.eq.s32.totalorder %s15, 0
    %p63 = por %p61, %p62
    %s65 = sadd.s32 %s64, 1
    %p68 = scmp.eq.s32.totalorder %s9, 1
    %p69 = scmp.ne.s32.totalorder %s64, %s66
    %p70 = scmp.eq.s32.totalorder %s9, 0
    %p71 = por %p69, %p70
    %p72 = scmp.ne.s32.totalorder %s64, %s66
    %p73 = scmp.eq.s32.totalorder %s14, 1
    %p74 = por %p72, %p73
    %p75 = scmp.ne.s32.totalorder %s66, %s67
    %p76 = scmp.eq.s32.totalorder %s14, 0
    %p77 = por %p75, %p76
    %p78 = scmp.ne.s32.totalorder %s66, %s67
    %p79 = scmp.eq.s32.totalorder %s15, 1
    %p80 = por %p78, %p79
    %p82 = scmp.ne.s32.totalorder %s67, %s81
    %p83 = scmp.eq.s32.totalorder %s15, 0
    %p84 = por %p82, %p83
    %s85 = ssub.s32 %s9, %s16
    %p86 = scmp.eq.s32.totalorder %s85, 0
    %s88 = sadd.s32 %s87, 1
    %s89 = scalar_select %p86, %s87, %s88
    %p92 = pneg %p86
    %p93 = scmp.eq.s32.totalorder %s9, 1
    %p94 = por %p92, %p93
    %p95 = scmp.ne.s32.totalorder %s87, %s90
    %p96 = scmp.eq.s32.totalorder %s9, 0
    %p97 = por %p95, %p96
    %p98 = scmp.ne.s32.totalorder %s87, %s90
    %p99 = scmp.eq.s32.totalorder %s14, 1
    %p100 = por %p98, %p99
    %p101 = scmp.ne.s32.totalorder %s90, %s91
    %p102 = scmp.eq.s32.totalorder %s14, 0
    %p103 = por %p101, %p102
    %p104 = scmp.ne.s32.totalorder %s90, %s91
    %p105 = scmp.eq.s32.totalorder %s15, 1
    %p106 = por %p104, %p105
    %p108 = scmp.ne.s32.totalorder %s91, %s107
    %p109 = scmp.eq.s32.totalorder %s15, 0
    %p110 = por %p108, %p109
    %p111 = scmp.le.s32.totalorder 1, %s9
    %p112 = scmp.lt.s32.totalorder %s9, 3
    %p113 = pnand %p111, %p112
    %p114 = pneg %p113
    // Predicated region
    $region9: #{swin_block_forward.5} parent=5 // pred_check
      _
    $region10: #{swin_block_forward.5} parent=5 // pred_check_branch
      %116 = sbr.rel (%p113) target = $region12
    $region11: #{swin_block_forward.5} parent=5 // pred_region
      %s117 = ssub.s32 %s9, 1
      // Predicated region
      $region13: #{swin_block_forward.5} parent=11 // pred_check
        %p118 = pneg %p56
      $region14: #{swin_block_forward.5} parent=11 // pred_check_branch
        %120 = sbr.rel (%p118) target = $region16
      $region15: #{swin_block_forward.5} parent=11 // pred_region
        _
      $region16: #{swin_block_forward.5} parent=11 // pred_fallthru
        _
      // Predicated region
      $region17: #{swin_block_forward.5} parent=11 // pred_check
        %p121 = pneg %p77
      $region18: #{swin_block_forward.5} parent=11 // pred_check_branch
        %123 = sbr.rel (%p121) target = $region20
      $region19: #{swin_block_forward.5} parent=11 // pred_region
        _
      $region20: #{swin_block_forward.5} parent=11 // pred_fallthru
        _
    $region12: #{swin_block_forward.5} parent=5 // pred_fallthru
      _
    %p124 = scmp.lt.s32.totalorder %s9, 2
    // Predicated region
    $region21: #{swin_block_forward.5} parent=5 // pred_check
      %p125 = pneg %p124
    $region22: #{swin_block_forward.5} parent=5 // pred_check_branch
      %127 = sbr.rel (%p125) target = $region24
    $region23: #{swin_block_forward.5} parent=5 // pred_region
      // Predicated region
      $region25: #{swin_block_forward.5} parent=23 // pred_check
        %p128 = pneg %p29
      $region26: #{swin_block_forward.5} parent=23 // pred_check_branch
        %130 = sbr.rel (%p128) target = $region28
      $region27: #{swin_block_forward.5} parent=23 // pred_region
        %s131 = smul.u32 32, %s9
        %p132 = scmp.lt.s32.totalorder %s131, 63
        %s133 = scalar_select %p132, %s131, 63
        %s134 = smul.addr %s133, 4
        %s135 = scalar_lea.vmem %s0, %s134
        %s136 = smul.u32 32, %s9
      $region28: #{swin_block_forward.5} parent=23 // pred_fallthru
        _
    $region24: #{swin_block_forward.5} parent=5 // pred_fallthru
      _
    %p137 = scmp.le.s32.totalorder 1, %s9
    %p138 = scmp.lt.s32.totalorder %s9, 3
    %p139 = pnand %p137, %p138
    %p140 = pneg %p139
    // Predicated region
    $region29: #{swin_block_forward.5} parent=5 // pred_check
      _
    $region30: #{swin_block_forward.5} parent=5 // pred_check_branch
      %142 = sbr.rel (%p139) target = $region32
    $region31: #{swin_block_forward.5} parent=5 // pred_region
      %s143 = ssub.s32 %s9, 1
      %s144 = smul.u32 32, %s14
      %p145 = scmp.lt.s32.totalorder %s144, 63
      %s146 = scalar_select %p145, %s144, 63
      %s147 = smul.addr %s146, 4
      %s148 = scalar_lea.vmem %s0, %s147
      %p149 = pneg %p35
      %p150 = pneg %p32
      %p151 = pneg %p56
      %p152 = pneg %p53
      %p153 = pneg %p77
      %p154 = pneg %p74
      %p155 = pneg %p103
      %p156 = pneg %p100
      %s157 = smul.u32 32, %s14
      %p158 = scmp.lt.s32.totalorder %s157, 63
      %s159 = scalar_select %p158, %s157, 63
      %s160 = smul.addr %s159, 4
      %s161 = scalar_lea.vmem %s3, %s160
      %s162 = smul.u32 32, %s14
      %p163 = scmp.lt.s32.totalorder %s162, 63
      %s164 = scalar_select %p163, %s162, 63
      %s165 = smul.addr %s164, 4
      %s166 = scalar_lea.vmem %s0, %s165
      %s167 = smul.u32 32, %s14
      %s168 = smul.u32 32, %s14
      %p169 = scmp.lt.s32.totalorder %s168, 63
      %s170 = scalar_select %p169, %s168, 63
      %s171 = smul.addr %s170, 4
      %s172 = scalar_lea.vmem %s3, %s171
      %s173 = smul.u32 32, %s14
      %v175 = vld [vmem:[%s166] sm:$0xf]
      %v176 = vld [vmem:[%s166 + $0x4] sm:$0xf]
      %v177 = vld [vmem:[%s166 + $0x8] sm:$0xf]
      %v178 = vld [vmem:[%s166 + $0xc] sm:$0xf]
      %v179 = vld [vmem:[%s166 + $0x10] sm:$0xf]
      %v180 = vld [vmem:[%s166 + $0x14] sm:$0xf]
      %v181 = vld [vmem:[%s166 + $0x18] sm:$0xf]
      %v182 = vld [vmem:[%s166 + $0x1c] sm:$0xf]
      %v183 = vld [vmem:[%s166 + $0x20] sm:$0xf]
      %v184 = vld [vmem:[%s166 + $0x24] sm:$0xf]
      %v185 = vld [vmem:[%s166 + $0x28] sm:$0xf]
      %v186 = vld [vmem:[%s166 + $0x2c] sm:$0xf]
      %v187 = vld [vmem:[%s166 + $0x30] sm:$0xf]
      %v188 = vld [vmem:[%s166 + $0x34] sm:$0xf]
      %v189 = vld [vmem:[%s166 + $0x38] sm:$0xf]
      %v190 = vld [vmem:[%s166 + $0x3c] sm:$0xf]
      %v191 = vld [vmem:[%s166 + $0x40] sm:$0xf]
      %v192 = vld [vmem:[%s166 + $0x44] sm:$0xf]
      %v193 = vld [vmem:[%s166 + $0x48] sm:$0xf]
      %v194 = vld [vmem:[%s166 + $0x4c] sm:$0xf]
      %v195 = vld [vmem:[%s166 + $0x50] sm:$0xf]
      %v196 = vld [vmem:[%s166 + $0x54] sm:$0xf]
      %v197 = vld [vmem:[%s166 + $0x58] sm:$0xf]
      %v198 = vld [vmem:[%s166 + $0x5c] sm:$0xf]
      %v199 = vld [vmem:[%s166 + $0x60] sm:$0xf]
      %v200 = vld [vmem:[%s166 + $0x64] sm:$0xf]
      %v201 = vld [vmem:[%s166 + $0x68] sm:$0xf]
      %v202 = vld [vmem:[%s166 + $0x6c] sm:$0xf]
      %v203 = vld [vmem:[%s166 + $0x70] sm:$0xf]
      %v204 = vld [vmem:[%s166 + $0x74] sm:$0xf]
      %v205 = vld [vmem:[%s166 + $0x78] sm:$0xf]
      %v206 = vld [vmem:[%s166 + $0x7c] sm:$0xf]
      %v207 = vld [vmem:[%s1] sm:$0xf]
      %v208 = vld [vmem:[%s1 + $0x4] sm:$0xf]
      %v209 = vld [vmem:[%s1 + $0x8] sm:$0xf]
      %v210 = vld [vmem:[%s1 + $0xc] sm:$0xf]
      %v211 = vld [vmem:[%s2] sm:$0x1]
      %v213 = vlaneseq
      %v214 = vshrl.u32 %v213, 7
      %v215 = vsub.s32 0, %v214
      %v216 = vrot.slane %v211, %v215
      %v250 = vunpack.c.l.b16 %v175
      %v251 = vunpack.c.l.b16 %v176
      %v252 = vunpack.c.l.b16 %v177
      %v253 = vunpack.c.l.b16 %v178
      %v254 = vunpack.c.l.b16 %v179
      %v255 = vunpack.c.l.b16 %v180
      %v256 = vunpack.c.l.b16 %v181
      %v257 = vunpack.c.l.b16 %v182
      %v258 = vunpack.c.l.b16 %v183
      %v259 = vunpack.c.l.b16 %v184
      %v260 = vunpack.c.l.b16 %v185
      %v261 = vunpack.c.l.b16 %v186
      %v262 = vunpack.c.l.b16 %v187
      %v263 = vunpack.c.l.b16 %v188
      %v264 = vunpack.c.l.b16 %v189
      %v265 = vunpack.c.l.b16 %v190
      %v266 = vunpack.c.l.b16 %v191
      %v267 = vunpack.c.l.b16 %v192
      %v268 = vunpack.c.l.b16 %v193
      %v269 = vunpack.c.l.b16 %v194
      %v270 = vunpack.c.l.b16 %v195
      %v271 = vunpack.c.l.b16 %v196
      %v272 = vunpack.c.l.b16 %v197
      %v273 = vunpack.c.l.b16 %v198
      %v274 = vunpack.c.l.b16 %v199
      %v275 = vunpack.c.l.b16 %v200
      %v276 = vunpack.c.l.b16 %v201
      %v277 = vunpack.c.l.b16 %v202
      %v278 = vunpack.c.l.b16 %v203
      %v279 = vunpack.c.l.b16 %v204
      %v280 = vunpack.c.l.b16 %v205
      %v281 = vunpack.c.l.b16 %v206
      %v282 = vpack.c.b16 %v251, %v250
      %v283 = vpack.c.b16 %v253, %v252
      %v284 = vpack.c.b16 %v255, %v254
      %v285 = vpack.c.b16 %v257, %v256
      %v286 = vpack.c.b16 %v259, %v258
      %v287 = vpack.c.b16 %v261, %v260
      %v288 = vpack.c.b16 %v263, %v262
      %v289 = vpack.c.b16 %v265, %v264
      %v290 = vpack.c.b16 %v267, %v266
      %v291 = vpack.c.b16 %v269, %v268
      %v292 = vpack.c.b16 %v271, %v270
      %v293 = vpack.c.b16 %v273, %v272
      %v294 = vpack.c.b16 %v275, %v274
      %v295 = vpack.c.b16 %v277, %v276
      %v296 = vpack.c.b16 %v279, %v278
      %v297 = vpack.c.b16 %v281, %v280
      %v302 = vunpack.c.l.b16 %v207
      %v303 = vunpack.c.l.b16 %v208
      %v304 = vunpack.c.l.b16 %v209
      %v305 = vunpack.c.l.b16 %v210
      %v306 = vpack.c.b16 %v303, %v302
      %v307 = vpack.c.b16 %v305, %v304
      %vm310 = vcmask 261120
      %v312 = vsel %vm310, %v282, 0
      %v315 = vsel %vm310, %v283, 0
      %v318 = vsel %vm310, %v284, 0
      %v321 = vsel %vm310, %v285, 0
      %v324 = vsel %vm310, %v286, 0
      %v327 = vsel %vm310, %v287, 0
      %v330 = vsel %vm310, %v288, 0
      %v333 = vsel %vm310, %v289, 0
      %v336 = vsel %vm310, %v290, 0
      %v339 = vsel %vm310, %v291, 0
      %v342 = vsel %vm310, %v292, 0
      %v345 = vsel %vm310, %v293, 0
      %v348 = vsel %vm310, %v294, 0
      %v351 = vsel %vm310, %v295, 0
      %v354 = vsel %vm310, %v296, 0
      %v357 = vsel %vm310, %v297, 0
      %359 = vmatprep.subr.bf16.mxu0 0
      %360 = vmatpush1.bf16.msra.mxu0 0
      %361 = vmatprep.subr.bf16.mxu0 0
      %362 = vmatpush1.bf16.msra.mxu0 0
      %363 = vmatprep.subr.bf16.mxu0 0
      %364 = vmatpush1.bf16.msra.mxu0 0
      %365 = vmatprep.subr.bf16.mxu0 0
      %366 = vmatpush1.bf16.msra.mxu0 0
      %367 = vmatprep.subr.bf16.mxu0 0
      %368 = vmatpush1.bf16.msra.mxu0 0
      %369 = vmatprep.subr.bf16.mxu0 0
      %370 = vmatpush1.bf16.msra.mxu0 0
      %371 = vmatprep.subr.bf16.mxu0 0
      %372 = vmatpush1.bf16.msra.mxu0 %v307
      %373 = vmatprep.subr.bf16.mxu0 0
      %374 = vmatpush1.bf16.msra.mxu0 %v306
      %375 = vmatprep.subr.bf16.mxu0 0
      %376 = vmatpush2.bf16.msra.mxu0 0
      %377 = vmatprep.subr.bf16.mxu0 0
      %378 = vmatpush2.bf16.msra.mxu0 0
      %379 = vmatprep.subr.bf16.mxu0 0
      %380 = vmatpush2.bf16.msra.mxu0 0
      %381 = vmatprep.subr.bf16.mxu0 0
      %382 = vmatpush2.bf16.msra.mxu0 0
      %383 = vmatprep.subr.bf16.mxu0 0
      %384 = vmatpush2.bf16.msra.mxu0 0
      %385 = vmatprep.subr.bf16.mxu0 0
      %386 = vmatpush2.bf16.msra.mxu0 0
      %387 = vmatprep.subr.bf16.mxu0 0
      %388 = vmatpush2.bf16.msra.mxu0 0
      %389 = vmatprep.subr.bf16.mxu0 0
      %390 = vmatpush2.bf16.msra.mxu0 0
      %391 = vmatprep.mubr.bf16.mxu0 0
      %392 = vmatmul.mubr.bf16.gmra.mxu0 %v312
      %v393 = vpop.f32.mrf.mxu0
      %v394 = vadd.f32 %v216, %v393
      %v395 = vpop.f32.mrf.mxu0
      %v396 = vpop.f32.mrf.mxu0
      %v397 = vadd.f32 %v216, %v396
      %v398 = vpop.f32.mrf.mxu0
      %399 = vmatprep.mubr.bf16.mxu0 0
      %400 = vmatmul.mubr.bf16.gmra.mxu0 %v315
      %v401 = vpop.f32.mrf.mxu0
      %v402 = vadd.f32 %v216, %v401
      %v403 = vpop.f32.mrf.mxu0
      %v404 = vpop.f32.mrf.mxu0
      %v405 = vadd.f32 %v216, %v404
      %v406 = vpop.f32.mrf.mxu0
      %407 = vmatprep.mubr.bf16.mxu0 0
      %408 = vmatmul.mubr.bf16.gmra.mxu0 %v318
      %v409 = vpop.f32.mrf.mxu0
      %v410 = vadd.f32 %v216, %v409
      %v411 = vpop.f32.mrf.mxu0
      %v412 = vpop.f32.mrf.mxu0
      %v413 = vadd.f32 %v216, %v412
      %v414 = vpop.f32.mrf.mxu0
      %415 = vmatprep.mubr.bf16.mxu0 0
      %416 = vmatmul.mubr.bf16.gmra.mxu0 %v321
      %v417 = vpop.f32.mrf.mxu0
      %v418 = vadd.f32 %v216, %v417
      %v419 = vpop.f32.mrf.mxu0
      %v420 = vpop.f32.mrf.mxu0
      %v421 = vadd.f32 %v216, %v420
      %v422 = vpop.f32.mrf.mxu0
      %423 = vmatprep.mubr.bf16.mxu0 0
      %424 = vmatmul.mubr.bf16.gmra.mxu0 %v324
      %v425 = vpop.f32.mrf.mxu0
      %v426 = vadd.f32 %v216, %v425
      %v427 = vpop.f32.mrf.mxu0
      %v428 = vpop.f32.mrf.mxu0
      %v429 = vadd.f32 %v216, %v428
      %v430 = vpop.f32.mrf.mxu0
      %431 = vmatprep.mubr.bf16.mxu0 0
      %432 = vmatmul.mubr.bf16.gmra.mxu0 %v327
      %v433 = vpop.f32.mrf.mxu0
      %v434 = vadd.f32 %v216, %v433
      %v435 = vpop.f32.mrf.mxu0
      %v436 = vpop.f32.mrf.mxu0
      %v437 = vadd.f32 %v216, %v436
      %v438 = vpop.f32.mrf.mxu0
      %439 = vmatprep.mubr.bf16.mxu0 0
      %440 = vmatmul.mubr.bf16.gmra.mxu0 %v330
      %v441 = vpop.f32.mrf.mxu0
      %v442 = vadd.f32 %v216, %v441
      %v443 = vpop.f32.mrf.mxu0
      %v444 = vpop.f32.mrf.mxu0
      %v445 = vadd.f32 %v216, %v444
      %v446 = vpop.f32.mrf.mxu0
      %447 = vmatprep.mubr.bf16.mxu0 0
      %448 = vmatmul.mubr.bf16.gmra.mxu0 %v333
      %v449 = vpop.f32.mrf.mxu0
      %v450 = vadd.f32 %v216, %v449
      %v451 = vpop.f32.mrf.mxu0
      %v452 = vpop.f32.mrf.mxu0
      %v453 = vadd.f32 %v216, %v452
      %v454 = vpop.f32.mrf.mxu0
      %455 = vmatprep.mubr.bf16.mxu0 0
      %456 = vmatmul.mubr.bf16.gmra.mxu0 %v336
      %v457 = vpop.f32.mrf.mxu0
      %v458 = vadd.f32 %v216, %v457
      %v459 = vpop.f32.mrf.mxu0
      %v460 = vpop.f32.mrf.mxu0
      %v461 = vadd.f32 %v216, %v460
      %v462 = vpop.f32.mrf.mxu0
      %463 = vmatprep.mubr.bf16.mxu0 0
      %464 = vmatmul.mubr.bf16.gmra.mxu0 %v339
      %v465 = vpop.f32.mrf.mxu0
      %v466 = vadd.f32 %v216, %v465
      %v467 = vpop.f32.mrf.mxu0
      %v468 = vpop.f32.mrf.mxu0
      %v469 = vadd.f32 %v216, %v468
      %v470 = vpop.f32.mrf.mxu0
      %471 = vmatprep.mubr.bf16.mxu0 0
      %472 = vmatmul.mubr.bf16.gmra.mxu0 %v342
      %v473 = vpop.f32.mrf.mxu0
      %v474 = vadd.f32 %v216, %v473
      %v475 = vpop.f32.mrf.mxu0
      %v476 = vpop.f32.mrf.mxu0
      %v477 = vadd.f32 %v216, %v476
      %v478 = vpop.f32.mrf.mxu0
      %479 = vmatprep.mubr.bf16.mxu0 0
      %480 = vmatmul.mubr.bf16.gmra.mxu0 %v345
      %v481 = vpop.f32.mrf.mxu0
      %v482 = vadd.f32 %v216, %v481
      %v483 = vpop.f32.mrf.mxu0
      %v484 = vpop.f32.mrf.mxu0
      %v485 = vadd.f32 %v216, %v484
      %v486 = vpop.f32.mrf.mxu0
      %487 = vmatprep.mubr.bf16.mxu0 0
      %488 = vmatmul.mubr.bf16.gmra.mxu0 %v348
      %v489 = vpop.f32.mrf.mxu0
      %v490 = vadd.f32 %v216, %v489
      %v491 = vpop.f32.mrf.mxu0
      %v492 = vpop.f32.mrf.mxu0
      %v493 = vadd.f32 %v216, %v492
      %v494 = vpop.f32.mrf.mxu0
      %495 = vmatprep.mubr.bf16.mxu0 0
      %496 = vmatmul.mubr.bf16.gmra.mxu0 %v351
      %v497 = vpop.f32.mrf.mxu0
      %v498 = vadd.f32 %v216, %v497
      %v499 = vpop.f32.mrf.mxu0
      %v500 = vpop.f32.mrf.mxu0
      %v501 = vadd.f32 %v216, %v500
      %v502 = vpop.f32.mrf.mxu0
      %503 = vmatprep.mubr.bf16.mxu0 0
      %504 = vmatmul.mubr.bf16.gmra.mxu0 %v354
      %v505 = vpop.f32.mrf.mxu0
      %v506 = vadd.f32 %v216, %v505
      %v507 = vpop.f32.mrf.mxu0
      %v508 = vpop.f32.mrf.mxu0
      %v509 = vadd.f32 %v216, %v508
      %v510 = vpop.f32.mrf.mxu0
      %511 = vmatprep.mubr.bf16.mxu0 0
      %512 = vmatmul.mubr.bf16.gmra.mxu0 %v357
      %v513 = vpop.f32.mrf.mxu0
      %v514 = vadd.f32 %v216, %v513
      %v515 = vpop.f32.mrf.mxu0
      %v516 = vpop.f32.mrf.mxu0
      %v517 = vadd.f32 %v216, %v516
      %v518 = vpop.f32.mrf.mxu0
      %519 = vdwg.mxu0
      %v520 = vpack.c.bf16 %v397, %v394
      %v521 = vpack.c.bf16 %v405, %v402
      %v522 = vpack.c.bf16 %v413, %v410
      %v523 = vpack.c.bf16 %v421, %v418
      %v524 = vpack.c.bf16 %v429, %v426
      %v525 = vpack.c.bf16 %v437, %v434
      %v526 = vpack.c.bf16 %v445, %v442
      %v527 = vpack.c.bf16 %v453, %v450
      %v528 = vpack.c.bf16 %v461, %v458
      %v529 = vpack.c.bf16 %v469, %v466
      %v530 = vpack.c.bf16 %v477, %v474
      %v531 = vpack.c.bf16 %v485, %v482
      %v532 = vpack.c.bf16 %v493, %v490
      %v533 = vpack.c.bf16 %v501, %v498
      %v534 = vpack.c.bf16 %v509, %v506
      %v535 = vpack.c.bf16 %v517, %v514
      %v552 = vunpack.c.l.b16 %v520
      %v553 = vunpack.c.h.b16 %v520
      %v554 = vunpack.c.l.b16 %v521
      %v555 = vunpack.c.h.b16 %v521
      %v556 = vunpack.c.l.b16 %v522
      %v557 = vunpack.c.h.b16 %v522
      %v558 = vunpack.c.l.b16 %v523
      %v559 = vunpack.c.h.b16 %v523
      %v560 = vunpack.c.l.b16 %v524
      %v561 = vunpack.c.h.b16 %v524
      %v562 = vunpack.c.l.b16 %v525
      %v563 = vunpack.c.h.b16 %v525
      %v564 = vunpack.c.l.b16 %v526
      %v565 = vunpack.c.h.b16 %v526
      %v566 = vunpack.c.l.b16 %v527
      %v567 = vunpack.c.h.b16 %v527
      %v568 = vunpack.c.l.b16 %v528
      %v569 = vunpack.c.h.b16 %v528
      %v570 = vunpack.c.l.b16 %v529
      %v571 = vunpack.c.h.b16 %v529
      %v572 = vunpack.c.l.b16 %v530
      %v573 = vunpack.c.h.b16 %v530
      %v574 = vunpack.c.l.b16 %v531
      %v575 = vunpack.c.h.b16 %v531
      %v576 = vunpack.c.l.b16 %v532
      %v577 = vunpack.c.h.b16 %v532
      %v578 = vunpack.c.l.b16 %v533
      %v579 = vunpack.c.h.b16 %v533
      %v580 = vunpack.c.l.b16 %v534
      %v581 = vunpack.c.h.b16 %v534
      %v582 = vunpack.c.l.b16 %v535
      %v583 = vunpack.c.h.b16 %v535
      %v584 = vpack.c.b16 %v552, %v552
      %v585 = vpack.c.b16 %v553, %v553
      %v586 = vpack.c.b16 %v554, %v554
      %v587 = vpack.c.b16 %v555, %v555
      %v588 = vpack.c.b16 %v556, %v556
      %v589 = vpack.c.b16 %v557, %v557
      %v590 = vpack.c.b16 %v558, %v558
      %v591 = vpack.c.b16 %v559, %v559
      %v592 = vpack.c.b16 %v560, %v560
      %v593 = vpack.c.b16 %v561, %v561
      %v594 = vpack.c.b16 %v562, %v562
      %v595 = vpack.c.b16 %v563, %v563
      %v596 = vpack.c.b16 %v564, %v564
      %v597 = vpack.c.b16 %v565, %v565
      %v598 = vpack.c.b16 %v566, %v566
      %v599 = vpack.c.b16 %v567, %v567
      %v600 = vpack.c.b16 %v568, %v568
      %v601 = vpack.c.b16 %v569, %v569
      %v602 = vpack.c.b16 %v570, %v570
      %v603 = vpack.c.b16 %v571, %v571
      %v604 = vpack.c.b16 %v572, %v572
      %v605 = vpack.c.b16 %v573, %v573
      %v606 = vpack.c.b16 %v574, %v574
      %v607 = vpack.c.b16 %v575, %v575
      %v608 = vpack.c.b16 %v576, %v576
      %v609 = vpack.c.b16 %v577, %v577
      %v610 = vpack.c.b16 %v578, %v578
      %v611 = vpack.c.b16 %v579, %v579
      %v612 = vpack.c.b16 %v580, %v580
      %v613 = vpack.c.b16 %v581, %v581
      %v614 = vpack.c.b16 %v582, %v582
      %v615 = vpack.c.b16 %v583, %v583
      %648 = vst [vmem:[%s172] sm:$0xf] %v584
      %649 = vst [vmem:[%s172 + $0x4] sm:$0xf] %v585
      %650 = vst [vmem:[%s172 + $0x8] sm:$0xf] %v586
      %651 = vst [vmem:[%s172 + $0xc] sm:$0xf] %v587
      %652 = vst [vmem:[%s172 + $0x10] sm:$0xf] %v588
      %653 = vst [vmem:[%s172 + $0x14] sm:$0xf] %v589
      %654 = vst [vmem:[%s172 + $0x18] sm:$0xf] %v590
      %655 = vst [vmem:[%s172 + $0x1c] sm:$0xf] %v591
      %656 = vst [vmem:[%s172 + $0x20] sm:$0xf] %v592
      %657 = vst [vmem:[%s172 + $0x24] sm:$0xf] %v593
      %658 = vst [vmem:[%s172 + $0x28] sm:$0xf] %v594
      %659 = vst [vmem:[%s172 + $0x2c] sm:$0xf] %v595
      %660 = vst [vmem:[%s172 + $0x30] sm:$0xf] %v596
      %661 = vst [vmem:[%s172 + $0x34] sm:$0xf] %v597
      %662 = vst [vmem:[%s172 + $0x38] sm:$0xf] %v598
      %663 = vst [vmem:[%s172 + $0x3c] sm:$0xf] %v599
      %664 = vst [vmem:[%s172 + $0x40] sm:$0xf] %v600
      %665 = vst [vmem:[%s172 + $0x44] sm:$0xf] %v601
      %666 = vst [vmem:[%s172 + $0x48] sm:$0xf] %v602
      %667 = vst [vmem:[%s172 + $0x4c] sm:$0xf] %v603
      %668 = vst [vmem:[%s172 + $0x50] sm:$0xf] %v604
      %669 = vst [vmem:[%s172 + $0x54] sm:$0xf] %v605
      %670 = vst [vmem:[%s172 + $0x58] sm:$0xf] %v606
      %671 = vst [vmem:[%s172 + $0x5c] sm:$0xf] %v607
      %672 = vst [vmem:[%s172 + $0x60] sm:$0xf] %v608
      %673 = vst [vmem:[%s172 + $0x64] sm:$0xf] %v609
      %674 = vst [vmem:[%s172 + $0x68] sm:$0xf] %v610
      %675 = vst [vmem:[%s172 + $0x6c] sm:$0xf] %v611
      %676 = vst [vmem:[%s172 + $0x70] sm:$0xf] %v612
      %677 = vst [vmem:[%s172 + $0x74] sm:$0xf] %v613
      %678 = vst [vmem:[%s172 + $0x78] sm:$0xf] %v614
      %679 = vst [vmem:[%s172 + $0x7c] sm:$0xf] %v615
      %s680 = smul.u32 32, %s14
      %p681 = scmp.lt.s32.totalorder %s680, 63
      %s682 = scalar_select %p681, %s680, 63
      %s683 = smul.addr %s682, 4
      %s684 = scalar_lea.vmem %s3, %s683
      // Predicated region
      $region33: #{swin_block_forward.5} parent=31 // pred_check
        %p685 = pneg %p100
      $region34: #{swin_block_forward.5} parent=31 // pred_check_branch
        %687 = sbr.rel (%p685) target = $region36
      $region35: #{swin_block_forward.5} parent=31 // pred_region
        %s688 = smul.u32 32, %s14
      $region36: #{swin_block_forward.5} parent=31 // pred_fallthru
        _
    $region32: #{swin_block_forward.5} parent=5 // pred_fallthru
      _
    %p689 = scmp.le.s32.totalorder 2, %s9
    // Predicated region
    $region37: #{swin_block_forward.5} parent=5 // pred_check
      %p690 = pneg %p689
    $region38: #{swin_block_forward.5} parent=5 // pred_check_branch
      %692 = sbr.rel (%p690) target = $region40
    $region39: #{swin_block_forward.5} parent=5 // pred_region
      %s693 = ssub.s32 %s9, 2
      // Predicated region
      $region41: #{swin_block_forward.5} parent=39 // pred_check
        %p694 = pneg %p106
      $region42: #{swin_block_forward.5} parent=39 // pred_check_branch
        %696 = sbr.rel (%p694) target = $region44
      $region43: #{swin_block_forward.5} parent=39 // pred_region
        %s697 = smul.u32 32, %s15
        %p698 = scmp.lt.s32.totalorder %s697, 63
        %s699 = scalar_select %p698, %s697, 63
        %s700 = smul.addr %s699, 4
        %s701 = scalar_lea.vmem %s3, %s700
      $region44: #{swin_block_forward.5} parent=39 // pred_fallthru
        _
    $region40: #{swin_block_forward.5} parent=5 // pred_fallthru
      _
  $region6: #{swin_block_forward.5} parent=0 // loop_footer
    %s13 = sadd.s32 1, %s9
  $region7: #{swin_block_forward.5} parent=0 // loop_footer_branch
    %8 = sbr.rel target = $region3
  $region8: #{swin_block_forward.5} parent=0 // loop_exit
    _

// kernel: swin_block_forward.7
$region0: #{swin_block_forward.7}
  #allocation0 [shape = 'u32[]', space=smem, size = 0x4, offset = 0x4, fixed_abs, tag = 'smem constant byte address 0x4 - core index']
  #allocation1 [shape = 'u32[144,128]{1,0:T(1,128)}', space=vmem, size = 0x12000, scoped, tag = 'internal scratch']
  #allocation2 [shape = 'bf16[256,32]{1,0:T(8,128)(2,1)}', space=vmem, size = 0x10000, scoped, tag = 'scratch operand']
  #allocation3 [shape = 'f32[256,32]{1,0:T(8,128)}', space=vmem, size = 0x20000, scoped, tag = 'scratch operand']
  %s0 = inlined_call_operand.vmem [shape: f32[512,32], index: 0, kind: input, shape index: {}]
  %s1 = inlined_call_operand.vmem [shape: f32[1,32], index: 1, kind: input, shape index: {}]
  %s2 = inlined_call_operand.vmem [shape: f32[1,32], index: 2, kind: input, shape index: {}]
  %s3 = inlined_call_operand.vmem [shape: bf16[32,128], index: 3, kind: input, shape index: {}]
  %s4 = inlined_call_operand.vmem [shape: f32[1,128], index: 4, kind: input, shape index: {}]
  %s5 = inlined_call_operand.vmem [shape: bf16[128,32], index: 5, kind: input, shape index: {}]
  %s6 = inlined_call_operand.vmem [shape: f32[1,32], index: 6, kind: input, shape index: {}]
  %s7 = inlined_call_operand.hbm [shape: f32[512,32], index: 7, kind: output, shape index: {}]
  %s8 = sld [smem:[#allocation0]]
  $region69: #{swin_block_forward.7} parent=0
    _
  %s10 = ssub.s32 1, %s8
  %s11 = scalar_select 0, %s10, %s8
  $region1: #{swin_block_forward.7} parent=0
    #allocation4 [shape = 'u8[262144]{0}', space=vmem, size = 0x40000, scoped, tag = 'output window, operand 0']
    #allocation5 [shape = 's32[2]{0}', space=sflag, size = 0x8, scoped, tag = 'scoped memory for swin_block_forward.7']
    %12 = vsyncpa [#allocation5], 0
    %s13 = scalar_lea.sflag [#allocation5], 1
    %14 = vsyncpa %s13, 0
    loop: start=0, step=1, limit=4
    $region2: #{swin_block_forward.7} parent=1 // loop_pre_header
      _
    $region3: #{swin_block_forward.7} parent=1 // loop_header
      %s16 = sphi 0, %s20
      %p17 = scmp.ge.s32.totalorder %s16, 4
      %s23 = sphi 0, %s35
      %s24 = sphi 0, %s31
      %s25 = sphi 0, %s23
      %s26 = sphi 0, %s24
      %s27 = sphi 0, %s25
      %s28 = sphi 0, %s26
      %s38 = sphi 0, %s40
      %s41 = sphi 0, %s38
      %s42 = sphi 0, %s41
      %s58 = sphi 0, %s42
      %s62 = sphi 0, %s62
      %s64 = sphi 0, %s62
      %s65 = sphi 0, %s64
      %s79 = sphi 0, %s65
      %s83 = sphi 0, %s83
      %s85 = sphi 0, %s83
      %s86 = sphi 0, %s85
      %s100 = sphi 0, %s86
      %s106 = sphi 0, %s108
      %s109 = sphi 0, %s106
      %s110 = sphi 0, %s109
      %s126 = sphi 0, %s110
      %s132 = sphi 0, %s134
      %s135 = sphi 0, %s132
      %s136 = sphi 0, %s135
      %s152 = sphi 0, %s136
      %s158 = sphi 0, %s160
      %s161 = sphi 0, %s158
      %s162 = sphi 0, %s161
      %s178 = sphi 0, %s162
      %s182 = sphi 0, %s182
      %s184 = sphi 0, %s182
      %s185 = sphi 0, %s184
      %s199 = sphi 0, %s185
      %s205 = sphi 0, %s207
      %s208 = sphi 0, %s205
      %s209 = sphi 0, %s208
      %s225 = sphi 0, %s209
    $region4: #{swin_block_forward.7} parent=1 // loop_header_branch
      %19 = sbr.rel (%p17) target = $region8
    $region5: #{swin_block_forward.7} parent=1 // loop_body
      %s21 = ssub.s32 %s16, 1
      %s22 = ssub.s32 %s16, 2
      %s29 = sadd.s32 1, %s24
      %p30 = scmp.ge.s32.totalorder %s29, 1
      %s31 = scalar_select %p30, 0, %s29
      %s32 = sadd.s32 1, %s23
      %s33 = scalar_select %p30, %s32, %s23
      %p34 = scmp.ge.s32.totalorder %s33, 2
      %s35 = scalar_select %p34, 0, %s33
      %s36 = ssub.s32 %s23, %s35
      %p37 = scmp.eq.s32.totalorder %s36, 0
      %s39 = sadd.s32 %s38, 1
      %s40 = scalar_select %p37, %s38, %s39
      %p43 = pneg %p37
      %p44 = scmp.eq.s32.totalorder %s16, 1
      %p45 = por %p43, %p44
      %p46 = scmp.ne.s32.totalorder %s38, %s41
      %p47 = scmp.eq.s32.totalorder %s16, 0
      %p48 = por %p46, %p47
      %p49 = scmp.ne.s32.totalorder %s38, %s41
      %p50 = scmp.eq.s32.totalorder %s21, 1
      %p51 = por %p49, %p50
      %p52 = scmp.ne.s32.totalorder %s41, %s42
      %p53 = scmp.eq.s32.totalorder %s21, 0
      %p54 = por %p52, %p53
      %p55 = scmp.ne.s32.totalorder %s41, %s42
      %p56 = scmp.eq.s32.totalorder %s22, 1
      %p57 = por %p55, %p56
      %p59 = scmp.ne.s32.totalorder %s42, %s58
      %p60 = scmp.eq.s32.totalorder %s22, 0
      %p61 = por %p59, %p60
      %s63 = sadd.s32 %s62, 1
      %p66 = scmp.eq.s32.totalorder %s16, 1
      %p67 = scmp.ne.s32.totalorder %s62, %s64
      %p68 = scmp.eq.s32.totalorder %s16, 0
      %p69 = por %p67, %p68
      %p70 = scmp.ne.s32.totalorder %s62, %s64
      %p71 = scmp.eq.s32.totalorder %s21, 1
      %p72 = por %p70, %p71
      %p73 = scmp.ne.s32.totalorder %s64, %s65
      %p74 = scmp.eq.s32.totalorder %s21, 0
      %p75 = por %p73, %p74
      %p76 = scmp.ne.s32.totalorder %s64, %s65
      %p77 = scmp.eq.s32.totalorder %s22, 1
      %p78 = por %p76, %p77
      %p80 = scmp.ne.s32.totalorder %s65, %s79
      %p81 = scmp.eq.s32.totalorder %s22, 0
      %p82 = por %p80, %p81
      %s84 = sadd.s32 %s83, 1
      %p87 = scmp.eq.s32.totalorder %s16, 1
      %p88 = scmp.ne.s32.totalorder %s83, %s85
      %p89 = scmp.eq.s32.totalorder %s16, 0
      %p90 = por %p88, %p89
      %p91 = scmp.ne.s32.totalorder %s83, %s85
      %p92 = scmp.eq.s32.totalorder %s21, 1
      %p93 = por %p91, %p92
      %p94 = scmp.ne.s32.totalorder %s85, %s86
      %p95 = scmp.eq.s32.totalorder %s21, 0
      %p96 = por %p94, %p95
      %p97 = scmp.ne.s32.totalorder %s85, %s86
      %p98 = scmp.eq.s32.totalorder %s22, 1
      %p99 = por %p97, %p98
      %p101 = scmp.ne.s32.totalorder %s86, %s100
      %p102 = scmp.eq.s32.totalorder %s22, 0
      %p103 = por %p101, %p102
      %s104 = ssub.s32 %s24, %s31
      %p105 = scmp.eq.s32.totalorder %s104, 0
      %s107 = sadd.s32 %s106, 1
      %s108 = scalar_select %p105, %s106, %s107
      %p111 = pneg %p105
      %p112 = scmp.eq.s32.totalorder %s16, 1
      %p113 = por %p111, %p112
      %p114 = scmp.ne.s32.totalorder %s106, %s109
      %p115 = scmp.eq.s32.totalorder %s16, 0
      %p116 = por %p114, %p115
      %p117 = scmp.ne.s32.totalorder %s106, %s109
      %p118 = scmp.eq.s32.totalorder %s21, 1
      %p119 = por %p117, %p118
      %p120 = scmp.ne.s32.totalorder %s109, %s110
      %p121 = scmp.eq.s32.totalorder %s21, 0
      %p122 = por %p120, %p121
      %p123 = scmp.ne.s32.totalorder %s109, %s110
      %p124 = scmp.eq.s32.totalorder %s22, 1
      %p125 = por %p123, %p124
      %p127 = scmp.ne.s32.totalorder %s110, %s126
      %p128 = scmp.eq.s32.totalorder %s22, 0
      %p129 = por %p127, %p128
      %s130 = ssub.s32 %s24, %s31
      %p131 = scmp.eq.s32.totalorder %s130, 0
      %s133 = sadd.s32 %s132, 1
      %s134 = scalar_select %p131, %s132, %s133
      %p137 = pneg %p131
      %p138 = scmp.eq.s32.totalorder %s16, 1
      %p139 = por %p137, %p138
      %p140 = scmp.ne.s32.totalorder %s132, %s135
      %p141 = scmp.eq.s32.totalorder %s16, 0
      %p142 = por %p140, %p141
      %p143 = scmp.ne.s32.totalorder %s132, %s135
      %p144 = scmp.eq.s32.totalorder %s21, 1
      %p145 = por %p143, %p144
      %p146 = scmp.ne.s32.totalorder %s135, %s136
      %p147 = scmp.eq.s32.totalorder %s21, 0
      %p148 = por %p146, %p147
      %p149 = scmp.ne.s32.totalorder %s135, %s136
      %p150 = scmp.eq.s32.totalorder %s22, 1
      %p151 = por %p149, %p150
      %p153 = scmp.ne.s32.totalorder %s136, %s152
      %p154 = scmp.eq.s32.totalorder %s22, 0
      %p155 = por %p153, %p154
      %s156 = ssub.s32 %s24, %s31
      %p157 = scmp.eq.s32.totalorder %s156, 0
      %s159 = sadd.s32 %s158, 1
      %s160 = scalar_select %p157, %s158, %s159
      %p163 = pneg %p157
      %p164 = scmp.eq.s32.totalorder %s16, 1
      %p165 = por %p163, %p164
      %p166 = scmp.ne.s32.totalorder %s158, %s161
      %p167 = scmp.eq.s32.totalorder %s16, 0
      %p168 = por %p166, %p167
      %p169 = scmp.ne.s32.totalorder %s158, %s161
      %p170 = scmp.eq.s32.totalorder %s21, 1
      %p171 = por %p169, %p170
      %p172 = scmp.ne.s32.totalorder %s161, %s162
      %p173 = scmp.eq.s32.totalorder %s21, 0
      %p174 = por %p172, %p173
      %p175 = scmp.ne.s32.totalorder %s161, %s162
      %p176 = scmp.eq.s32.totalorder %s22, 1
      %p177 = por %p175, %p176
      %p179 = scmp.ne.s32.totalorder %s162, %s178
      %p180 = scmp.eq.s32.totalorder %s22, 0
      %p181 = por %p179, %p180
      %s183 = sadd.s32 %s182, 1
      %p186 = scmp.eq.s32.totalorder %s16, 1
      %p187 = scmp.ne.s32.totalorder %s182, %s184
      %p188 = scmp.eq.s32.totalorder %s16, 0
      %p189 = por %p187, %p188
      %p190 = scmp.ne.s32.totalorder %s182, %s184
      %p191 = scmp.eq.s32.totalorder %s21, 1
      %p192 = por %p190, %p191
      %p193 = scmp.ne.s32.totalorder %s184, %s185
      %p194 = scmp.eq.s32.totalorder %s21, 0
      %p195 = por %p193, %p194
      %p196 = scmp.ne.s32.totalorder %s184, %s185
      %p197 = scmp.eq.s32.totalorder %s22, 1
      %p198 = por %p196, %p197
      %p200 = scmp.ne.s32.totalorder %s185, %s199
      %p201 = scmp.eq.s32.totalorder %s22, 0
      %p202 = por %p200, %p201
      %s203 = ssub.s32 %s23, %s35
      %p204 = scmp.eq.s32.totalorder %s203, 0
      %s206 = sadd.s32 %s205, 1
      %s207 = scalar_select %p204, %s205, %s206
      %p210 = pneg %p204
      %p211 = scmp.eq.s32.totalorder %s16, 1
      %p212 = por %p210, %p211
      %p213 = scmp.ne.s32.totalorder %s205, %s208
      %p214 = scmp.eq.s32.totalorder %s16, 0
      %p215 = por %p213, %p214
      %p216 = scmp.ne.s32.totalorder %s205, %s208
      %p217 = scmp.eq.s32.totalorder %s21, 1
      %p218 = por %p216, %p217
      %p219 = scmp.ne.s32.totalorder %s208, %s209
      %p220 = scmp.eq.s32.totalorder %s21, 0
      %p221 = por %p219, %p220
      %p222 = scmp.ne.s32.totalorder %s208, %s209
      %p223 = scmp.eq.s32.totalorder %s22, 1
      %p224 = por %p222, %p223
      %p226 = scmp.ne.s32.totalorder %s209, %s225
      %p227 = scmp.eq.s32.totalorder %s22, 0
      %p228 = por %p226, %p227
      %p229 = scmp.le.s32.totalorder 1, %s16
      %p230 = scmp.lt.s32.totalorder %s16, 3
      %p231 = pnand %p229, %p230
      %p232 = pneg %p231
      // Predicated region
      $region9: #{swin_block_forward.7} parent=5 // pred_check
        _
      $region10: #{swin_block_forward.7} parent=5 // pred_check_branch
        %234 = sbr.rel (%p231) target = $region12
      $region11: #{swin_block_forward.7} parent=5 // pred_region
        %s235 = ssub.s32 %s16, 1
        // Predicated region
        $region13: #{swin_block_forward.7} parent=11 // pred_check
          %p236 = pneg %p75
        $region14: #{swin_block_forward.7} parent=11 // pred_check_branch
          %238 = sbr.rel (%p236) target = $region16
        $region15: #{swin_block_forward.7} parent=11 // pred_region
          _
        $region16: #{swin_block_forward.7} parent=11 // pred_fallthru
          _
        // Predicated region
        $region17: #{swin_block_forward.7} parent=11 // pred_check
          %p239 = pneg %p96
        $region18: #{swin_block_forward.7} parent=11 // pred_check_branch
          %241 = sbr.rel (%p239) target = $region20
        $region19: #{swin_block_forward.7} parent=11 // pred_region
          _
        $region20: #{swin_block_forward.7} parent=11 // pred_fallthru
          _
        // Predicated region
        $region21: #{swin_block_forward.7} parent=11 // pred_check
          %p242 = pneg %p122
        $region22: #{swin_block_forward.7} parent=11 // pred_check_branch
          %244 = sbr.rel (%p242) target = $region24
        $region23: #{swin_block_forward.7} parent=11 // pred_region
          %p245 = scmp.lt.s32.totalorder %s26, 0
          %s246 = scalar_select %p245, %s26, 0
          %s247 = smul.addr %s246, 4
          %s248 = scalar_lea.vmem %s3, %s247
        $region24: #{swin_block_forward.7} parent=11 // pred_fallthru
          _
        // Predicated region
        $region25: #{swin_block_forward.7} parent=11 // pred_check
          %p249 = pneg %p148
        $region26: #{swin_block_forward.7} parent=11 // pred_check_branch
          %251 = sbr.rel (%p249) target = $region28
        $region27: #{swin_block_forward.7} parent=11 // pred_region
          %p252 = scmp.lt.s32.totalorder %s26, 0
          %s253 = scalar_select %p252, %s26, 0
          %s254 = scalar_lea.vmem %s4, %s253
        $region28: #{swin_block_forward.7} parent=11 // pred_fallthru
          _
        // Predicated region
        $region29: #{swin_block_forward.7} parent=11 // pred_check
          %p255 = pneg %p174
        $region30: #{swin_block_forward.7} parent=11 // pred_check_branch
          %257 = sbr.rel (%p255) target = $region32
        $region31: #{swin_block_forward.7} parent=11 // pred_region
          %s258 = smul.u32 16, %s26
          %p259 = scmp.lt.s32.totalorder %s258, 15
          %s260 = scalar_select %p259, %s258, 15
          %s261 = smul.addr %s260, 4
          %s262 = scalar_lea.vmem %s5, %s261
          %s263 = smul.u32 16, %s26
        $region32: #{swin_block_forward.7} parent=11 // pred_fallthru
          _
        // Predicated region
        $region33: #{swin_block_forward.7} parent=11 // pred_check
          %p264 = pneg %p195
        $region34: #{swin_block_forward.7} parent=11 // pred_check_branch
          %266 = sbr.rel (%p264) target = $region36
        $region35: #{swin_block_forward.7} parent=11 // pred_region
          _
        $region36: #{swin_block_forward.7} parent=11 // pred_fallthru
          _
      $region12: #{swin_block_forward.7} parent=5 // pred_fallthru
        _
      %p267 = scmp.lt.s32.totalorder %s16, 2
      // Predicated region
      $region37: #{swin_block_forward.7} parent=5 // pred_check
        %p268 = pneg %p267
      $region38: #{swin_block_forward.7} parent=5 // pred_check_branch
        %270 = sbr.rel (%p268) target = $region40
      $region39: #{swin_block_forward.7} parent=5 // pred_region
        // Predicated region
        $region41: #{swin_block_forward.7} parent=39 // pred_check
          %p271 = pneg %p48
        $region42: #{swin_block_forward.7} parent=39 // pred_check_branch
          %273 = sbr.rel (%p271) target = $region44
        $region43: #{swin_block_forward.7} parent=39 // pred_region
          %s274 = smul.u32 32, %s23
          %p275 = scmp.lt.s32.totalorder %s274, 63
          %s276 = scalar_select %p275, %s274, 63
          %s277 = smul.addr %s276, 8
          %s278 = scalar_lea.vmem %s0, %s277
          %s279 = smul.u32 32, %s23
        $region44: #{swin_block_forward.7} parent=39 // pred_fallthru
          _
      $region40: #{swin_block_forward.7} parent=5 // pred_fallthru
        _
      %p280 = scmp.le.s32.totalorder 1, %s16
      %p281 = scmp.lt.s32.totalorder %s16, 3
      %p282 = pnand %p280, %p281
      %p283 = pneg %p282
      // Predicated region
      $region45: #{swin_block_forward.7} parent=5 // pred_check
        _
      $region46: #{swin_block_forward.7} parent=5 // pred_check_branch
        %285 = sbr.rel (%p282) target = $region48
      $region47: #{swin_block_forward.7} parent=5 // pred_region
        %s286 = ssub.s32 %s16, 1
        %s287 = smul.u32 32, %s25
        %p288 = scmp.lt.s32.totalorder %s287, 63
        %s289 = scalar_select %p288, %s287, 63
        %s290 = smul.addr %s289, 8
        %s291 = scalar_lea.vmem %s0, %s290
        %p292 = pneg %p54
        %p293 = pneg %p51
        %p294 = pneg %p75
        %p295 = pneg %p72
        %p296 = pneg %p96
        %p297 = pneg %p93
        %p298 = scmp.lt.s32.totalorder %s26, 0
        %s299 = scalar_select %p298, %s26, 0
        %s300 = smul.addr %s299, 4
        %s301 = scalar_lea.vmem %s3, %s300
        %p302 = pneg %p122
        %p303 = pneg %p119
        %p304 = scmp.lt.s32.totalorder %s26, 0
        %s305 = scalar_select %p304, %s26, 0
        %s306 = scalar_lea.vmem %s4, %s305
        %p307 = pneg %p148
        %p308 = pneg %p145
        %s309 = smul.u32 16, %s26
        %p310 = scmp.lt.s32.totalorder %s309, 15
        %s311 = scalar_select %p310, %s309, 15
        %s312 = smul.addr %s311, 4
        %s313 = scalar_lea.vmem %s5, %s312
        %p314 = pneg %p174
        %p315 = pneg %p171
        %p316 = pneg %p195
        %p317 = pneg %p192
        %p318 = pneg %p221
        %p319 = pneg %p218
        %s320 = sand.u32 %s208, 1
        %s321 = scalar_lea.sflag [#allocation5], %s320
        %s322 = sand.u32 %s208, 1
        %s323 = smul.addr %s322, 256
        %s324 = scalar_lea.vmem [#allocation4], %s323
        %s325 = smul.u32 32, %s25
        %p326 = scmp.lt.s32.totalorder %s325, 63
        %s327 = scalar_select %p326, %s325, 63
        %s328 = smul.addr %s327, 8
        %s329 = scalar_lea.vmem %s0, %s328
        %s330 = smul.u32 32, %s25
        %p331 = scmp.lt.s32.totalorder %s26, 0
        %s332 = scalar_select %p331, %s26, 0
        %s333 = smul.addr %s332, 4
        %s334 = scalar_lea.vmem %s3, %s333
        %p335 = scmp.lt.s32.totalorder %s26, 0
        %s336 = scalar_select %p335, %s26, 0
        %s337 = scalar_lea.vmem %s4, %s336
        %s338 = smul.u32 16, %s26
        %p339 = scmp.lt.s32.totalorder %s338, 15
        %s340 = scalar_select %p339, %s338, 15
        %s341 = smul.addr %s340, 4
        %s342 = scalar_lea.vmem %s5, %s341
        %s343 = smul.u32 16, %s26
        %s344 = smul.u32 32, %s25
        %p346 = scmp.eq.s32.totalorder %s26, 0
        // Predicated region
        $region49: #{swin_block_forward.7} parent=47 // pred_check
          %p347 = pneg %p346
        $region50: #{swin_block_forward.7} parent=47 // pred_check_branch
          %349 = sbr.rel (%p347) target = $region52
        $region51: #{swin_block_forward.7} parent=47 // pred_region
          %v350 = vld [vmem:[%s329] sm:$0xff]
          %v351 = vld [vmem:[%s329 + $0x8] sm:$0xff]
          %v352 = vld [vmem:[%s329 + $0x10] sm:$0xff]
          %v353 = vld [vmem:[%s329 + $0x18] sm:$0xff]
          %v354 = vld [vmem:[%s329 + $0x20] sm:$0xff]
          %v355 = vld [vmem:[%s329 + $0x28] sm:$0xff]
          %v356 = vld [vmem:[%s329 + $0x30] sm:$0xff]
          %v357 = vld [vmem:[%s329 + $0x38] sm:$0xff]
          %v358 = vld [vmem:[%s329 + $0x40] sm:$0xff]
          %v359 = vld [vmem:[%s329 + $0x48] sm:$0xff]
          %v360 = vld [vmem:[%s329 + $0x50] sm:$0xff]
          %v361 = vld [vmem:[%s329 + $0x58] sm:$0xff]
          %v362 = vld [vmem:[%s329 + $0x60] sm:$0xff]
          %v363 = vld [vmem:[%s329 + $0x68] sm:$0xff]
          %v364 = vld [vmem:[%s329 + $0x70] sm:$0xff]
          %v365 = vld [vmem:[%s329 + $0x78] sm:$0xff]
          %v366 = vld [vmem:[%s329 + $0x80] sm:$0xff]
          %v367 = vld [vmem:[%s329 + $0x88] sm:$0xff]
          %v368 = vld [vmem:[%s329 + $0x90] sm:$0xff]
          %v369 = vld [vmem:[%s329 + $0x98] sm:$0xff]
          %v370 = vld [vmem:[%s329 + $0xa0] sm:$0xff]
          %v371 = vld [vmem:[%s329 + $0xa8] sm:$0xff]
          %v372 = vld [vmem:[%s329 + $0xb0] sm:$0xff]
          %v373 = vld [vmem:[%s329 + $0xb8] sm:$0xff]
          %v374 = vld [vmem:[%s329 + $0xc0] sm:$0xff]
          %v375 = vld [vmem:[%s329 + $0xc8] sm:$0xff]
          %v376 = vld [vmem:[%s329 + $0xd0] sm:$0xff]
          %v377 = vld [vmem:[%s329 + $0xd8] sm:$0xff]
          %v378 = vld [vmem:[%s329 + $0xe0] sm:$0xff]
          %v379 = vld [vmem:[%s329 + $0xe8] sm:$0xff]
          %v380 = vld [vmem:[%s329 + $0xf0] sm:$0xff]
          %v381 = vld [vmem:[%s329 + $0xf8] sm:$0xff]
          %vm382 = vcmask 261120
          %v383 = vsel %vm382, %v350, 0.0
          %384 = vadd.xlane.f32.xlu0 %v383
          %v385 = vpop.xlane.xlu0 %384
          %v386 = vsel %vm382, %v351, 0.0
          %387 = vadd.xlane.f32.xlu0 %v386
          %v388 = vpop.xlane.xlu0 %387
          %v389 = vsel %vm382, %v352, 0.0
          %390 = vadd.xlane.f32.xlu0 %v389
          %v391 = vpop.xlane.xlu0 %390
          %v392 = vsel %vm382, %v353, 0.0
          %393 = vadd.xlane.f32.xlu0 %v392
          %v394 = vpop.xlane.xlu0 %393
          %v395 = vsel %vm382, %v354, 0.0
          %396 = vadd.xlane.f32.xlu0 %v395
          %v397 = vpop.xlane.xlu0 %396
          %v398 = vsel %vm382, %v355, 0.0
          %399 = vadd.xlane.f32.xlu0 %v398
          %v400 = vpop.xlane.xlu0 %399
          %v401 = vsel %vm382, %v356, 0.0
          %402 = vadd.xlane.f32.xlu0 %v401
          %v403 = vpop.xlane.xlu0 %402
          %v404 = vsel %vm382, %v357, 0.0
          %405 = vadd.xlane.f32.xlu0 %v404
          %v406 = vpop.xlane.xlu0 %405
          %v407 = vsel %vm382, %v358, 0.0
          %408 = vadd.xlane.f32.xlu0 %v407
          %v409 = vpop.xlane.xlu0 %408
          %v410 = vsel %vm382, %v359, 0.0
          %411 = vadd.xlane.f32.xlu0 %v410
          %v412 = vpop.xlane.xlu0 %411
          %v413 = vsel %vm382, %v360, 0.0
          %414 = vadd.xlane.f32.xlu0 %v413
          %v415 = vpop.xlane.xlu0 %414
          %v416 = vsel %vm382, %v361, 0.0
          %417 = vadd.xlane.f32.xlu0 %v416
          %v418 = vpop.xlane.xlu0 %417
          %v419 = vsel %vm382, %v362, 0.0
          %420 = vadd.xlane.f32.xlu0 %v419
          %v421 = vpop.xlane.xlu0 %420
          %v422 = vsel %vm382, %v363, 0.0
          %423 = vadd.xlane.f32.xlu0 %v422
          %v424 = vpop.xlane.xlu0 %423
          %v425 = vsel %vm382, %v364, 0.0
          %426 = vadd.xlane.f32.xlu0 %v425
          %v427 = vpop.xlane.xlu0 %426
          %v428 = vsel %vm382, %v365, 0.0
          %429 = vadd.xlane.f32.xlu0 %v428
          %v430 = vpop.xlane.xlu0 %429
          %v431 = vsel %vm382, %v366, 0.0
          %432 = vadd.xlane.f32.xlu0 %v431
          %v433 = vpop.xlane.xlu0 %432
          %v434 = vsel %vm382, %v367, 0.0
          %435 = vadd.xlane.f32.xlu0 %v434
          %v436 = vpop.xlane.xlu0 %435
          %v437 = vsel %vm382, %v368, 0.0
          %438 = vadd.xlane.f32.xlu0 %v437
          %v439 = vpop.xlane.xlu0 %438
          %v440 = vsel %vm382, %v369, 0.0
          %441 = vadd.xlane.f32.xlu0 %v440
          %v442 = vpop.xlane.xlu0 %441
          %v443 = vsel %vm382, %v370, 0.0
          %444 = vadd.xlane.f32.xlu0 %v443
          %v445 = vpop.xlane.xlu0 %444
          %v446 = vsel %vm382, %v371, 0.0
          %447 = vadd.xlane.f32.xlu0 %v446
          %v448 = vpop.xlane.xlu0 %447
          %v449 = vsel %vm382, %v372, 0.0
          %450 = vadd.xlane.f32.xlu0 %v449
          %v451 = vpop.xlane.xlu0 %450
          %v452 = vsel %vm382, %v373, 0.0
          %453 = vadd.xlane.f32.xlu0 %v452
          %v454 = vpop.xlane.xlu0 %453
          %v455 = vsel %vm382, %v374, 0.0
          %456 = vadd.xlane.f32.xlu0 %v455
          %v457 = vpop.xlane.xlu0 %456
          %v458 = vsel %vm382, %v375, 0.0
          %459 = vadd.xlane.f32.xlu0 %v458
          %v460 = vpop.xlane.xlu0 %459
          %v461 = vsel %vm382, %v376, 0.0
          %462 = vadd.xlane.f32.xlu0 %v461
          %v463 = vpop.xlane.xlu0 %462
          %v464 = vsel %vm382, %v377, 0.0
          %465 = vadd.xlane.f32.xlu0 %v464
          %v466 = vpop.xlane.xlu0 %465
          %v467 = vsel %vm382, %v378, 0.0
          %468 = vadd.xlane.f32.xlu0 %v467
          %v469 = vpop.xlane.xlu0 %468
          %v470 = vsel %vm382, %v379, 0.0
          %471 = vadd.xlane.f32.xlu0 %v470
          %v472 = vpop.xlane.xlu0 %471
          %v473 = vsel %vm382, %v380, 0.0
          %474 = vadd.xlane.f32.xlu0 %v473
          %v475 = vpop.xlane.xlu0 %474
          %v476 = vsel %vm382, %v381, 0.0
          %477 = vadd.xlane.f32.xlu0 %v476
          %v478 = vpop.xlane.xlu0 %477
          %v479 = vrcp.pop 32.0
          %v480 = vmul.f32 %v385, %v479
          %v481 = vmul.f32 %v388, %v479
          %v482 = vmul.f32 %v391, %v479
          %v483 = vmul.f32 %v394, %v479
          %v484 = vmul.f32 %v397, %v479
          %v485 = vmul.f32 %v400, %v479
          %v486 = vmul.f32 %v403, %v479
          %v487 = vmul.f32 %v406, %v479
          %v488 = vmul.f32 %v409, %v479
          %v489 = vmul.f32 %v412, %v479
          %v490 = vmul.f32 %v415, %v479
          %v491 = vmul.f32 %v418, %v479
          %v492 = vmul.f32 %v421, %v479
          %v493 = vmul.f32 %v424, %v479
          %v494 = vmul.f32 %v427, %v479
          %v495 = vmul.f32 %v430, %v479
          %v496 = vmul.f32 %v433, %v479
          %v497 = vmul.f32 %v436, %v479
          %v498 = vmul.f32 %v439, %v479
          %v499 = vmul.f32 %v442, %v479
          %v500 = vmul.f32 %v445, %v479
          %v501 = vmul.f32 %v448, %v479
          %v502 = vmul.f32 %v451, %v479
          %v503 = vmul.f32 %v454, %v479
          %v504 = vmul.f32 %v457, %v479
          %v505 = vmul.f32 %v460, %v479
          %v506 = vmul.f32 %v463, %v479
          %v507 = vmul.f32 %v466, %v479
          %v508 = vmul.f32 %v469, %v479
          %v509 = vmul.f32 %v472, %v479
          %v510 = vmul.f32 %v475, %v479
          %v511 = vmul.f32 %v478, %v479
          %v512 = vsub.f32 %v350, %v480
          %v513 = vsub.f32 %v351, %v481
          %v514 = vsub.f32 %v352, %v482
          %v515 = vsub.f32 %v353, %v483
          %v516 = vsub.f32 %v354, %v484
          %v517 = vsub.f32 %v355, %v485
          %v518 = vsub.f32 %v356, %v486
          %v519 = vsub.f32 %v357, %v487
          %v520 = vsub.f32 %v358, %v488
          %v521 = vsub.f32 %v359, %v489
          %v522 = vsub.f32 %v360, %v490
          %v523 = vsub.f32 %v361, %v491
          %v524 = vsub.f32 %v362, %v492
          %v525 = vsub.f32 %v363, %v493
          %v526 = vsub.f32 %v364, %v494
          %v527 = vsub.f32 %v365, %v495
          %v528 = vsub.f32 %v366, %v496
          %v529 = vsub.f32 %v367, %v497
          %v530 = vsub.f32 %v368, %v498
          %v531 = vsub.f32 %v369, %v499
          %v532 = vsub.f32 %v370, %v500
          %v533 = vsub.f32 %v371, %v501
          %v534 = vsub.f32 %v372, %v502
          %v535 = vsub.f32 %v373, %v503
          %v536 = vsub.f32 %v374, %v504
          %v537 = vsub.f32 %v375, %v505
          %v538 = vsub.f32 %v376, %v506
          %v539 = vsub.f32 %v377, %v507
          %v540 = vsub.f32 %v378, %v508
          %v541 = vsub.f32 %v379, %v509
          %v542 = vsub.f32 %v380, %v510
          %v543 = vsub.f32 %v381, %v511
          %v544 = vmul.f32 %v512, %v512
          %v545 = vmul.f32 %v513, %v513
          %v546 = vmul.f32 %v514, %v514
          %v547 = vmul.f32 %v515, %v515
          %v548 = vmul.f32 %v516, %v516
          %v549 = vmul.f32 %v517, %v517
          %v550 = vmul.f32 %v518, %v518
          %v551 = vmul.f32 %v519, %v519
          %v552 = vmul.f32 %v520, %v520
          %v553 = vmul.f32 %v521, %v521
          %v554 = vmul.f32 %v522, %v522
          %v555 = vmul.f32 %v523, %v523
          %v556 = vmul.f32 %v524, %v524
          %v557 = vmul.f32 %v525, %v525
          %v558 = vmul.f32 %v526, %v526
          %v559 = vmul.f32 %v527, %v527
          %v560 = vmul.f32 %v528, %v528
          %v561 = vmul.f32 %v529, %v529
          %v562 = vmul.f32 %v530, %v530
          %v563 = vmul.f32 %v531, %v531
          %v564 = vmul.f32 %v532, %v532
          %v565 = vmul.f32 %v533, %v533
          %v566 = vmul.f32 %v534, %v534
          %v567 = vmul.f32 %v535, %v535
          %v568 = vmul.f32 %v536, %v536
          %v569 = vmul.f32 %v537, %v537
          %v570 = vmul.f32 %v538, %v538
          %v571 = vmul.f32 %v539, %v539
          %v572 = vmul.f32 %v540, %v540
          %v573 = vmul.f32 %v541, %v541
          %v574 = vmul.f32 %v542, %v542
          %v575 = vmul.f32 %v543, %v543
          %v576 = vsel %vm382, %v544, 0.0
          %577 = vadd.xlane.f32.xlu0 %v576
          %v578 = vpop.xlane.xlu0 %577
          %v579 = vsel %vm382, %v545, 0.0
          %580 = vadd.xlane.f32.xlu0 %v579
          %v581 = vpop.xlane.xlu0 %580
          %v582 = vsel %vm382, %v546, 0.0
          %583 = vadd.xlane.f32.xlu0 %v582
          %v584 = vpop.xlane.xlu0 %583
          %v585 = vsel %vm382, %v547, 0.0
          %586 = vadd.xlane.f32.xlu0 %v585
          %v587 = vpop.xlane.xlu0 %586
          %v588 = vsel %vm382, %v548, 0.0
          %589 = vadd.xlane.f32.xlu0 %v588
          %v590 = vpop.xlane.xlu0 %589
          %v591 = vsel %vm382, %v549, 0.0
          %592 = vadd.xlane.f32.xlu0 %v591
          %v593 = vpop.xlane.xlu0 %592
          %v594 = vsel %vm382, %v550, 0.0
          %595 = vadd.xlane.f32.xlu0 %v594
          %v596 = vpop.xlane.xlu0 %595
          %v597 = vsel %vm382, %v551, 0.0
          %598 = vadd.xlane.f32.xlu0 %v597
          %v599 = vpop.xlane.xlu0 %598
          %v600 = vsel %vm382, %v552, 0.0
          %601 = vadd.xlane.f32.xlu0 %v600
          %v602 = vpop.xlane.xlu0 %601
          %v603 = vsel %vm382, %v553, 0.0
          %604 = vadd.xlane.f32.xlu0 %v603
          %v605 = vpop.xlane.xlu0 %604
          %v606 = vsel %vm382, %v554, 0.0
          %607 = vadd.xlane.f32.xlu0 %v606
          %v608 = vpop.xlane.xlu0 %607
          %v609 = vsel %vm382, %v555, 0.0
          %610 = vadd.xlane.f32.xlu0 %v609
          %v611 = vpop.xlane.xlu0 %610
          %v612 = vsel %vm382, %v556, 0.0
          %613 = vadd.xlane.f32.xlu0 %v612
          %v614 = vpop.xlane.xlu0 %613
          %v615 = vsel %vm382, %v557, 0.0
          %616 = vadd.xlane.f32.xlu0 %v615
          %v617 = vpop.xlane.xlu0 %616
          %v618 = vsel %vm382, %v558, 0.0
          %619 = vadd.xlane.f32.xlu0 %v618
          %v620 = vpop.xlane.xlu0 %619
          %v621 = vsel %vm382, %v559, 0.0
          %622 = vadd.xlane.f32.xlu0 %v621
          %v623 = vpop.xlane.xlu0 %622
          %v624 = vsel %vm382, %v560, 0.0
          %625 = vadd.xlane.f32.xlu0 %v624
          %v626 = vpop.xlane.xlu0 %625
          %v627 = vsel %vm382, %v561, 0.0
          %628 = vadd.xlane.f32.xlu0 %v627
          %v629 = vpop.xlane.xlu0 %628
          %v630 = vsel %vm382, %v562, 0.0
          %631 = vadd.xlane.f32.xlu0 %v630
          %v632 = vpop.xlane.xlu0 %631
          %v633 = vsel %vm382, %v563, 0.0
          %634 = vadd.xlane.f32.xlu0 %v633
          %v635 = vpop.xlane.xlu0 %634
          %v636 = vsel %vm382, %v564, 0.0
          %637 = vadd.xlane.f32.xlu0 %v636
          %v638 = vpop.xlane.xlu0 %637
          %v639 = vsel %vm382, %v565, 0.0
          %640 = vadd.xlane.f32.xlu0 %v639
          %v641 = vpop.xlane.xlu0 %640
          %v642 = vsel %vm382, %v566, 0.0
          %643 = vadd.xlane.f32.xlu0 %v642
          %v644 = vpop.xlane.xlu0 %643
          %v645 = vsel %vm382, %v567, 0.0
          %646 = vadd.xlane.f32.xlu0 %v645
          %v647 = vpop.xlane.xlu0 %646
          %v648 = vsel %vm382, %v568, 0.0
          %649 = vadd.xlane.f32.xlu0 %v648
          %v650 = vpop.xlane.xlu0 %649
          %v651 = vsel %vm382, %v569, 0.0
          %652 = vadd.xlane.f32.xlu0 %v651
          %v653 = vpop.xlane.xlu0 %652
          %v654 = vsel %vm382, %v570, 0.0
          %655 = vadd.xlane.f32.xlu0 %v654
          %v656 = vpop.xlane.xlu0 %655
          %v657 = vsel %vm382, %v571, 0.0
          %658 = vadd.xlane.f32.xlu0 %v657
          %v659 = vpop.xlane.xlu0 %658
          %v660 = vsel %vm382, %v572, 0.0
          %661 = vadd.xlane.f32.xlu0 %v660
          %v662 = vpop.xlane.xlu0 %661
          %v663 = vsel %vm382, %v573, 0.0
          %664 = vadd.xlane.f32.xlu0 %v663
          %v665 = vpop.xlane.xlu0 %664
          %v666 = vsel %vm382, %v574, 0.0
          %667 = vadd.xlane.f32.xlu0 %v666
          %v668 = vpop.xlane.xlu0 %667
          %v669 = vsel %vm382, %v575, 0.0
          %670 = vadd.xlane.f32.xlu0 %v669
          %v671 = vpop.xlane.xlu0 %670
          %v672 = vmul.f32 %v578, %v479
          %v673 = vmul.f32 %v581, %v479
          %v674 = vmul.f32 %v584, %v479
          %v675 = vmul.f32 %v587, %v479
          %v676 = vmul.f32 %v590, %v479
          %v677 = vmul.f32 %v593, %v479
          %v678 = vmul.f32 %v596, %v479
          %v679 = vmul.f32 %v599, %v479
          %v680 = vmul.f32 %v602, %v479
          %v681 = vmul.f32 %v605, %v479
          %v682 = vmul.f32 %v608, %v479
          %v683 = vmul.f32 %v611, %v479
          %v684 = vmul.f32 %v614, %v479
          %v685 = vmul.f32 %v617, %v479
          %v686 = vmul.f32 %v620, %v479
          %v687 = vmul.f32 %v623, %v479
          %v688 = vmul.f32 %v626, %v479
          %v689 = vmul.f32 %v629, %v479
          %v690 = vmul.f32 %v632, %v479
          %v691 = vmul.f32 %v635, %v479
          %v692 = vmul.f32 %v638, %v479
          %v693 = vmul.f32 %v641, %v479
          %v694 = vmul.f32 %v644, %v479
          %v695 = vmul.f32 %v647, %v479
          %v696 = vmul.f32 %v650, %v479
          %v697 = vmul.f32 %v653, %v479
          %v698 = vmul.f32 %v656, %v479
          %v699 = vmul.f32 %v659, %v479
          %v700 = vmul.f32 %v662, %v479
          %v701 = vmul.f32 %v665, %v479
          %v702 = vmul.f32 %v668, %v479
          %v703 = vmul.f32 %v671, %v479
          %v704 = vadd.f32 %v672, 1e-05
          %v705 = vadd.f32 %v673, 1e-05
          %v706 = vadd.f32 %v674, 1e-05
          %v707 = vadd.f32 %v675, 1e-05
          %v708 = vadd.f32 %v676, 1e-05
          %v709 = vadd.f32 %v677, 1e-05
          %v710 = vadd.f32 %v678, 1e-05
          %v711 = vadd.f32 %v679, 1e-05
          %v712 = vadd.f32 %v680, 1e-05
          %v713 = vadd.f32 %v681, 1e-05
          %v714 = vadd.f32 %v682, 1e-05
          %v715 = vadd.f32 %v683, 1e-05
          %v716 = vadd.f32 %v684, 1e-05
          %v717 = vadd.f32 %v685, 1e-05
          %v718 = vadd.f32 %v686, 1e-05
          %v719 = vadd.f32 %v687, 1e-05
          %v720 = vadd.f32 %v688, 1e-05
          %v721 = vadd.f32 %v689, 1e-05
          %v722 = vadd.f32 %v690, 1e-05
          %v723 = vadd.f32 %v691, 1e-05
          %v724 = vadd.f32 %v692, 1e-05
          %v725 = vadd.f32 %v693, 1e-05
          %v726 = vadd.f32 %v694, 1e-05
          %v727 = vadd.f32 %v695, 1e-05
          %v728 = vadd.f32 %v696, 1e-05
          %v729 = vadd.f32 %v697, 1e-05
          %v730 = vadd.f32 %v698, 1e-05
          %v731 = vadd.f32 %v699, 1e-05
          %v732 = vadd.f32 %v700, 1e-05
          %v733 = vadd.f32 %v701, 1e-05
          %v734 = vadd.f32 %v702, 1e-05
          %v735 = vadd.f32 %v703, 1e-05
          %v736 = vrsqrt.pop %v704
          %v737 = vrsqrt.pop %v705
          %v738 = vrsqrt.pop %v706
          %v739 = vrsqrt.pop %v707
          %v740 = vrsqrt.pop %v708
          %v741 = vrsqrt.pop %v709
          %v742 = vrsqrt.pop %v710
          %v743 = vrsqrt.pop %v711
          %v744 = vrsqrt.pop %v712
          %v745 = vrsqrt.pop %v713
          %v746 = vrsqrt.pop %v714
          %v747 = vrsqrt.pop %v715
          %v748 = vrsqrt.pop %v716
          %v749 = vrsqrt.pop %v717
          %v750 = vrsqrt.pop %v718
          %v751 = vrsqrt.pop %v719
          %v752 = vrsqrt.pop %v720
          %v753 = vrsqrt.pop %v721
          %v754 = vrsqrt.pop %v722
          %v755 = vrsqrt.pop %v723
          %v756 = vrsqrt.pop %v724
          %v757 = vrsqrt.pop %v725
          %v758 = vrsqrt.pop %v726
          %v759 = vrsqrt.pop %v727
          %v760 = vrsqrt.pop %v728
          %v761 = vrsqrt.pop %v729
          %v762 = vrsqrt.pop %v730
          %v763 = vrsqrt.pop %v731
          %v764 = vrsqrt.pop %v732
          %v765 = vrsqrt.pop %v733
          %v766 = vrsqrt.pop %v734
          %v767 = vrsqrt.pop %v735
          %v768 = vmul.f32 %v512, %v736
          %v769 = vmul.f32 %v513, %v737
          %v770 = vmul.f32 %v514, %v738
          %v771 = vmul.f32 %v515, %v739
          %v772 = vmul.f32 %v516, %v740
          %v773 = vmul.f32 %v517, %v741
          %v774 = vmul.f32 %v518, %v742
          %v775 = vmul.f32 %v519, %v743
          %v776 = vmul.f32 %v520, %v744
          %v777 = vmul.f32 %v521, %v745
          %v778 = vmul.f32 %v522, %v746
          %v779 = vmul.f32 %v523, %v747
          %v780 = vmul.f32 %v524, %v748
          %v781 = vmul.f32 %v525, %v749
          %v782 = vmul.f32 %v526, %v750
          %v783 = vmul.f32 %v527, %v751
          %v784 = vmul.f32 %v528, %v752
          %v785 = vmul.f32 %v529, %v753
          %v786 = vmul.f32 %v530, %v754
          %v787 = vmul.f32 %v531, %v755
          %v788 = vmul.f32 %v532, %v756
          %v789 = vmul.f32 %v533, %v757
          %v790 = vmul.f32 %v534, %v758
          %v791 = vmul.f32 %v535, %v759
          %v792 = vmul.f32 %v536, %v760
          %v793 = vmul.f32 %v537, %v761
          %v794 = vmul.f32 %v538, %v762
          %v795 = vmul.f32 %v539, %v763
          %v796 = vmul.f32 %v540, %v764
          %v797 = vmul.f32 %v541, %v765
          %v798 = vmul.f32 %v542, %v766
          %v799 = vmul.f32 %v543, %v767
          %v800 = vld [vmem:[%s1] sm:$0x1]
          %v802 = vlaneseq
          %v803 = vshrl.u32 %v802, 7
          %v804 = vsub.s32 0, %v803
          %v805 = vrot.slane %v800, %v804
          %v807 = vmul.f32 %v768, %v805
          %v808 = vmul.f32 %v769, %v805
          %v809 = vmul.f32 %v770, %v805
          %v810 = vmul.f32 %v771, %v805
          %v811 = vmul.f32 %v772, %v805
          %v812 = vmul.f32 %v773, %v805
          %v813 = vmul.f32 %v774, %v805
          %v814 = vmul.f32 %v775, %v805
          %v815 = vmul.f32 %v776, %v805
          %v816 = vmul.f32 %v777, %v805
          %v817 = vmul.f32 %v778, %v805
          %v818 = vmul.f32 %v779, %v805
          %v819 = vmul.f32 %v780, %v805
          %v820 = vmul.f32 %v781, %v805
          %v821 = vmul.f32 %v782, %v805
          %v822 = vmul.f32 %v783, %v805
          %v823 = vmul.f32 %v784, %v805
          %v824 = vmul.f32 %v785, %v805
          %v825 = vmul.f32 %v786, %v805
          %v826 = vmul.f32 %v787, %v805
          %v827 = vmul.f32 %v788, %v805
          %v828 = vmul.f32 %v789, %v805
          %v829 = vmul.f32 %v790, %v805
          %v830 = vmul.f32 %v791, %v805
          %v831 = vmul.f32 %v792, %v805
          %v832 = vmul.f32 %v793, %v805
          %v833 = vmul.f32 %v794, %v805
          %v834 = vmul.f32 %v795, %v805
          %v835 = vmul.f32 %v796, %v805
          %v836 = vmul.f32 %v797, %v805
          %v837 = vmul.f32 %v798, %v805
          %v838 = vmul.f32 %v799, %v805
          %v839 = vld [vmem:[%s2] sm:$0x1]
          %v841 = vlaneseq
          %v842 = vshrl.u32 %v841, 7
          %v843 = vsub.s32 0, %v842
          %v844 = vrot.slane %v839, %v843
          %v846 = vadd.f32 %v807, %v844
          %v847 = vadd.f32 %v808, %v844
          %v848 = vadd.f32 %v809, %v844
          %v849 = vadd.f32 %v810, %v844
          %v850 = vadd.f32 %v811, %v844
          %v851 = vadd.f32 %v812, %v844
          %v852 = vadd.f32 %v813, %v844
          %v853 = vadd.f32 %v814, %v844
          %v854 = vadd.f32 %v815, %v844
          %v855 = vadd.f32 %v816, %v844
          %v856 = vadd.f32 %v817, %v844
          %v857 = vadd.f32 %v818, %v844
          %v858 = vadd.f32 %v819, %v844
          %v859 = vadd.f32 %v820, %v844
          %v860 = vadd.f32 %v821, %v844
          %v861 = vadd.f32 %v822, %v844
          %v862 = vadd.f32 %v823, %v844
          %v863 = vadd.f32 %v824, %v844
          %v864 = vadd.f32 %v825, %v844
          %v865 = vadd.f32 %v826, %v844
          %v866 = vadd.f32 %v827, %v844
          %v867 = vadd.f32 %v828, %v844
          %v868 = vadd.f32 %v829, %v844
          %v869 = vadd.f32 %v830, %v844
          %v870 = vadd.f32 %v831, %v844
          %v871 = vadd.f32 %v832, %v844
          %v872 = vadd.f32 %v833, %v844
          %v873 = vadd.f32 %v834, %v844
          %v874 = vadd.f32 %v835, %v844
          %v875 = vadd.f32 %v836, %v844
          %v876 = vadd.f32 %v837, %v844
          %v877 = vadd.f32 %v838, %v844
          %v878 = vpack.c.bf16 %v847, %v846
          %v879 = vpack.c.bf16 %v849, %v848
          %v880 = vpack.c.bf16 %v851, %v850
          %v881 = vpack.c.bf16 %v853, %v852
          %v882 = vpack.c.bf16 %v855, %v854
          %v883 = vpack.c.bf16 %v857, %v856
          %v884 = vpack.c.bf16 %v859, %v858
          %v885 = vpack.c.bf16 %v861, %v860
          %v886 = vpack.c.bf16 %v863, %v862
          %v887 = vpack.c.bf16 %v865, %v864
          %v888 = vpack.c.bf16 %v867, %v866
          %v889 = vpack.c.bf16 %v869, %v868
          %v890 = vpack.c.bf16 %v871, %v870
          %v891 = vpack.c.bf16 %v873, %v872
          %v892 = vpack.c.bf16 %v875, %v874
          %v893 = vpack.c.bf16 %v877, %v876
          %v910 = vunpack.c.l.b16 %v878
          %v911 = vunpack.c.h.b16 %v878
          %v912 = vunpack.c.l.b16 %v879
          %v913 = vunpack.c.h.b16 %v879
          %v914 = vunpack.c.l.b16 %v880
          %v915 = vunpack.c.h.b16 %v880
          %v916 = vunpack.c.l.b16 %v881
          %v917 = vunpack.c.h.b16 %v881
          %v918 = vunpack.c.l.b16 %v882
          %v919 = vunpack.c.h.b16 %v882
          %v920 = vunpack.c.l.b16 %v883
          %v921 = vunpack.c.h.b16 %v883
          %v922 = vunpack.c.l.b16 %v884
          %v923 = vunpack.c.h.b16 %v884
          %v924 = vunpack.c.l.b16 %v885
          %v925 = vunpack.c.h.b16 %v885
          %v926 = vunpack.c.l.b16 %v886
          %v927 = vunpack.c.h.b16 %v886
          %v928 = vunpack.c.l.b16 %v887
          %v929 = vunpack.c.h.b16 %v887
          %v930 = vunpack.c.l.b16 %v888
          %v931 = vunpack.c.h.b16 %v888
          %v932 = vunpack.c.l.b16 %v889
          %v933 = vunpack.c.h.b16 %v889
          %v934 = vunpack.c.l.b16 %v890
          %v935 = vunpack.c.h.b16 %v890
          %v936 = vunpack.c.l.b16 %v891
          %v937 = vunpack.c.h.b16 %v891
          %v938 = vunpack.c.l.b16 %v892
          %v939 = vunpack.c.h.b16 %v892
          %v940 = vunpack.c.l.b16 %v893
          %v941 = vunpack.c.h.b16 %v893
          %v942 = vpack.c.b16 %v910, %v910
          %v943 = vpack.c.b16 %v911, %v911
          %v944 = vpack.c.b16 %v912, %v912
          %v945 = vpack.c.b16 %v913, %v913
          %v946 = vpack.c.b16 %v914, %v914
          %v947 = vpack.c.b16 %v915, %v915
          %v948 = vpack.c.b16 %v916, %v916
          %v949 = vpack.c.b16 %v917, %v917
          %v950 = vpack.c.b16 %v918, %v918
          %v951 = vpack.c.b16 %v919, %v919
          %v952 = vpack.c.b16 %v920, %v920
          %v953 = vpack.c.b16 %v921, %v921
          %v954 = vpack.c.b16 %v922, %v922
          %v955 = vpack.c.b16 %v923, %v923
          %v956 = vpack.c.b16 %v924, %v924
          %v957 = vpack.c.b16 %v925, %v925
          %v958 = vpack.c.b16 %v926, %v926
          %v959 = vpack.c.b16 %v927, %v927
          %v960 = vpack.c.b16 %v928, %v928
          %v961 = vpack.c.b16 %v929, %v929
          %v962 = vpack.c.b16 %v930, %v930
          %v963 = vpack.c.b16 %v931, %v931
          %v964 = vpack.c.b16 %v932, %v932
          %v965 = vpack.c.b16 %v933, %v933
          %v966 = vpack.c.b16 %v934, %v934
          %v967 = vpack.c.b16 %v935, %v935
          %v968 = vpack.c.b16 %v936, %v936
          %v969 = vpack.c.b16 %v937, %v937
          %v970 = vpack.c.b16 %v938, %v938
          %v971 = vpack.c.b16 %v939, %v939
          %v972 = vpack.c.b16 %v940, %v940
          %v973 = vpack.c.b16 %v941, %v941
          %vm1006 = vcmask 257024
          %1007 = vst.msk [vmem:[#allocation2] sm:$0xf] %vm1006, %v942
          %1008 = vst.msk [vmem:[#allocation2 + $0x4] sm:$0xf] %vm1006, %v943
          %1009 = vst.msk [vmem:[#allocation2 + $0x8] sm:$0xf] %vm1006, %v944
          %1010 = vst.msk [vmem:[#allocation2 + $0xc] sm:$0xf] %vm1006, %v945
          %1011 = vst.msk [vmem:[#allocation2 + $0x10] sm:$0xf] %vm1006, %v946
          %1012 = vst.msk [vmem:[#allocation2 + $0x14] sm:$0xf] %vm1006, %v947
          %1013 = vst.msk [vmem:[#allocation2 + $0x18] sm:$0xf] %vm1006, %v948
          %1014 = vst.msk [vmem:[#allocation2 + $0x1c] sm:$0xf] %vm1006, %v949
          %1015 = vst.msk [vmem:[#allocation2 + $0x20] sm:$0xf] %vm1006, %v950
          %1016 = vst.msk [vmem:[#allocation2 + $0x24] sm:$0xf] %vm1006, %v951
          %1017 = vst.msk [vmem:[#allocation2 + $0x28] sm:$0xf] %vm1006, %v952
          %1018 = vst.msk [vmem:[#allocation2 + $0x2c] sm:$0xf] %vm1006, %v953
          %1019 = vst.msk [vmem:[#allocation2 + $0x30] sm:$0xf] %vm1006, %v954
          %1020 = vst.msk [vmem:[#allocation2 + $0x34] sm:$0xf] %vm1006, %v955
          %1021 = vst.msk [vmem:[#allocation2 + $0x38] sm:$0xf] %vm1006, %v956
          %1022 = vst.msk [vmem:[#allocation2 + $0x3c] sm:$0xf] %vm1006, %v957
          %1023 = vst.msk [vmem:[#allocation2 + $0x40] sm:$0xf] %vm1006, %v958
          %1024 = vst.msk [vmem:[#allocation2 + $0x44] sm:$0xf] %vm1006, %v959
          %1025 = vst.msk [vmem:[#allocation2 + $0x48] sm:$0xf] %vm1006, %v960
          %1026 = vst.msk [vmem:[#allocation2 + $0x4c] sm:$0xf] %vm1006, %v961
          %1027 = vst.msk [vmem:[#allocation2 + $0x50] sm:$0xf] %vm1006, %v962
          %1028 = vst.msk [vmem:[#allocation2 + $0x54] sm:$0xf] %vm1006, %v963
          %1029 = vst.msk [vmem:[#allocation2 + $0x58] sm:$0xf] %vm1006, %v964
          %1030 = vst.msk [vmem:[#allocation2 + $0x5c] sm:$0xf] %vm1006, %v965
          %1031 = vst.msk [vmem:[#allocation2 + $0x60] sm:$0xf] %vm1006, %v966
          %1032 = vst.msk [vmem:[#allocation2 + $0x64] sm:$0xf] %vm1006, %v967
          %1033 = vst.msk [vmem:[#allocation2 + $0x68] sm:$0xf] %vm1006, %v968
          %1034 = vst.msk [vmem:[#allocation2 + $0x6c] sm:$0xf] %vm1006, %v969
          %1035 = vst.msk [vmem:[#allocation2 + $0x70] sm:$0xf] %vm1006, %v970
          %1036 = vst.msk [vmem:[#allocation2 + $0x74] sm:$0xf] %vm1006, %v971
          %1037 = vst.msk [vmem:[#allocation2 + $0x78] sm:$0xf] %vm1006, %v972
          %1038 = vst.msk [vmem:[#allocation2 + $0x7c] sm:$0xf] %vm1006, %v973
          %1039 = vst.msk [vmem:[#allocation3] sm:$0xff] %vm382, 0.0
          %1040 = vst.msk [vmem:[#allocation3 + $0x8] sm:$0xff] %vm382, 0.0
          %1041 = vst.msk [vmem:[#allocation3 + $0x10] sm:$0xff] %vm382, 0.0
          %1042 = vst.msk [vmem:[#allocation3 + $0x18] sm:$0xff] %vm382, 0.0
          %1043 = vst.msk [vmem:[#allocation3 + $0x20] sm:$0xff] %vm382, 0.0
          %1044 = vst.msk [vmem:[#allocation3 + $0x28] sm:$0xff] %vm382, 0.0
          %1045 = vst.msk [vmem:[#allocation3 + $0x30] sm:$0xff] %vm382, 0.0
          %1046 = vst.msk [vmem:[#allocation3 + $0x38] sm:$0xff] %vm382, 0.0
          %1047 = vst.msk [vmem:[#allocation3 + $0x40] sm:$0xff] %vm382, 0.0
          %1048 = vst.msk [vmem:[#allocation3 + $0x48] sm:$0xff] %vm382, 0.0
          %1049 = vst.msk [vmem:[#allocation3 + $0x50] sm:$0xff] %vm382, 0.0
          %1050 = vst.msk [vmem:[#allocation3 + $0x58] sm:$0xff] %vm382, 0.0
          %1051 = vst.msk [vmem:[#allocation3 + $0x60] sm:$0xff] %vm382, 0.0
          %1052 = vst.msk [vmem:[#allocation3 + $0x68] sm:$0xff] %vm382, 0.0
          %1053 = vst.msk [vmem:[#allocation3 + $0x70] sm:$0xff] %vm382, 0.0
          %1054 = vst.msk [vmem:[#allocation3 + $0x78] sm:$0xff] %vm382, 0.0
          %1055 = vst.msk [vmem:[#allocation3 + $0x80] sm:$0xff] %vm382, 0.0
          %1056 = vst.msk [vmem:[#allocation3 + $0x88] sm:$0xff] %vm382, 0.0
          %1057 = vst.msk [vmem:[#allocation3 + $0x90] sm:$0xff] %vm382, 0.0
          %1058 = vst.msk [vmem:[#allocation3 + $0x98] sm:$0xff] %vm382, 0.0
          %1059 = vst.msk [vmem:[#allocation3 + $0xa0] sm:$0xff] %vm382, 0.0
          %1060 = vst.msk [vmem:[#allocation3 + $0xa8] sm:$0xff] %vm382, 0.0
          %1061 = vst.msk [vmem:[#allocation3 + $0xb0] sm:$0xff] %vm382, 0.0
          %1062 = vst.msk [vmem:[#allocation3 + $0xb8] sm:$0xff] %vm382, 0.0
          %1063 = vst.msk [vmem:[#allocation3 + $0xc0] sm:$0xff] %vm382, 0.0
          %1064 = vst.msk [vmem:[#allocation3 + $0xc8] sm:$0xff] %vm382, 0.0
          %1065 = vst.msk [vmem:[#allocation3 + $0xd0] sm:$0xff] %vm382, 0.0
          %1066 = vst.msk [vmem:[#allocation3 + $0xd8] sm:$0xff] %vm382, 0.0
          %1067 = vst.msk [vmem:[#allocation3 + $0xe0] sm:$0xff] %vm382, 0.0
          %1068 = vst.msk [vmem:[#allocation3 + $0xe8] sm:$0xff] %vm382, 0.0
          %1069 = vst.msk [vmem:[#allocation3 + $0xf0] sm:$0xff] %vm382, 0.0
          %1070 = vst.msk [vmem:[#allocation3 + $0xf8] sm:$0xff] %vm382, 0.0
        $region52: #{swin_block_forward.7} parent=47 // pred_fallthru
          _
        %v1071 = vld [vmem:[#allocation2] sm:$0xf]
        %v1072 = vld [vmem:[#allocation2 + $0x4] sm:$0xf]
        %v1073 = vld [vmem:[#allocation2 + $0x8] sm:$0xf]
        %v1074 = vld [vmem:[#allocation2 + $0xc] sm:$0xf]
        %v1075 = vld [vmem:[#allocation2 + $0x10] sm:$0xf]
        %v1076 = vld [vmem:[#allocation2 + $0x14] sm:$0xf]
        %v1077 = vld [vmem:[#allocation2 + $0x18] sm:$0xf]
        %v1078 = vld [vmem:[#allocation2 + $0x1c] sm:$0xf]
        %v1079 = vld [vmem:[#allocation2 + $0x20] sm:$0xf]
        %v1080 = vld [vmem:[#allocation2 + $0x24] sm:$0xf]
        %v1081 = vld [vmem:[#allocation2 + $0x28] sm:$0xf]
        %v1082 = vld [vmem:[#allocation2 + $0x2c] sm:$0xf]
        %v1083 = vld [vmem:[#allocation2 + $0x30] sm:$0xf]
        %v1084 = vld [vmem:[#allocation2 + $0x34] sm:$0xf]
        %v1085 = vld [vmem:[#allocation2 + $0x38] sm:$0xf]
        %v1086 = vld [vmem:[#allocation2 + $0x3c] sm:$0xf]
        %v1087 = vld [vmem:[#allocation2 + $0x40] sm:$0xf]
        %v1088 = vld [vmem:[#allocation2 + $0x44] sm:$0xf]
        %v1089 = vld [vmem:[#allocation2 + $0x48] sm:$0xf]
        %v1090 = vld [vmem:[#allocation2 + $0x4c] sm:$0xf]
        %v1091 = vld [vmem:[#allocation2 + $0x50] sm:$0xf]
        %v1092 = vld [vmem:[#allocation2 + $0x54] sm:$0xf]
        %v1093 = vld [vmem:[#allocation2 + $0x58] sm:$0xf]
        %v1094 = vld [vmem:[#allocation2 + $0x5c] sm:$0xf]
        %v1095 = vld [vmem:[#allocation2 + $0x60] sm:$0xf]
        %v1096 = vld [vmem:[#allocation2 + $0x64] sm:$0xf]
        %v1097 = vld [vmem:[#allocation2 + $0x68] sm:$0xf]
        %v1098 = vld [vmem:[#allocation2 + $0x6c] sm:$0xf]
        %v1099 = vld [vmem:[#allocation2 + $0x70] sm:$0xf]
        %v1100 = vld [vmem:[#allocation2 + $0x74] sm:$0xf]
        %v1101 = vld [vmem:[#allocation2 + $0x78] sm:$0xf]
        %v1102 = vld [vmem:[#allocation2 + $0x7c] sm:$0xf]
        %v1103 = vld [vmem:[%s334] sm:$0xf]
        %v1104 = vld [vmem:[%s334 + $0x4] sm:$0xf]
        %v1105 = vld [vmem:[%s334 + $0x8] sm:$0xf]
        %v1106 = vld [vmem:[%s334 + $0xc] sm:$0xf]
        %v1107 = vld [vmem:[%s337] sm:$0x1]
        %v1109 = vlaneseq
        %v1110 = vshrl.u32 %v1109, 7
        %v1111 = vsub.s32 0, %v1110
        %v1112 = vrot.slane %v1107, %v1111
        %v1146 = vunpack.c.l.b16 %v1071
        %v1147 = vunpack.c.l.b16 %v1072
        %v1148 = vunpack.c.l.b16 %v1073
        %v1149 = vunpack.c.l.b16 %v1074
        %v1150 = vunpack.c.l.b16 %v1075
        %v1151 = vunpack.c.l.b16 %v1076
        %v1152 = vunpack.c.l.b16 %v1077
        %v1153 = vunpack.c.l.b16 %v1078
        %v1154 = vunpack.c.l.b16 %v1079
        %v1155 = vunpack.c.l.b16 %v1080
        %v1156 = vunpack.c.l.b16 %v1081
        %v1157 = vunpack.c.l.b16 %v1082
        %v1158 = vunpack.c.l.b16 %v1083
        %v1159 = vunpack.c.l.b16 %v1084
        %v1160 = vunpack.c.l.b16 %v1085
        %v1161 = vunpack.c.l.b16 %v1086
        %v1162 = vunpack.c.l.b16 %v1087
        %v1163 = vunpack.c.l.b16 %v1088
        %v1164 = vunpack.c.l.b16 %v1089
        %v1165 = vunpack.c.l.b16 %v1090
        %v1166 = vunpack.c.l.b16 %v1091
        %v1167 = vunpack.c.l.b16 %v1092
        %v1168 = vunpack.c.l.b16 %v1093
        %v1169 = vunpack.c.l.b16 %v1094
        %v1170 = vunpack.c.l.b16 %v1095
        %v1171 = vunpack.c.l.b16 %v1096
        %v1172 = vunpack.c.l.b16 %v1097
        %v1173 = vunpack.c.l.b16 %v1098
        %v1174 = vunpack.c.l.b16 %v1099
        %v1175 = vunpack.c.l.b16 %v1100
        %v1176 = vunpack.c.l.b16 %v1101
        %v1177 = vunpack.c.l.b16 %v1102
        %v1178 = vpack.c.b16 %v1147, %v1146
        %v1179 = vpack.c.b16 %v1149, %v1148
        %v1180 = vpack.c.b16 %v1151, %v1150
        %v1181 = vpack.c.b16 %v1153, %v1152
        %v1182 = vpack.c.b16 %v1155, %v1154
        %v1183 = vpack.c.b16 %v1157, %v1156
        %v1184 = vpack.c.b16 %v1159, %v1158
        %v1185 = vpack.c.b16 %v1161, %v1160
        %v1186 = vpack.c.b16 %v1163, %v1162
        %v1187 = vpack.c.b16 %v1165, %v1164
        %v1188 = vpack.c.b16 %v1167, %v1166
        %v1189 = vpack.c.b16 %v1169, %v1168
        %v1190 = vpack.c.b16 %v1171, %v1170
        %v1191 = vpack.c.b16 %v1173, %v1172
        %v1192 = vpack.c.b16 %v1175, %v1174
        %v1193 = vpack.c.b16 %v1177, %v1176
        %v1198 = vunpack.c.l.b16 %v1103
        %v1199 = vunpack.c.l.b16 %v1104
        %v1200 = vunpack.c.l.b16 %v1105
        %v1201 = vunpack.c.l.b16 %v1106
        %v1202 = vpack.c.b16 %v1199, %v1198
        %v1203 = vpack.c.b16 %v1201, %v1200
        %vm1206 = vcmask 261120
        %v1208 = vsel %vm1206, %v1178, 0
        %v1211 = vsel %vm1206, %v1179, 0
        %v1214 = vsel %vm1206, %v1180, 0
        %v1217 = vsel %vm1206, %v1181, 0
        %v1220 = vsel %vm1206, %v1182, 0
        %v1223 = vsel %vm1206, %v1183, 0
        %v1226 = vsel %vm1206, %v1184, 0
        %v1229 = vsel %vm1206, %v1185, 0
        %v1232 = vsel %vm1206, %v1186, 0
        %v1235 = vsel %vm1206, %v1187, 0
        %v1238 = vsel %vm1206, %v1188, 0
        %v1241 = vsel %vm1206, %v1189, 0
        %v1244 = vsel %vm1206, %v1190, 0
        %v1247 = vsel %vm1206, %v1191, 0
        %v1250 = vsel %vm1206, %v1192, 0
        %v1253 = vsel %vm1206, %v1193, 0
        %1255 = vmatprep.subr.bf16.mxu0 0
        %1256 = vmatpush1.bf16.msra.mxu0 0
        %1257 = vmatprep.subr.bf16.mxu0 0
        %1258 = vmatpush1.bf16.msra.mxu0 0
        %1259 = vmatprep.subr.bf16.mxu0 0
        %1260 = vmatpush1.bf16.msra.mxu0 0
        %1261 = vmatprep.subr.bf16.mxu0 0
        %1262 = vmatpush1.bf16.msra.mxu0 0
        %1263 = vmatprep.subr.bf16.mxu0 0
        %1264 = vmatpush1.bf16.msra.mxu0 0
        %1265 = vmatprep.subr.bf16.mxu0 0
        %1266 = vmatpush1.bf16.msra.mxu0 0
        %1267 = vmatprep.subr.bf16.mxu0 0
        %1268 = vmatpush1.bf16.msra.mxu0 %v1203
        %1269 = vmatprep.subr.bf16.mxu0 0
        %1270 = vmatpush1.bf16.msra.mxu0 %v1202
        %1271 = vmatprep.subr.bf16.mxu0 0
        %1272 = vmatpush2.bf16.msra.mxu0 0
        %1273 = vmatprep.subr.bf16.mxu0 0
        %1274 = vmatpush2.bf16.msra.mxu0 0
        %1275 = vmatprep.subr.bf16.mxu0 0
        %1276 = vmatpush2.bf16.msra.mxu0 0
        %1277 = vmatprep.subr.bf16.mxu0 0
        %1278 = vmatpush2.bf16.msra.mxu0 0
        %1279 = vmatprep.subr.bf16.mxu0 0
        %1280 = vmatpush2.bf16.msra.mxu0 0
        %1281 = vmatprep.subr.bf16.mxu0 0
        %1282 = vmatpush2.bf16.msra.mxu0 0
        %1283 = vmatprep.subr.bf16.mxu0 0
        %1284 = vmatpush2.bf16.msra.mxu0 0
        %1285 = vmatprep.subr.bf16.mxu0 0
        %1286 = vmatpush2.bf16.msra.mxu0 0
        %1287 = vmatprep.mubr.bf16.mxu0 0
        %1288 = vmatmul.mubr.bf16.gmra.mxu0 %v1208
        %v1289 = vpop.f32.mrf.mxu0
        %v1290 = vadd.f32 %v1112, %v1289
        %v1291 = vpop.f32.mrf.mxu0
        %v1292 = vpop.f32.mrf.mxu0
        %v1293 = vadd.f32 %v1112, %v1292
        %v1294 = vpop.f32.mrf.mxu0
        %1295 = vmatprep.mubr.bf16.mxu0 0
        %1296 = vmatmul.mubr.bf16.gmra.mxu0 %v1211
        %v1297 = vpop.f32.mrf.mxu0
        %v1298 = vadd.f32 %v1112, %v1297
        %v1299 = vpop.f32.mrf.mxu0
        %v1300 = vpop.f32.mrf.mxu0
        %v1301 = vadd.f32 %v1112, %v1300
        %v1302 = vpop.f32.mrf.mxu0
        %1303 = vmatprep.mubr.bf16.mxu0 0
        %1304 = vmatmul.mubr.bf16.gmra.mxu0 %v1214
        %v1305 = vpop.f32.mrf.mxu0
        %v1306 = vadd.f32 %v1112, %v1305
        %v1307 = vpop.f32.mrf.mxu0
        %v1308 = vpop.f32.mrf.mxu0
        %v1309 = vadd.f32 %v1112, %v1308
        %v1310 = vpop.f32.mrf.mxu0
        %1311 = vmatprep.mubr.bf16.mxu0 0
        %1312 = vmatmul.mubr.bf16.gmra.mxu0 %v1217
        %v1313 = vpop.f32.mrf.mxu0
        %v1314 = vadd.f32 %v1112, %v1313
        %v1315 = vpop.f32.mrf.mxu0
        %v1316 = vpop.f32.mrf.mxu0
        %v1317 = vadd.f32 %v1112, %v1316
        %v1318 = vpop.f32.mrf.mxu0
        %1319 = vmatprep.mubr.bf16.mxu0 0
        %1320 = vmatmul.mubr.bf16.gmra.mxu0 %v1220
        %v1321 = vpop.f32.mrf.mxu0
        %v1322 = vadd.f32 %v1112, %v1321
        %v1323 = vpop.f32.mrf.mxu0
        %v1324 = vpop.f32.mrf.mxu0
        %v1325 = vadd.f32 %v1112, %v1324
        %v1326 = vpop.f32.mrf.mxu0
        %1327 = vmatprep.mubr.bf16.mxu0 0
        %1328 = vmatmul.mubr.bf16.gmra.mxu0 %v1223
        %v1329 = vpop.f32.mrf.mxu0
        %v1330 = vadd.f32 %v1112, %v1329
        %v1331 = vpop.f32.mrf.mxu0
        %v1332 = vpop.f32.mrf.mxu0
        %v1333 = vadd.f32 %v1112, %v1332
        %v1334 = vpop.f32.mrf.mxu0
        %1335 = vmatprep.mubr.bf16.mxu0 0
        %1336 = vmatmul.mubr.bf16.gmra.mxu0 %v1226
        %v1337 = vpop.f32.mrf.mxu0
        %v1338 = vadd.f32 %v1112, %v1337
        %v1339 = vpop.f32.mrf.mxu0
        %v1340 = vpop.f32.mrf.mxu0
        %v1341 = vadd.f32 %v1112, %v1340
        %v1342 = vpop.f32.mrf.mxu0
        %1343 = vmatprep.mubr.bf16.mxu0 0
        %1344 = vmatmul.mubr.bf16.gmra.mxu0 %v1229
        %v1345 = vpop.f32.mrf.mxu0
        %v1346 = vadd.f32 %v1112, %v1345
        %v1347 = vpop.f32.mrf.mxu0
        %v1348 = vpop.f32.mrf.mxu0
        %v1349 = vadd.f32 %v1112, %v1348
        %v1350 = vpop.f32.mrf.mxu0
        %1351 = vmatprep.mubr.bf16.mxu0 0
        %1352 = vmatmul.mubr.bf16.gmra.mxu0 %v1232
        %v1353 = vpop.f32.mrf.mxu0
        %v1354 = vadd.f32 %v1112, %v1353
        %v1355 = vpop.f32.mrf.mxu0
        %v1356 = vpop.f32.mrf.mxu0
        %v1357 = vadd.f32 %v1112, %v1356
        %v1358 = vpop.f32.mrf.mxu0
        %1359 = vmatprep.mubr.bf16.mxu0 0
        %1360 = vmatmul.mubr.bf16.gmra.mxu0 %v1235
        %v1361 = vpop.f32.mrf.mxu0
        %v1362 = vadd.f32 %v1112, %v1361
        %v1363 = vpop.f32.mrf.mxu0
        %v1364 = vpop.f32.mrf.mxu0
        %v1365 = vadd.f32 %v1112, %v1364
        %v1366 = vpop.f32.mrf.mxu0
        %1367 = vmatprep.mubr.bf16.mxu0 0
        %1368 = vmatmul.mubr.bf16.gmra.mxu0 %v1238
        %v1369 = vpop.f32.mrf.mxu0
        %v1370 = vadd.f32 %v1112, %v1369
        %v1371 = vpop.f32.mrf.mxu0
        %v1372 = vpop.f32.mrf.mxu0
        %v1373 = vadd.f32 %v1112, %v1372
        %v1374 = vpop.f32.mrf.mxu0
        %1375 = vmatprep.mubr.bf16.mxu0 0
        %1376 = vmatmul.mubr.bf16.gmra.mxu0 %v1241
        %v1377 = vpop.f32.mrf.mxu0
        %v1378 = vadd.f32 %v1112, %v1377
        %v1379 = vpop.f32.mrf.mxu0
        %v1380 = vpop.f32.mrf.mxu0
        %v1381 = vadd.f32 %v1112, %v1380
        %v1382 = vpop.f32.mrf.mxu0
        %1383 = vmatprep.mubr.bf16.mxu0 0
        %1384 = vmatmul.mubr.bf16.gmra.mxu0 %v1244
        %v1385 = vpop.f32.mrf.mxu0
        %v1386 = vadd.f32 %v1112, %v1385
        %v1387 = vpop.f32.mrf.mxu0
        %v1388 = vpop.f32.mrf.mxu0
        %v1389 = vadd.f32 %v1112, %v1388
        %v1390 = vpop.f32.mrf.mxu0
        %1391 = vmatprep.mubr.bf16.mxu0 0
        %1392 = vmatmul.mubr.bf16.gmra.mxu0 %v1247
        %v1393 = vpop.f32.mrf.mxu0
        %v1394 = vadd.f32 %v1112, %v1393
        %v1395 = vpop.f32.mrf.mxu0
        %v1396 = vpop.f32.mrf.mxu0
        %v1397 = vadd.f32 %v1112, %v1396
        %v1398 = vpop.f32.mrf.mxu0
        %1399 = vmatprep.mubr.bf16.mxu0 0
        %1400 = vmatmul.mubr.bf16.gmra.mxu0 %v1250
        %v1401 = vpop.f32.mrf.mxu0
        %v1402 = vadd.f32 %v1112, %v1401
        %v1403 = vpop.f32.mrf.mxu0
        %v1404 = vpop.f32.mrf.mxu0
        %v1405 = vadd.f32 %v1112, %v1404
        %v1406 = vpop.f32.mrf.mxu0
        %1407 = vmatprep.mubr.bf16.mxu0 0
        %1408 = vmatmul.mubr.bf16.gmra.mxu0 %v1253
        %v1409 = vpop.f32.mrf.mxu0
        %v1410 = vadd.f32 %v1112, %v1409
        %v1411 = vpop.f32.mrf.mxu0
        %v1412 = vpop.f32.mrf.mxu0
        %v1413 = vadd.f32 %v1112, %v1412
        %v1414 = vpop.f32.mrf.mxu0
        %1415 = vdwg.mxu0
        %v1416 = vmul.f32 %v1290, %v1290
        %v1417 = vmul.f32 %v1293, %v1293
        %v1418 = vmul.f32 %v1298, %v1298
        %v1419 = vmul.f32 %v1301, %v1301
        %v1420 = vmul.f32 %v1306, %v1306
        %v1421 = vmul.f32 %v1309, %v1309
        %v1422 = vmul.f32 %v1314, %v1314
        %v1423 = vmul.f32 %v1317, %v1317
        %v1424 = vmul.f32 %v1322, %v1322
        %v1425 = vmul.f32 %v1325, %v1325
        %v1426 = vmul.f32 %v1330, %v1330
        %v1427 = vmul.f32 %v1333, %v1333
        %v1428 = vmul.f32 %v1338, %v1338
        %v1429 = vmul.f32 %v1341, %v1341
        %v1430 = vmul.f32 %v1346, %v1346
        %v1431 = vmul.f32 %v1349, %v1349
        %v1432 = vmul.f32 %v1354, %v1354
        %v1433 = vmul.f32 %v1357, %v1357
        %v1434 = vmul.f32 %v1362, %v1362
        %v1435 = vmul.f32 %v1365, %v1365
        %v1436 = vmul.f32 %v1370, %v1370
        %v1437 = vmul.f32 %v1373, %v1373
        %v1438 = vmul.f32 %v1378, %v1378
        %v1439 = vmul.f32 %v1381, %v1381
        %v1440 = vmul.f32 %v1386, %v1386
        %v1441 = vmul.f32 %v1389, %v1389
        %v1442 = vmul.f32 %v1394, %v1394
        %v1443 = vmul.f32 %v1397, %v1397
        %v1444 = vmul.f32 %v1402, %v1402
        %v1445 = vmul.f32 %v1405, %v1405
        %v1446 = vmul.f32 %v1410, %v1410
        %v1447 = vmul.f32 %v1413, %v1413
        %v1448 = vmul.f32 %v1290, %v1416
        %v1449 = vmul.f32 %v1293, %v1417
        %v1450 = vmul.f32 %v1298, %v1418
        %v1451 = vmul.f32 %v1301, %v1419
        %v1452 = vmul.f32 %v1306, %v1420
        %v1453 = vmul.f32 %v1309, %v1421
        %v1454 = vmul.f32 %v1314, %v1422
        %v1455 = vmul.f32 %v1317, %v1423
        %v1456 = vmul.f32 %v1322, %v1424
        %v1457 = vmul.f32 %v1325, %v1425
        %v1458 = vmul.f32 %v1330, %v1426
        %v1459 = vmul.f32 %v1333, %v1427
        %v1460 = vmul.f32 %v1338, %v1428
        %v1461 = vmul.f32 %v1341, %v1429
        %v1462 = vmul.f32 %v1346, %v1430
        %v1463 = vmul.f32 %v1349, %v1431
        %v1464 = vmul.f32 %v1354, %v1432
        %v1465 = vmul.f32 %v1357, %v1433
        %v1466 = vmul.f32 %v1362, %v1434
        %v1467 = vmul.f32 %v1365, %v1435
        %v1468 = vmul.f32 %v1370, %v1436
        %v1469 = vmul.f32 %v1373, %v1437
        %v1470 = vmul.f32 %v1378, %v1438
        %v1471 = vmul.f32 %v1381, %v1439
        %v1472 = vmul.f32 %v1386, %v1440
        %v1473 = vmul.f32 %v1389, %v1441
        %v1474 = vmul.f32 %v1394, %v1442
        %v1475 = vmul.f32 %v1397, %v1443
        %v1476 = vmul.f32 %v1402, %v1444
        %v1477 = vmul.f32 %v1405, %v1445
        %v1478 = vmul.f32 %v1410, %v1446
        %v1479 = vmul.f32 %v1413, %v1447
        %v1480 = vmul.f32 %v1448, 0.044715
        %v1481 = vmul.f32 %v1449, 0.044715
        %v1482 = vmul.f32 %v1450, 0.044715
        %v1483 = vmul.f32 %v1451, 0.044715
        %v1484 = vmul.f32 %v1452, 0.044715
        %v1485 = vmul.f32 %v1453, 0.044715
        %v1486 = vmul.f32 %v1454, 0.044715
        %v1487 = vmul.f32 %v1455, 0.044715
        %v1488 = vmul.f32 %v1456, 0.044715
        %v1489 = vmul.f32 %v1457, 0.044715
        %v1490 = vmul.f32 %v1458, 0.044715
        %v1491 = vmul.f32 %v1459, 0.044715
        %v1492 = vmul.f32 %v1460, 0.044715
        %v1493 = vmul.f32 %v1461, 0.044715
        %v1494 = vmul.f32 %v1462, 0.044715
        %v1495 = vmul.f32 %v1463, 0.044715
        %v1496 = vmul.f32 %v1464, 0.044715
        %v1497 = vmul.f32 %v1465, 0.044715
        %v1498 = vmul.f32 %v1466, 0.044715
        %v1499 = vmul.f32 %v1467, 0.044715
        %v1500 = vmul.f32 %v1468, 0.044715
        %v1501 = vmul.f32 %v1469, 0.044715
        %v1502 = vmul.f32 %v1470, 0.044715
        %v1503 = vmul.f32 %v1471, 0.044715
        %v1504 = vmul.f32 %v1472, 0.044715
        %v1505 = vmul.f32 %v1473, 0.044715
        %v1506 = vmul.f32 %v1474, 0.044715
        %v1507 = vmul.f32 %v1475, 0.044715
        %v1508 = vmul.f32 %v1476, 0.044715
        %v1509 = vmul.f32 %v1477, 0.044715
        %v1510 = vmul.f32 %v1478, 0.044715
        %v1511 = vmul.f32 %v1479, 0.044715
        %v1512 = vadd.f32 %v1290, %v1480
        %v1513 = vadd.f32 %v1293, %v1481
        %v1514 = vadd.f32 %v1298, %v1482
        %v1515 = vadd.f32 %v1301, %v1483
        %v1516 = vadd.f32 %v1306, %v1484
        %v1517 = vadd.f32 %v1309, %v1485
        %v1518 = vadd.f32 %v1314, %v1486
        %v1519 = vadd.f32 %v1317, %v1487
        %v1520 = vadd.f32 %v1322, %v1488
        %v1521 = vadd.f32 %v1325, %v1489
        %v1522 = vadd.f32 %v1330, %v1490
        %v1523 = vadd.f32 %v1333, %v1491
        %v1524 = vadd.f32 %v1338, %v1492
        %v1525 = vadd.f32 %v1341, %v1493
        %v1526 = vadd.f32 %v1346, %v1494
        %v1527 = vadd.f32 %v1349, %v1495
        %v1528 = vadd.f32 %v1354, %v1496
        %v1529 = vadd.f32 %v1357, %v1497
        %v1530 = vadd.f32 %v1362, %v1498
        %v1531 = vadd.f32 %v1365, %v1499
        %v1532 = vadd.f32 %v1370, %v1500
        %v1533 = vadd.f32 %v1373, %v1501
        %v1534 = vadd.f32 %v1378, %v1502
        %v1535 = vadd.f32 %v1381, %v1503
        %v1536 = vadd.f32 %v1386, %v1504
        %v1537 = vadd.f32 %v1389, %v1505
        %v1538 = vadd.f32 %v1394, %v1506
        %v1539 = vadd.f32 %v1397, %v1507
        %v1540 = vadd.f32 %v1402, %v1508
        %v1541 = vadd.f32 %v1405, %v1509
        %v1542 = vadd.f32 %v1410, %v1510
        %v1543 = vadd.f32 %v1413, %v1511
        %v1544 = vmul.f32 %v1512, 0.7978846
        %v1545 = vmul.f32 %v1513, 0.7978846
        %v1546 = vmul.f32 %v1514, 0.7978846
        %v1547 = vmul.f32 %v1515, 0.7978846
        %v1548 = vmul.f32 %v1516, 0.7978846
        %v1549 = vmul.f32 %v1517, 0.7978846
        %v1550 = vmul.f32 %v1518, 0.7978846
        %v1551 = vmul.f32 %v1519, 0.7978846
        %v1552 = vmul.f32 %v1520, 0.7978846
        %v1553 = vmul.f32 %v1521, 0.7978846
        %v1554 = vmul.f32 %v1522, 0.7978846
        %v1555 = vmul.f32 %v1523, 0.7978846
        %v1556 = vmul.f32 %v1524, 0.7978846
        %v1557 = vmul.f32 %v1525, 0.7978846
        %v1558 = vmul.f32 %v1526, 0.7978846
        %v1559 = vmul.f32 %v1527, 0.7978846
        %v1560 = vmul.f32 %v1528, 0.7978846
        %v1561 = vmul.f32 %v1529, 0.7978846
        %v1562 = vmul.f32 %v1530, 0.7978846
        %v1563 = vmul.f32 %v1531, 0.7978846
        %v1564 = vmul.f32 %v1532, 0.7978846
        %v1565 = vmul.f32 %v1533, 0.7978846
        %v1566 = vmul.f32 %v1534, 0.7978846
        %v1567 = vmul.f32 %v1535, 0.7978846
        %v1568 = vmul.f32 %v1536, 0.7978846
        %v1569 = vmul.f32 %v1537, 0.7978846
        %v1570 = vmul.f32 %v1538, 0.7978846
        %v1571 = vmul.f32 %v1539, 0.7978846
        %v1572 = vmul.f32 %v1540, 0.7978846
        %v1573 = vmul.f32 %v1541, 0.7978846
        %v1574 = vmul.f32 %v1542, 0.7978846
        %v1575 = vmul.f32 %v1543, 0.7978846
        %v1576 = vtanh.pop %v1544
        %v1577 = vtanh.pop %v1545
        %v1578 = vtanh.pop %v1546
        %v1579 = vtanh.pop %v1547
        %v1580 = vtanh.pop %v1548
        %v1581 = vtanh.pop %v1549
        %v1582 = vtanh.pop %v1550
        %v1583 = vtanh.pop %v1551
        %v1584 = vtanh.pop %v1552
        %v1585 = vtanh.pop %v1553
        %v1586 = vtanh.pop %v1554
        %v1587 = vtanh.pop %v1555
        %v1588 = vtanh.pop %v1556
        %v1589 = vtanh.pop %v1557
        %v1590 = vtanh.pop %v1558
        %v1591 = vtanh.pop %v1559
        %v1592 = vtanh.pop %v1560
        %v1593 = vtanh.pop %v1561
        %v1594 = vtanh.pop %v1562
        %v1595 = vtanh.pop %v1563
        %v1596 = vtanh.pop %v1564
        %v1597 = vtanh.pop %v1565
        %v1598 = vtanh.pop %v1566
        %v1599 = vtanh.pop %v1567
        %v1600 = vtanh.pop %v1568
        %v1601 = vtanh.pop %v1569
        %v1602 = vtanh.pop %v1570
        %v1603 = vtanh.pop %v1571
        %v1604 = vtanh.pop %v1572
        %v1605 = vtanh.pop %v1573
        %v1606 = vtanh.pop %v1574
        %v1607 = vtanh.pop %v1575
        %v1608 = vadd.f32 %v1576, 1.0
        %v1609 = vadd.f32 %v1577, 1.0
        %v1610 = vadd.f32 %v1578, 1.0
        %v1611 = vadd.f32 %v1579, 1.0
        %v1612 = vadd.f32 %v1580, 1.0
        %v1613 = vadd.f32 %v1581, 1.0
        %v1614 = vadd.f32 %v1582, 1.0
        %v1615 = vadd.f32 %v1583, 1.0
        %v1616 = vadd.f32 %v1584, 1.0
        %v1617 = vadd.f32 %v1585, 1.0
        %v1618 = vadd.f32 %v1586, 1.0
        %v1619 = vadd.f32 %v1587, 1.0
        %v1620 = vadd.f32 %v1588, 1.0
        %v1621 = vadd.f32 %v1589, 1.0
        %v1622 = vadd.f32 %v1590, 1.0
        %v1623 = vadd.f32 %v1591, 1.0
        %v1624 = vadd.f32 %v1592, 1.0
        %v1625 = vadd.f32 %v1593, 1.0
        %v1626 = vadd.f32 %v1594, 1.0
        %v1627 = vadd.f32 %v1595, 1.0
        %v1628 = vadd.f32 %v1596, 1.0
        %v1629 = vadd.f32 %v1597, 1.0
        %v1630 = vadd.f32 %v1598, 1.0
        %v1631 = vadd.f32 %v1599, 1.0
        %v1632 = vadd.f32 %v1600, 1.0
        %v1633 = vadd.f32 %v1601, 1.0
        %v1634 = vadd.f32 %v1602, 1.0
        %v1635 = vadd.f32 %v1603, 1.0
        %v1636 = vadd.f32 %v1604, 1.0
        %v1637 = vadd.f32 %v1605, 1.0
        %v1638 = vadd.f32 %v1606, 1.0
        %v1639 = vadd.f32 %v1607, 1.0
        %v1640 = vmul.f32 %v1608, 0.5
        %v1641 = vmul.f32 %v1609, 0.5
        %v1642 = vmul.f32 %v1610, 0.5
        %v1643 = vmul.f32 %v1611, 0.5
        %v1644 = vmul.f32 %v1612, 0.5
        %v1645 = vmul.f32 %v1613, 0.5
        %v1646 = vmul.f32 %v1614, 0.5
        %v1647 = vmul.f32 %v1615, 0.5
        %v1648 = vmul.f32 %v1616, 0.5
        %v1649 = vmul.f32 %v1617, 0.5
        %v1650 = vmul.f32 %v1618, 0.5
        %v1651 = vmul.f32 %v1619, 0.5
        %v1652 = vmul.f32 %v1620, 0.5
        %v1653 = vmul.f32 %v1621, 0.5
        %v1654 = vmul.f32 %v1622, 0.5
        %v1655 = vmul.f32 %v1623, 0.5
        %v1656 = vmul.f32 %v1624, 0.5
        %v1657 = vmul.f32 %v1625, 0.5
        %v1658 = vmul.f32 %v1626, 0.5
        %v1659 = vmul.f32 %v1627, 0.5
        %v1660 = vmul.f32 %v1628, 0.5
        %v1661 = vmul.f32 %v1629, 0.5
        %v1662 = vmul.f32 %v1630, 0.5
        %v1663 = vmul.f32 %v1631, 0.5
        %v1664 = vmul.f32 %v1632, 0.5
        %v1665 = vmul.f32 %v1633, 0.5
        %v1666 = vmul.f32 %v1634, 0.5
        %v1667 = vmul.f32 %v1635, 0.5
        %v1668 = vmul.f32 %v1636, 0.5
        %v1669 = vmul.f32 %v1637, 0.5
        %v1670 = vmul.f32 %v1638, 0.5
        %v1671 = vmul.f32 %v1639, 0.5
        %v1672 = vmul.f32 %v1290, %v1640
        %v1673 = vmul.f32 %v1293, %v1641
        %v1674 = vmul.f32 %v1298, %v1642
        %v1675 = vmul.f32 %v1301, %v1643
        %v1676 = vmul.f32 %v1306, %v1644
        %v1677 = vmul.f32 %v1309, %v1645
        %v1678 = vmul.f32 %v1314, %v1646
        %v1679 = vmul.f32 %v1317, %v1647
        %v1680 = vmul.f32 %v1322, %v1648
        %v1681 = vmul.f32 %v1325, %v1649
        %v1682 = vmul.f32 %v1330, %v1650
        %v1683 = vmul.f32 %v1333, %v1651
        %v1684 = vmul.f32 %v1338, %v1652
        %v1685 = vmul.f32 %v1341, %v1653
        %v1686 = vmul.f32 %v1346, %v1654
        %v1687 = vmul.f32 %v1349, %v1655
        %v1688 = vmul.f32 %v1354, %v1656
        %v1689 = vmul.f32 %v1357, %v1657
        %v1690 = vmul.f32 %v1362, %v1658
        %v1691 = vmul.f32 %v1365, %v1659
        %v1692 = vmul.f32 %v1370, %v1660
        %v1693 = vmul.f32 %v1373, %v1661
        %v1694 = vmul.f32 %v1378, %v1662
        %v1695 = vmul.f32 %v1381, %v1663
        %v1696 = vmul.f32 %v1386, %v1664
        %v1697 = vmul.f32 %v1389, %v1665
        %v1698 = vmul.f32 %v1394, %v1666
        %v1699 = vmul.f32 %v1397, %v1667
        %v1700 = vmul.f32 %v1402, %v1668
        %v1701 = vmul.f32 %v1405, %v1669
        %v1702 = vmul.f32 %v1410, %v1670
        %v1703 = vmul.f32 %v1413, %v1671
        %v1704 = vld [vmem:[#allocation3] sm:$0xff]
        %v1705 = vld [vmem:[#allocation3 + $0x8] sm:$0xff]
        %v1706 = vld [vmem:[#allocation3 + $0x10] sm:$0xff]
        %v1707 = vld [vmem:[#allocation3 + $0x18] sm:$0xff]
        %v1708 = vld [vmem:[#allocation3 + $0x20] sm:$0xff]
        %v1709 = vld [vmem:[#allocation3 + $0x28] sm:$0xff]
        %v1710 = vld [vmem:[#allocation3 + $0x30] sm:$0xff]
        %v1711 = vld [vmem:[#allocation3 + $0x38] sm:$0xff]
        %v1712 = vld [vmem:[#allocation3 + $0x40] sm:$0xff]
        %v1713 = vld [vmem:[#allocation3 + $0x48] sm:$0xff]
        %v1714 = vld [vmem:[#allocation3 + $0x50] sm:$0xff]
        %v1715 = vld [vmem:[#allocation3 + $0x58] sm:$0xff]
        %v1716 = vld [vmem:[#allocation3 + $0x60] sm:$0xff]
        %v1717 = vld [vmem:[#allocation3 + $0x68] sm:$0xff]
        %v1718 = vld [vmem:[#allocation3 + $0x70] sm:$0xff]
        %v1719 = vld [vmem:[#allocation3 + $0x78] sm:$0xff]
        %v1720 = vld [vmem:[#allocation3 + $0x80] sm:$0xff]
        %v1721 = vld [vmem:[#allocation3 + $0x88] sm:$0xff]
        %v1722 = vld [vmem:[#allocation3 + $0x90] sm:$0xff]
        %v1723 = vld [vmem:[#allocation3 + $0x98] sm:$0xff]
        %v1724 = vld [vmem:[#allocation3 + $0xa0] sm:$0xff]
        %v1725 = vld [vmem:[#allocation3 + $0xa8] sm:$0xff]
        %v1726 = vld [vmem:[#allocation3 + $0xb0] sm:$0xff]
        %v1727 = vld [vmem:[#allocation3 + $0xb8] sm:$0xff]
        %v1728 = vld [vmem:[#allocation3 + $0xc0] sm:$0xff]
        %v1729 = vld [vmem:[#allocation3 + $0xc8] sm:$0xff]
        %v1730 = vld [vmem:[#allocation3 + $0xd0] sm:$0xff]
        %v1731 = vld [vmem:[#allocation3 + $0xd8] sm:$0xff]
        %v1732 = vld [vmem:[#allocation3 + $0xe0] sm:$0xff]
        %v1733 = vld [vmem:[#allocation3 + $0xe8] sm:$0xff]
        %v1734 = vld [vmem:[#allocation3 + $0xf0] sm:$0xff]
        %v1735 = vld [vmem:[#allocation3 + $0xf8] sm:$0xff]
        %v1736 = vpack.c.bf16 %v1673, %v1672
        %v1737 = vpack.c.bf16 %v1675, %v1674
        %v1738 = vpack.c.bf16 %v1677, %v1676
        %v1739 = vpack.c.bf16 %v1679, %v1678
        %v1740 = vpack.c.bf16 %v1681, %v1680
        %v1741 = vpack.c.bf16 %v1683, %v1682
        %v1742 = vpack.c.bf16 %v1685, %v1684
        %v1743 = vpack.c.bf16 %v1687, %v1686
        %v1744 = vpack.c.bf16 %v1689, %v1688
        %v1745 = vpack.c.bf16 %v1691, %v1690
        %v1746 = vpack.c.bf16 %v1693, %v1692
        %v1747 = vpack.c.bf16 %v1695, %v1694
        %v1748 = vpack.c.bf16 %v1697, %v1696
        %v1749 = vpack.c.bf16 %v1699, %v1698
        %v1750 = vpack.c.bf16 %v1701, %v1700
        %v1751 = vpack.c.bf16 %v1703, %v1702
        %v1752 = vld [vmem:[%s342] sm:$0xf]
        %v1753 = vld [vmem:[%s342 + $0x4] sm:$0xf]
        %v1754 = vld [vmem:[%s342 + $0x8] sm:$0xf]
        %v1755 = vld [vmem:[%s342 + $0xc] sm:$0xf]
        %v1756 = vld [vmem:[%s342 + $0x10] sm:$0xf]
        %v1757 = vld [vmem:[%s342 + $0x14] sm:$0xf]
        %v1758 = vld [vmem:[%s342 + $0x18] sm:$0xf]
        %v1759 = vld [vmem:[%s342 + $0x1c] sm:$0xf]
        %v1760 = vld [vmem:[%s342 + $0x20] sm:$0xf]
        %v1761 = vld [vmem:[%s342 + $0x24] sm:$0xf]
        %v1762 = vld [vmem:[%s342 + $0x28] sm:$0xf]
        %v1763 = vld [vmem:[%s342 + $0x2c] sm:$0xf]
        %v1764 = vld [vmem:[%s342 + $0x30] sm:$0xf]
        %v1765 = vld [vmem:[%s342 + $0x34] sm:$0xf]
        %v1766 = vld [vmem:[%s342 + $0x38] sm:$0xf]
        %v1767 = vld [vmem:[%s342 + $0x3c] sm:$0xf]
        %v1784 = vunpack.c.l.b16 %v1752
        %v1785 = vunpack.c.l.b16 %v1753
        %v1786 = vunpack.c.l.b16 %v1754
        %v1787 = vunpack.c.l.b16 %v1755
        %v1788 = vunpack.c.l.b16 %v1756
        %v1789 = vunpack.c.l.b16 %v1757
        %v1790 = vunpack.c.l.b16 %v1758
        %v1791 = vunpack.c.l.b16 %v1759
        %v1792 = vunpack.c.l.b16 %v1760
        %v1793 = vunpack.c.l.b16 %v1761
        %v1794 = vunpack.c.l.b16 %v1762
        %v1795 = vunpack.c.l.b16 %v1763
        %v1796 = vunpack.c.l.b16 %v1764
        %v1797 = vunpack.c.l.b16 %v1765
        %v1798 = vunpack.c.l.b16 %v1766
        %v1799 = vunpack.c.l.b16 %v1767
        %v1800 = vpack.c.b16 %v1785, %v1784
        %v1801 = vpack.c.b16 %v1787, %v1786
        %v1802 = vpack.c.b16 %v1789, %v1788
        %v1803 = vpack.c.b16 %v1791, %v1790
        %v1804 = vpack.c.b16 %v1793, %v1792
        %v1805 = vpack.c.b16 %v1795, %v1794
        %v1806 = vpack.c.b16 %v1797, %v1796
        %v1807 = vpack.c.b16 %v1799, %v1798
        %1816 = vmatprep.subr.bf16.mxu0 0
        %1817 = vmatpush1.bf16.msra.mxu0 %v1807
        %1818 = vmatprep.subr.bf16.mxu0 0
        %1819 = vmatpush1.bf16.msra.mxu0 %v1806
        %1820 = vmatprep.subr.bf16.mxu0 0
        %1821 = vmatpush1.bf16.msra.mxu0 %v1805
        %1822 = vmatprep.subr.bf16.mxu0 0
        %1823 = vmatpush1.bf16.msra.mxu0 %v1804
        %1824 = vmatprep.subr.bf16.mxu0 0
        %1825 = vmatpush1.bf16.msra.mxu0 %v1803
        %1826 = vmatprep.subr.bf16.mxu0 0
        %1827 = vmatpush1.bf16.msra.mxu0 %v1802
        %1828 = vmatprep.subr.bf16.mxu0 0
        %1829 = vmatpush1.bf16.msra.mxu0 %v1801
        %1830 = vmatprep.subr.bf16.mxu0 0
        %1831 = vmatpush1.bf16.msra.mxu0 %v1800
        %1832 = vmatprep.subr.bf16.mxu0 0
        %1833 = vmatpush2.bf16.msra.mxu0 0
        %1834 = vmatprep.subr.bf16.mxu0 0
        %1835 = vmatpush2.bf16.msra.mxu0 0
        %1836 = vmatprep.subr.bf16.mxu0 0
        %1837 = vmatpush2.bf16.msra.mxu0 0
        %1838 = vmatprep.subr.bf16.mxu0 0
        %1839 = vmatpush2.bf16.msra.mxu0 0
        %1840 = vmatprep.subr.bf16.mxu0 0
        %1841 = vmatpush2.bf16.msra.mxu0 0
        %1842 = vmatprep.subr.bf16.mxu0 0
        %1843 = vmatpush2.bf16.msra.mxu0 0
        %1844 = vmatprep.subr.bf16.mxu0 0
        %1845 = vmatpush2.bf16.msra.mxu0 0
        %1846 = vmatprep.subr.bf16.mxu0 0
        %1847 = vmatpush2.bf16.msra.mxu0 0
        %1848 = vmatprep.mubr.bf16.mxu0 0
        %1849 = vmatmul.mubr.bf16.gmra.mxu0 %v1736
        %v1850 = vpop.f32.mrf.mxu0
        %v1851 = vadd.f32 0.0, %v1850
        %v1852 = vpop.f32.mrf.mxu0
        %v1853 = vpop.f32.mrf.mxu0
        %v1854 = vadd.f32 0.0, %v1853
        %v1855 = vpop.f32.mrf.mxu0
        %1856 = vmatprep.mubr.bf16.mxu0 0
        %1857 = vmatmul.mubr.bf16.gmra.mxu0 %v1737
        %v1858 = vpop.f32.mrf.mxu0
        %v1859 = vadd.f32 0.0, %v1858
        %v1860 = vpop.f32.mrf.mxu0
        %v1861 = vpop.f32.mrf.mxu0
        %v1862 = vadd.f32 0.0, %v1861
        %v1863 = vpop.f32.mrf.mxu0
        %1864 = vmatprep.mubr.bf16.mxu0 0
        %1865 = vmatmul.mubr.bf16.gmra.mxu0 %v1738
        %v1866 = vpop.f32.mrf.mxu0
        %v1867 = vadd.f32 0.0, %v1866
        %v1868 = vpop.f32.mrf.mxu0
        %v1869 = vpop.f32.mrf.mxu0
        %v1870 = vadd.f32 0.0, %v1869
        %v1871 = vpop.f32.mrf.mxu0
        %1872 = vmatprep.mubr.bf16.mxu0 0
        %1873 = vmatmul.mubr.bf16.gmra.mxu0 %v1739
        %v1874 = vpop.f32.mrf.mxu0
        %v1875 = vadd.f32 0.0, %v1874
        %v1876 = vpop.f32.mrf.mxu0
        %v1877 = vpop.f32.mrf.mxu0
        %v1878 = vadd.f32 0.0, %v1877
        %v1879 = vpop.f32.mrf.mxu0
        %1880 = vmatprep.mubr.bf16.mxu0 0
        %1881 = vmatmul.mubr.bf16.gmra.mxu0 %v1740
        %v1882 = vpop.f32.mrf.mxu0
        %v1883 = vadd.f32 0.0, %v1882
        %v1884 = vpop.f32.mrf.mxu0
        %v1885 = vpop.f32.mrf.mxu0
        %v1886 = vadd.f32 0.0, %v1885
        %v1887 = vpop.f32.mrf.mxu0
        %1888 = vmatprep.mubr.bf16.mxu0 0
        %1889 = vmatmul.mubr.bf16.gmra.mxu0 %v1741
        %v1890 = vpop.f32.mrf.mxu0
        %v1891 = vadd.f32 0.0, %v1890
        %v1892 = vpop.f32.mrf.mxu0
        %v1893 = vpop.f32.mrf.mxu0
        %v1894 = vadd.f32 0.0, %v1893
        %v1895 = vpop.f32.mrf.mxu0
        %1896 = vmatprep.mubr.bf16.mxu0 0
        %1897 = vmatmul.mubr.bf16.gmra.mxu0 %v1742
        %v1898 = vpop.f32.mrf.mxu0
        %v1899 = vadd.f32 0.0, %v1898
        %v1900 = vpop.f32.mrf.mxu0
        %v1901 = vpop.f32.mrf.mxu0
        %v1902 = vadd.f32 0.0, %v1901
        %v1903 = vpop.f32.mrf.mxu0
        %1904 = vmatprep.mubr.bf16.mxu0 0
        %1905 = vmatmul.mubr.bf16.gmra.mxu0 %v1743
        %v1906 = vpop.f32.mrf.mxu0
        %v1907 = vadd.f32 0.0, %v1906
        %v1908 = vpop.f32.mrf.mxu0
        %v1909 = vpop.f32.mrf.mxu0
        %v1910 = vadd.f32 0.0, %v1909
        %v1911 = vpop.f32.mrf.mxu0
        %1912 = vmatprep.mubr.bf16.mxu0 0
        %1913 = vmatmul.mubr.bf16.gmra.mxu0 %v1744
        %v1914 = vpop.f32.mrf.mxu0
        %v1915 = vadd.f32 0.0, %v1914
        %v1916 = vpop.f32.mrf.mxu0
        %v1917 = vpop.f32.mrf.mxu0
        %v1918 = vadd.f32 0.0, %v1917
        %v1919 = vpop.f32.mrf.mxu0
        %1920 = vmatprep.mubr.bf16.mxu0 0
        %1921 = vmatmul.mubr.bf16.gmra.mxu0 %v1745
        %v1922 = vpop.f32.mrf.mxu0
        %v1923 = vadd.f32 0.0, %v1922
        %v1924 = vpop.f32.mrf.mxu0
        %v1925 = vpop.f32.mrf.mxu0
        %v1926 = vadd.f32 0.0, %v1925
        %v1927 = vpop.f32.mrf.mxu0
        %1928 = vmatprep.mubr.bf16.mxu0 0
        %1929 = vmatmul.mubr.bf16.gmra.mxu0 %v1746
        %v1930 = vpop.f32.mrf.mxu0
        %v1931 = vadd.f32 0.0, %v1930
        %v1932 = vpop.f32.mrf.mxu0
        %v1933 = vpop.f32.mrf.mxu0
        %v1934 = vadd.f32 0.0, %v1933
        %v1935 = vpop.f32.mrf.mxu0
        %1936 = vmatprep.mubr.bf16.mxu0 0
        %1937 = vmatmul.mubr.bf16.gmra.mxu0 %v1747
        %v1938 = vpop.f32.mrf.mxu0
        %v1939 = vadd.f32 0.0, %v1938
        %v1940 = vpop.f32.mrf.mxu0
        %v1941 = vpop.f32.mrf.mxu0
        %v1942 = vadd.f32 0.0, %v1941
        %v1943 = vpop.f32.mrf.mxu0
        %1944 = vmatprep.mubr.bf16.mxu0 0
        %1945 = vmatmul.mubr.bf16.gmra.mxu0 %v1748
        %v1946 = vpop.f32.mrf.mxu0
        %v1947 = vadd.f32 0.0, %v1946
        %v1948 = vpop.f32.mrf.mxu0
        %v1949 = vpop.f32.mrf.mxu0
        %v1950 = vadd.f32 0.0, %v1949
        %v1951 = vpop.f32.mrf.mxu0
        %1952 = vmatprep.mubr.bf16.mxu0 0
        %1953 = vmatmul.mubr.bf16.gmra.mxu0 %v1749
        %v1954 = vpop.f32.mrf.mxu0
        %v1955 = vadd.f32 0.0, %v1954
        %v1956 = vpop.f32.mrf.mxu0
        %v1957 = vpop.f32.mrf.mxu0
        %v1958 = vadd.f32 0.0, %v1957
        %v1959 = vpop.f32.mrf.mxu0
        %1960 = vmatprep.mubr.bf16.mxu0 0
        %1961 = vmatmul.mubr.bf16.gmra.mxu0 %v1750
        %v1962 = vpop.f32.mrf.mxu0
        %v1963 = vadd.f32 0.0, %v1962
        %v1964 = vpop.f32.mrf.mxu0
        %v1965 = vpop.f32.mrf.mxu0
        %v1966 = vadd.f32 0.0, %v1965
        %v1967 = vpop.f32.mrf.mxu0
        %1968 = vmatprep.mubr.bf16.mxu0 0
        %1969 = vmatmul.mubr.bf16.gmra.mxu0 %v1751
        %v1970 = vpop.f32.mrf.mxu0
        %v1971 = vadd.f32 0.0, %v1970
        %v1972 = vpop.f32.mrf.mxu0
        %v1973 = vpop.f32.mrf.mxu0
        %v1974 = vadd.f32 0.0, %v1973
        %v1975 = vpop.f32.mrf.mxu0
        %1976 = vdwg.mxu0
        %v1977 = vadd.f32 %v1704, %v1851
        %v1978 = vadd.f32 %v1705, %v1854
        %v1979 = vadd.f32 %v1706, %v1859
        %v1980 = vadd.f32 %v1707, %v1862
        %v1981 = vadd.f32 %v1708, %v1867
        %v1982 = vadd.f32 %v1709, %v1870
        %v1983 = vadd.f32 %v1710, %v1875
        %v1984 = vadd.f32 %v1711, %v1878
        %v1985 = vadd.f32 %v1712, %v1883
        %v1986 = vadd.f32 %v1713, %v1886
        %v1987 = vadd.f32 %v1714, %v1891
        %v1988 = vadd.f32 %v1715, %v1894
        %v1989 = vadd.f32 %v1716, %v1899
        %v1990 = vadd.f32 %v1717, %v1902
        %v1991 = vadd.f32 %v1718, %v1907
        %v1992 = vadd.f32 %v1719, %v1910
        %v1993 = vadd.f32 %v1720, %v1915
        %v1994 = vadd.f32 %v1721, %v1918
        %v1995 = vadd.f32 %v1722, %v1923
        %v1996 = vadd.f32 %v1723, %v1926
        %v1997 = vadd.f32 %v1724, %v1931
        %v1998 = vadd.f32 %v1725, %v1934
        %v1999 = vadd.f32 %v1726, %v1939
        %v2000 = vadd.f32 %v1727, %v1942
        %v2001 = vadd.f32 %v1728, %v1947
        %v2002 = vadd.f32 %v1729, %v1950
        %v2003 = vadd.f32 %v1730, %v1955
        %v2004 = vadd.f32 %v1731, %v1958
        %v2005 = vadd.f32 %v1732, %v1963
        %v2006 = vadd.f32 %v1733, %v1966
        %v2007 = vadd.f32 %v1734, %v1971
        %v2008 = vadd.f32 %v1735, %v1974
        %2009 = vst.msk [vmem:[#allocation3] sm:$0xff] %vm1206, %v1977
        %2010 = vst.msk [vmem:[#allocation3 + $0x8] sm:$0xff] %vm1206, %v1978
        %2011 = vst.msk [vmem:[#allocation3 + $0x10] sm:$0xff] %vm1206, %v1979
        %2012 = vst.msk [vmem:[#allocation3 + $0x18] sm:$0xff] %vm1206, %v1980
        %2013 = vst.msk [vmem:[#allocation3 + $0x20] sm:$0xff] %vm1206, %v1981
        %2014 = vst.msk [vmem:[#allocation3 + $0x28] sm:$0xff] %vm1206, %v1982
        %2015 = vst.msk [vmem:[#allocation3 + $0x30] sm:$0xff] %vm1206, %v1983
        %2016 = vst.msk [vmem:[#allocation3 + $0x38] sm:$0xff] %vm1206, %v1984
        %2017 = vst.msk [vmem:[#allocation3 + $0x40] sm:$0xff] %vm1206, %v1985
        %2018 = vst.msk [vmem:[#allocation3 + $0x48] sm:$0xff] %vm1206, %v1986
        %2019 = vst.msk [vmem:[#allocation3 + $0x50] sm:$0xff] %vm1206, %v1987
        %2020 = vst.msk [vmem:[#allocation3 + $0x58] sm:$0xff] %vm1206, %v1988
        %2021 = vst.msk [vmem:[#allocation3 + $0x60] sm:$0xff] %vm1206, %v1989
        %2022 = vst.msk [vmem:[#allocation3 + $0x68] sm:$0xff] %vm1206, %v1990
        %2023 = vst.msk [vmem:[#allocation3 + $0x70] sm:$0xff] %vm1206, %v1991
        %2024 = vst.msk [vmem:[#allocation3 + $0x78] sm:$0xff] %vm1206, %v1992
        %2025 = vst.msk [vmem:[#allocation3 + $0x80] sm:$0xff] %vm1206, %v1993
        %2026 = vst.msk [vmem:[#allocation3 + $0x88] sm:$0xff] %vm1206, %v1994
        %2027 = vst.msk [vmem:[#allocation3 + $0x90] sm:$0xff] %vm1206, %v1995
        %2028 = vst.msk [vmem:[#allocation3 + $0x98] sm:$0xff] %vm1206, %v1996
        %2029 = vst.msk [vmem:[#allocation3 + $0xa0] sm:$0xff] %vm1206, %v1997
        %2030 = vst.msk [vmem:[#allocation3 + $0xa8] sm:$0xff] %vm1206, %v1998
        %2031 = vst.msk [vmem:[#allocation3 + $0xb0] sm:$0xff] %vm1206, %v1999
        %2032 = vst.msk [vmem:[#allocation3 + $0xb8] sm:$0xff] %vm1206, %v2000
        %2033 = vst.msk [vmem:[#allocation3 + $0xc0] sm:$0xff] %vm1206, %v2001
        %2034 = vst.msk [vmem:[#allocation3 + $0xc8] sm:$0xff] %vm1206, %v2002
        %2035 = vst.msk [vmem:[#allocation3 + $0xd0] sm:$0xff] %vm1206, %v2003
        %2036 = vst.msk [vmem:[#allocation3 + $0xd8] sm:$0xff] %vm1206, %v2004
        %2037 = vst.msk [vmem:[#allocation3 + $0xe0] sm:$0xff] %vm1206, %v2005
        %2038 = vst.msk [vmem:[#allocation3 + $0xe8] sm:$0xff] %vm1206, %v2006
        %2039 = vst.msk [vmem:[#allocation3 + $0xf0] sm:$0xff] %vm1206, %v2007
        %2040 = vst.msk [vmem:[#allocation3 + $0xf8] sm:$0xff] %vm1206, %v2008
        // Predicated region
        $region53: #{swin_block_forward.7} parent=47 // pred_check
          %p2041 = pneg %p346
        $region54: #{swin_block_forward.7} parent=47 // pred_check_branch
          %2043 = sbr.rel (%p2041) target = $region56
        $region55: #{swin_block_forward.7} parent=47 // pred_region
          %v2044 = vld [vmem:[%s329] sm:$0xff]
          %v2045 = vld [vmem:[%s329 + $0x8] sm:$0xff]
          %v2046 = vld [vmem:[%s329 + $0x10] sm:$0xff]
          %v2047 = vld [vmem:[%s329 + $0x18] sm:$0xff]
          %v2048 = vld [vmem:[%s329 + $0x20] sm:$0xff]
          %v2049 = vld [vmem:[%s329 + $0x28] sm:$0xff]
          %v2050 = vld [vmem:[%s329 + $0x30] sm:$0xff]
          %v2051 = vld [vmem:[%s329 + $0x38] sm:$0xff]
          %v2052 = vld [vmem:[%s329 + $0x40] sm:$0xff]
          %v2053 = vld [vmem:[%s329 + $0x48] sm:$0xff]
          %v2054 = vld [vmem:[%s329 + $0x50] sm:$0xff]
          %v2055 = vld [vmem:[%s329 + $0x58] sm:$0xff]
          %v2056 = vld [vmem:[%s329 + $0x60] sm:$0xff]
          %v2057 = vld [vmem:[%s329 + $0x68] sm:$0xff]
          %v2058 = vld [vmem:[%s329 + $0x70] sm:$0xff]
          %v2059 = vld [vmem:[%s329 + $0x78] sm:$0xff]
          %v2060 = vld [vmem:[%s329 + $0x80] sm:$0xff]
          %v2061 = vld [vmem:[%s329 + $0x88] sm:$0xff]
          %v2062 = vld [vmem:[%s329 + $0x90] sm:$0xff]
          %v2063 = vld [vmem:[%s329 + $0x98] sm:$0xff]
          %v2064 = vld [vmem:[%s329 + $0xa0] sm:$0xff]
          %v2065 = vld [vmem:[%s329 + $0xa8] sm:$0xff]
          %v2066 = vld [vmem:[%s329 + $0xb0] sm:$0xff]
          %v2067 = vld [vmem:[%s329 + $0xb8] sm:$0xff]
          %v2068 = vld [vmem:[%s329 + $0xc0] sm:$0xff]
          %v2069 = vld [vmem:[%s329 + $0xc8] sm:$0xff]
          %v2070 = vld [vmem:[%s329 + $0xd0] sm:$0xff]
          %v2071 = vld [vmem:[%s329 + $0xd8] sm:$0xff]
          %v2072 = vld [vmem:[%s329 + $0xe0] sm:$0xff]
          %v2073 = vld [vmem:[%s329 + $0xe8] sm:$0xff]
          %v2074 = vld [vmem:[%s329 + $0xf0] sm:$0xff]
          %v2075 = vld [vmem:[%s329 + $0xf8] sm:$0xff]
          %v2076 = vld [vmem:[#allocation3] sm:$0xff]
          %v2077 = vld [vmem:[#allocation3 + $0x8] sm:$0xff]
          %v2078 = vld [vmem:[#allocation3 + $0x10] sm:$0xff]
          %v2079 = vld [vmem:[#allocation3 + $0x18] sm:$0xff]
          %v2080 = vld [vmem:[#allocation3 + $0x20] sm:$0xff]
          %v2081 = vld [vmem:[#allocation3 + $0x28] sm:$0xff]
          %v2082 = vld [vmem:[#allocation3 + $0x30] sm:$0xff]
          %v2083 = vld [vmem:[#allocation3 + $0x38] sm:$0xff]
          %v2084 = vld [vmem:[#allocation3 + $0x40] sm:$0xff]
          %v2085 = vld [vmem:[#allocation3 + $0x48] sm:$0xff]
          %v2086 = vld [vmem:[#allocation3 + $0x50] sm:$0xff]
          %v2087 = vld [vmem:[#allocation3 + $0x58] sm:$0xff]
          %v2088 = vld [vmem:[#allocation3 + $0x60] sm:$0xff]
          %v2089 = vld [vmem:[#allocation3 + $0x68] sm:$0xff]
          %v2090 = vld [vmem:[#allocation3 + $0x70] sm:$0xff]
          %v2091 = vld [vmem:[#allocation3 + $0x78] sm:$0xff]
          %v2092 = vld [vmem:[#allocation3 + $0x80] sm:$0xff]
          %v2093 = vld [vmem:[#allocation3 + $0x88] sm:$0xff]
          %v2094 = vld [vmem:[#allocation3 + $0x90] sm:$0xff]
          %v2095 = vld [vmem:[#allocation3 + $0x98] sm:$0xff]
          %v2096 = vld [vmem:[#allocation3 + $0xa0] sm:$0xff]
          %v2097 = vld [vmem:[#allocation3 + $0xa8] sm:$0xff]
          %v2098 = vld [vmem:[#allocation3 + $0xb0] sm:$0xff]
          %v2099 = vld [vmem:[#allocation3 + $0xb8] sm:$0xff]
          %v2100 = vld [vmem:[#allocation3 + $0xc0] sm:$0xff]
          %v2101 = vld [vmem:[#allocation3 + $0xc8] sm:$0xff]
          %v2102 = vld [vmem:[#allocation3 + $0xd0] sm:$0xff]
          %v2103 = vld [vmem:[#allocation3 + $0xd8] sm:$0xff]
          %v2104 = vld [vmem:[#allocation3 + $0xe0] sm:$0xff]
          %v2105 = vld [vmem:[#allocation3 + $0xe8] sm:$0xff]
          %v2106 = vld [vmem:[#allocation3 + $0xf0] sm:$0xff]
          %v2107 = vld [vmem:[#allocation3 + $0xf8] sm:$0xff]
          %v2108 = vadd.f32 %v2044, %v2076
          %v2109 = vadd.f32 %v2045, %v2077
          %v2110 = vadd.f32 %v2046, %v2078
          %v2111 = vadd.f32 %v2047, %v2079
          %v2112 = vadd.f32 %v2048, %v2080
          %v2113 = vadd.f32 %v2049, %v2081
          %v2114 = vadd.f32 %v2050, %v2082
          %v2115 = vadd.f32 %v2051, %v2083
          %v2116 = vadd.f32 %v2052, %v2084
          %v2117 = vadd.f32 %v2053, %v2085
          %v2118 = vadd.f32 %v2054, %v2086
          %v2119 = vadd.f32 %v2055, %v2087
          %v2120 = vadd.f32 %v2056, %v2088
          %v2121 = vadd.f32 %v2057, %v2089
          %v2122 = vadd.f32 %v2058, %v2090
          %v2123 = vadd.f32 %v2059, %v2091
          %v2124 = vadd.f32 %v2060, %v2092
          %v2125 = vadd.f32 %v2061, %v2093
          %v2126 = vadd.f32 %v2062, %v2094
          %v2127 = vadd.f32 %v2063, %v2095
          %v2128 = vadd.f32 %v2064, %v2096
          %v2129 = vadd.f32 %v2065, %v2097
          %v2130 = vadd.f32 %v2066, %v2098
          %v2131 = vadd.f32 %v2067, %v2099
          %v2132 = vadd.f32 %v2068, %v2100
          %v2133 = vadd.f32 %v2069, %v2101
          %v2134 = vadd.f32 %v2070, %v2102
          %v2135 = vadd.f32 %v2071, %v2103
          %v2136 = vadd.f32 %v2072, %v2104
          %v2137 = vadd.f32 %v2073, %v2105
          %v2138 = vadd.f32 %v2074, %v2106
          %v2139 = vadd.f32 %v2075, %v2107
          %v2140 = vld [vmem:[%s6] sm:$0x1]
          %v2142 = vlaneseq
          %v2143 = vshrl.u32 %v2142, 7
          %v2144 = vsub.s32 0, %v2143
          %v2145 = vrot.slane %v2140, %v2144
          %v2147 = vadd.f32 %v2108, %v2145
          %v2148 = vadd.f32 %v2109, %v2145
          %v2149 = vadd.f32 %v2110, %v2145
          %v2150 = vadd.f32 %v2111, %v2145
          %v2151 = vadd.f32 %v2112, %v2145
          %v2152 = vadd.f32 %v2113, %v2145
          %v2153 = vadd.f32 %v2114, %v2145
          %v2154 = vadd.f32 %v2115, %v2145
          %v2155 = vadd.f32 %v2116, %v2145
          %v2156 = vadd.f32 %v2117, %v2145
          %v2157 = vadd.f32 %v2118, %v2145
          %v2158 = vadd.f32 %v2119, %v2145
          %v2159 = vadd.f32 %v2120, %v2145
          %v2160 = vadd.f32 %v2121, %v2145
          %v2161 = vadd.f32 %v2122, %v2145
          %v2162 = vadd.f32 %v2123, %v2145
          %v2163 = vadd.f32 %v2124, %v2145
          %v2164 = vadd.f32 %v2125, %v2145
          %v2165 = vadd.f32 %v2126, %v2145
          %v2166 = vadd.f32 %v2127, %v2145
          %v2167 = vadd.f32 %v2128, %v2145
          %v2168 = vadd.f32 %v2129, %v2145
          %v2169 = vadd.f32 %v2130, %v2145
          %v2170 = vadd.f32 %v2131, %v2145
          %v2171 = vadd.f32 %v2132, %v2145
          %v2172 = vadd.f32 %v2133, %v2145
          %v2173 = vadd.f32 %v2134, %v2145
          %v2174 = vadd.f32 %v2135, %v2145
          %v2175 = vadd.f32 %v2136, %v2145
          %v2176 = vadd.f32 %v2137, %v2145
          %v2177 = vadd.f32 %v2138, %v2145
          %v2178 = vadd.f32 %v2139, %v2145
          %2179 = vst.msk [vmem:[%s324] sm:$0xff] %vm1206, %v2147
          %2180 = vst.msk [vmem:[%s324 + $0x8] sm:$0xff] %vm1206, %v2148
          %2181 = vst.msk [vmem:[%s324 + $0x10] sm:$0xff] %vm1206, %v2149
          %2182 = vst.msk [vmem:[%s324 + $0x18] sm:$0xff] %vm1206, %v2150
          %2183 = vst.msk [vmem:[%s324 + $0x20] sm:$0xff] %vm1206, %v2151
          %2184 = vst.msk [vmem:[%s324 + $0x28] sm:$0xff] %vm1206, %v2152
          %2185 = vst.msk [vmem:[%s324 + $0x30] sm:$0xff] %vm1206, %v2153
          %2186 = vst.msk [vmem:[%s324 + $0x38] sm:$0xff] %vm1206, %v2154
          %2187 = vst.msk [vmem:[%s324 + $0x40] sm:$0xff] %vm1206, %v2155
          %2188 = vst.msk [vmem:[%s324 + $0x48] sm:$0xff] %vm1206, %v2156
          %2189 = vst.msk [vmem:[%s324 + $0x50] sm:$0xff] %vm1206, %v2157
          %2190 = vst.msk [vmem:[%s324 + $0x58] sm:$0xff] %vm1206, %v2158
          %2191 = vst.msk [vmem:[%s324 + $0x60] sm:$0xff] %vm1206, %v2159
          %2192 = vst.msk [vmem:[%s324 + $0x68] sm:$0xff] %vm1206, %v2160
          %2193 = vst.msk [vmem:[%s324 + $0x70] sm:$0xff] %vm1206, %v2161
          %2194 = vst.msk [vmem:[%s324 + $0x78] sm:$0xff] %vm1206, %v2162
          %2195 = vst.msk [vmem:[%s324 + $0x80] sm:$0xff] %vm1206, %v2163
          %2196 = vst.msk [vmem:[%s324 + $0x88] sm:$0xff] %vm1206, %v2164
          %2197 = vst.msk [vmem:[%s324 + $0x90] sm:$0xff] %vm1206, %v2165
          %2198 = vst.msk [vmem:[%s324 + $0x98] sm:$0xff] %vm1206, %v2166
          %2199 = vst.msk [vmem:[%s324 + $0xa0] sm:$0xff] %vm1206, %v2167
          %2200 = vst.msk [vmem:[%s324 + $0xa8] sm:$0xff] %vm1206, %v2168
          %2201 = vst.msk [vmem:[%s324 + $0xb0] sm:$0xff] %vm1206, %v2169
          %2202 = vst.msk [vmem:[%s324 + $0xb8] sm:$0xff] %vm1206, %v2170
          %2203 = vst.msk [vmem:[%s324 + $0xc0] sm:$0xff] %vm1206, %v2171
          %2204 = vst.msk [vmem:[%s324 + $0xc8] sm:$0xff] %vm1206, %v2172
          %2205 = vst.msk [vmem:[%s324 + $0xd0] sm:$0xff] %vm1206, %v2173
          %2206 = vst.msk [vmem:[%s324 + $0xd8] sm:$0xff] %vm1206, %v2174
          %2207 = vst.msk [vmem:[%s324 + $0xe0] sm:$0xff] %vm1206, %v2175
          %2208 = vst.msk [vmem:[%s324 + $0xe8] sm:$0xff] %vm1206, %v2176
          %2209 = vst.msk [vmem:[%s324 + $0xf0] sm:$0xff] %vm1206, %v2177
          %2210 = vst.msk [vmem:[%s324 + $0xf8] sm:$0xff] %vm1206, %v2178
        $region56: #{swin_block_forward.7} parent=47 // pred_fallthru
          _
        %s2211 = sand.u32 %s208, 1
        %s2212 = scalar_lea.sflag [#allocation5], %s2211
        %s2213 = sand.u32 %s208, 1
        %s2214 = smul.addr %s2213, 256
        %s2215 = scalar_lea.vmem [#allocation4], %s2214
        // Predicated region
        $region57: #{swin_block_forward.7} parent=47 // pred_check
          %p2216 = pneg %p218
        $region58: #{swin_block_forward.7} parent=47 // pred_check_branch
          %2218 = sbr.rel (%p2216) target = $region60
        $region59: #{swin_block_forward.7} parent=47 // pred_region
          %s2219 = smul.u32 32, %s25
          %s2221 = ssub.s32 4096, 4096
          %2222 = vsyncadd %s2212, %s2221
          %s2223 = smul.addr %s2219, 128
          %s2224 = scalar_lea.hbm %s7, %s2223
          %s2225 = sshll.u32 %s2215, 4
          %s2226 = int_to_ptr.vmem [resolvable:$true] %s2225
          %2231 = dma.vmem_to_hbm [thread:$0]  %s2226, 4096, %s2224, %s2212, 128, 128, 8
        $region60: #{swin_block_forward.7} parent=47 // pred_fallthru
          _
      $region48: #{swin_block_forward.7} parent=5 // pred_fallthru
        _
      %p2232 = scmp.le.s32.totalorder 2, %s16
      // Predicated region
      $region61: #{swin_block_forward.7} parent=5 // pred_check
        %p2233 = pneg %p2232
      $region62: #{swin_block_forward.7} parent=5 // pred_check_branch
        %2235 = sbr.rel (%p2233) target = $region64
      $region63: #{swin_block_forward.7} parent=5 // pred_region
        %s2236 = ssub.s32 %s16, 2
        // Predicated region
        $region65: #{swin_block_forward.7} parent=63 // pred_check
          %p2237 = pneg %p224
        $region66: #{swin_block_forward.7} parent=63 // pred_check_branch
          %2239 = sbr.rel (%p2237) target = $region68
        $region67: #{swin_block_forward.7} parent=63 // pred_region
          %s2240 = sand.u32 %s209, 1
          %s2241 = scalar_lea.sflag [#allocation5], %s2240
          %s2242 = sand.u32 %s209, 1
          %s2243 = smul.addr %s2242, 256
          %s2244 = scalar_lea.vmem [#allocation4], %s2243
          %2245 = dma.done %s2241, 4096
        $region68: #{swin_block_forward.7} parent=63 // pred_fallthru
          _
      $region64: #{swin_block_forward.7} parent=5 // pred_fallthru
        _
    $region6: #{swin_block_forward.7} parent=1 // loop_footer
      %s20 = sadd.s32 1, %s16
    $region7: #{swin_block_forward.7} parent=1 // loop_footer_branch
      %15 = sbr.rel target = $region3
    $region8: #{swin_block_forward.7} parent=1 // loop_exit
      _
    %2246 = vsyncpa [#allocation5], 1
    %s2247 = scalar_lea.sflag [#allocation5], 1
    %2248 = vsyncpa %s2247, 1

// kernel: swin_block_forward.6
$region0: #{swin_block_forward.6}
  #allocation0 [shape = 'u32[]', space=smem, size = 0x4, offset = 0x4, fixed_abs, tag = 'smem constant byte address 0x4 - core index']
  #allocation1 [shape = 'u32[144,128]{1,0:T(1,128)}', space=vmem, size = 0x12000, scoped, tag = 'internal scratch']
  %s0 = inlined_call_operand.vmem [shape: bf16[16,32,128], index: 0, kind: input, shape index: {}]
  %s1 = inlined_call_operand.vmem [shape: f32[4,32,32], index: 1, kind: input, shape index: {}]
  %s2 = inlined_call_operand.vmem [shape: bf16[32,32], index: 2, kind: input, shape index: {}]
  %s3 = inlined_call_operand.vmem [shape: f32[1,32], index: 3, kind: input, shape index: {}]
  %s4 = inlined_call_operand.vmem [shape: bf16[16,32,32], index: 4, kind: output, shape index: {}]
  %s5 = sld [smem:[#allocation0]]
  $region49: #{swin_block_forward.6} parent=0
    _
  %s7 = ssub.s32 1, %s5
  %s8 = scalar_select 0, %s7, %s5
  loop: start=0, step=1, limit=4
  $region2: #{swin_block_forward.6} parent=0 // loop_pre_header
    _
  $region3: #{swin_block_forward.6} parent=0 // loop_header
    %s10 = sphi 0, %s14
    %p11 = scmp.ge.s32.totalorder %s10, 4
    %s17 = sphi 0, %s29
    %s18 = sphi 0, %s25
    %s19 = sphi 0, %s17
    %s20 = sphi 0, %s18
    %s21 = sphi 0, %s19
    %s22 = sphi 0, %s20
    %s34 = sphi 0, %s36
    %s37 = sphi 0, %s34
    %s38 = sphi 0, %s37
    %s54 = sphi 0, %s38
    %s58 = sphi 0, %s58
    %s60 = sphi 0, %s58
    %s61 = sphi 0, %s60
    %s75 = sphi 0, %s61
    %s79 = sphi 0, %s79
    %s81 = sphi 0, %s79
    %s82 = sphi 0, %s81
    %s96 = sphi 0, %s82
    %s100 = sphi 0, %s100
    %s102 = sphi 0, %s100
    %s103 = sphi 0, %s102
    %s117 = sphi 0, %s103
    %s125 = sphi 0, %s127
    %s128 = sphi 0, %s125
    %s129 = sphi 0, %s128
    %s145 = sphi 0, %s129
  $region4: #{swin_block_forward.6} parent=0 // loop_header_branch
    %13 = sbr.rel (%p11) target = $region8
  $region5: #{swin_block_forward.6} parent=0 // loop_body
    %s15 = ssub.s32 %s10, 1
    %s16 = ssub.s32 %s10, 2
    %s23 = sadd.s32 1, %s18
    %p24 = scmp.ge.s32.totalorder %s23, 2
    %s25 = scalar_select %p24, 0, %s23
    %s26 = sadd.s32 1, %s17
    %s27 = scalar_select %p24, %s26, %s17
    %p28 = scmp.ge.s32.totalorder %s27, 1
    %s29 = scalar_select %p28, 0, %s27
    %s30 = sadd.s32 %s18, %s17
    %s31 = sadd.s32 %s25, %s29
    %s32 = ssub.s32 %s30, %s31
    %p33 = scmp.eq.s32.totalorder %s32, 0
    %s35 = sadd.s32 %s34, 1
    %s36 = scalar_select %p33, %s34, %s35
    %p39 = pneg %p33
    %p40 = scmp.eq.s32.totalorder %s10, 1
    %p41 = por %p39, %p40
    %p42 = scmp.ne.s32.totalorder %s34, %s37
    %p43 = scmp.eq.s32.totalorder %s10, 0
    %p44 = por %p42, %p43
    %p45 = scmp.ne.s32.totalorder %s34, %s37
    %p46 = scmp.eq.s32.totalorder %s15, 1
    %p47 = por %p45, %p46
    %p48 = scmp.ne.s32.totalorder %s37, %s38
    %p49 = scmp.eq.s32.totalorder %s15, 0
    %p50 = por %p48, %p49
    %p51 = scmp.ne.s32.totalorder %s37, %s38
    %p52 = scmp.eq.s32.totalorder %s16, 1
    %p53 = por %p51, %p52
    %p55 = scmp.ne.s32.totalorder %s38, %s54
    %p56 = scmp.eq.s32.totalorder %s16, 0
    %p57 = por %p55, %p56
    %s59 = sadd.s32 %s58, 1
    %p62 = scmp.eq.s32.totalorder %s10, 1
    %p63 = scmp.ne.s32.totalorder %s58, %s60
    %p64 = scmp.eq.s32.totalorder %s10, 0
    %p65 = por %p63, %p64
    %p66 = scmp.ne.s32.totalorder %s58, %s60
    %p67 = scmp.eq.s32.totalorder %s15, 1
    %p68 = por %p66, %p67
    %p69 = scmp.ne.s32.totalorder %s60, %s61
    %p70 = scmp.eq.s32.totalorder %s15, 0
    %p71 = por %p69, %p70
    %p72 = scmp.ne.s32.totalorder %s60, %s61
    %p73 = scmp.eq.s32.totalorder %s16, 1
    %p74 = por %p72, %p73
    %p76 = scmp.ne.s32.totalorder %s61, %s75
    %p77 = scmp.eq.s32.totalorder %s16, 0
    %p78 = por %p76, %p77
    %s80 = sadd.s32 %s79, 1
    %p83 = scmp.eq.s32.totalorder %s10, 1
    %p84 = scmp.ne.s32.totalorder %s79, %s81
    %p85 = scmp.eq.s32.totalorder %s10, 0
    %p86 = por %p84, %p85
    %p87 = scmp.ne.s32.totalorder %s79, %s81
    %p88 = scmp.eq.s32.totalorder %s15, 1
    %p89 = por %p87, %p88
    %p90 = scmp.ne.s32.totalorder %s81, %s82
    %p91 = scmp.eq.s32.totalorder %s15, 0
    %p92 = por %p90, %p91
    %p93 = scmp.ne.s32.totalorder %s81, %s82
    %p94 = scmp.eq.s32.totalorder %s16, 1
    %p95 = por %p93, %p94
    %p97 = scmp.ne.s32.totalorder %s82, %s96
    %p98 = scmp.eq.s32.totalorder %s16, 0
    %p99 = por %p97, %p98
    %s101 = sadd.s32 %s100, 1
    %p104 = scmp.eq.s32.totalorder %s10, 1
    %p105 = scmp.ne.s32.totalorder %s100, %s102
    %p106 = scmp.eq.s32.totalorder %s10, 0
    %p107 = por %p105, %p106
    %p108 = scmp.ne.s32.totalorder %s100, %s102
    %p109 = scmp.eq.s32.totalorder %s15, 1
    %p110 = por %p108, %p109
    %p111 = scmp.ne.s32.totalorder %s102, %s103
    %p112 = scmp.eq.s32.totalorder %s15, 0
    %p113 = por %p111, %p112
    %p114 = scmp.ne.s32.totalorder %s102, %s103
    %p115 = scmp.eq.s32.totalorder %s16, 1
    %p116 = por %p114, %p115
    %p118 = scmp.ne.s32.totalorder %s103, %s117
    %p119 = scmp.eq.s32.totalorder %s16, 0
    %p120 = por %p118, %p119
    %s121 = sadd.s32 %s18, %s17
    %s122 = sadd.s32 %s25, %s29
    %s123 = ssub.s32 %s121, %s122
    %p124 = scmp.eq.s32.totalorder %s123, 0
    %s126 = sadd.s32 %s125, 1
    %s127 = scalar_select %p124, %s125, %s126
    %p130 = pneg %p124
    %p131 = scmp.eq.s32.totalorder %s10, 1
    %p132 = por %p130, %p131
    %p133 = scmp.ne.s32.totalorder %s125, %s128
    %p134 = scmp.eq.s32.totalorder %s10, 0
    %p135 = por %p133, %p134
    %p136 = scmp.ne.s32.totalorder %s125, %s128
    %p137 = scmp.eq.s32.totalorder %s15, 1
    %p138 = por %p136, %p137
    %p139 = scmp.ne.s32.totalorder %s128, %s129
    %p140 = scmp.eq.s32.totalorder %s15, 0
    %p141 = por %p139, %p140
    %p142 = scmp.ne.s32.totalorder %s128, %s129
    %p143 = scmp.eq.s32.totalorder %s16, 1
    %p144 = por %p142, %p143
    %p146 = scmp.ne.s32.totalorder %s129, %s145
    %p147 = scmp.eq.s32.totalorder %s16, 0
    %p148 = por %p146, %p147
    %p149 = scmp.le.s32.totalorder 1, %s10
    %p150 = scmp.lt.s32.totalorder %s10, 3
    %p151 = pnand %p149, %p150
    %p152 = pneg %p151
    // Predicated region
    $region9: #{swin_block_forward.6} parent=5 // pred_check
      _
    $region10: #{swin_block_forward.6} parent=5 // pred_check_branch
      %154 = sbr.rel (%p151) target = $region12
    $region11: #{swin_block_forward.6} parent=5 // pred_region
      %s155 = ssub.s32 %s10, 1
      // Predicated region
      $region13: #{swin_block_forward.6} parent=11 // pred_check
        %p156 = pneg %p71
      $region14: #{swin_block_forward.6} parent=11 // pred_check_branch
        %158 = sbr.rel (%p156) target = $region16
      $region15: #{swin_block_forward.6} parent=11 // pred_region
        _
      $region16: #{swin_block_forward.6} parent=11 // pred_fallthru
        _
      // Predicated region
      $region17: #{swin_block_forward.6} parent=11 // pred_check
        %p159 = pneg %p92
      $region18: #{swin_block_forward.6} parent=11 // pred_check_branch
        %161 = sbr.rel (%p159) target = $region20
      $region19: #{swin_block_forward.6} parent=11 // pred_region
        _
      $region20: #{swin_block_forward.6} parent=11 // pred_fallthru
        _
      // Predicated region
      $region21: #{swin_block_forward.6} parent=11 // pred_check
        %p162 = pneg %p113
      $region22: #{swin_block_forward.6} parent=11 // pred_check_branch
        %164 = sbr.rel (%p162) target = $region24
      $region23: #{swin_block_forward.6} parent=11 // pred_region
        _
      $region24: #{swin_block_forward.6} parent=11 // pred_fallthru
        _
    $region12: #{swin_block_forward.6} parent=5 // pred_fallthru
      _
    %p165 = scmp.lt.s32.totalorder %s10, 2
    // Predicated region
    $region25: #{swin_block_forward.6} parent=5 // pred_check
      %p166 = pneg %p165
    $region26: #{swin_block_forward.6} parent=5 // pred_check_branch
      %168 = sbr.rel (%p166) target = $region28
    $region27: #{swin_block_forward.6} parent=5 // pred_region
      // Predicated region
      $region29: #{swin_block_forward.6} parent=27 // pred_check
        %p169 = pneg %p44
      $region30: #{swin_block_forward.6} parent=27 // pred_check_branch
        %171 = sbr.rel (%p169) target = $region32
      $region31: #{swin_block_forward.6} parent=27 // pred_region
        %s172 = sadd.s32 %s18, %s17
        %s173 = smul.u32 8, %s172
        %p174 = scmp.lt.s32.totalorder %s173, 15
        %s175 = scalar_select %p174, %s173, 15
        %s176 = smul.addr %s175, 4
        %s177 = smul.addr %s176, 4
        %s178 = scalar_lea.vmem %s0, %s177
        %s179 = sadd.s32 %s18, %s17
        %s180 = smul.u32 8, %s179
      $region32: #{swin_block_forward.6} parent=27 // pred_fallthru
        _
    $region28: #{swin_block_forward.6} parent=5 // pred_fallthru
      _
    %p181 = scmp.le.s32.totalorder 1, %s10
    %p182 = scmp.lt.s32.totalorder %s10, 3
    %p183 = pnand %p181, %p182
    %p184 = pneg %p183
    // Predicated region
    $region33: #{swin_block_forward.6} parent=5 // pred_check
      _
    $region34: #{swin_block_forward.6} parent=5 // pred_check_branch
      %186 = sbr.rel (%p183) target = $region36
    $region35: #{swin_block_forward.6} parent=5 // pred_region
      %s187 = ssub.s32 %s10, 1
      %s188 = sadd.s32 %s20, %s19
      %s189 = smul.u32 8, %s188
      %p190 = scmp.lt.s32.totalorder %s189, 15
      %s191 = scalar_select %p190, %s189, 15
      %s192 = smul.addr %s191, 4
      %s193 = smul.addr %s192, 4
      %s194 = scalar_lea.vmem %s0, %s193
      %p195 = pneg %p50
      %p196 = pneg %p47
      %p197 = pneg %p71
      %p198 = pneg %p68
      %p199 = pneg %p92
      %p200 = pneg %p89
      %p201 = pneg %p113
      %p202 = pneg %p110
      %p203 = pneg %p141
      %p204 = pneg %p138
      %s205 = sadd.s32 %s20, %s19
      %s206 = smul.u32 8, %s205
      %p207 = scmp.lt.s32.totalorder %s206, 15
      %s208 = scalar_select %p207, %s206, 15
      %s209 = smul.addr %s208, 4
      %s210 = smul.addr %s209, 4
      %s211 = scalar_lea.vmem %s4, %s210
      %s212 = sadd.s32 %s20, %s19
      %s213 = smul.u32 8, %s212
      %p214 = scmp.lt.s32.totalorder %s213, 15
      %s215 = scalar_select %p214, %s213, 15
      %s216 = smul.addr %s215, 4
      %s217 = smul.addr %s216, 4
      %s218 = scalar_lea.vmem %s0, %s217
      %s219 = sadd.s32 %s20, %s19
      %s220 = smul.u32 8, %s219
      %s221 = sadd.s32 %s20, %s19
      %s222 = smul.u32 8, %s221
      %p223 = scmp.lt.s32.totalorder %s222, 15
      %s224 = scalar_select %p223, %s222, 15
      %s225 = smul.addr %s224, 4
      %s226 = smul.addr %s225, 4
      %s227 = scalar_lea.vmem %s4, %s226
      %s228 = sadd.s32 %s20, %s19
      %s229 = smul.u32 8, %s228
      %v231 = vld [vmem:[%s218] sm:$0xf]
      %v232 = vld [vmem:[%s218 + $0x4] sm:$0xf]
      %v233 = vld [vmem:[%s218 + $0x8] sm:$0xf]
      %v234 = vld [vmem:[%s218 + $0xc] sm:$0xf]
      %v235 = vld [vmem:[%s218 + $0x10] sm:$0xf]
      %v236 = vld [vmem:[%s218 + $0x14] sm:$0xf]
      %v237 = vld [vmem:[%s218 + $0x18] sm:$0xf]
      %v238 = vld [vmem:[%s218 + $0x1c] sm:$0xf]
      %v239 = vld [vmem:[%s218 + $0x20] sm:$0xf]
      %v240 = vld [vmem:[%s218 + $0x24] sm:$0xf]
      %v241 = vld [vmem:[%s218 + $0x28] sm:$0xf]
      %v242 = vld [vmem:[%s218 + $0x2c] sm:$0xf]
      %v243 = vld [vmem:[%s218 + $0x30] sm:$0xf]
      %v244 = vld [vmem:[%s218 + $0x34] sm:$0xf]
      %v245 = vld [vmem:[%s218 + $0x38] sm:$0xf]
      %v246 = vld [vmem:[%s218 + $0x3c] sm:$0xf]
      %v247 = vld [vmem:[%s218 + $0x40] sm:$0xf]
      %v248 = vld [vmem:[%s218 + $0x44] sm:$0xf]
      %v249 = vld [vmem:[%s218 + $0x48] sm:$0xf]
      %v250 = vld [vmem:[%s218 + $0x4c] sm:$0xf]
      %v251 = vld [vmem:[%s218 + $0x50] sm:$0xf]
      %v252 = vld [vmem:[%s218 + $0x54] sm:$0xf]
      %v253 = vld [vmem:[%s218 + $0x58] sm:$0xf]
      %v254 = vld [vmem:[%s218 + $0x5c] sm:$0xf]
      %v255 = vld [vmem:[%s218 + $0x60] sm:$0xf]
      %v256 = vld [vmem:[%s218 + $0x64] sm:$0xf]
      %v257 = vld [vmem:[%s218 + $0x68] sm:$0xf]
      %v258 = vld [vmem:[%s218 + $0x6c] sm:$0xf]
      %v259 = vld [vmem:[%s218 + $0x70] sm:$0xf]
      %v260 = vld [vmem:[%s218 + $0x74] sm:$0xf]
      %v261 = vld [vmem:[%s218 + $0x78] sm:$0xf]
      %v262 = vld [vmem:[%s218 + $0x7c] sm:$0xf]
      %v263 = vld [vmem:[%s1] sm:$0xff]
      %v264 = vld [vmem:[%s1 + $0x8] sm:$0xff]
      %v265 = vld [vmem:[%s1 + $0x10] sm:$0xff]
      %v266 = vld [vmem:[%s1 + $0x18] sm:$0xff]
      %v271 = vunpack.c.l.b16 %v231
      %v272 = vunpack.c.l.b16 %v232
      %v273 = vunpack.c.l.b16 %v233
      %v274 = vunpack.c.l.b16 %v234
      %v275 = vpack.c.b16 %v272, %v271
      %v276 = vpack.c.b16 %v274, %v273
      %277 = vrot.lane.b32.xlu0 %v275, 96
      %v278 = vpop.permute.xlu0 %277
      %279 = vrot.lane.b32.xlu0 %v276, 96
      %v280 = vpop.permute.xlu0 %279
      %vm281 = vcmask 64512
      %v283 = vsel %vm281, %v275, 0
      %v286 = vsel %vm281, %v276, 0
      %v289 = vsel %vm281, %v278, 0
      %v292 = vsel %vm281, %v280, 0
      %294 = vmatprep.subr.bf16.mxu0 0
      %295 = vmatpush1.bf16.xpose.msra.mxu0 0
      %296 = vmatprep.subr.bf16.mxu0 0
      %297 = vmatpush1.bf16.xpose.msra.mxu0 0
      %298 = vmatprep.subr.bf16.mxu0 0
      %299 = vmatpush1.bf16.xpose.msra.mxu0 0
      %300 = vmatprep.subr.bf16.mxu0 0
      %301 = vmatpush1.bf16.xpose.msra.mxu0 0
      %302 = vmatprep.subr.bf16.mxu0 0
      %303 = vmatpush1.bf16.xpose.msra.mxu0 0
      %304 = vmatprep.subr.bf16.mxu0 0
      %305 = vmatpush1.bf16.xpose.msra.mxu0 0
      %306 = vmatprep.subr.bf16.mxu0 0
      %307 = vmatpush1.bf16.xpose.msra.mxu0 %v292
      %308 = vmatprep.subr.bf16.mxu0 0
      %309 = vmatpush1.bf16.xpose.msra.mxu0 %v289
      %310 = vmatprep.subr.bf16.mxu0 0
      %311 = vmatpush2.bf16.xpose.msra.mxu0 0
      %312 = vmatprep.subr.bf16.mxu0 0
      %313 = vmatpush2.bf16.xpose.msra.mxu0 0
      %314 = vmatprep.subr.bf16.mxu0 0
      %315 = vmatpush2.bf16.xpose.msra.mxu0 0
      %316 = vmatprep.subr.bf16.mxu0 0
      %317 = vmatpush2.bf16.xpose.msra.mxu0 0
      %318 = vmatprep.subr.bf16.mxu0 0
      %319 = vmatpush2.bf16.xpose.msra.mxu0 0
      %320 = vmatprep.subr.bf16.mxu0 0
      %321 = vmatpush2.bf16.xpose.msra.mxu0 0
      %322 = vmatprep.subr.bf16.mxu0 0
      %323 = vmatpush2.bf16.xpose.msra.mxu0 0
      %324 = vmatprep.subr.bf16.mxu0 0
      %325 = vmatpush2.bf16.xpose.msra.mxu0 0
      %326 = vmatprep.mubr.bf16.mxu0 0
      %327 = vmatmul.mubr.bf16.gmra.mxu0 %v283
      %v328 = vpop.f32.mrf.mxu0
      %v329 = vadd.f32 %v263, %v328
      %v330 = vpop.f32.mrf.mxu0
      %v331 = vpop.f32.mrf.mxu0
      %v332 = vadd.f32 %v264, %v331
      %v333 = vpop.f32.mrf.mxu0
      %334 = vmatprep.mubr.bf16.mxu0 0
      %335 = vmatmul.mubr.bf16.gmra.mxu0 %v286
      %v336 = vpop.f32.mrf.mxu0
      %v337 = vadd.f32 %v265, %v336
      %v338 = vpop.f32.mrf.mxu0
      %v339 = vpop.f32.mrf.mxu0
      %v340 = vadd.f32 %v266, %v339
      %v341 = vpop.f32.mrf.mxu0
      %342 = vdwg.mxu0
      %v347 = vunpack.c.l.b16 %v235
      %v348 = vunpack.c.l.b16 %v236
      %v349 = vunpack.c.l.b16 %v237
      %v350 = vunpack.c.l.b16 %v238
      %v351 = vpack.c.b16 %v348, %v347
      %v352 = vpack.c.b16 %v350, %v349
      %353 = vrot.lane.b32.xlu0 %v351, 96
      %v354 = vpop.permute.xlu0 %353
      %355 = vrot.lane.b32.xlu0 %v352, 96
      %v356 = vpop.permute.xlu0 %355
      %v358 = vsel %vm281, %v351, 0
      %v361 = vsel %vm281, %v352, 0
      %v364 = vsel %vm281, %v354, 0
      %v367 = vsel %vm281, %v356, 0
      %369 = vmatprep.subr.bf16.mxu0 0
      %370 = vmatpush1.bf16.xpose.msra.mxu0 0
      %371 = vmatprep.subr.bf16.mxu0 0
      %372 = vmatpush1.bf16.xpose.msra.mxu0 0
      %373 = vmatprep.subr.bf16.mxu0 0
      %374 = vmatpush1.bf16.xpose.msra.mxu0 0
      %375 = vmatprep.subr.bf16.mxu0 0
      %376 = vmatpush1.bf16.xpose.msra.mxu0 0
      %377 = vmatprep.subr.bf16.mxu0 0
      %378 = vmatpush1.bf16.xpose.msra.mxu0 0
      %379 = vmatprep.subr.bf16.mxu0 0
      %380 = vmatpush1.bf16.xpose.msra.mxu0 0
      %381 = vmatprep.subr.bf16.mxu0 0
      %382 = vmatpush1.bf16.xpose.msra.mxu0 %v367
      %383 = vmatprep.subr.bf16.mxu0 0
      %384 = vmatpush1.bf16.xpose.msra.mxu0 %v364
      %385 = vmatprep.subr.bf16.mxu0 0
      %386 = vmatpush2.bf16.xpose.msra.mxu0 0
      %387 = vmatprep.subr.bf16.mxu0 0
      %388 = vmatpush2.bf16.xpose.msra.mxu0 0
      %389 = vmatprep.subr.bf16.mxu0 0
      %390 = vmatpush2.bf16.xpose.msra.mxu0 0
      %391 = vmatprep.subr.bf16.mxu0 0
      %392 = vmatpush2.bf16.xpose.msra.mxu0 0
      %393 = vmatprep.subr.bf16.mxu0 0
      %394 = vmatpush2.bf16.xpose.msra.mxu0 0
      %395 = vmatprep.subr.bf16.mxu0 0
      %396 = vmatpush2.bf16.xpose.msra.mxu0 0
      %397 = vmatprep.subr.bf16.mxu0 0
      %398 = vmatpush2.bf16.xpose.msra.mxu0 0
      %399 = vmatprep.subr.bf16.mxu0 0
      %400 = vmatpush2.bf16.xpose.msra.mxu0 0
      %401 = vmatprep.mubr.bf16.mxu0 0
      %402 = vmatmul.mubr.bf16.gmra.mxu0 %v358
      %v403 = vpop.f32.mrf.mxu0
      %v404 = vadd.f32 %v263, %v403
      %v405 = vpop.f32.mrf.mxu0
      %v406 = vpop.f32.mrf.mxu0
      %v407 = vadd.f32 %v264, %v406
      %v408 = vpop.f32.mrf.mxu0
      %409 = vmatprep.mubr.bf16.mxu0 0
      %410 = vmatmul.mubr.bf16.gmra.mxu0 %v361
      %v411 = vpop.f32.mrf.mxu0
      %v412 = vadd.f32 %v265, %v411
      %v413 = vpop.f32.mrf.mxu0
      %v414 = vpop.f32.mrf.mxu0
      %v415 = vadd.f32 %v266, %v414
      %v416 = vpop.f32.mrf.mxu0
      %417 = vdwg.mxu0
      %v422 = vunpack.c.l.b16 %v239
      %v423 = vunpack.c.l.b16 %v240
      %v424 = vunpack.c.l.b16 %v241
      %v425 = vunpack.c.l.b16 %v242
      %v426 = vpack.c.b16 %v423, %v422
      %v427 = vpack.c.b16 %v425, %v424
      %428 = vrot.lane.b32.xlu0 %v426, 96
      %v429 = vpop.permute.xlu0 %428
      %430 = vrot.lane.b32.xlu0 %v427, 96
      %v431 = vpop.permute.xlu0 %430
      %v433 = vsel %vm281, %v426, 0
      %v436 = vsel %vm281, %v427, 0
      %v439 = vsel %vm281, %v429, 0
      %v442 = vsel %vm281, %v431, 0
      %444 = vmatprep.subr.bf16.mxu0 0
      %445 = vmatpush1.bf16.xpose.msra.mxu0 0
      %446 = vmatprep.subr.bf16.mxu0 0
      %447 = vmatpush1.bf16.xpose.msra.mxu0 0
      %448 = vmatprep.subr.bf16.mxu0 0
      %449 = vmatpush1.bf16.xpose.msra.mxu0 0
      %450 = vmatprep.subr.bf16.mxu0 0
      %451 = vmatpush1.bf16.xpose.msra.mxu0 0
      %452 = vmatprep.subr.bf16.mxu0 0
      %453 = vmatpush1.bf16.xpose.msra.mxu0 0
      %454 = vmatprep.subr.bf16.mxu0 0
      %455 = vmatpush1.bf16.xpose.msra.mxu0 0
      %456 = vmatprep.subr.bf16.mxu0 0
      %457 = vmatpush1.bf16.xpose.msra.mxu0 %v442
      %458 = vmatprep.subr.bf16.mxu0 0
      %459 = vmatpush1.bf16.xpose.msra.mxu0 %v439
      %460 = vmatprep.subr.bf16.mxu0 0
      %461 = vmatpush2.bf16.xpose.msra.mxu0 0
      %462 = vmatprep.subr.bf16.mxu0 0
      %463 = vmatpush2.bf16.xpose.msra.mxu0 0
      %464 = vmatprep.subr.bf16.mxu0 0
      %465 = vmatpush2.bf16.xpose.msra.mxu0 0
      %466 = vmatprep.subr.bf16.mxu0 0
      %467 = vmatpush2.bf16.xpose.msra.mxu0 0
      %468 = vmatprep.subr.bf16.mxu0 0
      %469 = vmatpush2.bf16.xpose.msra.mxu0 0
      %470 = vmatprep.subr.bf16.mxu0 0
      %471 = vmatpush2.bf16.xpose.msra.mxu0 0
      %472 = vmatprep.subr.bf16.mxu0 0
      %473 = vmatpush2.bf16.xpose.msra.mxu0 0
      %474 = vmatprep.subr.bf16.mxu0 0
      %475 = vmatpush2.bf16.xpose.msra.mxu0 0
      %476 = vmatprep.mubr.bf16.mxu0 0
      %477 = vmatmul.mubr.bf16.gmra.mxu0 %v433
      %v478 = vpop.f32.mrf.mxu0
      %v479 = vadd.f32 %v263, %v478
      %v480 = vpop.f32.mrf.mxu0
      %v481 = vpop.f32.mrf.mxu0
      %v482 = vadd.f32 %v264, %v481
      %v483 = vpop.f32.mrf.mxu0
      %484 = vmatprep.mubr.bf16.mxu0 0
      %485 = vmatmul.mubr.bf16.gmra.mxu0 %v436
      %v486 = vpop.f32.mrf.mxu0
      %v487 = vadd.f32 %v265, %v486
      %v488 = vpop.f32.mrf.mxu0
      %v489 = vpop.f32.mrf.mxu0
      %v490 = vadd.f32 %v266, %v489
      %v491 = vpop.f32.mrf.mxu0
      %492 = vdwg.mxu0
      %v497 = vunpack.c.l.b16 %v243
      %v498 = vunpack.c.l.b16 %v244
      %v499 = vunpack.c.l.b16 %v245
      %v500 = vunpack.c.l.b16 %v246
      %v501 = vpack.c.b16 %v498, %v497
      %v502 = vpack.c.b16 %v500, %v499
      %503 = vrot.lane.b32.xlu0 %v501, 96
      %v504 = vpop.permute.xlu0 %503
      %505 = vrot.lane.b32.xlu0 %v502, 96
      %v506 = vpop.permute.xlu0 %505
      %v508 = vsel %vm281, %v501, 0
      %v511 = vsel %vm281, %v502, 0
      %v514 = vsel %vm281, %v504, 0
      %v517 = vsel %vm281, %v506, 0
      %519 = vmatprep.subr.bf16.mxu0 0
      %520 = vmatpush1.bf16.xpose.msra.mxu0 0
      %521 = vmatprep.subr.bf16.mxu0 0
      %522 = vmatpush1.bf16.xpose.msra.mxu0 0
      %523 = vmatprep.subr.bf16.mxu0 0
      %524 = vmatpush1.bf16.xpose.msra.mxu0 0
      %525 = vmatprep.subr.bf16.mxu0 0
      %526 = vmatpush1.bf16.xpose.msra.mxu0 0
      %527 = vmatprep.subr.bf16.mxu0 0
      %528 = vmatpush1.bf16.xpose.msra.mxu0 0
      %529 = vmatprep.subr.bf16.mxu0 0
      %530 = vmatpush1.bf16.xpose.msra.mxu0 0
      %531 = vmatprep.subr.bf16.mxu0 0
      %532 = vmatpush1.bf16.xpose.msra.mxu0 %v517
      %533 = vmatprep.subr.bf16.mxu0 0
      %534 = vmatpush1.bf16.xpose.msra.mxu0 %v514
      %535 = vmatprep.subr.bf16.mxu0 0
      %536 = vmatpush2.bf16.xpose.msra.mxu0 0
      %537 = vmatprep.subr.bf16.mxu0 0
      %538 = vmatpush2.bf16.xpose.msra.mxu0 0
      %539 = vmatprep.subr.bf16.mxu0 0
      %540 = vmatpush2.bf16.xpose.msra.mxu0 0
      %541 = vmatprep.subr.bf16.mxu0 0
      %542 = vmatpush2.bf16.xpose.msra.mxu0 0
      %543 = vmatprep.subr.bf16.mxu0 0
      %544 = vmatpush2.bf16.xpose.msra.mxu0 0
      %545 = vmatprep.subr.bf16.mxu0 0
      %546 = vmatpush2.bf16.xpose.msra.mxu0 0
      %547 = vmatprep.subr.bf16.mxu0 0
      %548 = vmatpush2.bf16.xpose.msra.mxu0 0
      %549 = vmatprep.subr.bf16.mxu0 0
      %550 = vmatpush2.bf16.xpose.msra.mxu0 0
      %551 = vmatprep.mubr.bf16.mxu0 0
      %552 = vmatmul.mubr.bf16.gmra.mxu0 %v508
      %v553 = vpop.f32.mrf.mxu0
      %v554 = vadd.f32 %v263, %v553
      %v555 = vpop.f32.mrf.mxu0
      %v556 = vpop.f32.mrf.mxu0
      %v557 = vadd.f32 %v264, %v556
      %v558 = vpop.f32.mrf.mxu0
      %559 = vmatprep.mubr.bf16.mxu0 0
      %560 = vmatmul.mubr.bf16.gmra.mxu0 %v511
      %v561 = vpop.f32.mrf.mxu0
      %v562 = vadd.f32 %v265, %v561
      %v563 = vpop.f32.mrf.mxu0
      %v564 = vpop.f32.mrf.mxu0
      %v565 = vadd.f32 %v266, %v564
      %v566 = vpop.f32.mrf.mxu0
      %567 = vdwg.mxu0
      %v572 = vunpack.c.l.b16 %v247
      %v573 = vunpack.c.l.b16 %v248
      %v574 = vunpack.c.l.b16 %v249
      %v575 = vunpack.c.l.b16 %v250
      %v576 = vpack.c.b16 %v573, %v572
      %v577 = vpack.c.b16 %v575, %v574
      %578 = vrot.lane.b32.xlu0 %v576, 96
      %v579 = vpop.permute.xlu0 %578
      %580 = vrot.lane.b32.xlu0 %v577, 96
      %v581 = vpop.permute.xlu0 %580
      %v583 = vsel %vm281, %v576, 0
      %v586 = vsel %vm281, %v577, 0
      %v589 = vsel %vm281, %v579, 0
      %v592 = vsel %vm281, %v581, 0
      %594 = vmatprep.subr.bf16.mxu0 0
      %595 = vmatpush1.bf16.xpose.msra.mxu0 0
      %596 = vmatprep.subr.bf16.mxu0 0
      %597 = vmatpush1.bf16.xpose.msra.mxu0 0
      %598 = vmatprep.subr.bf16.mxu0 0
      %599 = vmatpush1.bf16.xpose.msra.mxu0 0
      %600 = vmatprep.subr.bf16.mxu0 0
      %601 = vmatpush1.bf16.xpose.msra.mxu0 0
      %602 = vmatprep.subr.bf16.mxu0 0
      %603 = vmatpush1.bf16.xpose.msra.mxu0 0
      %604 = vmatprep.subr.bf16.mxu0 0
      %605 = vmatpush1.bf16.xpose.msra.mxu0 0
      %606 = vmatprep.subr.bf16.mxu0 0
      %607 = vmatpush1.bf16.xpose.msra.mxu0 %v592
      %608 = vmatprep.subr.bf16.mxu0 0
      %609 = vmatpush1.bf16.xpose.msra.mxu0 %v589
      %610 = vmatprep.subr.bf16.mxu0 0
      %611 = vmatpush2.bf16.xpose.msra.mxu0 0
      %612 = vmatprep.subr.bf16.mxu0 0
      %613 = vmatpush2.bf16.xpose.msra.mxu0 0
      %614 = vmatprep.subr.bf16.mxu0 0
      %615 = vmatpush2.bf16.xpose.msra.mxu0 0
      %616 = vmatprep.subr.bf16.mxu0 0
      %617 = vmatpush2.bf16.xpose.msra.mxu0 0
      %618 = vmatprep.subr.bf16.mxu0 0
      %619 = vmatpush2.bf16.xpose.msra.mxu0 0
      %620 = vmatprep.subr.bf16.mxu0 0
      %621 = vmatpush2.bf16.xpose.msra.mxu0 0
      %622 = vmatprep.subr.bf16.mxu0 0
      %623 = vmatpush2.bf16.xpose.msra.mxu0 0
      %624 = vmatprep.subr.bf16.mxu0 0
      %625 = vmatpush2.bf16.xpose.msra.mxu0 0
      %626 = vmatprep.mubr.bf16.mxu0 0
      %627 = vmatmul.mubr.bf16.gmra.mxu0 %v583
      %v628 = vpop.f32.mrf.mxu0
      %v629 = vadd.f32 %v263, %v628
      %v630 = vpop.f32.mrf.mxu0
      %v631 = vpop.f32.mrf.mxu0
      %v632 = vadd.f32 %v264, %v631
      %v633 = vpop.f32.mrf.mxu0
      %634 = vmatprep.mubr.bf16.mxu0 0
      %635 = vmatmul.mubr.bf16.gmra.mxu0 %v586
      %v636 = vpop.f32.mrf.mxu0
      %v637 = vadd.f32 %v265, %v636
      %v638 = vpop.f32.mrf.mxu0
      %v639 = vpop.f32.mrf.mxu0
      %v640 = vadd.f32 %v266, %v639
      %v641 = vpop.f32.mrf.mxu0
      %642 = vdwg.mxu0
      %v647 = vunpack.c.l.b16 %v251
      %v648 = vunpack.c.l.b16 %v252
      %v649 = vunpack.c.l.b16 %v253
      %v650 = vunpack.c.l.b16 %v254
      %v651 = vpack.c.b16 %v648, %v647
      %v652 = vpack.c.b16 %v650, %v649
      %653 = vrot.lane.b32.xlu0 %v651, 96
      %v654 = vpop.permute.xlu0 %653
      %655 = vrot.lane.b32.xlu0 %v652, 96
      %v656 = vpop.permute.xlu0 %655
      %v658 = vsel %vm281, %v651, 0
      %v661 = vsel %vm281, %v652, 0
      %v664 = vsel %vm281, %v654, 0
      %v667 = vsel %vm281, %v656, 0
      %669 = vmatprep.subr.bf16.mxu0 0
      %670 = vmatpush1.bf16.xpose.msra.mxu0 0
      %671 = vmatprep.subr.bf16.mxu0 0
      %672 = vmatpush1.bf16.xpose.msra.mxu0 0
      %673 = vmatprep.subr.bf16.mxu0 0
      %674 = vmatpush1.bf16.xpose.msra.mxu0 0
      %675 = vmatprep.subr.bf16.mxu0 0
      %676 = vmatpush1.bf16.xpose.msra.mxu0 0
      %677 = vmatprep.subr.bf16.mxu0 0
      %678 = vmatpush1.bf16.xpose.msra.mxu0 0
      %679 = vmatprep.subr.bf16.mxu0 0
      %680 = vmatpush1.bf16.xpose.msra.mxu0 0
      %681 = vmatprep.subr.bf16.mxu0 0
      %682 = vmatpush1.bf16.xpose.msra.mxu0 %v667
      %683 = vmatprep.subr.bf16.mxu0 0
      %684 = vmatpush1.bf16.xpose.msra.mxu0 %v664
      %685 = vmatprep.subr.bf16.mxu0 0
      %686 = vmatpush2.bf16.xpose.msra.mxu0 0
      %687 = vmatprep.subr.bf16.mxu0 0
      %688 = vmatpush2.bf16.xpose.msra.mxu0 0
      %689 = vmatprep.subr.bf16.mxu0 0
      %690 = vmatpush2.bf16.xpose.msra.mxu0 0
      %691 = vmatprep.subr.bf16.mxu0 0
      %692 = vmatpush2.bf16.xpose.msra.mxu0 0
      %693 = vmatprep.subr.bf16.mxu0 0
      %694 = vmatpush2.bf16.xpose.msra.mxu0 0
      %695 = vmatprep.subr.bf16.mxu0 0
      %696 = vmatpush2.bf16.xpose.msra.mxu0 0
      %697 = vmatprep.subr.bf16.mxu0 0
      %698 = vmatpush2.bf16.xpose.msra.mxu0 0
      %699 = vmatprep.subr.bf16.mxu0 0
      %700 = vmatpush2.bf16.xpose.msra.mxu0 0
      %701 = vmatprep.mubr.bf16.mxu0 0
      %702 = vmatmul.mubr.bf16.gmra.mxu0 %v658
      %v703 = vpop.f32.mrf.mxu0
      %v704 = vadd.f32 %v263, %v703
      %v705 = vpop.f32.mrf.mxu0
      %v706 = vpop.f32.mrf.mxu0
      %v707 = vadd.f32 %v264, %v706
      %v708 = vpop.f32.mrf.mxu0
      %709 = vmatprep.mubr.bf16.mxu0 0
      %710 = vmatmul.mubr.bf16.gmra.mxu0 %v661
      %v711 = vpop.f32.mrf.mxu0
      %v712 = vadd.f32 %v265, %v711
      %v713 = vpop.f32.mrf.mxu0
      %v714 = vpop.f32.mrf.mxu0
      %v715 = vadd.f32 %v266, %v714
      %v716 = vpop.f32.mrf.mxu0
      %717 = vdwg.mxu0
      %v722 = vunpack.c.l.b16 %v255
      %v723 = vunpack.c.l.b16 %v256
      %v724 = vunpack.c.l.b16 %v257
      %v725 = vunpack.c.l.b16 %v258
      %v726 = vpack.c.b16 %v723, %v722
      %v727 = vpack.c.b16 %v725, %v724
      %728 = vrot.lane.b32.xlu0 %v726, 96
      %v729 = vpop.permute.xlu0 %728
      %730 = vrot.lane.b32.xlu0 %v727, 96
      %v731 = vpop.permute.xlu0 %730
      %v733 = vsel %vm281, %v726, 0
      %v736 = vsel %vm281, %v727, 0
      %v739 = vsel %vm281, %v729, 0
      %v742 = vsel %vm281, %v731, 0
      %744 = vmatprep.subr.bf16.mxu0 0
      %745 = vmatpush1.bf16.xpose.msra.mxu0 0
      %746 = vmatprep.subr.bf16.mxu0 0
      %747 = vmatpush1.bf16.xpose.msra.mxu0 0
      %748 = vmatprep.subr.bf16.mxu0 0
      %749 = vmatpush1.bf16.xpose.msra.mxu0 0
      %750 = vmatprep.subr.bf16.mxu0 0
      %751 = vmatpush1.bf16.xpose.msra.mxu0 0
      %752 = vmatprep.subr.bf16.mxu0 0
      %753 = vmatpush1.bf16.xpose.msra.mxu0 0
      %754 = vmatprep.subr.bf16.mxu0 0
      %755 = vmatpush1.bf16.xpose.msra.mxu0 0
      %756 = vmatprep.subr.bf16.mxu0 0
      %757 = vmatpush1.bf16.xpose.msra.mxu0 %v742
      %758 = vmatprep.subr.bf16.mxu0 0
      %759 = vmatpush1.bf16.xpose.msra.mxu0 %v739
      %760 = vmatprep.subr.bf16.mxu0 0
      %761 = vmatpush2.bf16.xpose.msra.mxu0 0
      %762 = vmatprep.subr.bf16.mxu0 0
      %763 = vmatpush2.bf16.xpose.msra.mxu0 0
      %764 = vmatprep.subr.bf16.mxu0 0
      %765 = vmatpush2.bf16.xpose.msra.mxu0 0
      %766 = vmatprep.subr.bf16.mxu0 0
      %767 = vmatpush2.bf16.xpose.msra.mxu0 0
      %768 = vmatprep.subr.bf16.mxu0 0
      %769 = vmatpush2.bf16.xpose.msra.mxu0 0
      %770 = vmatprep.subr.bf16.mxu0 0
      %771 = vmatpush2.bf16.xpose.msra.mxu0 0
      %772 = vmatprep.subr.bf16.mxu0 0
      %773 = vmatpush2.bf16.xpose.msra.mxu0 0
      %774 = vmatprep.subr.bf16.mxu0 0
      %775 = vmatpush2.bf16.xpose.msra.mxu0 0
      %776 = vmatprep.mubr.bf16.mxu0 0
      %777 = vmatmul.mubr.bf16.gmra.mxu0 %v733
      %v778 = vpop.f32.mrf.mxu0
      %v779 = vadd.f32 %v263, %v778
      %v780 = vpop.f32.mrf.mxu0
      %v781 = vpop.f32.mrf.mxu0
      %v782 = vadd.f32 %v264, %v781
      %v783 = vpop.f32.mrf.mxu0
      %784 = vmatprep.mubr.bf16.mxu0 0
      %785 = vmatmul.mubr.bf16.gmra.mxu0 %v736
      %v786 = vpop.f32.mrf.mxu0
      %v787 = vadd.f32 %v265, %v786
      %v788 = vpop.f32.mrf.mxu0
      %v789 = vpop.f32.mrf.mxu0
      %v790 = vadd.f32 %v266, %v789
      %v791 = vpop.f32.mrf.mxu0
      %792 = vdwg.mxu0
      %v797 = vunpack.c.l.b16 %v259
      %v798 = vunpack.c.l.b16 %v260
      %v799 = vunpack.c.l.b16 %v261
      %v800 = vunpack.c.l.b16 %v262
      %v801 = vpack.c.b16 %v798, %v797
      %v802 = vpack.c.b16 %v800, %v799
      %803 = vrot.lane.b32.xlu0 %v801, 96
      %v804 = vpop.permute.xlu0 %803
      %805 = vrot.lane.b32.xlu0 %v802, 96
      %v806 = vpop.permute.xlu0 %805
      %v808 = vsel %vm281, %v801, 0
      %v811 = vsel %vm281, %v802, 0
      %v814 = vsel %vm281, %v804, 0
      %v817 = vsel %vm281, %v806, 0
      %819 = vmatprep.subr.bf16.mxu0 0
      %820 = vmatpush1.bf16.xpose.msra.mxu0 0
      %821 = vmatprep.subr.bf16.mxu0 0
      %822 = vmatpush1.bf16.xpose.msra.mxu0 0
      %823 = vmatprep.subr.bf16.mxu0 0
      %824 = vmatpush1.bf16.xpose.msra.mxu0 0
      %825 = vmatprep.subr.bf16.mxu0 0
      %826 = vmatpush1.bf16.xpose.msra.mxu0 0
      %827 = vmatprep.subr.bf16.mxu0 0
      %828 = vmatpush1.bf16.xpose.msra.mxu0 0
      %829 = vmatprep.subr.bf16.mxu0 0
      %830 = vmatpush1.bf16.xpose.msra.mxu0 0
      %831 = vmatprep.subr.bf16.mxu0 0
      %832 = vmatpush1.bf16.xpose.msra.mxu0 %v817
      %833 = vmatprep.subr.bf16.mxu0 0
      %834 = vmatpush1.bf16.xpose.msra.mxu0 %v814
      %835 = vmatprep.subr.bf16.mxu0 0
      %836 = vmatpush2.bf16.xpose.msra.mxu0 0
      %837 = vmatprep.subr.bf16.mxu0 0
      %838 = vmatpush2.bf16.xpose.msra.mxu0 0
      %839 = vmatprep.subr.bf16.mxu0 0
      %840 = vmatpush2.bf16.xpose.msra.mxu0 0
      %841 = vmatprep.subr.bf16.mxu0 0
      %842 = vmatpush2.bf16.xpose.msra.mxu0 0
      %843 = vmatprep.subr.bf16.mxu0 0
      %844 = vmatpush2.bf16.xpose.msra.mxu0 0
      %845 = vmatprep.subr.bf16.mxu0 0
      %846 = vmatpush2.bf16.xpose.msra.mxu0 0
      %847 = vmatprep.subr.bf16.mxu0 0
      %848 = vmatpush2.bf16.xpose.msra.mxu0 0
      %849 = vmatprep.subr.bf16.mxu0 0
      %850 = vmatpush2.bf16.xpose.msra.mxu0 0
      %851 = vmatprep.mubr.bf16.mxu0 0
      %852 = vmatmul.mubr.bf16.gmra.mxu0 %v808
      %v853 = vpop.f32.mrf.mxu0
      %v854 = vadd.f32 %v263, %v853
      %v855 = vpop.f32.mrf.mxu0
      %v856 = vpop.f32.mrf.mxu0
      %v857 = vadd.f32 %v264, %v856
      %v858 = vpop.f32.mrf.mxu0
      %859 = vmatprep.mubr.bf16.mxu0 0
      %860 = vmatmul.mubr.bf16.gmra.mxu0 %v811
      %v861 = vpop.f32.mrf.mxu0
      %v862 = vadd.f32 %v265, %v861
      %v863 = vpop.f32.mrf.mxu0
      %v864 = vpop.f32.mrf.mxu0
      %v865 = vadd.f32 %v266, %v864
      %v866 = vpop.f32.mrf.mxu0
      %867 = vdwg.mxu0
      %vm868 = vcmask 261120
      %v869 = vsel %vm868, %v329, -inf
      %870 = vmax.xlane.f32.xlu0 %v869
      %v871 = vpop.xlane.xlu0 %870
      %v872 = vsel %vm868, %v332, -inf
      %873 = vmax.xlane.f32.xlu0 %v872
      %v874 = vpop.xlane.xlu0 %873
      %v875 = vsel %vm868, %v337, -inf
      %876 = vmax.xlane.f32.xlu0 %v875
      %v877 = vpop.xlane.xlu0 %876
      %v878 = vsel %vm868, %v340, -inf
      %879 = vmax.xlane.f32.xlu0 %v878
      %v880 = vpop.xlane.xlu0 %879
      %v881 = vsel %vm868, %v404, -inf
      %882 = vmax.xlane.f32.xlu0 %v881
      %v883 = vpop.xlane.xlu0 %882
      %v884 = vsel %vm868, %v407, -inf
      %885 = vmax.xlane.f32.xlu0 %v884
      %v886 = vpop.xlane.xlu0 %885
      %v887 = vsel %vm868, %v412, -inf
      %888 = vmax.xlane.f32.xlu0 %v887
      %v889 = vpop.xlane.xlu0 %888
      %v890 = vsel %vm868, %v415, -inf
      %891 = vmax.xlane.f32.xlu0 %v890
      %v892 = vpop.xlane.xlu0 %891
      %v893 = vsel %vm868, %v479, -inf
      %894 = vmax.xlane.f32.xlu0 %v893
      %v895 = vpop.xlane.xlu0 %894
      %v896 = vsel %vm868, %v482, -inf
      %897 = vmax.xlane.f32.xlu0 %v896
      %v898 = vpop.xlane.xlu0 %897
      %v899 = vsel %vm868, %v487, -inf
      %900 = vmax.xlane.f32.xlu0 %v899
      %v901 = vpop.xlane.xlu0 %900
      %v902 = vsel %vm868, %v490, -inf
      %903 = vmax.xlane.f32.xlu0 %v902
      %v904 = vpop.xlane.xlu0 %903
      %v905 = vsel %vm868, %v554, -inf
      %906 = vmax.xlane.f32.xlu0 %v905
      %v907 = vpop.xlane.xlu0 %906
      %v908 = vsel %vm868, %v557, -inf
      %909 = vmax.xlane.f32.xlu0 %v908
      %v910 = vpop.xlane.xlu0 %909
      %v911 = vsel %vm868, %v562, -inf
      %912 = vmax.xlane.f32.xlu0 %v911
      %v913 = vpop.xlane.xlu0 %912
      %v914 = vsel %vm868, %v565, -inf
      %915 = vmax.xlane.f32.xlu0 %v914
      %v916 = vpop.xlane.xlu0 %915
      %v917 = vsel %vm868, %v629, -inf
      %918 = vmax.xlane.f32.xlu0 %v917
      %v919 = vpop.xlane.xlu0 %918
      %v920 = vsel %vm868, %v632, -inf
      %921 = vmax.xlane.f32.xlu0 %v920
      %v922 = vpop.xlane.xlu0 %921
      %v923 = vsel %vm868, %v637, -inf
      %924 = vmax.xlane.f32.xlu0 %v923
      %v925 = vpop.xlane.xlu0 %924
      %v926 = vsel %vm868, %v640, -inf
      %927 = vmax.xlane.f32.xlu0 %v926
      %v928 = vpop.xlane.xlu0 %927
      %v929 = vsel %vm868, %v704, -inf
      %930 = vmax.xlane.f32.xlu0 %v929
      %v931 = vpop.xlane.xlu0 %930
      %v932 = vsel %vm868, %v707, -inf
      %933 = vmax.xlane.f32.xlu0 %v932
      %v934 = vpop.xlane.xlu0 %933
      %v935 = vsel %vm868, %v712, -inf
      %936 = vmax.xlane.f32.xlu0 %v935
      %v937 = vpop.xlane.xlu0 %936
      %v938 = vsel %vm868, %v715, -inf
      %939 = vmax.xlane.f32.xlu0 %v938
      %v940 = vpop.xlane.xlu0 %939
      %v941 = vsel %vm868, %v779, -inf
      %942 = vmax.xlane.f32.xlu0 %v941
      %v943 = vpop.xlane.xlu0 %942
      %v944 = vsel %vm868, %v782, -inf
      %945 = vmax.xlane.f32.xlu0 %v944
      %v946 = vpop.xlane.xlu0 %945
      %v947 = vsel %vm868, %v787, -inf
      %948 = vmax.xlane.f32.xlu0 %v947
      %v949 = vpop.xlane.xlu0 %948
      %v950 = vsel %vm868, %v790, -inf
      %951 = vmax.xlane.f32.xlu0 %v950
      %v952 = vpop.xlane.xlu0 %951
      %v953 = vsel %vm868, %v854, -inf
      %954 = vmax.xlane.f32.xlu0 %v953
      %v955 = vpop.xlane.xlu0 %954
      %v956 = vsel %vm868, %v857, -inf
      %957 = vmax.xlane.f32.xlu0 %v956
      %v958 = vpop.xlane.xlu0 %957
      %v959 = vsel %vm868, %v862, -inf
      %960 = vmax.xlane.f32.xlu0 %v959
      %v961 = vpop.xlane.xlu0 %960
      %v962 = vsel %vm868, %v865, -inf
      %963 = vmax.xlane.f32.xlu0 %v962
      %v964 = vpop.xlane.xlu0 %963
      %v965 = vsub.f32 %v329, %v871
      %v966 = vsub.f32 %v332, %v874
      %v967 = vsub.f32 %v337, %v877
      %v968 = vsub.f32 %v340, %v880
      %v969 = vsub.f32 %v404, %v883
      %v970 = vsub.f32 %v407, %v886
      %v971 = vsub.f32 %v412, %v889
      %v972 = vsub.f32 %v415, %v892
      %v973 = vsub.f32 %v479, %v895
      %v974 = vsub.f32 %v482, %v898
      %v975 = vsub.f32 %v487, %v901
      %v976 = vsub.f32 %v490, %v904
      %v977 = vsub.f32 %v554, %v907
      %v978 = vsub.f32 %v557, %v910
      %v979 = vsub.f32 %v562, %v913
      %v980 = vsub.f32 %v565, %v916
      %v981 = vsub.f32 %v629, %v919
      %v982 = vsub.f32 %v632, %v922
      %v983 = vsub.f32 %v637, %v925
      %v984 = vsub.f32 %v640, %v928
      %v985 = vsub.f32 %v704, %v931
      %v986 = vsub.f32 %v707, %v934
      %v987 = vsub.f32 %v712, %v937
      %v988 = vsub.f32 %v715, %v940
      %v989 = vsub.f32 %v779, %v943
      %v990 = vsub.f32 %v782, %v946
      %v991 = vsub.f32 %v787, %v949
      %v992 = vsub.f32 %v790, %v952
      %v993 = vsub.f32 %v854, %v955
      %v994 = vsub.f32 %v857, %v958
      %v995 = vsub.f32 %v862, %v961
      %v996 = vsub.f32 %v865, %v964
      %v997 = vmul.f32 %v965, 1.442695
      %v998 = vpow.pop %v997
      %v999 = vmul.f32 %v966, 1.442695
      %v1000 = vpow.pop %v999
      %v1001 = vmul.f32 %v967, 1.442695
      %v1002 = vpow.pop %v1001
      %v1003 = vmul.f32 %v968, 1.442695
      %v1004 = vpow.pop %v1003
      %v1005 = vmul.f32 %v969, 1.442695
      %v1006 = vpow.pop %v1005
      %v1007 = vmul.f32 %v970, 1.442695
      %v1008 = vpow.pop %v1007
      %v1009 = vmul.f32 %v971, 1.442695
      %v1010 = vpow.pop %v1009
      %v1011 = vmul.f32 %v972, 1.442695
      %v1012 = vpow.pop %v1011
      %v1013 = vmul.f32 %v973, 1.442695
      %v1014 = vpow.pop %v1013
      %v1015 = vmul.f32 %v974, 1.442695
      %v1016 = vpow.pop %v1015
      %v1017 = vmul.f32 %v975, 1.442695
      %v1018 = vpow.pop %v1017
      %v1019 = vmul.f32 %v976, 1.442695
      %v1020 = vpow.pop %v1019
      %v1021 = vmul.f32 %v977, 1.442695
      %v1022 = vpow.pop %v1021
      %v1023 = vmul.f32 %v978, 1.442695
      %v1024 = vpow.pop %v1023
      %v1025 = vmul.f32 %v979, 1.442695
      %v1026 = vpow.pop %v1025
      %v1027 = vmul.f32 %v980, 1.442695
      %v1028 = vpow.pop %v1027
      %v1029 = vmul.f32 %v981, 1.442695
      %v1030 = vpow.pop %v1029
      %v1031 = vmul.f32 %v982, 1.442695
      %v1032 = vpow.pop %v1031
      %v1033 = vmul.f32 %v983, 1.442695
      %v1034 = vpow.pop %v1033
      %v1035 = vmul.f32 %v984, 1.442695
      %v1036 = vpow.pop %v1035
      %v1037 = vmul.f32 %v985, 1.442695
      %v1038 = vpow.pop %v1037
      %v1039 = vmul.f32 %v986, 1.442695
      %v1040 = vpow.pop %v1039
      %v1041 = vmul.f32 %v987, 1.442695
      %v1042 = vpow.pop %v1041
      %v1043 = vmul.f32 %v988, 1.442695
      %v1044 = vpow.pop %v1043
      %v1045 = vmul.f32 %v989, 1.442695
      %v1046 = vpow.pop %v1045
      %v1047 = vmul.f32 %v990, 1.442695
      %v1048 = vpow.pop %v1047
      %v1049 = vmul.f32 %v991, 1.442695
      %v1050 = vpow.pop %v1049
      %v1051 = vmul.f32 %v992, 1.442695
      %v1052 = vpow.pop %v1051
      %v1053 = vmul.f32 %v993, 1.442695
      %v1054 = vpow.pop %v1053
      %v1055 = vmul.f32 %v994, 1.442695
      %v1056 = vpow.pop %v1055
      %v1057 = vmul.f32 %v995, 1.442695
      %v1058 = vpow.pop %v1057
      %v1059 = vmul.f32 %v996, 1.442695
      %v1060 = vpow.pop %v1059
      %v1061 = vsel %vm868, %v998, 0.0
      %1062 = vadd.xlane.f32.xlu0 %v1061
      %v1063 = vpop.xlane.xlu0 %1062
      %v1064 = vsel %vm868, %v1000, 0.0
      %1065 = vadd.xlane.f32.xlu0 %v1064
      %v1066 = vpop.xlane.xlu0 %1065
      %v1067 = vsel %vm868, %v1002, 0.0
      %1068 = vadd.xlane.f32.xlu0 %v1067
      %v1069 = vpop.xlane.xlu0 %1068
      %v1070 = vsel %vm868, %v1004, 0.0
      %1071 = vadd.xlane.f32.xlu0 %v1070
      %v1072 = vpop.xlane.xlu0 %1071
      %v1073 = vsel %vm868, %v1006, 0.0
      %1074 = vadd.xlane.f32.xlu0 %v1073
      %v1075 = vpop.xlane.xlu0 %1074
      %v1076 = vsel %vm868, %v1008, 0.0
      %1077 = vadd.xlane.f32.xlu0 %v1076
      %v1078 = vpop.xlane.xlu0 %1077
      %v1079 = vsel %vm868, %v1010, 0.0
      %1080 = vadd.xlane.f32.xlu0 %v1079
      %v1081 = vpop.xlane.xlu0 %1080
      %v1082 = vsel %vm868, %v1012, 0.0
      %1083 = vadd.xlane.f32.xlu0 %v1082
      %v1084 = vpop.xlane.xlu0 %1083
      %v1085 = vsel %vm868, %v1014, 0.0
      %1086 = vadd.xlane.f32.xlu0 %v1085
      %v1087 = vpop.xlane.xlu0 %1086
      %v1088 = vsel %vm868, %v1016, 0.0
      %1089 = vadd.xlane.f32.xlu0 %v1088
      %v1090 = vpop.xlane.xlu0 %1089
      %v1091 = vsel %vm868, %v1018, 0.0
      %1092 = vadd.xlane.f32.xlu0 %v1091
      %v1093 = vpop.xlane.xlu0 %1092
      %v1094 = vsel %vm868, %v1020, 0.0
      %1095 = vadd.xlane.f32.xlu0 %v1094
      %v1096 = vpop.xlane.xlu0 %1095
      %v1097 = vsel %vm868, %v1022, 0.0
      %1098 = vadd.xlane.f32.xlu0 %v1097
      %v1099 = vpop.xlane.xlu0 %1098
      %v1100 = vsel %vm868, %v1024, 0.0
      %1101 = vadd.xlane.f32.xlu0 %v1100
      %v1102 = vpop.xlane.xlu0 %1101
      %v1103 = vsel %vm868, %v1026, 0.0
      %1104 = vadd.xlane.f32.xlu0 %v1103
      %v1105 = vpop.xlane.xlu0 %1104
      %v1106 = vsel %vm868, %v1028, 0.0
      %1107 = vadd.xlane.f32.xlu0 %v1106
      %v1108 = vpop.xlane.xlu0 %1107
      %v1109 = vsel %vm868, %v1030, 0.0
      %1110 = vadd.xlane.f32.xlu0 %v1109
      %v1111 = vpop.xlane.xlu0 %1110
      %v1112 = vsel %vm868, %v1032, 0.0
      %1113 = vadd.xlane.f32.xlu0 %v1112
      %v1114 = vpop.xlane.xlu0 %1113
      %v1115 = vsel %vm868, %v1034, 0.0
      %1116 = vadd.xlane.f32.xlu0 %v1115
      %v1117 = vpop.xlane.xlu0 %1116
      %v1118 = vsel %vm868, %v1036, 0.0
      %1119 = vadd.xlane.f32.xlu0 %v1118
      %v1120 = vpop.xlane.xlu0 %1119
      %v1121 = vsel %vm868, %v1038, 0.0
      %1122 = vadd.xlane.f32.xlu0 %v1121
      %v1123 = vpop.xlane.xlu0 %1122
      %v1124 = vsel %vm868, %v1040, 0.0
      %1125 = vadd.xlane.f32.xlu0 %v1124
      %v1126 = vpop.xlane.xlu0 %1125
      %v1127 = vsel %vm868, %v1042, 0.0
      %1128 = vadd.xlane.f32.xlu0 %v1127
      %v1129 = vpop.xlane.xlu0 %1128
      %v1130 = vsel %vm868, %v1044, 0.0
      %1131 = vadd.xlane.f32.xlu0 %v1130
      %v1132 = vpop.xlane.xlu0 %1131
      %v1133 = vsel %vm868, %v1046, 0.0
      %1134 = vadd.xlane.f32.xlu0 %v1133
      %v1135 = vpop.xlane.xlu0 %1134
      %v1136 = vsel %vm868, %v1048, 0.0
      %1137 = vadd.xlane.f32.xlu0 %v1136
      %v1138 = vpop.xlane.xlu0 %1137
      %v1139 = vsel %vm868, %v1050, 0.0
      %1140 = vadd.xlane.f32.xlu0 %v1139
      %v1141 = vpop.xlane.xlu0 %1140
      %v1142 = vsel %vm868, %v1052, 0.0
      %1143 = vadd.xlane.f32.xlu0 %v1142
      %v1144 = vpop.xlane.xlu0 %1143
      %v1145 = vsel %vm868, %v1054, 0.0
      %1146 = vadd.xlane.f32.xlu0 %v1145
      %v1147 = vpop.xlane.xlu0 %1146
      %v1148 = vsel %vm868, %v1056, 0.0
      %1149 = vadd.xlane.f32.xlu0 %v1148
      %v1150 = vpop.xlane.xlu0 %1149
      %v1151 = vsel %vm868, %v1058, 0.0
      %1152 = vadd.xlane.f32.xlu0 %v1151
      %v1153 = vpop.xlane.xlu0 %1152
      %v1154 = vsel %vm868, %v1060, 0.0
      %1155 = vadd.xlane.f32.xlu0 %v1154
      %v1156 = vpop.xlane.xlu0 %1155
      %v1157 = vrcp.pop %v1063
      %v1158 = vrcp.pop %v1066
      %v1159 = vrcp.pop %v1069
      %v1160 = vrcp.pop %v1072
      %v1161 = vrcp.pop %v1075
      %v1162 = vrcp.pop %v1078
      %v1163 = vrcp.pop %v1081
      %v1164 = vrcp.pop %v1084
      %v1165 = vrcp.pop %v1087
      %v1166 = vrcp.pop %v1090
      %v1167 = vrcp.pop %v1093
      %v1168 = vrcp.pop %v1096
      %v1169 = vrcp.pop %v1099
      %v1170 = vrcp.pop %v1102
      %v1171 = vrcp.pop %v1105
      %v1172 = vrcp.pop %v1108
      %v1173 = vrcp.pop %v1111
      %v1174 = vrcp.pop %v1114
      %v1175 = vrcp.pop %v1117
      %v1176 = vrcp.pop %v1120
      %v1177 = vrcp.pop %v1123
      %v1178 = vrcp.pop %v1126
      %v1179 = vrcp.pop %v1129
      %v1180 = vrcp.pop %v1132
      %v1181 = vrcp.pop %v1135
      %v1182 = vrcp.pop %v1138
      %v1183 = vrcp.pop %v1141
      %v1184 = vrcp.pop %v1144
      %v1185 = vrcp.pop %v1147
      %v1186 = vrcp.pop %v1150
      %v1187 = vrcp.pop %v1153
      %v1188 = vrcp.pop %v1156
      %v1189 = vmul.f32 %v998, %v1157
      %v1190 = vmul.f32 %v1000, %v1158
      %v1191 = vmul.f32 %v1002, %v1159
      %v1192 = vmul.f32 %v1004, %v1160
      %v1193 = vmul.f32 %v1006, %v1161
      %v1194 = vmul.f32 %v1008, %v1162
      %v1195 = vmul.f32 %v1010, %v1163
      %v1196 = vmul.f32 %v1012, %v1164
      %v1197 = vmul.f32 %v1014, %v1165
      %v1198 = vmul.f32 %v1016, %v1166
      %v1199 = vmul.f32 %v1018, %v1167
      %v1200 = vmul.f32 %v1020, %v1168
      %v1201 = vmul.f32 %v1022, %v1169
      %v1202 = vmul.f32 %v1024, %v1170
      %v1203 = vmul.f32 %v1026, %v1171
      %v1204 = vmul.f32 %v1028, %v1172
      %v1205 = vmul.f32 %v1030, %v1173
      %v1206 = vmul.f32 %v1032, %v1174
      %v1207 = vmul.f32 %v1034, %v1175
      %v1208 = vmul.f32 %v1036, %v1176
      %v1209 = vmul.f32 %v1038, %v1177
      %v1210 = vmul.f32 %v1040, %v1178
      %v1211 = vmul.f32 %v1042, %v1179
      %v1212 = vmul.f32 %v1044, %v1180
      %v1213 = vmul.f32 %v1046, %v1181
      %v1214 = vmul.f32 %v1048, %v1182
      %v1215 = vmul.f32 %v1050, %v1183
      %v1216 = vmul.f32 %v1052, %v1184
      %v1217 = vmul.f32 %v1054, %v1185
      %v1218 = vmul.f32 %v1056, %v1186
      %v1219 = vmul.f32 %v1058, %v1187
      %v1220 = vmul.f32 %v1060, %v1188
      %v1221 = vpack.c.bf16 %v1190, %v1189
      %v1222 = vpack.c.bf16 %v1192, %v1191
      %v1223 = vpack.c.bf16 %v1194, %v1193
      %v1224 = vpack.c.bf16 %v1196, %v1195
      %v1225 = vpack.c.bf16 %v1198, %v1197
      %v1226 = vpack.c.bf16 %v1200, %v1199
      %v1227 = vpack.c.bf16 %v1202, %v1201
      %v1228 = vpack.c.bf16 %v1204, %v1203
      %v1229 = vpack.c.bf16 %v1206, %v1205
      %v1230 = vpack.c.bf16 %v1208, %v1207
      %v1231 = vpack.c.bf16 %v1210, %v1209
      %v1232 = vpack.c.bf16 %v1212, %v1211
      %v1233 = vpack.c.bf16 %v1214, %v1213
      %v1234 = vpack.c.bf16 %v1216, %v1215
      %v1235 = vpack.c.bf16 %v1218, %v1217
      %v1236 = vpack.c.bf16 %v1220, %v1219
      %1237 = vrot.lane.b32.xlu0 %v275, 64
      %v1238 = vpop.permute.xlu0 %1237
      %1239 = vrot.lane.b32.xlu0 %v276, 64
      %v1240 = vpop.permute.xlu0 %1239
      %v1244 = vsel %vm868, %v1221, 0
      %v1247 = vsel %vm868, %v1222, 0
      %1249 = vmatprep.subr.bf16.mxu0 0
      %1250 = vmatpush1.bf16.msra.mxu0 0
      %1251 = vmatprep.subr.bf16.mxu0 0
      %1252 = vmatpush1.bf16.msra.mxu0 0
      %1253 = vmatprep.subr.bf16.mxu0 0
      %1254 = vmatpush1.bf16.msra.mxu0 0
      %1255 = vmatprep.subr.bf16.mxu0 0
      %1256 = vmatpush1.bf16.msra.mxu0 0
      %1257 = vmatprep.subr.bf16.mxu0 0
      %1258 = vmatpush1.bf16.msra.mxu0 0
      %1259 = vmatprep.subr.bf16.mxu0 0
      %1260 = vmatpush1.bf16.msra.mxu0 0
      %1261 = vmatprep.subr.bf16.mxu0 0
      %1262 = vmatpush1.bf16.msra.mxu0 %v1240
      %1263 = vmatprep.subr.bf16.mxu0 0
      %1264 = vmatpush1.bf16.msra.mxu0 %v1238
      %1265 = vmatprep.subr.bf16.mxu0 0
      %1266 = vmatpush2.bf16.msra.mxu0 0
      %1267 = vmatprep.subr.bf16.mxu0 0
      %1268 = vmatpush2.bf16.msra.mxu0 0
      %1269 = vmatprep.subr.bf16.mxu0 0
      %1270 = vmatpush2.bf16.msra.mxu0 0
      %1271 = vmatprep.subr.bf16.mxu0 0
      %1272 = vmatpush2.bf16.msra.mxu0 0
      %1273 = vmatprep.subr.bf16.mxu0 0
      %1274 = vmatpush2.bf16.msra.mxu0 0
      %1275 = vmatprep.subr.bf16.mxu0 0
      %1276 = vmatpush2.bf16.msra.mxu0 0
      %1277 = vmatprep.subr.bf16.mxu0 0
      %1278 = vmatpush2.bf16.msra.mxu0 0
      %1279 = vmatprep.subr.bf16.mxu0 0
      %1280 = vmatpush2.bf16.msra.mxu0 0
      %1281 = vmatprep.mubr.bf16.mxu0 0
      %1282 = vmatmul.mubr.bf16.gmra.mxu0 %v1244
      %v1283 = vpop.f32.mrf.mxu0
      %v1284 = vadd.f32 0.0, %v1283
      %v1285 = vpop.f32.mrf.mxu0
      %v1286 = vpop.f32.mrf.mxu0
      %v1287 = vadd.f32 0.0, %v1286
      %v1288 = vpop.f32.mrf.mxu0
      %1289 = vmatprep.mubr.bf16.mxu0 0
      %1290 = vmatmul.mubr.bf16.gmra.mxu0 %v1247
      %v1291 = vpop.f32.mrf.mxu0
      %v1292 = vadd.f32 0.0, %v1291
      %v1293 = vpop.f32.mrf.mxu0
      %v1294 = vpop.f32.mrf.mxu0
      %v1295 = vadd.f32 0.0, %v1294
      %v1296 = vpop.f32.mrf.mxu0
      %1297 = vdwg.mxu0
      %1298 = vrot.lane.b32.xlu0 %v351, 64
      %v1299 = vpop.permute.xlu0 %1298
      %1300 = vrot.lane.b32.xlu0 %v352, 64
      %v1301 = vpop.permute.xlu0 %1300
      %v1305 = vsel %vm868, %v1223, 0
      %v1308 = vsel %vm868, %v1224, 0
      %1310 = vmatprep.subr.bf16.mxu0 0
      %1311 = vmatpush1.bf16.msra.mxu0 0
      %1312 = vmatprep.subr.bf16.mxu0 0
      %1313 = vmatpush1.bf16.msra.mxu0 0
      %1314 = vmatprep.subr.bf16.mxu0 0
      %1315 = vmatpush1.bf16.msra.mxu0 0
      %1316 = vmatprep.subr.bf16.mxu0 0
      %1317 = vmatpush1.bf16.msra.mxu0 0
      %1318 = vmatprep.subr.bf16.mxu0 0
      %1319 = vmatpush1.bf16.msra.mxu0 0
      %1320 = vmatprep.subr.bf16.mxu0 0
      %1321 = vmatpush1.bf16.msra.mxu0 0
      %1322 = vmatprep.subr.bf16.mxu0 0
      %1323 = vmatpush1.bf16.msra.mxu0 %v1301
      %1324 = vmatprep.subr.bf16.mxu0 0
      %1325 = vmatpush1.bf16.msra.mxu0 %v1299
      %1326 = vmatprep.subr.bf16.mxu0 0
      %1327 = vmatpush2.bf16.msra.mxu0 0
      %1328 = vmatprep.subr.bf16.mxu0 0
      %1329 = vmatpush2.bf16.msra.mxu0 0
      %1330 = vmatprep.subr.bf16.mxu0 0
      %1331 = vmatpush2.bf16.msra.mxu0 0
      %1332 = vmatprep.subr.bf16.mxu0 0
      %1333 = vmatpush2.bf16.msra.mxu0 0
      %1334 = vmatprep.subr.bf16.mxu0 0
      %1335 = vmatpush2.bf16.msra.mxu0 0
      %1336 = vmatprep.subr.bf16.mxu0 0
      %1337 = vmatpush2.bf16.msra.mxu0 0
      %1338 = vmatprep.subr.bf16.mxu0 0
      %1339 = vmatpush2.bf16.msra.mxu0 0
      %1340 = vmatprep.subr.bf16.mxu0 0
      %1341 = vmatpush2.bf16.msra.mxu0 0
      %1342 = vmatprep.mubr.bf16.mxu0 0
      %1343 = vmatmul.mubr.bf16.gmra.mxu0 %v1305
      %v1344 = vpop.f32.mrf.mxu0
      %v1345 = vadd.f32 0.0, %v1344
      %v1346 = vpop.f32.mrf.mxu0
      %v1347 = vpop.f32.mrf.mxu0
      %v1348 = vadd.f32 0.0, %v1347
      %v1349 = vpop.f32.mrf.mxu0
      %1350 = vmatprep.mubr.bf16.mxu0 0
      %1351 = vmatmul.mubr.bf16.gmra.mxu0 %v1308
      %v1352 = vpop.f32.mrf.mxu0
      %v1353 = vadd.f32 0.0, %v1352
      %v1354 = vpop.f32.mrf.mxu0
      %v1355 = vpop.f32.mrf.mxu0
      %v1356 = vadd.f32 0.0, %v1355
      %v1357 = vpop.f32.mrf.mxu0
      %1358 = vdwg.mxu0
      %1359 = vrot.lane.b32.xlu0 %v426, 64
      %v1360 = vpop.permute.xlu0 %1359
      %1361 = vrot.lane.b32.xlu0 %v427, 64
      %v1362 = vpop.permute.xlu0 %1361
      %v1366 = vsel %vm868, %v1225, 0
      %v1369 = vsel %vm868, %v1226, 0
      %1371 = vmatprep.subr.bf16.mxu0 0
      %1372 = vmatpush1.bf16.msra.mxu0 0
      %1373 = vmatprep.subr.bf16.mxu0 0
      %1374 = vmatpush1.bf16.msra.mxu0 0
      %1375 = vmatprep.subr.bf16.mxu0 0
      %1376 = vmatpush1.bf16.msra.mxu0 0
      %1377 = vmatprep.subr.bf16.mxu0 0
      %1378 = vmatpush1.bf16.msra.mxu0 0
      %1379 = vmatprep.subr.bf16.mxu0 0
      %1380 = vmatpush1.bf16.msra.mxu0 0
      %1381 = vmatprep.subr.bf16.mxu0 0
      %1382 = vmatpush1.bf16.msra.mxu0 0
      %1383 = vmatprep.subr.bf16.mxu0 0
      %1384 = vmatpush1.bf16.msra.mxu0 %v1362
      %1385 = vmatprep.subr.bf16.mxu0 0
      %1386 = vmatpush1.bf16.msra.mxu0 %v1360
      %1387 = vmatprep.subr.bf16.mxu0 0
      %1388 = vmatpush2.bf16.msra.mxu0 0
      %1389 = vmatprep.subr.bf16.mxu0 0
      %1390 = vmatpush2.bf16.msra.mxu0 0
      %1391 = vmatprep.subr.bf16.mxu0 0
      %1392 = vmatpush2.bf16.msra.mxu0 0
      %1393 = vmatprep.subr.bf16.mxu0 0
      %1394 = vmatpush2.bf16.msra.mxu0 0
      %1395 = vmatprep.subr.bf16.mxu0 0
      %1396 = vmatpush2.bf16.msra.mxu0 0
      %1397 = vmatprep.subr.bf16.mxu0 0
      %1398 = vmatpush2.bf16.msra.mxu0 0
      %1399 = vmatprep.subr.bf16.mxu0 0
      %1400 = vmatpush2.bf16.msra.mxu0 0
      %1401 = vmatprep.subr.bf16.mxu0 0
      %1402 = vmatpush2.bf16.msra.mxu0 0
      %1403 = vmatprep.mubr.bf16.mxu0 0
      %1404 = vmatmul.mubr.bf16.gmra.mxu0 %v1366
      %v1405 = vpop.f32.mrf.mxu0
      %v1406 = vadd.f32 0.0, %v1405
      %v1407 = vpop.f32.mrf.mxu0
      %v1408 = vpop.f32.mrf.mxu0
      %v1409 = vadd.f32 0.0, %v1408
      %v1410 = vpop.f32.mrf.mxu0
      %1411 = vmatprep.mubr.bf16.mxu0 0
      %1412 = vmatmul.mubr.bf16.gmra.mxu0 %v1369
      %v1413 = vpop.f32.mrf.mxu0
      %v1414 = vadd.f32 0.0, %v1413
      %v1415 = vpop.f32.mrf.mxu0
      %v1416 = vpop.f32.mrf.mxu0
      %v1417 = vadd.f32 0.0, %v1416
      %v1418 = vpop.f32.mrf.mxu0
      %1419 = vdwg.mxu0
      %1420 = vrot.lane.b32.xlu0 %v501, 64
      %v1421 = vpop.permute.xlu0 %1420
      %1422 = vrot.lane.b32.xlu0 %v502, 64
      %v1423 = vpop.permute.xlu0 %1422
      %v1427 = vsel %vm868, %v1227, 0
      %v1430 = vsel %vm868, %v1228, 0
      %1432 = vmatprep.subr.bf16.mxu0 0
      %1433 = vmatpush1.bf16.msra.mxu0 0
      %1434 = vmatprep.subr.bf16.mxu0 0
      %1435 = vmatpush1.bf16.msra.mxu0 0
      %1436 = vmatprep.subr.bf16.mxu0 0
      %1437 = vmatpush1.bf16.msra.mxu0 0
      %1438 = vmatprep.subr.bf16.mxu0 0
      %1439 = vmatpush1.bf16.msra.mxu0 0
      %1440 = vmatprep.subr.bf16.mxu0 0
      %1441 = vmatpush1.bf16.msra.mxu0 0
      %1442 = vmatprep.subr.bf16.mxu0 0
      %1443 = vmatpush1.bf16.msra.mxu0 0
      %1444 = vmatprep.subr.bf16.mxu0 0
      %1445 = vmatpush1.bf16.msra.mxu0 %v1423
      %1446 = vmatprep.subr.bf16.mxu0 0
      %1447 = vmatpush1.bf16.msra.mxu0 %v1421
      %1448 = vmatprep.subr.bf16.mxu0 0
      %1449 = vmatpush2.bf16.msra.mxu0 0
      %1450 = vmatprep.subr.bf16.mxu0 0
      %1451 = vmatpush2.bf16.msra.mxu0 0
      %1452 = vmatprep.subr.bf16.mxu0 0
      %1453 = vmatpush2.bf16.msra.mxu0 0
      %1454 = vmatprep.subr.bf16.mxu0 0
      %1455 = vmatpush2.bf16.msra.mxu0 0
      %1456 = vmatprep.subr.bf16.mxu0 0
      %1457 = vmatpush2.bf16.msra.mxu0 0
      %1458 = vmatprep.subr.bf16.mxu0 0
      %1459 = vmatpush2.bf16.msra.mxu0 0
      %1460 = vmatprep.subr.bf16.mxu0 0
      %1461 = vmatpush2.bf16.msra.mxu0 0
      %1462 = vmatprep.subr.bf16.mxu0 0
      %1463 = vmatpush2.bf16.msra.mxu0 0
      %1464 = vmatprep.mubr.bf16.mxu0 0
      %1465 = vmatmul.mubr.bf16.gmra.mxu0 %v1427
      %v1466 = vpop.f32.mrf.mxu0
      %v1467 = vadd.f32 0.0, %v1466
      %v1468 = vpop.f32.mrf.mxu0
      %v1469 = vpop.f32.mrf.mxu0
      %v1470 = vadd.f32 0.0, %v1469
      %v1471 = vpop.f32.mrf.mxu0
      %1472 = vmatprep.mubr.bf16.mxu0 0
      %1473 = vmatmul.mubr.bf16.gmra.mxu0 %v1430
      %v1474 = vpop.f32.mrf.mxu0
      %v1475 = vadd.f32 0.0, %v1474
      %v1476 = vpop.f32.mrf.mxu0
      %v1477 = vpop.f32.mrf.mxu0
      %v1478 = vadd.f32 0.0, %v1477
      %v1479 = vpop.f32.mrf.mxu0
      %1480 = vdwg.mxu0
      %1481 = vrot.lane.b32.xlu0 %v576, 64
      %v1482 = vpop.permute.xlu0 %1481
      %1483 = vrot.lane.b32.xlu0 %v577, 64
      %v1484 = vpop.permute.xlu0 %1483
      %v1488 = vsel %vm868, %v1229, 0
      %v1491 = vsel %vm868, %v1230, 0
      %1493 = vmatprep.subr.bf16.mxu0 0
      %1494 = vmatpush1.bf16.msra.mxu0 0
      %1495 = vmatprep.subr.bf16.mxu0 0
      %1496 = vmatpush1.bf16.msra.mxu0 0
      %1497 = vmatprep.subr.bf16.mxu0 0
      %1498 = vmatpush1.bf16.msra.mxu0 0
      %1499 = vmatprep.subr.bf16.mxu0 0
      %1500 = vmatpush1.bf16.msra.mxu0 0
      %1501 = vmatprep.subr.bf16.mxu0 0
      %1502 = vmatpush1.bf16.msra.mxu0 0
      %1503 = vmatprep.subr.bf16.mxu0 0
      %1504 = vmatpush1.bf16.msra.mxu0 0
      %1505 = vmatprep.subr.bf16.mxu0 0
      %1506 = vmatpush1.bf16.msra.mxu0 %v1484
      %1507 = vmatprep.subr.bf16.mxu0 0
      %1508 = vmatpush1.bf16.msra.mxu0 %v1482
      %1509 = vmatprep.subr.bf16.mxu0 0
      %1510 = vmatpush2.bf16.msra.mxu0 0
      %1511 = vmatprep.subr.bf16.mxu0 0
      %1512 = vmatpush2.bf16.msra.mxu0 0
      %1513 = vmatprep.subr.bf16.mxu0 0
      %1514 = vmatpush2.bf16.msra.mxu0 0
      %1515 = vmatprep.subr.bf16.mxu0 0
      %1516 = vmatpush2.bf16.msra.mxu0 0
      %1517 = vmatprep.subr.bf16.mxu0 0
      %1518 = vmatpush2.bf16.msra.mxu0 0
      %1519 = vmatprep.subr.bf16.mxu0 0
      %1520 = vmatpush2.bf16.msra.mxu0 0
      %1521 = vmatprep.subr.bf16.mxu0 0
      %1522 = vmatpush2.bf16.msra.mxu0 0
      %1523 = vmatprep.subr.bf16.mxu0 0
      %1524 = vmatpush2.bf16.msra.mxu0 0
      %1525 = vmatprep.mubr.bf16.mxu0 0
      %1526 = vmatmul.mubr.bf16.gmra.mxu0 %v1488
      %v1527 = vpop.f32.mrf.mxu0
      %v1528 = vadd.f32 0.0, %v1527
      %v1529 = vpop.f32.mrf.mxu0
      %v1530 = vpop.f32.mrf.mxu0
      %v1531 = vadd.f32 0.0, %v1530
      %v1532 = vpop.f32.mrf.mxu0
      %1533 = vmatprep.mubr.bf16.mxu0 0
      %1534 = vmatmul.mubr.bf16.gmra.mxu0 %v1491
      %v1535 = vpop.f32.mrf.mxu0
      %v1536 = vadd.f32 0.0, %v1535
      %v1537 = vpop.f32.mrf.mxu0
      %v1538 = vpop.f32.mrf.mxu0
      %v1539 = vadd.f32 0.0, %v1538
      %v1540 = vpop.f32.mrf.mxu0
      %1541 = vdwg.mxu0
      %1542 = vrot.lane.b32.xlu0 %v651, 64
      %v1543 = vpop.permute.xlu0 %1542
      %1544 = vrot.lane.b32.xlu0 %v652, 64
      %v1545 = vpop.permute.xlu0 %1544
      %v1549 = vsel %vm868, %v1231, 0
      %v1552 = vsel %vm868, %v1232, 0
      %1554 = vmatprep.subr.bf16.mxu0 0
      %1555 = vmatpush1.bf16.msra.mxu0 0
      %1556 = vmatprep.subr.bf16.mxu0 0
      %1557 = vmatpush1.bf16.msra.mxu0 0
      %1558 = vmatprep.subr.bf16.mxu0 0
      %1559 = vmatpush1.bf16.msra.mxu0 0
      %1560 = vmatprep.subr.bf16.mxu0 0
      %1561 = vmatpush1.bf16.msra.mxu0 0
      %1562 = vmatprep.subr.bf16.mxu0 0
      %1563 = vmatpush1.bf16.msra.mxu0 0
      %1564 = vmatprep.subr.bf16.mxu0 0
      %1565 = vmatpush1.bf16.msra.mxu0 0
      %1566 = vmatprep.subr.bf16.mxu0 0
      %1567 = vmatpush1.bf16.msra.mxu0 %v1545
      %1568 = vmatprep.subr.bf16.mxu0 0
      %1569 = vmatpush1.bf16.msra.mxu0 %v1543
      %1570 = vmatprep.subr.bf16.mxu0 0
      %1571 = vmatpush2.bf16.msra.mxu0 0
      %1572 = vmatprep.subr.bf16.mxu0 0
      %1573 = vmatpush2.bf16.msra.mxu0 0
      %1574 = vmatprep.subr.bf16.mxu0 0
      %1575 = vmatpush2.bf16.msra.mxu0 0
      %1576 = vmatprep.subr.bf16.mxu0 0
      %1577 = vmatpush2.bf16.msra.mxu0 0
      %1578 = vmatprep.subr.bf16.mxu0 0
      %1579 = vmatpush2.bf16.msra.mxu0 0
      %1580 = vmatprep.subr.bf16.mxu0 0
      %1581 = vmatpush2.bf16.msra.mxu0 0
      %1582 = vmatprep.subr.bf16.mxu0 0
      %1583 = vmatpush2.bf16.msra.mxu0 0
      %1584 = vmatprep.subr.bf16.mxu0 0
      %1585 = vmatpush2.bf16.msra.mxu0 0
      %1586 = vmatprep.mubr.bf16.mxu0 0
      %1587 = vmatmul.mubr.bf16.gmra.mxu0 %v1549
      %v1588 = vpop.f32.mrf.mxu0
      %v1589 = vadd.f32 0.0, %v1588
      %v1590 = vpop.f32.mrf.mxu0
      %v1591 = vpop.f32.mrf.mxu0
      %v1592 = vadd.f32 0.0, %v1591
      %v1593 = vpop.f32.mrf.mxu0
      %1594 = vmatprep.mubr.bf16.mxu0 0
      %1595 = vmatmul.mubr.bf16.gmra.mxu0 %v1552
      %v1596 = vpop.f32.mrf.mxu0
      %v1597 = vadd.f32 0.0, %v1596
      %v1598 = vpop.f32.mrf.mxu0
      %v1599 = vpop.f32.mrf.mxu0
      %v1600 = vadd.f32 0.0, %v1599
      %v1601 = vpop.f32.mrf.mxu0
      %1602 = vdwg.mxu0
      %1603 = vrot.lane.b32.xlu0 %v726, 64
      %v1604 = vpop.permute.xlu0 %1603
      %1605 = vrot.lane.b32.xlu0 %v727, 64
      %v1606 = vpop.permute.xlu0 %1605
      %v1610 = vsel %vm868, %v1233, 0
      %v1613 = vsel %vm868, %v1234, 0
      %1615 = vmatprep.subr.bf16.mxu0 0
      %1616 = vmatpush1.bf16.msra.mxu0 0
      %1617 = vmatprep.subr.bf16.mxu0 0
      %1618 = vmatpush1.bf16.msra.mxu0 0
      %1619 = vmatprep.subr.bf16.mxu0 0
      %1620 = vmatpush1.bf16.msra.mxu0 0
      %1621 = vmatprep.subr.bf16.mxu0 0
      %1622 = vmatpush1.bf16.msra.mxu0 0
      %1623 = vmatprep.subr.bf16.mxu0 0
      %1624 = vmatpush1.bf16.msra.mxu0 0
      %1625 = vmatprep.subr.bf16.mxu0 0
      %1626 = vmatpush1.bf16.msra.mxu0 0
      %1627 = vmatprep.subr.bf16.mxu0 0
      %1628 = vmatpush1.bf16.msra.mxu0 %v1606
      %1629 = vmatprep.subr.bf16.mxu0 0
      %1630 = vmatpush1.bf16.msra.mxu0 %v1604
      %1631 = vmatprep.subr.bf16.mxu0 0
      %1632 = vmatpush2.bf16.msra.mxu0 0
      %1633 = vmatprep.subr.bf16.mxu0 0
      %1634 = vmatpush2.bf16.msra.mxu0 0
      %1635 = vmatprep.subr.bf16.mxu0 0
      %1636 = vmatpush2.bf16.msra.mxu0 0
      %1637 = vmatprep.subr.bf16.mxu0 0
      %1638 = vmatpush2.bf16.msra.mxu0 0
      %1639 = vmatprep.subr.bf16.mxu0 0
      %1640 = vmatpush2.bf16.msra.mxu0 0
      %1641 = vmatprep.subr.bf16.mxu0 0
      %1642 = vmatpush2.bf16.msra.mxu0 0
      %1643 = vmatprep.subr.bf16.mxu0 0
      %1644 = vmatpush2.bf16.msra.mxu0 0
      %1645 = vmatprep.subr.bf16.mxu0 0
      %1646 = vmatpush2.bf16.msra.mxu0 0
      %1647 = vmatprep.mubr.bf16.mxu0 0
      %1648 = vmatmul.mubr.bf16.gmra.mxu0 %v1610
      %v1649 = vpop.f32.mrf.mxu0
      %v1650 = vadd.f32 0.0, %v1649
      %v1651 = vpop.f32.mrf.mxu0
      %v1652 = vpop.f32.mrf.mxu0
      %v1653 = vadd.f32 0.0, %v1652
      %v1654 = vpop.f32.mrf.mxu0
      %1655 = vmatprep.mubr.bf16.mxu0 0
      %1656 = vmatmul.mubr.bf16.gmra.mxu0 %v1613
      %v1657 = vpop.f32.mrf.mxu0
      %v1658 = vadd.f32 0.0, %v1657
      %v1659 = vpop.f32.mrf.mxu0
      %v1660 = vpop.f32.mrf.mxu0
      %v1661 = vadd.f32 0.0, %v1660
      %v1662 = vpop.f32.mrf.mxu0
      %1663 = vdwg.mxu0
      %1664 = vrot.lane.b32.xlu0 %v801, 64
      %v1665 = vpop.permute.xlu0 %1664
      %1666 = vrot.lane.b32.xlu0 %v802, 64
      %v1667 = vpop.permute.xlu0 %1666
      %v1671 = vsel %vm868, %v1235, 0
      %v1674 = vsel %vm868, %v1236, 0
      %1676 = vmatprep.subr.bf16.mxu0 0
      %1677 = vmatpush1.bf16.msra.mxu0 0
      %1678 = vmatprep.subr.bf16.mxu0 0
      %1679 = vmatpush1.bf16.msra.mxu0 0
      %1680 = vmatprep.subr.bf16.mxu0 0
      %1681 = vmatpush1.bf16.msra.mxu0 0
      %1682 = vmatprep.subr.bf16.mxu0 0
      %1683 = vmatpush1.bf16.msra.mxu0 0
      %1684 = vmatprep.subr.bf16.mxu0 0
      %1685 = vmatpush1.bf16.msra.mxu0 0
      %1686 = vmatprep.subr.bf16.mxu0 0
      %1687 = vmatpush1.bf16.msra.mxu0 0
      %1688 = vmatprep.subr.bf16.mxu0 0
      %1689 = vmatpush1.bf16.msra.mxu0 %v1667
      %1690 = vmatprep.subr.bf16.mxu0 0
      %1691 = vmatpush1.bf16.msra.mxu0 %v1665
      %1692 = vmatprep.subr.bf16.mxu0 0
      %1693 = vmatpush2.bf16.msra.mxu0 0
      %1694 = vmatprep.subr.bf16.mxu0 0
      %1695 = vmatpush2.bf16.msra.mxu0 0
      %1696 = vmatprep.subr.bf16.mxu0 0
      %1697 = vmatpush2.bf16.msra.mxu0 0
      %1698 = vmatprep.subr.bf16.mxu0 0
      %1699 = vmatpush2.bf16.msra.mxu0 0
      %1700 = vmatprep.subr.bf16.mxu0 0
      %1701 = vmatpush2.bf16.msra.mxu0 0
      %1702 = vmatprep.subr.bf16.mxu0 0
      %1703 = vmatpush2.bf16.msra.mxu0 0
      %1704 = vmatprep.subr.bf16.mxu0 0
      %1705 = vmatpush2.bf16.msra.mxu0 0
      %1706 = vmatprep.subr.bf16.mxu0 0
      %1707 = vmatpush2.bf16.msra.mxu0 0
      %1708 = vmatprep.mubr.bf16.mxu0 0
      %1709 = vmatmul.mubr.bf16.gmra.mxu0 %v1671
      %v1710 = vpop.f32.mrf.mxu0
      %v1711 = vadd.f32 0.0, %v1710
      %v1712 = vpop.f32.mrf.mxu0
      %v1713 = vpop.f32.mrf.mxu0
      %v1714 = vadd.f32 0.0, %v1713
      %v1715 = vpop.f32.mrf.mxu0
      %1716 = vmatprep.mubr.bf16.mxu0 0
      %1717 = vmatmul.mubr.bf16.gmra.mxu0 %v1674
      %v1718 = vpop.f32.mrf.mxu0
      %v1719 = vadd.f32 0.0, %v1718
      %v1720 = vpop.f32.mrf.mxu0
      %v1721 = vpop.f32.mrf.mxu0
      %v1722 = vadd.f32 0.0, %v1721
      %v1723 = vpop.f32.mrf.mxu0
      %1724 = vdwg.mxu0
      %s1725 = scalar_lea.vmem %s1, 32
      %v1726 = vld [vmem:[%s1725] sm:$0xff]
      %v1727 = vld [vmem:[%s1725 + $0x8] sm:$0xff]
      %v1728 = vld [vmem:[%s1725 + $0x10] sm:$0xff]
      %v1729 = vld [vmem:[%s1725 + $0x18] sm:$0xff]
      %1730 = vrot.lane.b32.xlu0 %v275, 120
      %v1731 = vpop.permute.xlu0 %1730
      %1732 = vrot.lane.b32.xlu0 %v276, 120
      %v1733 = vpop.permute.xlu0 %1732
      %1734 = vrot.lane.b32.xlu0 %v275, 88
      %v1735 = vpop.permute.xlu0 %1734
      %1736 = vrot.lane.b32.xlu0 %v276, 88
      %v1737 = vpop.permute.xlu0 %1736
      %v1739 = vsel %vm281, %v1731, 0
      %v1742 = vsel %vm281, %v1733, 0
      %v1745 = vsel %vm281, %v1735, 0
      %v1748 = vsel %vm281, %v1737, 0
      %1750 = vmatprep.subr.bf16.mxu0 0
      %1751 = vmatpush1.bf16.xpose.msra.mxu0 0
      %1752 = vmatprep.subr.bf16.mxu0 0
      %1753 = vmatpush1.bf16.xpose.msra.mxu0 0
      %1754 = vmatprep.subr.bf16.mxu0 0
      %1755 = vmatpush1.bf16.xpose.msra.mxu0 0
      %1756 = vmatprep.subr.bf16.mxu0 0
      %1757 = vmatpush1.bf16.xpose.msra.mxu0 0
      %1758 = vmatprep.subr.bf16.mxu0 0
      %1759 = vmatpush1.bf16.xpose.msra.mxu0 0
      %1760 = vmatprep.subr.bf16.mxu0 0
      %1761 = vmatpush1.bf16.xpose.msra.mxu0 0
      %1762 = vmatprep.subr.bf16.mxu0 0
      %1763 = vmatpush1.bf16.xpose.msra.mxu0 %v1748
      %1764 = vmatprep.subr.bf16.mxu0 0
      %1765 = vmatpush1.bf16.xpose.msra.mxu0 %v1745
      %1766 = vmatprep.subr.bf16.mxu0 0
      %1767 = vmatpush2.bf16.xpose.msra.mxu0 0
      %1768 = vmatprep.subr.bf16.mxu0 0
      %1769 = vmatpush2.bf16.xpose.msra.mxu0 0
      %1770 = vmatprep.subr.bf16.mxu0 0
      %1771 = vmatpush2.bf16.xpose.msra.mxu0 0
      %1772 = vmatprep.subr.bf16.mxu0 0
      %1773 = vmatpush2.bf16.xpose.msra.mxu0 0
      %1774 = vmatprep.subr.bf16.mxu0 0
      %1775 = vmatpush2.bf16.xpose.msra.mxu0 0
      %1776 = vmatprep.subr.bf16.mxu0 0
      %1777 = vmatpush2.bf16.xpose.msra.mxu0 0
      %1778 = vmatprep.subr.bf16.mxu0 0
      %1779 = vmatpush2.bf16.xpose.msra.mxu0 0
      %1780 = vmatprep.subr.bf16.mxu0 0
      %1781 = vmatpush2.bf16.xpose.msra.mxu0 0
      %1782 = vmatprep.mubr.bf16.mxu0 0
      %1783 = vmatmul.mubr.bf16.gmra.mxu0 %v1739
      %v1784 = vpop.f32.mrf.mxu0
      %v1785 = vadd.f32 %v1726, %v1784
      %v1786 = vpop.f32.mrf.mxu0
      %v1787 = vpop.f32.mrf.mxu0
      %v1788 = vadd.f32 %v1727, %v1787
      %v1789 = vpop.f32.mrf.mxu0
      %1790 = vmatprep.mubr.bf16.mxu0 0
      %1791 = vmatmul.mubr.bf16.gmra.mxu0 %v1742
      %v1792 = vpop.f32.mrf.mxu0
      %v1793 = vadd.f32 %v1728, %v1792
      %v1794 = vpop.f32.mrf.mxu0
      %v1795 = vpop.f32.mrf.mxu0
      %v1796 = vadd.f32 %v1729, %v1795
      %v1797 = vpop.f32.mrf.mxu0
      %1798 = vdwg.mxu0
      %1799 = vrot.lane.b32.xlu0 %v351, 120
      %v1800 = vpop.permute.xlu0 %1799
      %1801 = vrot.lane.b32.xlu0 %v352, 120
      %v1802 = vpop.permute.xlu0 %1801
      %1803 = vrot.lane.b32.xlu0 %v351, 88
      %v1804 = vpop.permute.xlu0 %1803
      %1805 = vrot.lane.b32.xlu0 %v352, 88
      %v1806 = vpop.permute.xlu0 %1805
      %v1808 = vsel %vm281, %v1800, 0
      %v1811 = vsel %vm281, %v1802, 0
      %v1814 = vsel %vm281, %v1804, 0
      %v1817 = vsel %vm281, %v1806, 0
      %1819 = vmatprep.subr.bf16.mxu0 0
      %1820 = vmatpush1.bf16.xpose.msra.mxu0 0
      %1821 = vmatprep.subr.bf16.mxu0 0
      %1822 = vmatpush1.bf16.xpose.msra.mxu0 0
      %1823 = vmatprep.subr.bf16.mxu0 0
      %1824 = vmatpush1.bf16.xpose.msra.mxu0 0
      %1825 = vmatprep.subr.bf16.mxu0 0
      %1826 = vmatpush1.bf16.xpose.msra.mxu0 0
      %1827 = vmatprep.subr.bf16.mxu0 0
      %1828 = vmatpush1.bf16.xpose.msra.mxu0 0
      %1829 = vmatprep.subr.bf16.mxu0 0
      %1830 = vmatpush1.bf16.xpose.msra.mxu0 0
      %1831 = vmatprep.subr.bf16.mxu0 0
      %1832 = vmatpush1.bf16.xpose.msra.mxu0 %v1817
      %1833 = vmatprep.subr.bf16.mxu0 0
      %1834 = vmatpush1.bf16.xpose.msra.mxu0 %v1814
      %1835 = vmatprep.subr.bf16.mxu0 0
      %1836 = vmatpush2.bf16.xpose.msra.mxu0 0
      %1837 = vmatprep.subr.bf16.mxu0 0
      %1838 = vmatpush2.bf16.xpose.msra.mxu0 0
      %1839 = vmatprep.subr.bf16.mxu0 0
      %1840 = vmatpush2.bf16.xpose.msra.mxu0 0
      %1841 = vmatprep.subr.bf16.mxu0 0
      %1842 = vmatpush2.bf16.xpose.msra.mxu0 0
      %1843 = vmatprep.subr.bf16.mxu0 0
      %1844 = vmatpush2.bf16.xpose.msra.mxu0 0
      %1845 = vmatprep.subr.bf16.mxu0 0
      %1846 = vmatpush2.bf16.xpose.msra.mxu0 0
      %1847 = vmatprep.subr.bf16.mxu0 0
      %1848 = vmatpush2.bf16.xpose.msra.mxu0 0
      %1849 = vmatprep.subr.bf16.mxu0 0
      %1850 = vmatpush2.bf16.xpose.msra.mxu0 0
      %1851 = vmatprep.mubr.bf16.mxu0 0
      %1852 = vmatmul.mubr.bf16.gmra.mxu0 %v1808
      %v1853 = vpop.f32.mrf.mxu0
      %v1854 = vadd.f32 %v1726, %v1853
      %v1855 = vpop.f32.mrf.mxu0
      %v1856 = vpop.f32.mrf.mxu0
      %v1857 = vadd.f32 %v1727, %v1856
      %v1858 = vpop.f32.mrf.mxu0
      %1859 = vmatprep.mubr.bf16.mxu0 0
      %1860 = vmatmul.mubr.bf16.gmra.mxu0 %v1811
      %v1861 = vpop.f32.mrf.mxu0
      %v1862 = vadd.f32 %v1728, %v1861
      %v1863 = vpop.f32.mrf.mxu0
      %v1864 = vpop.f32.mrf.mxu0
      %v1865 = vadd.f32 %v1729, %v1864
      %v1866 = vpop.f32.mrf.mxu0
      %1867 = vdwg.mxu0
      %1868 = vrot.lane.b32.xlu0 %v426, 120
      %v1869 = vpop.permute.xlu0 %1868
      %1870 = vrot.lane.b32.xlu0 %v427, 120
      %v1871 = vpop.permute.xlu0 %1870
      %1872 = vrot.lane.b32.xlu0 %v426, 88
      %v1873 = vpop.permute.xlu0 %1872
      %1874 = vrot.lane.b32.xlu0 %v427, 88
      %v1875 = vpop.permute.xlu0 %1874
      %v1877 = vsel %vm281, %v1869, 0
      %v1880 = vsel %vm281, %v1871, 0
      %v1883 = vsel %vm281, %v1873, 0
      %v1886 = vsel %vm281, %v1875, 0
      %1888 = vmatprep.subr.bf16.mxu0 0
      %1889 = vmatpush1.bf16.xpose.msra.mxu0 0
      %1890 = vmatprep.subr.bf16.mxu0 0
      %1891 = vmatpush1.bf16.xpose.msra.mxu0 0
      %1892 = vmatprep.subr.bf16.mxu0 0
      %1893 = vmatpush1.bf16.xpose.msra.mxu0 0
      %1894 = vmatprep.subr.bf16.mxu0 0
      %1895 = vmatpush1.bf16.xpose.msra.mxu0 0
      %1896 = vmatprep.subr.bf16.mxu0 0
      %1897 = vmatpush1.bf16.xpose.msra.mxu0 0
      %1898 = vmatprep.subr.bf16.mxu0 0
      %1899 = vmatpush1.bf16.xpose.msra.mxu0 0
      %1900 = vmatprep.subr.bf16.mxu0 0
      %1901 = vmatpush1.bf16.xpose.msra.mxu0 %v1886
      %1902 = vmatprep.subr.bf16.mxu0 0
      %1903 = vmatpush1.bf16.xpose.msra.mxu0 %v1883
      %1904 = vmatprep.subr.bf16.mxu0 0
      %1905 = vmatpush2.bf16.xpose.msra.mxu0 0
      %1906 = vmatprep.subr.bf16.mxu0 0
      %1907 = vmatpush2.bf16.xpose.msra.mxu0 0
      %1908 = vmatprep.subr.bf16.mxu0 0
      %1909 = vmatpush2.bf16.xpose.msra.mxu0 0
      %1910 = vmatprep.subr.bf16.mxu0 0
      %1911 = vmatpush2.bf16.xpose.msra.mxu0 0
      %1912 = vmatprep.subr.bf16.mxu0 0
      %1913 = vmatpush2.bf16.xpose.msra.mxu0 0
      %1914 = vmatprep.subr.bf16.mxu0 0
      %1915 = vmatpush2.bf16.xpose.msra.mxu0 0
      %1916 = vmatprep.subr.bf16.mxu0 0
      %1917 = vmatpush2.bf16.xpose.msra.mxu0 0
      %1918 = vmatprep.subr.bf16.mxu0 0
      %1919 = vmatpush2.bf16.xpose.msra.mxu0 0
      %1920 = vmatprep.mubr.bf16.mxu0 0
      %1921 = vmatmul.mubr.bf16.gmra.mxu0 %v1877
      %v1922 = vpop.f32.mrf.mxu0
      %v1923 = vadd.f32 %v1726, %v1922
      %v1924 = vpop.f32.mrf.mxu0
      %v1925 = vpop.f32.mrf.mxu0
      %v1926 = vadd.f32 %v1727, %v1925
      %v1927 = vpop.f32.mrf.mxu0
      %1928 = vmatprep.mubr.bf16.mxu0 0
      %1929 = vmatmul.mubr.bf16.gmra.mxu0 %v1880
      %v1930 = vpop.f32.mrf.mxu0
      %v1931 = vadd.f32 %v1728, %v1930
      %v1932 = vpop.f32.mrf.mxu0
      %v1933 = vpop.f32.mrf.mxu0
      %v1934 = vadd.f32 %v1729, %v1933
      %v1935 = vpop.f32.mrf.mxu0
      %1936 = vdwg.mxu0
      %1937 = vrot.lane.b32.xlu0 %v501, 120
      %v1938 = vpop.permute.xlu0 %1937
      %1939 = vrot.lane.b32.xlu0 %v502, 120
      %v1940 = vpop.permute.xlu0 %1939
      %1941 = vrot.lane.b32.xlu0 %v501, 88
      %v1942 = vpop.permute.xlu0 %1941
      %1943 = vrot.lane.b32.xlu0 %v502, 88
      %v1944 = vpop.permute.xlu0 %1943
      %v1946 = vsel %vm281, %v1938, 0
      %v1949 = vsel %vm281, %v1940, 0
      %v1952 = vsel %vm281, %v1942, 0
      %v1955 = vsel %vm281, %v1944, 0
      %1957 = vmatprep.subr.bf16.mxu0 0
      %1958 = vmatpush1.bf16.xpose.msra.mxu0 0
      %1959 = vmatprep.subr.bf16.mxu0 0
      %1960 = vmatpush1.bf16.xpose.msra.mxu0 0
      %1961 = vmatprep.subr.bf16.mxu0 0
      %1962 = vmatpush1.bf16.xpose.msra.mxu0 0
      %1963 = vmatprep.subr.bf16.mxu0 0
      %1964 = vmatpush1.bf16.xpose.msra.mxu0 0
      %1965 = vmatprep.subr.bf16.mxu0 0
      %1966 = vmatpush1.bf16.xpose.msra.mxu0 0
      %1967 = vmatprep.subr.bf16.mxu0 0
      %1968 = vmatpush1.bf16.xpose.msra.mxu0 0
      %1969 = vmatprep.subr.bf16.mxu0 0
      %1970 = vmatpush1.bf16.xpose.msra.mxu0 %v1955
      %1971 = vmatprep.subr.bf16.mxu0 0
      %1972 = vmatpush1.bf16.xpose.msra.mxu0 %v1952
      %1973 = vmatprep.subr.bf16.mxu0 0
      %1974 = vmatpush2.bf16.xpose.msra.mxu0 0
      %1975 = vmatprep.subr.bf16.mxu0 0
      %1976 = vmatpush2.bf16.xpose.msra.mxu0 0
      %1977 = vmatprep.subr.bf16.mxu0 0
      %1978 = vmatpush2.bf16.xpose.msra.mxu0 0
      %1979 = vmatprep.subr.bf16.mxu0 0
      %1980 = vmatpush2.bf16.xpose.msra.mxu0 0
      %1981 = vmatprep.subr.bf16.mxu0 0
      %1982 = vmatpush2.bf16.xpose.msra.mxu0 0
      %1983 = vmatprep.subr.bf16.mxu0 0
      %1984 = vmatpush2.bf16.xpose.msra.mxu0 0
      %1985 = vmatprep.subr.bf16.mxu0 0
      %1986 = vmatpush2.bf16.xpose.msra.mxu0 0
      %1987 = vmatprep.subr.bf16.mxu0 0
      %1988 = vmatpush2.bf16.xpose.msra.mxu0 0
      %1989 = vmatprep.mubr.bf16.mxu0 0
      %1990 = vmatmul.mubr.bf16.gmra.mxu0 %v1946
      %v1991 = vpop.f32.mrf.mxu0
      %v1992 = vadd.f32 %v1726, %v1991
      %v1993 = vpop.f32.mrf.mxu0
      %v1994 = vpop.f32.mrf.mxu0
      %v1995 = vadd.f32 %v1727, %v1994
      %v1996 = vpop.f32.mrf.mxu0
      %1997 = vmatprep.mubr.bf16.mxu0 0
      %1998 = vmatmul.mubr.bf16.gmra.mxu0 %v1949
      %v1999 = vpop.f32.mrf.mxu0
      %v2000 = vadd.f32 %v1728, %v1999
      %v2001 = vpop.f32.mrf.mxu0
      %v2002 = vpop.f32.mrf.mxu0
      %v2003 = vadd.f32 %v1729, %v2002
      %v2004 = vpop.f32.mrf.mxu0
      %2005 = vdwg.mxu0
      %2006 = vrot.lane.b32.xlu0 %v576, 120
      %v2007 = vpop.permute.xlu0 %2006
      %2008 = vrot.lane.b32.xlu0 %v577, 120
      %v2009 = vpop.permute.xlu0 %2008
      %2010 = vrot.lane.b32.xlu0 %v576, 88
      %v2011 = vpop.permute.xlu0 %2010
      %2012 = vrot.lane.b32.xlu0 %v577, 88
      %v2013 = vpop.permute.xlu0 %2012
      %v2015 = vsel %vm281, %v2007, 0
      %v2018 = vsel %vm281, %v2009, 0
      %v2021 = vsel %vm281, %v2011, 0
      %v2024 = vsel %vm281, %v2013, 0
      %2026 = vmatprep.subr.bf16.mxu0 0
      %2027 = vmatpush1.bf16.xpose.msra.mxu0 0
      %2028 = vmatprep.subr.bf16.mxu0 0
      %2029 = vmatpush1.bf16.xpose.msra.mxu0 0
      %2030 = vmatprep.subr.bf16.mxu0 0
      %2031 = vmatpush1.bf16.xpose.msra.mxu0 0
      %2032 = vmatprep.subr.bf16.mxu0 0
      %2033 = vmatpush1.bf16.xpose.msra.mxu0 0
      %2034 = vmatprep.subr.bf16.mxu0 0
      %2035 = vmatpush1.bf16.xpose.msra.mxu0 0
      %2036 = vmatprep.subr.bf16.mxu0 0
      %2037 = vmatpush1.bf16.xpose.msra.mxu0 0
      %2038 = vmatprep.subr.bf16.mxu0 0
      %2039 = vmatpush1.bf16.xpose.msra.mxu0 %v2024
      %2040 = vmatprep.subr.bf16.mxu0 0
      %2041 = vmatpush1.bf16.xpose.msra.mxu0 %v2021
      %2042 = vmatprep.subr.bf16.mxu0 0
      %2043 = vmatpush2.bf16.xpose.msra.mxu0 0
      %2044 = vmatprep.subr.bf16.mxu0 0
      %2045 = vmatpush2.bf16.xpose.msra.mxu0 0
      %2046 = vmatprep.subr.bf16.mxu0 0
      %2047 = vmatpush2.bf16.xpose.msra.mxu0 0
      %2048 = vmatprep.subr.bf16.mxu0 0
      %2049 = vmatpush2.bf16.xpose.msra.mxu0 0
      %2050 = vmatprep.subr.bf16.mxu0 0
      %2051 = vmatpush2.bf16.xpose.msra.mxu0 0
      %2052 = vmatprep.subr.bf16.mxu0 0
      %2053 = vmatpush2.bf16.xpose.msra.mxu0 0
      %2054 = vmatprep.subr.bf16.mxu0 0
      %2055 = vmatpush2.bf16.xpose.msra.mxu0 0
      %2056 = vmatprep.subr.bf16.mxu0 0
      %2057 = vmatpush2.bf16.xpose.msra.mxu0 0
      %2058 = vmatprep.mubr.bf16.mxu0 0
      %2059 = vmatmul.mubr.bf16.gmra.mxu0 %v2015
      %v2060 = vpop.f32.mrf.mxu0
      %v2061 = vadd.f32 %v1726, %v2060
      %v2062 = vpop.f32.mrf.mxu0
      %v2063 = vpop.f32.mrf.mxu0
      %v2064 = vadd.f32 %v1727, %v2063
      %v2065 = vpop.f32.mrf.mxu0
      %2066 = vmatprep.mubr.bf16.mxu0 0
      %2067 = vmatmul.mubr.bf16.gmra.mxu0 %v2018
      %v2068 = vpop.f32.mrf.mxu0
      %v2069 = vadd.f32 %v1728, %v2068
      %v2070 = vpop.f32.mrf.mxu0
      %v2071 = vpop.f32.mrf.mxu0
      %v2072 = vadd.f32 %v1729, %v2071
      %v2073 = vpop.f32.mrf.mxu0
      %2074 = vdwg.mxu0
      %2075 = vrot.lane.b32.xlu0 %v651, 120
      %v2076 = vpop.permute.xlu0 %2075
      %2077 = vrot.lane.b32.xlu0 %v652, 120
      %v2078 = vpop.permute.xlu0 %2077
      %2079 = vrot.lane.b32.xlu0 %v651, 88
      %v2080 = vpop.permute.xlu0 %2079
      %2081 = vrot.lane.b32.xlu0 %v652, 88
      %v2082 = vpop.permute.xlu0 %2081
      %v2084 = vsel %vm281, %v2076, 0
      %v2087 = vsel %vm281, %v2078, 0
      %v2090 = vsel %vm281, %v2080, 0
      %v2093 = vsel %vm281, %v2082, 0
      %2095 = vmatprep.subr.bf16.mxu0 0
      %2096 = vmatpush1.bf16.xpose.msra.mxu0 0
      %2097 = vmatprep.subr.bf16.mxu0 0
      %2098 = vmatpush1.bf16.xpose.msra.mxu0 0
      %2099 = vmatprep.subr.bf16.mxu0 0
      %2100 = vmatpush1.bf16.xpose.msra.mxu0 0
      %2101 = vmatprep.subr.bf16.mxu0 0
      %2102 = vmatpush1.bf16.xpose.msra.mxu0 0
      %2103 = vmatprep.subr.bf16.mxu0 0
      %2104 = vmatpush1.bf16.xpose.msra.mxu0 0
      %2105 = vmatprep.subr.bf16.mxu0 0
      %2106 = vmatpush1.bf16.xpose.msra.mxu0 0
      %2107 = vmatprep.subr.bf16.mxu0 0
      %2108 = vmatpush1.bf16.xpose.msra.mxu0 %v2093
      %2109 = vmatprep.subr.bf16.mxu0 0
      %2110 = vmatpush1.bf16.xpose.msra.mxu0 %v2090
      %2111 = vmatprep.subr.bf16.mxu0 0
      %2112 = vmatpush2.bf16.xpose.msra.mxu0 0
      %2113 = vmatprep.subr.bf16.mxu0 0
      %2114 = vmatpush2.bf16.xpose.msra.mxu0 0
      %2115 = vmatprep.subr.bf16.mxu0 0
      %2116 = vmatpush2.bf16.xpose.msra.mxu0 0
      %2117 = vmatprep.subr.bf16.mxu0 0
      %2118 = vmatpush2.bf16.xpose.msra.mxu0 0
      %2119 = vmatprep.subr.bf16.mxu0 0
      %2120 = vmatpush2.bf16.xpose.msra.mxu0 0
      %2121 = vmatprep.subr.bf16.mxu0 0
      %2122 = vmatpush2.bf16.xpose.msra.mxu0 0
      %2123 = vmatprep.subr.bf16.mxu0 0
      %2124 = vmatpush2.bf16.xpose.msra.mxu0 0
      %2125 = vmatprep.subr.bf16.mxu0 0
      %2126 = vmatpush2.bf16.xpose.msra.mxu0 0
      %2127 = vmatprep.mubr.bf16.mxu0 0
      %2128 = vmatmul.mubr.bf16.gmra.mxu0 %v2084
      %v2129 = vpop.f32.mrf.mxu0
      %v2130 = vadd.f32 %v1726, %v2129
      %v2131 = vpop.f32.mrf.mxu0
      %v2132 = vpop.f32.mrf.mxu0
      %v2133 = vadd.f32 %v1727, %v2132
      %v2134 = vpop.f32.mrf.mxu0
      %2135 = vmatprep.mubr.bf16.mxu0 0
      %2136 = vmatmul.mubr.bf16.gmra.mxu0 %v2087
      %v2137 = vpop.f32.mrf.mxu0
      %v2138 = vadd.f32 %v1728, %v2137
      %v2139 = vpop.f32.mrf.mxu0
      %v2140 = vpop.f32.mrf.mxu0
      %v2141 = vadd.f32 %v1729, %v2140
      %v2142 = vpop.f32.mrf.mxu0
      %2143 = vdwg.mxu0
      %2144 = vrot.lane.b32.xlu0 %v726, 120
      %v2145 = vpop.permute.xlu0 %2144
      %2146 = vrot.lane.b32.xlu0 %v727, 120
      %v2147 = vpop.permute.xlu0 %2146
      %2148 = vrot.lane.b32.xlu0 %v726, 88
      %v2149 = vpop.permute.xlu0 %2148
      %2150 = vrot.lane.b32.xlu0 %v727, 88
      %v2151 = vpop.permute.xlu0 %2150
      %v2153 = vsel %vm281, %v2145, 0
      %v2156 = vsel %vm281, %v2147, 0
      %v2159 = vsel %vm281, %v2149, 0
      %v2162 = vsel %vm281, %v2151, 0
      %2164 = vmatprep.subr.bf16.mxu0 0
      %2165 = vmatpush1.bf16.xpose.msra.mxu0 0
      %2166 = vmatprep.subr.bf16.mxu0 0
      %2167 = vmatpush1.bf16.xpose.msra.mxu0 0
      %2168 = vmatprep.subr.bf16.mxu0 0
      %2169 = vmatpush1.bf16.xpose.msra.mxu0 0
      %2170 = vmatprep.subr.bf16.mxu0 0
      %2171 = vmatpush1.bf16.xpose.msra.mxu0 0
      %2172 = vmatprep.subr.bf16.mxu0 0
      %2173 = vmatpush1.bf16.xpose.msra.mxu0 0
      %2174 = vmatprep.subr.bf16.mxu0 0
      %2175 = vmatpush1.bf16.xpose.msra.mxu0 0
      %2176 = vmatprep.subr.bf16.mxu0 0
      %2177 = vmatpush1.bf16.xpose.msra.mxu0 %v2162
      %2178 = vmatprep.subr.bf16.mxu0 0
      %2179 = vmatpush1.bf16.xpose.msra.mxu0 %v2159
      %2180 = vmatprep.subr.bf16.mxu0 0
      %2181 = vmatpush2.bf16.xpose.msra.mxu0 0
      %2182 = vmatprep.subr.bf16.mxu0 0
      %2183 = vmatpush2.bf16.xpose.msra.mxu0 0
      %2184 = vmatprep.subr.bf16.mxu0 0
      %2185 = vmatpush2.bf16.xpose.msra.mxu0 0
      %2186 = vmatprep.subr.bf16.mxu0 0
      %2187 = vmatpush2.bf16.xpose.msra.mxu0 0
      %2188 = vmatprep.subr.bf16.mxu0 0
      %2189 = vmatpush2.bf16.xpose.msra.mxu0 0
      %2190 = vmatprep.subr.bf16.mxu0 0
      %2191 = vmatpush2.bf16.xpose.msra.mxu0 0
      %2192 = vmatprep.subr.bf16.mxu0 0
      %2193 = vmatpush2.bf16.xpose.msra.mxu0 0
      %2194 = vmatprep.subr.bf16.mxu0 0
      %2195 = vmatpush2.bf16.xpose.msra.mxu0 0
      %2196 = vmatprep.mubr.bf16.mxu0 0
      %2197 = vmatmul.mubr.bf16.gmra.mxu0 %v2153
      %v2198 = vpop.f32.mrf.mxu0
      %v2199 = vadd.f32 %v1726, %v2198
      %v2200 = vpop.f32.mrf.mxu0
      %v2201 = vpop.f32.mrf.mxu0
      %v2202 = vadd.f32 %v1727, %v2201
      %v2203 = vpop.f32.mrf.mxu0
      %2204 = vmatprep.mubr.bf16.mxu0 0
      %2205 = vmatmul.mubr.bf16.gmra.mxu0 %v2156
      %v2206 = vpop.f32.mrf.mxu0
      %v2207 = vadd.f32 %v1728, %v2206
      %v2208 = vpop.f32.mrf.mxu0
      %v2209 = vpop.f32.mrf.mxu0
      %v2210 = vadd.f32 %v1729, %v2209
      %v2211 = vpop.f32.mrf.mxu0
      %2212 = vdwg.mxu0
      %2213 = vrot.lane.b32.xlu0 %v801, 120
      %v2214 = vpop.permute.xlu0 %2213
      %2215 = vrot.lane.b32.xlu0 %v802, 120
      %v2216 = vpop.permute.xlu0 %2215
      %2217 = vrot.lane.b32.xlu0 %v801, 88
      %v2218 = vpop.permute.xlu0 %2217
      %2219 = vrot.lane.b32.xlu0 %v802, 88
      %v2220 = vpop.permute.xlu0 %2219
      %v2222 = vsel %vm281, %v2214, 0
      %v2225 = vsel %vm281, %v2216, 0
      %v2228 = vsel %vm281, %v2218, 0
      %v2231 = vsel %vm281, %v2220, 0
      %2233 = vmatprep.subr.bf16.mxu0 0
      %2234 = vmatpush1.bf16.xpose.msra.mxu0 0
      %2235 = vmatprep.subr.bf16.mxu0 0
      %2236 = vmatpush1.bf16.xpose.msra.mxu0 0
      %2237 = vmatprep.subr.bf16.mxu0 0
      %2238 = vmatpush1.bf16.xpose.msra.mxu0 0
      %2239 = vmatprep.subr.bf16.mxu0 0
      %2240 = vmatpush1.bf16.xpose.msra.mxu0 0
      %2241 = vmatprep.subr.bf16.mxu0 0
      %2242 = vmatpush1.bf16.xpose.msra.mxu0 0
      %2243 = vmatprep.subr.bf16.mxu0 0
      %2244 = vmatpush1.bf16.xpose.msra.mxu0 0
      %2245 = vmatprep.subr.bf16.mxu0 0
      %2246 = vmatpush1.bf16.xpose.msra.mxu0 %v2231
      %2247 = vmatprep.subr.bf16.mxu0 0
      %2248 = vmatpush1.bf16.xpose.msra.mxu0 %v2228
      %2249 = vmatprep.subr.bf16.mxu0 0
      %2250 = vmatpush2.bf16.xpose.msra.mxu0 0
      %2251 = vmatprep.subr.bf16.mxu0 0
      %2252 = vmatpush2.bf16.xpose.msra.mxu0 0
      %2253 = vmatprep.subr.bf16.mxu0 0
      %2254 = vmatpush2.bf16.xpose.msra.mxu0 0
      %2255 = vmatprep.subr.bf16.mxu0 0
      %2256 = vmatpush2.bf16.xpose.msra.mxu0 0
      %2257 = vmatprep.subr.bf16.mxu0 0
      %2258 = vmatpush2.bf16.xpose.msra.mxu0 0
      %2259 = vmatprep.subr.bf16.mxu0 0
      %2260 = vmatpush2.bf16.xpose.msra.mxu0 0
      %2261 = vmatprep.subr.bf16.mxu0 0
      %2262 = vmatpush2.bf16.xpose.msra.mxu0 0
      %2263 = vmatprep.subr.bf16.mxu0 0
      %2264 = vmatpush2.bf16.xpose.msra.mxu0 0
      %2265 = vmatprep.mubr.bf16.mxu0 0
      %2266 = vmatmul.mubr.bf16.gmra.mxu0 %v2222
      %v2267 = vpop.f32.mrf.mxu0
      %v2268 = vadd.f32 %v1726, %v2267
      %v2269 = vpop.f32.mrf.mxu0
      %v2270 = vpop.f32.mrf.mxu0
      %v2271 = vadd.f32 %v1727, %v2270
      %v2272 = vpop.f32.mrf.mxu0
      %2273 = vmatprep.mubr.bf16.mxu0 0
      %2274 = vmatmul.mubr.bf16.gmra.mxu0 %v2225
      %v2275 = vpop.f32.mrf.mxu0
      %v2276 = vadd.f32 %v1728, %v2275
      %v2277 = vpop.f32.mrf.mxu0
      %v2278 = vpop.f32.mrf.mxu0
      %v2279 = vadd.f32 %v1729, %v2278
      %v2280 = vpop.f32.mrf.mxu0
      %2281 = vdwg.mxu0
      %v2282 = vsel %vm868, %v1785, -inf
      %2283 = vmax.xlane.f32.xlu0 %v2282
      %v2284 = vpop.xlane.xlu0 %2283
      %v2285 = vsel %vm868, %v1788, -inf
      %2286 = vmax.xlane.f32.xlu0 %v2285
      %v2287 = vpop.xlane.xlu0 %2286
      %v2288 = vsel %vm868, %v1793, -inf
      %2289 = vmax.xlane.f32.xlu0 %v2288
      %v2290 = vpop.xlane.xlu0 %2289
      %v2291 = vsel %vm868, %v1796, -inf
      %2292 = vmax.xlane.f32.xlu0 %v2291
      %v2293 = vpop.xlane.xlu0 %2292
      %v2294 = vsel %vm868, %v1854, -inf
      %2295 = vmax.xlane.f32.xlu0 %v2294
      %v2296 = vpop.xlane.xlu0 %2295
      %v2297 = vsel %vm868, %v1857, -inf
      %2298 = vmax.xlane.f32.xlu0 %v2297
      %v2299 = vpop.xlane.xlu0 %2298
      %v2300 = vsel %vm868, %v1862, -inf
      %2301 = vmax.xlane.f32.xlu0 %v2300
      %v2302 = vpop.xlane.xlu0 %2301
      %v2303 = vsel %vm868, %v1865, -inf
      %2304 = vmax.xlane.f32.xlu0 %v2303
      %v2305 = vpop.xlane.xlu0 %2304
      %v2306 = vsel %vm868, %v1923, -inf
      %2307 = vmax.xlane.f32.xlu0 %v2306
      %v2308 = vpop.xlane.xlu0 %2307
      %v2309 = vsel %vm868, %v1926, -inf
      %2310 = vmax.xlane.f32.xlu0 %v2309
      %v2311 = vpop.xlane.xlu0 %2310
      %v2312 = vsel %vm868, %v1931, -inf
      %2313 = vmax.xlane.f32.xlu0 %v2312
      %v2314 = vpop.xlane.xlu0 %2313
      %v2315 = vsel %vm868, %v1934, -inf
      %2316 = vmax.xlane.f32.xlu0 %v2315
      %v2317 = vpop.xlane.xlu0 %2316
      %v2318 = vsel %vm868, %v1992, -inf
      %2319 = vmax.xlane.f32.xlu0 %v2318
      %v2320 = vpop.xlane.xlu0 %2319
      %v2321 = vsel %vm868, %v1995, -inf
      %2322 = vmax.xlane.f32.xlu0 %v2321
      %v2323 = vpop.xlane.xlu0 %2322
      %v2324 = vsel %vm868, %v2000, -inf
      %2325 = vmax.xlane.f32.xlu0 %v2324
      %v2326 = vpop.xlane.xlu0 %2325
      %v2327 = vsel %vm868, %v2003, -inf
      %2328 = vmax.xlane.f32.xlu0 %v2327
      %v2329 = vpop.xlane.xlu0 %2328
      %v2330 = vsel %vm868, %v2061, -inf
      %2331 = vmax.xlane.f32.xlu0 %v2330
      %v2332 = vpop.xlane.xlu0 %2331
      %v2333 = vsel %vm868, %v2064, -inf
      %2334 = vmax.xlane.f32.xlu0 %v2333
      %v2335 = vpop.xlane.xlu0 %2334
      %v2336 = vsel %vm868, %v2069, -inf
      %2337 = vmax.xlane.f32.xlu0 %v2336
      %v2338 = vpop.xlane.xlu0 %2337
      %v2339 = vsel %vm868, %v2072, -inf
      %2340 = vmax.xlane.f32.xlu0 %v2339
      %v2341 = vpop.xlane.xlu0 %2340
      %v2342 = vsel %vm868, %v2130, -inf
      %2343 = vmax.xlane.f32.xlu0 %v2342
      %v2344 = vpop.xlane.xlu0 %2343
      %v2345 = vsel %vm868, %v2133, -inf
      %2346 = vmax.xlane.f32.xlu0 %v2345
      %v2347 = vpop.xlane.xlu0 %2346
      %v2348 = vsel %vm868, %v2138, -inf
      %2349 = vmax.xlane.f32.xlu0 %v2348
      %v2350 = vpop.xlane.xlu0 %2349
      %v2351 = vsel %vm868, %v2141, -inf
      %2352 = vmax.xlane.f32.xlu0 %v2351
      %v2353 = vpop.xlane.xlu0 %2352
      %v2354 = vsel %vm868, %v2199, -inf
      %2355 = vmax.xlane.f32.xlu0 %v2354
      %v2356 = vpop.xlane.xlu0 %2355
      %v2357 = vsel %vm868, %v2202, -inf
      %2358 = vmax.xlane.f32.xlu0 %v2357
      %v2359 = vpop.xlane.xlu0 %2358
      %v2360 = vsel %vm868, %v2207, -inf
      %2361 = vmax.xlane.f32.xlu0 %v2360
      %v2362 = vpop.xlane.xlu0 %2361
      %v2363 = vsel %vm868, %v2210, -inf
      %2364 = vmax.xlane.f32.xlu0 %v2363
      %v2365 = vpop.xlane.xlu0 %2364
      %v2366 = vsel %vm868, %v2268, -inf
      %2367 = vmax.xlane.f32.xlu0 %v2366
      %v2368 = vpop.xlane.xlu0 %2367
      %v2369 = vsel %vm868, %v2271, -inf
      %2370 = vmax.xlane.f32.xlu0 %v2369
      %v2371 = vpop.xlane.xlu0 %2370
      %v2372 = vsel %vm868, %v2276, -inf
      %2373 = vmax.xlane.f32.xlu0 %v2372
      %v2374 = vpop.xlane.xlu0 %2373
      %v2375 = vsel %vm868, %v2279, -inf
      %2376 = vmax.xlane.f32.xlu0 %v2375
      %v2377 = vpop.xlane.xlu0 %2376
      %v2378 = vsub.f32 %v1785, %v2284
      %v2379 = vsub.f32 %v1788, %v2287
      %v2380 = vsub.f32 %v1793, %v2290
      %v2381 = vsub.f32 %v1796, %v2293
      %v2382 = vsub.f32 %v1854, %v2296
      %v2383 = vsub.f32 %v1857, %v2299
      %v2384 = vsub.f32 %v1862, %v2302
      %v2385 = vsub.f32 %v1865, %v2305
      %v2386 = vsub.f32 %v1923, %v2308
      %v2387 = vsub.f32 %v1926, %v2311
      %v2388 = vsub.f32 %v1931, %v2314
      %v2389 = vsub.f32 %v1934, %v2317
      %v2390 = vsub.f32 %v1992, %v2320
      %v2391 = vsub.f32 %v1995, %v2323
      %v2392 = vsub.f32 %v2000, %v2326
      %v2393 = vsub.f32 %v2003, %v2329
      %v2394 = vsub.f32 %v2061, %v2332
      %v2395 = vsub.f32 %v2064, %v2335
      %v2396 = vsub.f32 %v2069, %v2338
      %v2397 = vsub.f32 %v2072, %v2341
      %v2398 = vsub.f32 %v2130, %v2344
      %v2399 = vsub.f32 %v2133, %v2347
      %v2400 = vsub.f32 %v2138, %v2350
      %v2401 = vsub.f32 %v2141, %v2353
      %v2402 = vsub.f32 %v2199, %v2356
      %v2403 = vsub.f32 %v2202, %v2359
      %v2404 = vsub.f32 %v2207, %v2362
      %v2405 = vsub.f32 %v2210, %v2365
      %v2406 = vsub.f32 %v2268, %v2368
      %v2407 = vsub.f32 %v2271, %v2371
      %v2408 = vsub.f32 %v2276, %v2374
      %v2409 = vsub.f32 %v2279, %v2377
      %v2410 = vmul.f32 %v2378, 1.442695
      %v2411 = vpow.pop %v2410
      %v2412 = vmul.f32 %v2379, 1.442695
      %v2413 = vpow.pop %v2412
      %v2414 = vmul.f32 %v2380, 1.442695
      %v2415 = vpow.pop %v2414
      %v2416 = vmul.f32 %v2381, 1.442695
      %v2417 = vpow.pop %v2416
      %v2418 = vmul.f32 %v2382, 1.442695
      %v2419 = vpow.pop %v2418
      %v2420 = vmul.f32 %v2383, 1.442695
      %v2421 = vpow.pop %v2420
      %v2422 = vmul.f32 %v2384, 1.442695
      %v2423 = vpow.pop %v2422
      %v2424 = vmul.f32 %v2385, 1.442695
      %v2425 = vpow.pop %v2424
      %v2426 = vmul.f32 %v2386, 1.442695
      %v2427 = vpow.pop %v2426
      %v2428 = vmul.f32 %v2387, 1.442695
      %v2429 = vpow.pop %v2428
      %v2430 = vmul.f32 %v2388, 1.442695
      %v2431 = vpow.pop %v2430
      %v2432 = vmul.f32 %v2389, 1.442695
      %v2433 = vpow.pop %v2432
      %v2434 = vmul.f32 %v2390, 1.442695
      %v2435 = vpow.pop %v2434
      %v2436 = vmul.f32 %v2391, 1.442695
      %v2437 = vpow.pop %v2436
      %v2438 = vmul.f32 %v2392, 1.442695
      %v2439 = vpow.pop %v2438
      %v2440 = vmul.f32 %v2393, 1.442695
      %v2441 = vpow.pop %v2440
      %v2442 = vmul.f32 %v2394, 1.442695
      %v2443 = vpow.pop %v2442
      %v2444 = vmul.f32 %v2395, 1.442695
      %v2445 = vpow.pop %v2444
      %v2446 = vmul.f32 %v2396, 1.442695
      %v2447 = vpow.pop %v2446
      %v2448 = vmul.f32 %v2397, 1.442695
      %v2449 = vpow.pop %v2448
      %v2450 = vmul.f32 %v2398, 1.442695
      %v2451 = vpow.pop %v2450
      %v2452 = vmul.f32 %v2399, 1.442695
      %v2453 = vpow.pop %v2452
      %v2454 = vmul.f32 %v2400, 1.442695
      %v2455 = vpow.pop %v2454
      %v2456 = vmul.f32 %v2401, 1.442695
      %v2457 = vpow.pop %v2456
      %v2458 = vmul.f32 %v2402, 1.442695
      %v2459 = vpow.pop %v2458
      %v2460 = vmul.f32 %v2403, 1.442695
      %v2461 = vpow.pop %v2460
      %v2462 = vmul.f32 %v2404, 1.442695
      %v2463 = vpow.pop %v2462
      %v2464 = vmul.f32 %v2405, 1.442695
      %v2465 = vpow.pop %v2464
      %v2466 = vmul.f32 %v2406, 1.442695
      %v2467 = vpow.pop %v2466
      %v2468 = vmul.f32 %v2407, 1.442695
      %v2469 = vpow.pop %v2468
      %v2470 = vmul.f32 %v2408, 1.442695
      %v2471 = vpow.pop %v2470
      %v2472 = vmul.f32 %v2409, 1.442695
      %v2473 = vpow.pop %v2472
      %v2474 = vsel %vm868, %v2411, 0.0
      %2475 = vadd.xlane.f32.xlu0 %v2474
      %v2476 = vpop.xlane.xlu0 %2475
      %v2477 = vsel %vm868, %v2413, 0.0
      %2478 = vadd.xlane.f32.xlu0 %v2477
      %v2479 = vpop.xlane.xlu0 %2478
      %v2480 = vsel %vm868, %v2415, 0.0
      %2481 = vadd.xlane.f32.xlu0 %v2480
      %v2482 = vpop.xlane.xlu0 %2481
      %v2483 = vsel %vm868, %v2417, 0.0
      %2484 = vadd.xlane.f32.xlu0 %v2483
      %v2485 = vpop.xlane.xlu0 %2484
      %v2486 = vsel %vm868, %v2419, 0.0
      %2487 = vadd.xlane.f32.xlu0 %v2486
      %v2488 = vpop.xlane.xlu0 %2487
      %v2489 = vsel %vm868, %v2421, 0.0
      %2490 = vadd.xlane.f32.xlu0 %v2489
      %v2491 = vpop.xlane.xlu0 %2490
      %v2492 = vsel %vm868, %v2423, 0.0
      %2493 = vadd.xlane.f32.xlu0 %v2492
      %v2494 = vpop.xlane.xlu0 %2493
      %v2495 = vsel %vm868, %v2425, 0.0
      %2496 = vadd.xlane.f32.xlu0 %v2495
      %v2497 = vpop.xlane.xlu0 %2496
      %v2498 = vsel %vm868, %v2427, 0.0
      %2499 = vadd.xlane.f32.xlu0 %v2498
      %v2500 = vpop.xlane.xlu0 %2499
      %v2501 = vsel %vm868, %v2429, 0.0
      %2502 = vadd.xlane.f32.xlu0 %v2501
      %v2503 = vpop.xlane.xlu0 %2502
      %v2504 = vsel %vm868, %v2431, 0.0
      %2505 = vadd.xlane.f32.xlu0 %v2504
      %v2506 = vpop.xlane.xlu0 %2505
      %v2507 = vsel %vm868, %v2433, 0.0
      %2508 = vadd.xlane.f32.xlu0 %v2507
      %v2509 = vpop.xlane.xlu0 %2508
      %v2510 = vsel %vm868, %v2435, 0.0
      %2511 = vadd.xlane.f32.xlu0 %v2510
      %v2512 = vpop.xlane.xlu0 %2511
      %v2513 = vsel %vm868, %v2437, 0.0
      %2514 = vadd.xlane.f32.xlu0 %v2513
      %v2515 = vpop.xlane.xlu0 %2514
      %v2516 = vsel %vm868, %v2439, 0.0
      %2517 = vadd.xlane.f32.xlu0 %v2516
      %v2518 = vpop.xlane.xlu0 %2517
      %v2519 = vsel %vm868, %v2441, 0.0
      %2520 = vadd.xlane.f32.xlu0 %v2519
      %v2521 = vpop.xlane.xlu0 %2520
      %v2522 = vsel %vm868, %v2443, 0.0
      %2523 = vadd.xlane.f32.xlu0 %v2522
      %v2524 = vpop.xlane.xlu0 %2523
      %v2525 = vsel %vm868, %v2445, 0.0
      %2526 = vadd.xlane.f32.xlu0 %v2525
      %v2527 = vpop.xlane.xlu0 %2526
      %v2528 = vsel %vm868, %v2447, 0.0
      %2529 = vadd.xlane.f32.xlu0 %v2528
      %v2530 = vpop.xlane.xlu0 %2529
      %v2531 = vsel %vm868, %v2449, 0.0
      %2532 = vadd.xlane.f32.xlu0 %v2531
      %v2533 = vpop.xlane.xlu0 %2532
      %v2534 = vsel %vm868, %v2451, 0.0
      %2535 = vadd.xlane.f32.xlu0 %v2534
      %v2536 = vpop.xlane.xlu0 %2535
      %v2537 = vsel %vm868, %v2453, 0.0
      %2538 = vadd.xlane.f32.xlu0 %v2537
      %v2539 = vpop.xlane.xlu0 %2538
      %v2540 = vsel %vm868, %v2455, 0.0
      %2541 = vadd.xlane.f32.xlu0 %v2540
      %v2542 = vpop.xlane.xlu0 %2541
      %v2543 = vsel %vm868, %v2457, 0.0
      %2544 = vadd.xlane.f32.xlu0 %v2543
      %v2545 = vpop.xlane.xlu0 %2544
      %v2546 = vsel %vm868, %v2459, 0.0
      %2547 = vadd.xlane.f32.xlu0 %v2546
      %v2548 = vpop.xlane.xlu0 %2547
      %v2549 = vsel %vm868, %v2461, 0.0
      %2550 = vadd.xlane.f32.xlu0 %v2549
      %v2551 = vpop.xlane.xlu0 %2550
      %v2552 = vsel %vm868, %v2463, 0.0
      %2553 = vadd.xlane.f32.xlu0 %v2552
      %v2554 = vpop.xlane.xlu0 %2553
      %v2555 = vsel %vm868, %v2465, 0.0
      %2556 = vadd.xlane.f32.xlu0 %v2555
      %v2557 = vpop.xlane.xlu0 %2556
      %v2558 = vsel %vm868, %v2467, 0.0
      %2559 = vadd.xlane.f32.xlu0 %v2558
      %v2560 = vpop.xlane.xlu0 %2559
      %v2561 = vsel %vm868, %v2469, 0.0
      %2562 = vadd.xlane.f32.xlu0 %v2561
      %v2563 = vpop.xlane.xlu0 %2562
      %v2564 = vsel %vm868, %v2471, 0.0
      %2565 = vadd.xlane.f32.xlu0 %v2564
      %v2566 = vpop.xlane.xlu0 %2565
      %v2567 = vsel %vm868, %v2473, 0.0
      %2568 = vadd.xlane.f32.xlu0 %v2567
      %v2569 = vpop.xlane.xlu0 %2568
      %v2570 = vrcp.pop %v2476
      %v2571 = vrcp.pop %v2479
      %v2572 = vrcp.pop %v2482
      %v2573 = vrcp.pop %v2485
      %v2574 = vrcp.pop %v2488
      %v2575 = vrcp.pop %v2491
      %v2576 = vrcp.pop %v2494
      %v2577 = vrcp.pop %v2497
      %v2578 = vrcp.pop %v2500
      %v2579 = vrcp.pop %v2503
      %v2580 = vrcp.pop %v2506
      %v2581 = vrcp.pop %v2509
      %v2582 = vrcp.pop %v2512
      %v2583 = vrcp.pop %v2515
      %v2584 = vrcp.pop %v2518
      %v2585 = vrcp.pop %v2521
      %v2586 = vrcp.pop %v2524
      %v2587 = vrcp.pop %v2527
      %v2588 = vrcp.pop %v2530
      %v2589 = vrcp.pop %v2533
      %v2590 = vrcp.pop %v2536
      %v2591 = vrcp.pop %v2539
      %v2592 = vrcp.pop %v2542
      %v2593 = vrcp.pop %v2545
      %v2594 = vrcp.pop %v2548
      %v2595 = vrcp.pop %v2551
      %v2596 = vrcp.pop %v2554
      %v2597 = vrcp.pop %v2557
      %v2598 = vrcp.pop %v2560
      %v2599 = vrcp.pop %v2563
      %v2600 = vrcp.pop %v2566
      %v2601 = vrcp.pop %v2569
      %v2602 = vmul.f32 %v2411, %v2570
      %v2603 = vmul.f32 %v2413, %v2571
      %v2604 = vmul.f32 %v2415, %v2572
      %v2605 = vmul.f32 %v2417, %v2573
      %v2606 = vmul.f32 %v2419, %v2574
      %v2607 = vmul.f32 %v2421, %v2575
      %v2608 = vmul.f32 %v2423, %v2576
      %v2609 = vmul.f32 %v2425, %v2577
      %v2610 = vmul.f32 %v2427, %v2578
      %v2611 = vmul.f32 %v2429, %v2579
      %v2612 = vmul.f32 %v2431, %v2580
      %v2613 = vmul.f32 %v2433, %v2581
      %v2614 = vmul.f32 %v2435, %v2582
      %v2615 = vmul.f32 %v2437, %v2583
      %v2616 = vmul.f32 %v2439, %v2584
      %v2617 = vmul.f32 %v2441, %v2585
      %v2618 = vmul.f32 %v2443, %v2586
      %v2619 = vmul.f32 %v2445, %v2587
      %v2620 = vmul.f32 %v2447, %v2588
      %v2621 = vmul.f32 %v2449, %v2589
      %v2622 = vmul.f32 %v2451, %v2590
      %v2623 = vmul.f32 %v2453, %v2591
      %v2624 = vmul.f32 %v2455, %v2592
      %v2625 = vmul.f32 %v2457, %v2593
      %v2626 = vmul.f32 %v2459, %v2594
      %v2627 = vmul.f32 %v2461, %v2595
      %v2628 = vmul.f32 %v2463, %v2596
      %v2629 = vmul.f32 %v2465, %v2597
      %v2630 = vmul.f32 %v2467, %v2598
      %v2631 = vmul.f32 %v2469, %v2599
      %v2632 = vmul.f32 %v2471, %v2600
      %v2633 = vmul.f32 %v2473, %v2601
      %v2634 = vpack.c.bf16 %v2603, %v2602
      %v2635 = vpack.c.bf16 %v2605, %v2604
      %v2636 = vpack.c.bf16 %v2607, %v2606
      %v2637 = vpack.c.bf16 %v2609, %v2608
      %v2638 = vpack.c.bf16 %v2611, %v2610
      %v2639 = vpack.c.bf16 %v2613, %v2612
      %v2640 = vpack.c.bf16 %v2615, %v2614
      %v2641 = vpack.c.bf16 %v2617, %v2616
      %v2642 = vpack.c.bf16 %v2619, %v2618
      %v2643 = vpack.c.bf16 %v2621, %v2620
      %v2644 = vpack.c.bf16 %v2623, %v2622
      %v2645 = vpack.c.bf16 %v2625, %v2624
      %v2646 = vpack.c.bf16 %v2627, %v2626
      %v2647 = vpack.c.bf16 %v2629, %v2628
      %v2648 = vpack.c.bf16 %v2631, %v2630
      %v2649 = vpack.c.bf16 %v2633, %v2632
      %2650 = vrot.lane.b32.xlu0 %v275, 56
      %v2651 = vpop.permute.xlu0 %2650
      %2652 = vrot.lane.b32.xlu0 %v276, 56
      %v2653 = vpop.permute.xlu0 %2652
      %v2657 = vsel %vm868, %v2634, 0
      %v2660 = vsel %vm868, %v2635, 0
      %2662 = vmatprep.subr.bf16.mxu0 0
      %2663 = vmatpush1.bf16.msra.mxu0 0
      %2664 = vmatprep.subr.bf16.mxu0 0
      %2665 = vmatpush1.bf16.msra.mxu0 0
      %2666 = vmatprep.subr.bf16.mxu0 0
      %2667 = vmatpush1.bf16.msra.mxu0 0
      %2668 = vmatprep.subr.bf16.mxu0 0
      %2669 = vmatpush1.bf16.msra.mxu0 0
      %2670 = vmatprep.subr.bf16.mxu0 0
      %2671 = vmatpush1.bf16.msra.mxu0 0
      %2672 = vmatprep.subr.bf16.mxu0 0
      %2673 = vmatpush1.bf16.msra.mxu0 0
      %2674 = vmatprep.subr.bf16.mxu0 0
      %2675 = vmatpush1.bf16.msra.mxu0 %v2653
      %2676 = vmatprep.subr.bf16.mxu0 0
      %2677 = vmatpush1.bf16.msra.mxu0 %v2651
      %2678 = vmatprep.subr.bf16.mxu0 0
      %2679 = vmatpush2.bf16.msra.mxu0 0
      %2680 = vmatprep.subr.bf16.mxu0 0
      %2681 = vmatpush2.bf16.msra.mxu0 0
      %2682 = vmatprep.subr.bf16.mxu0 0
      %2683 = vmatpush2.bf16.msra.mxu0 0
      %2684 = vmatprep.subr.bf16.mxu0 0
      %2685 = vmatpush2.bf16.msra.mxu0 0
      %2686 = vmatprep.subr.bf16.mxu0 0
      %2687 = vmatpush2.bf16.msra.mxu0 0
      %2688 = vmatprep.subr.bf16.mxu0 0
      %2689 = vmatpush2.bf16.msra.mxu0 0
      %2690 = vmatprep.subr.bf16.mxu0 0
      %2691 = vmatpush2.bf16.msra.mxu0 0
      %2692 = vmatprep.subr.bf16.mxu0 0
      %2693 = vmatpush2.bf16.msra.mxu0 0
      %2694 = vmatprep.mubr.bf16.mxu0 0
      %2695 = vmatmul.mubr.bf16.gmra.mxu0 %v2657
      %v2696 = vpop.f32.mrf.mxu0
      %v2697 = vadd.f32 0.0, %v2696
      %v2698 = vpop.f32.mrf.mxu0
      %v2699 = vpop.f32.mrf.mxu0
      %v2700 = vadd.f32 0.0, %v2699
      %v2701 = vpop.f32.mrf.mxu0
      %2702 = vmatprep.mubr.bf16.mxu0 0
      %2703 = vmatmul.mubr.bf16.gmra.mxu0 %v2660
      %v2704 = vpop.f32.mrf.mxu0
      %v2705 = vadd.f32 0.0, %v2704
      %v2706 = vpop.f32.mrf.mxu0
      %v2707 = vpop.f32.mrf.mxu0
      %v2708 = vadd.f32 0.0, %v2707
      %v2709 = vpop.f32.mrf.mxu0
      %2710 = vdwg.mxu0
      %2711 = vrot.lane.b32.xlu0 %v351, 56
      %v2712 = vpop.permute.xlu0 %2711
      %2713 = vrot.lane.b32.xlu0 %v352, 56
      %v2714 = vpop.permute.xlu0 %2713
      %v2718 = vsel %vm868, %v2636, 0
      %v2721 = vsel %vm868, %v2637, 0
      %2723 = vmatprep.subr.bf16.mxu0 0
      %2724 = vmatpush1.bf16.msra.mxu0 0
      %2725 = vmatprep.subr.bf16.mxu0 0
      %2726 = vmatpush1.bf16.msra.mxu0 0
      %2727 = vmatprep.subr.bf16.mxu0 0
      %2728 = vmatpush1.bf16.msra.mxu0 0
      %2729 = vmatprep.subr.bf16.mxu0 0
      %2730 = vmatpush1.bf16.msra.mxu0 0
      %2731 = vmatprep.subr.bf16.mxu0 0
      %2732 = vmatpush1.bf16.msra.mxu0 0
      %2733 = vmatprep.subr.bf16.mxu0 0
      %2734 = vmatpush1.bf16.msra.mxu0 0
      %2735 = vmatprep.subr.bf16.mxu0 0
      %2736 = vmatpush1.bf16.msra.mxu0 %v2714
      %2737 = vmatprep.subr.bf16.mxu0 0
      %2738 = vmatpush1.bf16.msra.mxu0 %v2712
      %2739 = vmatprep.subr.bf16.mxu0 0
      %2740 = vmatpush2.bf16.msra.mxu0 0
      %2741 = vmatprep.subr.bf16.mxu0 0
      %2742 = vmatpush2.bf16.msra.mxu0 0
      %2743 = vmatprep.subr.bf16.mxu0 0
      %2744 = vmatpush2.bf16.msra.mxu0 0
      %2745 = vmatprep.subr.bf16.mxu0 0
      %2746 = vmatpush2.bf16.msra.mxu0 0
      %2747 = vmatprep.subr.bf16.mxu0 0
      %2748 = vmatpush2.bf16.msra.mxu0 0
      %2749 = vmatprep.subr.bf16.mxu0 0
      %2750 = vmatpush2.bf16.msra.mxu0 0
      %2751 = vmatprep.subr.bf16.mxu0 0
      %2752 = vmatpush2.bf16.msra.mxu0 0
      %2753 = vmatprep.subr.bf16.mxu0 0
      %2754 = vmatpush2.bf16.msra.mxu0 0
      %2755 = vmatprep.mubr.bf16.mxu0 0
      %2756 = vmatmul.mubr.bf16.gmra.mxu0 %v2718
      %v2757 = vpop.f32.mrf.mxu0
      %v2758 = vadd.f32 0.0, %v2757
      %v2759 = vpop.f32.mrf.mxu0
      %v2760 = vpop.f32.mrf.mxu0
      %v2761 = vadd.f32 0.0, %v2760
      %v2762 = vpop.f32.mrf.mxu0
      %2763 = vmatprep.mubr.bf16.mxu0 0
      %2764 = vmatmul.mubr.bf16.gmra.mxu0 %v2721
      %v2765 = vpop.f32.mrf.mxu0
      %v2766 = vadd.f32 0.0, %v2765
      %v2767 = vpop.f32.mrf.mxu0
      %v2768 = vpop.f32.mrf.mxu0
      %v2769 = vadd.f32 0.0, %v2768
      %v2770 = vpop.f32.mrf.mxu0
      %2771 = vdwg.mxu0
      %2772 = vrot.lane.b32.xlu0 %v426, 56
      %v2773 = vpop.permute.xlu0 %2772
      %2774 = vrot.lane.b32.xlu0 %v427, 56
      %v2775 = vpop.permute.xlu0 %2774
      %v2779 = vsel %vm868, %v2638, 0
      %v2782 = vsel %vm868, %v2639, 0
      %2784 = vmatprep.subr.bf16.mxu0 0
      %2785 = vmatpush1.bf16.msra.mxu0 0
      %2786 = vmatprep.subr.bf16.mxu0 0
      %2787 = vmatpush1.bf16.msra.mxu0 0
      %2788 = vmatprep.subr.bf16.mxu0 0
      %2789 = vmatpush1.bf16.msra.mxu0 0
      %2790 = vmatprep.subr.bf16.mxu0 0
      %2791 = vmatpush1.bf16.msra.mxu0 0
      %2792 = vmatprep.subr.bf16.mxu0 0
      %2793 = vmatpush1.bf16.msra.mxu0 0
      %2794 = vmatprep.subr.bf16.mxu0 0
      %2795 = vmatpush1.bf16.msra.mxu0 0
      %2796 = vmatprep.subr.bf16.mxu0 0
      %2797 = vmatpush1.bf16.msra.mxu0 %v2775
      %2798 = vmatprep.subr.bf16.mxu0 0
      %2799 = vmatpush1.bf16.msra.mxu0 %v2773
      %2800 = vmatprep.subr.bf16.mxu0 0
      %2801 = vmatpush2.bf16.msra.mxu0 0
      %2802 = vmatprep.subr.bf16.mxu0 0
      %2803 = vmatpush2.bf16.msra.mxu0 0
      %2804 = vmatprep.subr.bf16.mxu0 0
      %2805 = vmatpush2.bf16.msra.mxu0 0
      %2806 = vmatprep.subr.bf16.mxu0 0
      %2807 = vmatpush2.bf16.msra.mxu0 0
      %2808 = vmatprep.subr.bf16.mxu0 0
      %2809 = vmatpush2.bf16.msra.mxu0 0
      %2810 = vmatprep.subr.bf16.mxu0 0
      %2811 = vmatpush2.bf16.msra.mxu0 0
      %2812 = vmatprep.subr.bf16.mxu0 0
      %2813 = vmatpush2.bf16.msra.mxu0 0
      %2814 = vmatprep.subr.bf16.mxu0 0
      %2815 = vmatpush2.bf16.msra.mxu0 0
      %2816 = vmatprep.mubr.bf16.mxu0 0
      %2817 = vmatmul.mubr.bf16.gmra.mxu0 %v2779
      %v2818 = vpop.f32.mrf.mxu0
      %v2819 = vadd.f32 0.0, %v2818
      %v2820 = vpop.f32.mrf.mxu0
      %v2821 = vpop.f32.mrf.mxu0
      %v2822 = vadd.f32 0.0, %v2821
      %v2823 = vpop.f32.mrf.mxu0
      %2824 = vmatprep.mubr.bf16.mxu0 0
      %2825 = vmatmul.mubr.bf16.gmra.mxu0 %v2782
      %v2826 = vpop.f32.mrf.mxu0
      %v2827 = vadd.f32 0.0, %v2826
      %v2828 = vpop.f32.mrf.mxu0
      %v2829 = vpop.f32.mrf.mxu0
      %v2830 = vadd.f32 0.0, %v2829
      %v2831 = vpop.f32.mrf.mxu0
      %2832 = vdwg.mxu0
      %2833 = vrot.lane.b32.xlu0 %v501, 56
      %v2834 = vpop.permute.xlu0 %2833
      %2835 = vrot.lane.b32.xlu0 %v502, 56
      %v2836 = vpop.permute.xlu0 %2835
      %v2840 = vsel %vm868, %v2640, 0
      %v2843 = vsel %vm868, %v2641, 0
      %2845 = vmatprep.subr.bf16.mxu0 0
      %2846 = vmatpush1.bf16.msra.mxu0 0
      %2847 = vmatprep.subr.bf16.mxu0 0
      %2848 = vmatpush1.bf16.msra.mxu0 0
      %2849 = vmatprep.subr.bf16.mxu0 0
      %2850 = vmatpush1.bf16.msra.mxu0 0
      %2851 = vmatprep.subr.bf16.mxu0 0
      %2852 = vmatpush1.bf16.msra.mxu0 0
      %2853 = vmatprep.subr.bf16.mxu0 0
      %2854 = vmatpush1.bf16.msra.mxu0 0
      %2855 = vmatprep.subr.bf16.mxu0 0
      %2856 = vmatpush1.bf16.msra.mxu0 0
      %2857 = vmatprep.subr.bf16.mxu0 0
      %2858 = vmatpush1.bf16.msra.mxu0 %v2836
      %2859 = vmatprep.subr.bf16.mxu0 0
      %2860 = vmatpush1.bf16.msra.mxu0 %v2834
      %2861 = vmatprep.subr.bf16.mxu0 0
      %2862 = vmatpush2.bf16.msra.mxu0 0
      %2863 = vmatprep.subr.bf16.mxu0 0
      %2864 = vmatpush2.bf16.msra.mxu0 0
      %2865 = vmatprep.subr.bf16.mxu0 0
      %2866 = vmatpush2.bf16.msra.mxu0 0
      %2867 = vmatprep.subr.bf16.mxu0 0
      %2868 = vmatpush2.bf16.msra.mxu0 0
      %2869 = vmatprep.subr.bf16.mxu0 0
      %2870 = vmatpush2.bf16.msra.mxu0 0
      %2871 = vmatprep.subr.bf16.mxu0 0
      %2872 = vmatpush2.bf16.msra.mxu0 0
      %2873 = vmatprep.subr.bf16.mxu0 0
      %2874 = vmatpush2.bf16.msra.mxu0 0
      %2875 = vmatprep.subr.bf16.mxu0 0
      %2876 = vmatpush2.bf16.msra.mxu0 0
      %2877 = vmatprep.mubr.bf16.mxu0 0
      %2878 = vmatmul.mubr.bf16.gmra.mxu0 %v2840
      %v2879 = vpop.f32.mrf.mxu0
      %v2880 = vadd.f32 0.0, %v2879
      %v2881 = vpop.f32.mrf.mxu0
      %v2882 = vpop.f32.mrf.mxu0
      %v2883 = vadd.f32 0.0, %v2882
      %v2884 = vpop.f32.mrf.mxu0
      %2885 = vmatprep.mubr.bf16.mxu0 0
      %2886 = vmatmul.mubr.bf16.gmra.mxu0 %v2843
      %v2887 = vpop.f32.mrf.mxu0
      %v2888 = vadd.f32 0.0, %v2887
      %v2889 = vpop.f32.mrf.mxu0
      %v2890 = vpop.f32.mrf.mxu0
      %v2891 = vadd.f32 0.0, %v2890
      %v2892 = vpop.f32.mrf.mxu0
      %2893 = vdwg.mxu0
      %2894 = vrot.lane.b32.xlu0 %v576, 56
      %v2895 = vpop.permute.xlu0 %2894
      %2896 = vrot.lane.b32.xlu0 %v577, 56
      %v2897 = vpop.permute.xlu0 %2896
      %v2901 = vsel %vm868, %v2642, 0
      %v2904 = vsel %vm868, %v2643, 0
      %2906 = vmatprep.subr.bf16.mxu0 0
      %2907 = vmatpush1.bf16.msra.mxu0 0
      %2908 = vmatprep.subr.bf16.mxu0 0
      %2909 = vmatpush1.bf16.msra.mxu0 0
      %2910 = vmatprep.subr.bf16.mxu0 0
      %2911 = vmatpush1.bf16.msra.mxu0 0
      %2912 = vmatprep.subr.bf16.mxu0 0
      %2913 = vmatpush1.bf16.msra.mxu0 0
      %2914 = vmatprep.subr.bf16.mxu0 0
      %2915 = vmatpush1.bf16.msra.mxu0 0
      %2916 = vmatprep.subr.bf16.mxu0 0
      %2917 = vmatpush1.bf16.msra.mxu0 0
      %2918 = vmatprep.subr.bf16.mxu0 0
      %2919 = vmatpush1.bf16.msra.mxu0 %v2897
      %2920 = vmatprep.subr.bf16.mxu0 0
      %2921 = vmatpush1.bf16.msra.mxu0 %v2895
      %2922 = vmatprep.subr.bf16.mxu0 0
      %2923 = vmatpush2.bf16.msra.mxu0 0
      %2924 = vmatprep.subr.bf16.mxu0 0
      %2925 = vmatpush2.bf16.msra.mxu0 0
      %2926 = vmatprep.subr.bf16.mxu0 0
      %2927 = vmatpush2.bf16.msra.mxu0 0
      %2928 = vmatprep.subr.bf16.mxu0 0
      %2929 = vmatpush2.bf16.msra.mxu0 0
      %2930 = vmatprep.subr.bf16.mxu0 0
      %2931 = vmatpush2.bf16.msra.mxu0 0
      %2932 = vmatprep.subr.bf16.mxu0 0
      %2933 = vmatpush2.bf16.msra.mxu0 0
      %2934 = vmatprep.subr.bf16.mxu0 0
      %2935 = vmatpush2.bf16.msra.mxu0 0
      %2936 = vmatprep.subr.bf16.mxu0 0
      %2937 = vmatpush2.bf16.msra.mxu0 0
      %2938 = vmatprep.mubr.bf16.mxu0 0
      %2939 = vmatmul.mubr.bf16.gmra.mxu0 %v2901
      %v2940 = vpop.f32.mrf.mxu0
      %v2941 = vadd.f32 0.0, %v2940
      %v2942 = vpop.f32.mrf.mxu0
      %v2943 = vpop.f32.mrf.mxu0
      %v2944 = vadd.f32 0.0, %v2943
      %v2945 = vpop.f32.mrf.mxu0
      %2946 = vmatprep.mubr.bf16.mxu0 0
      %2947 = vmatmul.mubr.bf16.gmra.mxu0 %v2904
      %v2948 = vpop.f32.mrf.mxu0
      %v2949 = vadd.f32 0.0, %v2948
      %v2950 = vpop.f32.mrf.mxu0
      %v2951 = vpop.f32.mrf.mxu0
      %v2952 = vadd.f32 0.0, %v2951
      %v2953 = vpop.f32.mrf.mxu0
      %2954 = vdwg.mxu0
      %2955 = vrot.lane.b32.xlu0 %v651, 56
      %v2956 = vpop.permute.xlu0 %2955
      %2957 = vrot.lane.b32.xlu0 %v652, 56
      %v2958 = vpop.permute.xlu0 %2957
      %v2962 = vsel %vm868, %v2644, 0
      %v2965 = vsel %vm868, %v2645, 0
      %2967 = vmatprep.subr.bf16.mxu0 0
      %2968 = vmatpush1.bf16.msra.mxu0 0
      %2969 = vmatprep.subr.bf16.mxu0 0
      %2970 = vmatpush1.bf16.msra.mxu0 0
      %2971 = vmatprep.subr.bf16.mxu0 0
      %2972 = vmatpush1.bf16.msra.mxu0 0
      %2973 = vmatprep.subr.bf16.mxu0 0
      %2974 = vmatpush1.bf16.msra.mxu0 0
      %2975 = vmatprep.subr.bf16.mxu0 0
      %2976 = vmatpush1.bf16.msra.mxu0 0
      %2977 = vmatprep.subr.bf16.mxu0 0
      %2978 = vmatpush1.bf16.msra.mxu0 0
      %2979 = vmatprep.subr.bf16.mxu0 0
      %2980 = vmatpush1.bf16.msra.mxu0 %v2958
      %2981 = vmatprep.subr.bf16.mxu0 0
      %2982 = vmatpush1.bf16.msra.mxu0 %v2956
      %2983 = vmatprep.subr.bf16.mxu0 0
      %2984 = vmatpush2.bf16.msra.mxu0 0
      %2985 = vmatprep.subr.bf16.mxu0 0
      %2986 = vmatpush2.bf16.msra.mxu0 0
      %2987 = vmatprep.subr.bf16.mxu0 0
      %2988 = vmatpush2.bf16.msra.mxu0 0
      %2989 = vmatprep.subr.bf16.mxu0 0
      %2990 = vmatpush2.bf16.msra.mxu0 0
      %2991 = vmatprep.subr.bf16.mxu0 0
      %2992 = vmatpush2.bf16.msra.mxu0 0
      %2993 = vmatprep.subr.bf16.mxu0 0
      %2994 = vmatpush2.bf16.msra.mxu0 0
      %2995 = vmatprep.subr.bf16.mxu0 0
      %2996 = vmatpush2.bf16.msra.mxu0 0
      %2997 = vmatprep.subr.bf16.mxu0 0
      %2998 = vmatpush2.bf16.msra.mxu0 0
      %2999 = vmatprep.mubr.bf16.mxu0 0
      %3000 = vmatmul.mubr.bf16.gmra.mxu0 %v2962
      %v3001 = vpop.f32.mrf.mxu0
      %v3002 = vadd.f32 0.0, %v3001
      %v3003 = vpop.f32.mrf.mxu0
      %v3004 = vpop.f32.mrf.mxu0
      %v3005 = vadd.f32 0.0, %v3004
      %v3006 = vpop.f32.mrf.mxu0
      %3007 = vmatprep.mubr.bf16.mxu0 0
      %3008 = vmatmul.mubr.bf16.gmra.mxu0 %v2965
      %v3009 = vpop.f32.mrf.mxu0
      %v3010 = vadd.f32 0.0, %v3009
      %v3011 = vpop.f32.mrf.mxu0
      %v3012 = vpop.f32.mrf.mxu0
      %v3013 = vadd.f32 0.0, %v3012
      %v3014 = vpop.f32.mrf.mxu0
      %3015 = vdwg.mxu0
      %3016 = vrot.lane.b32.xlu0 %v726, 56
      %v3017 = vpop.permute.xlu0 %3016
      %3018 = vrot.lane.b32.xlu0 %v727, 56
      %v3019 = vpop.permute.xlu0 %3018
      %v3023 = vsel %vm868, %v2646, 0
      %v3026 = vsel %vm868, %v2647, 0
      %3028 = vmatprep.subr.bf16.mxu0 0
      %3029 = vmatpush1.bf16.msra.mxu0 0
      %3030 = vmatprep.subr.bf16.mxu0 0
      %3031 = vmatpush1.bf16.msra.mxu0 0
      %3032 = vmatprep.subr.bf16.mxu0 0
      %3033 = vmatpush1.bf16.msra.mxu0 0
      %3034 = vmatprep.subr.bf16.mxu0 0
      %3035 = vmatpush1.bf16.msra.mxu0 0
      %3036 = vmatprep.subr.bf16.mxu0 0
      %3037 = vmatpush1.bf16.msra.mxu0 0
      %3038 = vmatprep.subr.bf16.mxu0 0
      %3039 = vmatpush1.bf16.msra.mxu0 0
      %3040 = vmatprep.subr.bf16.mxu0 0
      %3041 = vmatpush1.bf16.msra.mxu0 %v3019
      %3042 = vmatprep.subr.bf16.mxu0 0
      %3043 = vmatpush1.bf16.msra.mxu0 %v3017
      %3044 = vmatprep.subr.bf16.mxu0 0
      %3045 = vmatpush2.bf16.msra.mxu0 0
      %3046 = vmatprep.subr.bf16.mxu0 0
      %3047 = vmatpush2.bf16.msra.mxu0 0
      %3048 = vmatprep.subr.bf16.mxu0 0
      %3049 = vmatpush2.bf16.msra.mxu0 0
      %3050 = vmatprep.subr.bf16.mxu0 0
      %3051 = vmatpush2.bf16.msra.mxu0 0
      %3052 = vmatprep.subr.bf16.mxu0 0
      %3053 = vmatpush2.bf16.msra.mxu0 0
      %3054 = vmatprep.subr.bf16.mxu0 0
      %3055 = vmatpush2.bf16.msra.mxu0 0
      %3056 = vmatprep.subr.bf16.mxu0 0
      %3057 = vmatpush2.bf16.msra.mxu0 0
      %3058 = vmatprep.subr.bf16.mxu0 0
      %3059 = vmatpush2.bf16.msra.mxu0 0
      %3060 = vmatprep.mubr.bf16.mxu0 0
      %3061 = vmatmul.mubr.bf16.gmra.mxu0 %v3023
      %v3062 = vpop.f32.mrf.mxu0
      %v3063 = vadd.f32 0.0, %v3062
      %v3064 = vpop.f32.mrf.mxu0
      %v3065 = vpop.f32.mrf.mxu0
      %v3066 = vadd.f32 0.0, %v3065
      %v3067 = vpop.f32.mrf.mxu0
      %3068 = vmatprep.mubr.bf16.mxu0 0
      %3069 = vmatmul.mubr.bf16.gmra.mxu0 %v3026
      %v3070 = vpop.f32.mrf.mxu0
      %v3071 = vadd.f32 0.0, %v3070
      %v3072 = vpop.f32.mrf.mxu0
      %v3073 = vpop.f32.mrf.mxu0
      %v3074 = vadd.f32 0.0, %v3073
      %v3075 = vpop.f32.mrf.mxu0
      %3076 = vdwg.mxu0
      %3077 = vrot.lane.b32.xlu0 %v801, 56
      %v3078 = vpop.permute.xlu0 %3077
      %3079 = vrot.lane.b32.xlu0 %v802, 56
      %v3080 = vpop.permute.xlu0 %3079
      %v3084 = vsel %vm868, %v2648, 0
      %v3087 = vsel %vm868, %v2649, 0
      %3089 = vmatprep.subr.bf16.mxu0 0
      %3090 = vmatpush1.bf16.msra.mxu0 0
      %3091 = vmatprep.subr.bf16.mxu0 0
      %3092 = vmatpush1.bf16.msra.mxu0 0
      %3093 = vmatprep.subr.bf16.mxu0 0
      %3094 = vmatpush1.bf16.msra.mxu0 0
      %3095 = vmatprep.subr.bf16.mxu0 0
      %3096 = vmatpush1.bf16.msra.mxu0 0
      %3097 = vmatprep.subr.bf16.mxu0 0
      %3098 = vmatpush1.bf16.msra.mxu0 0
      %3099 = vmatprep.subr.bf16.mxu0 0
      %3100 = vmatpush1.bf16.msra.mxu0 0
      %3101 = vmatprep.subr.bf16.mxu0 0
      %3102 = vmatpush1.bf16.msra.mxu0 %v3080
      %3103 = vmatprep.subr.bf16.mxu0 0
      %3104 = vmatpush1.bf16.msra.mxu0 %v3078
      %3105 = vmatprep.subr.bf16.mxu0 0
      %3106 = vmatpush2.bf16.msra.mxu0 0
      %3107 = vmatprep.subr.bf16.mxu0 0
      %3108 = vmatpush2.bf16.msra.mxu0 0
      %3109 = vmatprep.subr.bf16.mxu0 0
      %3110 = vmatpush2.bf16.msra.mxu0 0
      %3111 = vmatprep.subr.bf16.mxu0 0
      %3112 = vmatpush2.bf16.msra.mxu0 0
      %3113 = vmatprep.subr.bf16.mxu0 0
      %3114 = vmatpush2.bf16.msra.mxu0 0
      %3115 = vmatprep.subr.bf16.mxu0 0
      %3116 = vmatpush2.bf16.msra.mxu0 0
      %3117 = vmatprep.subr.bf16.mxu0 0
      %3118 = vmatpush2.bf16.msra.mxu0 0
      %3119 = vmatprep.subr.bf16.mxu0 0
      %3120 = vmatpush2.bf16.msra.mxu0 0
      %3121 = vmatprep.mubr.bf16.mxu0 0
      %3122 = vmatmul.mubr.bf16.gmra.mxu0 %v3084
      %v3123 = vpop.f32.mrf.mxu0
      %v3124 = vadd.f32 0.0, %v3123
      %v3125 = vpop.f32.mrf.mxu0
      %v3126 = vpop.f32.mrf.mxu0
      %v3127 = vadd.f32 0.0, %v3126
      %v3128 = vpop.f32.mrf.mxu0
      %3129 = vmatprep.mubr.bf16.mxu0 0
      %3130 = vmatmul.mubr.bf16.gmra.mxu0 %v3087
      %v3131 = vpop.f32.mrf.mxu0
      %v3132 = vadd.f32 0.0, %v3131
      %v3133 = vpop.f32.mrf.mxu0
      %v3134 = vpop.f32.mrf.mxu0
      %v3135 = vadd.f32 0.0, %v3134
      %v3136 = vpop.f32.mrf.mxu0
      %3137 = vdwg.mxu0
      %s3138 = scalar_lea.vmem %s1, 64
      %v3139 = vld [vmem:[%s3138] sm:$0xff]
      %v3140 = vld [vmem:[%s3138 + $0x8] sm:$0xff]
      %v3141 = vld [vmem:[%s3138 + $0x10] sm:$0xff]
      %v3142 = vld [vmem:[%s3138 + $0x18] sm:$0xff]
      %3143 = vrot.lane.b32.xlu0 %v275, 112
      %v3144 = vpop.permute.xlu0 %3143
      %3145 = vrot.lane.b32.xlu0 %v276, 112
      %v3146 = vpop.permute.xlu0 %3145
      %3147 = vrot.lane.b32.xlu0 %v275, 80
      %v3148 = vpop.permute.xlu0 %3147
      %3149 = vrot.lane.b32.xlu0 %v276, 80
      %v3150 = vpop.permute.xlu0 %3149
      %v3152 = vsel %vm281, %v3144, 0
      %v3155 = vsel %vm281, %v3146, 0
      %v3158 = vsel %vm281, %v3148, 0
      %v3161 = vsel %vm281, %v3150, 0
      %3163 = vmatprep.subr.bf16.mxu0 0
      %3164 = vmatpush1.bf16.xpose.msra.mxu0 0
      %3165 = vmatprep.subr.bf16.mxu0 0
      %3166 = vmatpush1.bf16.xpose.msra.mxu0 0
      %3167 = vmatprep.subr.bf16.mxu0 0
      %3168 = vmatpush1.bf16.xpose.msra.mxu0 0
      %3169 = vmatprep.subr.bf16.mxu0 0
      %3170 = vmatpush1.bf16.xpose.msra.mxu0 0
      %3171 = vmatprep.subr.bf16.mxu0 0
      %3172 = vmatpush1.bf16.xpose.msra.mxu0 0
      %3173 = vmatprep.subr.bf16.mxu0 0
      %3174 = vmatpush1.bf16.xpose.msra.mxu0 0
      %3175 = vmatprep.subr.bf16.mxu0 0
      %3176 = vmatpush1.bf16.xpose.msra.mxu0 %v3161
      %3177 = vmatprep.subr.bf16.mxu0 0
      %3178 = vmatpush1.bf16.xpose.msra.mxu0 %v3158
      %3179 = vmatprep.subr.bf16.mxu0 0
      %3180 = vmatpush2.bf16.xpose.msra.mxu0 0
      %3181 = vmatprep.subr.bf16.mxu0 0
      %3182 = vmatpush2.bf16.xpose.msra.mxu0 0
      %3183 = vmatprep.subr.bf16.mxu0 0
      %3184 = vmatpush2.bf16.xpose.msra.mxu0 0
      %3185 = vmatprep.subr.bf16.mxu0 0
      %3186 = vmatpush2.bf16.xpose.msra.mxu0 0
      %3187 = vmatprep.subr.bf16.mxu0 0
      %3188 = vmatpush2.bf16.xpose.msra.mxu0 0
      %3189 = vmatprep.subr.bf16.mxu0 0
      %3190 = vmatpush2.bf16.xpose.msra.mxu0 0
      %3191 = vmatprep.subr.bf16.mxu0 0
      %3192 = vmatpush2.bf16.xpose.msra.mxu0 0
      %3193 = vmatprep.subr.bf16.mxu0 0
      %3194 = vmatpush2.bf16.xpose.msra.mxu0 0
      %3195 = vmatprep.mubr.bf16.mxu0 0
      %3196 = vmatmul.mubr.bf16.gmra.mxu0 %v3152
      %v3197 = vpop.f32.mrf.mxu0
      %v3198 = vadd.f32 %v3139, %v3197
      %v3199 = vpop.f32.mrf.mxu0
      %v3200 = vpop.f32.mrf.mxu0
      %v3201 = vadd.f32 %v3140, %v3200
      %v3202 = vpop.f32.mrf.mxu0
      %3203 = vmatprep.mubr.bf16.mxu0 0
      %3204 = vmatmul.mubr.bf16.gmra.mxu0 %v3155
      %v3205 = vpop.f32.mrf.mxu0
      %v3206 = vadd.f32 %v3141, %v3205
      %v3207 = vpop.f32.mrf.mxu0
      %v3208 = vpop.f32.mrf.mxu0
      %v3209 = vadd.f32 %v3142, %v3208
      %v3210 = vpop.f32.mrf.mxu0
      %3211 = vdwg.mxu0
      %3212 = vrot.lane.b32.xlu0 %v351, 112
      %v3213 = vpop.permute.xlu0 %3212
      %3214 = vrot.lane.b32.xlu0 %v352, 112
      %v3215 = vpop.permute.xlu0 %3214
      %3216 = vrot.lane.b32.xlu0 %v351, 80
      %v3217 = vpop.permute.xlu0 %3216
      %3218 = vrot.lane.b32.xlu0 %v352, 80
      %v3219 = vpop.permute.xlu0 %3218
      %v3221 = vsel %vm281, %v3213, 0
      %v3224 = vsel %vm281, %v3215, 0
      %v3227 = vsel %vm281, %v3217, 0
      %v3230 = vsel %vm281, %v3219, 0
      %3232 = vmatprep.subr.bf16.mxu0 0
      %3233 = vmatpush1.bf16.xpose.msra.mxu0 0
      %3234 = vmatprep.subr.bf16.mxu0 0
      %3235 = vmatpush1.bf16.xpose.msra.mxu0 0
      %3236 = vmatprep.subr.bf16.mxu0 0
      %3237 = vmatpush1.bf16.xpose.msra.mxu0 0
      %3238 = vmatprep.subr.bf16.mxu0 0
      %3239 = vmatpush1.bf16.xpose.msra.mxu0 0
      %3240 = vmatprep.subr.bf16.mxu0 0
      %3241 = vmatpush1.bf16.xpose.msra.mxu0 0
      %3242 = vmatprep.subr.bf16.mxu0 0
      %3243 = vmatpush1.bf16.xpose.msra.mxu0 0
      %3244 = vmatprep.subr.bf16.mxu0 0
      %3245 = vmatpush1.bf16.xpose.msra.mxu0 %v3230
      %3246 = vmatprep.subr.bf16.mxu0 0
      %3247 = vmatpush1.bf16.xpose.msra.mxu0 %v3227
      %3248 = vmatprep.subr.bf16.mxu0 0
      %3249 = vmatpush2.bf16.xpose.msra.mxu0 0
      %3250 = vmatprep.subr.bf16.mxu0 0
      %3251 = vmatpush2.bf16.xpose.msra.mxu0 0
      %3252 = vmatprep.subr.bf16.mxu0 0
      %3253 = vmatpush2.bf16.xpose.msra.mxu0 0
      %3254 = vmatprep.subr.bf16.mxu0 0
      %3255 = vmatpush2.bf16.xpose.msra.mxu0 0
      %3256 = vmatprep.subr.bf16.mxu0 0
      %3257 = vmatpush2.bf16.xpose.msra.mxu0 0
      %3258 = vmatprep.subr.bf16.mxu0 0
      %3259 = vmatpush2.bf16.xpose.msra.mxu0 0
      %3260 = vmatprep.subr.bf16.mxu0 0
      %3261 = vmatpush2.bf16.xpose.msra.mxu0 0
      %3262 = vmatprep.subr.bf16.mxu0 0
      %3263 = vmatpush2.bf16.xpose.msra.mxu0 0
      %3264 = vmatprep.mubr.bf16.mxu0 0
      %3265 = vmatmul.mubr.bf16.gmra.mxu0 %v3221
      %v3266 = vpop.f32.mrf.mxu0
      %v3267 = vadd.f32 %v3139, %v3266
      %v3268 = vpop.f32.mrf.mxu0
      %v3269 = vpop.f32.mrf.mxu0
      %v3270 = vadd.f32 %v3140, %v3269
      %v3271 = vpop.f32.mrf.mxu0
      %3272 = vmatprep.mubr.bf16.mxu0 0
      %3273 = vmatmul.mubr.bf16.gmra.mxu0 %v3224
      %v3274 = vpop.f32.mrf.mxu0
      %v3275 = vadd.f32 %v3141, %v3274
      %v3276 = vpop.f32.mrf.mxu0
      %v3277 = vpop.f32.mrf.mxu0
      %v3278 = vadd.f32 %v3142, %v3277
      %v3279 = vpop.f32.mrf.mxu0
      %3280 = vdwg.mxu0
      %3281 = vrot.lane.b32.xlu0 %v426, 112
      %v3282 = vpop.permute.xlu0 %3281
      %3283 = vrot.lane.b32.xlu0 %v427, 112
      %v3284 = vpop.permute.xlu0 %3283
      %3285 = vrot.lane.b32.xlu0 %v426, 80
      %v3286 = vpop.permute.xlu0 %3285
      %3287 = vrot.lane.b32.xlu0 %v427, 80
      %v3288 = vpop.permute.xlu0 %3287
      %v3290 = vsel %vm281, %v3282, 0
      %v3293 = vsel %vm281, %v3284, 0
      %v3296 = vsel %vm281, %v3286, 0
      %v3299 = vsel %vm281, %v3288, 0
      %3301 = vmatprep.subr.bf16.mxu0 0
      %3302 = vmatpush1.bf16.xpose.msra.mxu0 0
      %3303 = vmatprep.subr.bf16.mxu0 0
      %3304 = vmatpush1.bf16.xpose.msra.mxu0 0
      %3305 = vmatprep.subr.bf16.mxu0 0
      %3306 = vmatpush1.bf16.xpose.msra.mxu0 0
      %3307 = vmatprep.subr.bf16.mxu0 0
      %3308 = vmatpush1.bf16.xpose.msra.mxu0 0
      %3309 = vmatprep.subr.bf16.mxu0 0
      %3310 = vmatpush1.bf16.xpose.msra.mxu0 0
      %3311 = vmatprep.subr.bf16.mxu0 0
      %3312 = vmatpush1.bf16.xpose.msra.mxu0 0
      %3313 = vmatprep.subr.bf16.mxu0 0
      %3314 = vmatpush1.bf16.xpose.msra.mxu0 %v3299
      %3315 = vmatprep.subr.bf16.mxu0 0
      %3316 = vmatpush1.bf16.xpose.msra.mxu0 %v3296
      %3317 = vmatprep.subr.bf16.mxu0 0
      %3318 = vmatpush2.bf16.xpose.msra.mxu0 0
      %3319 = vmatprep.subr.bf16.mxu0 0
      %3320 = vmatpush2.bf16.xpose.msra.mxu0 0
      %3321 = vmatprep.subr.bf16.mxu0 0
      %3322 = vmatpush2.bf16.xpose.msra.mxu0 0
      %3323 = vmatprep.subr.bf16.mxu0 0
      %3324 = vmatpush2.bf16.xpose.msra.mxu0 0
      %3325 = vmatprep.subr.bf16.mxu0 0
      %3326 = vmatpush2.bf16.xpose.msra.mxu0 0
      %3327 = vmatprep.subr.bf16.mxu0 0
      %3328 = vmatpush2.bf16.xpose.msra.mxu0 0
      %3329 = vmatprep.subr.bf16.mxu0 0
      %3330 = vmatpush2.bf16.xpose.msra.mxu0 0
      %3331 = vmatprep.subr.bf16.mxu0 0
      %3332 = vmatpush2.bf16.xpose.msra.mxu0 0
      %3333 = vmatprep.mubr.bf16.mxu0 0
      %3334 = vmatmul.mubr.bf16.gmra.mxu0 %v3290
      %v3335 = vpop.f32.mrf.mxu0
      %v3336 = vadd.f32 %v3139, %v3335
      %v3337 = vpop.f32.mrf.mxu0
      %v3338 = vpop.f32.mrf.mxu0
      %v3339 = vadd.f32 %v3140, %v3338
      %v3340 = vpop.f32.mrf.mxu0
      %3341 = vmatprep.mubr.bf16.mxu0 0
      %3342 = vmatmul.mubr.bf16.gmra.mxu0 %v3293
      %v3343 = vpop.f32.mrf.mxu0
      %v3344 = vadd.f32 %v3141, %v3343
      %v3345 = vpop.f32.mrf.mxu0
      %v3346 = vpop.f32.mrf.mxu0
      %v3347 = vadd.f32 %v3142, %v3346
      %v3348 = vpop.f32.mrf.mxu0
      %3349 = vdwg.mxu0
      %3350 = vrot.lane.b32.xlu0 %v501, 112
      %v3351 = vpop.permute.xlu0 %3350
      %3352 = vrot.lane.b32.xlu0 %v502, 112
      %v3353 = vpop.permute.xlu0 %3352
      %3354 = vrot.lane.b32.xlu0 %v501, 80
      %v3355 = vpop.permute.xlu0 %3354
      %3356 = vrot.lane.b32.xlu0 %v502, 80
      %v3357 = vpop.permute.xlu0 %3356
      %v3359 = vsel %vm281, %v3351, 0
      %v3362 = vsel %vm281, %v3353, 0
      %v3365 = vsel %vm281, %v3355, 0
      %v3368 = vsel %vm281, %v3357, 0
      %3370 = vmatprep.subr.bf16.mxu0 0
      %3371 = vmatpush1.bf16.xpose.msra.mxu0 0
      %3372 = vmatprep.subr.bf16.mxu0 0
      %3373 = vmatpush1.bf16.xpose.msra.mxu0 0
      %3374 = vmatprep.subr.bf16.mxu0 0
      %3375 = vmatpush1.bf16.xpose.msra.mxu0 0
      %3376 = vmatprep.subr.bf16.mxu0 0
      %3377 = vmatpush1.bf16.xpose.msra.mxu0 0
      %3378 = vmatprep.subr.bf16.mxu0 0
      %3379 = vmatpush1.bf16.xpose.msra.mxu0 0
      %3380 = vmatprep.subr.bf16.mxu0 0
      %3381 = vmatpush1.bf16.xpose.msra.mxu0 0
      %3382 = vmatprep.subr.bf16.mxu0 0
      %3383 = vmatpush1.bf16.xpose.msra.mxu0 %v3368
      %3384 = vmatprep.subr.bf16.mxu0 0
      %3385 = vmatpush1.bf16.xpose.msra.mxu0 %v3365
      %3386 = vmatprep.subr.bf16.mxu0 0
      %3387 = vmatpush2.bf16.xpose.msra.mxu0 0
      %3388 = vmatprep.subr.bf16.mxu0 0
      %3389 = vmatpush2.bf16.xpose.msra.mxu0 0
      %3390 = vmatprep.subr.bf16.mxu0 0
      %3391 = vmatpush2.bf16.xpose.msra.mxu0 0
      %3392 = vmatprep.subr.bf16.mxu0 0
      %3393 = vmatpush2.bf16.xpose.msra.mxu0 0
      %3394 = vmatprep.subr.bf16.mxu0 0
      %3395 = vmatpush2.bf16.xpose.msra.mxu0 0
      %3396 = vmatprep.subr.bf16.mxu0 0
      %3397 = vmatpush2.bf16.xpose.msra.mxu0 0
      %3398 = vmatprep.subr.bf16.mxu0 0
      %3399 = vmatpush2.bf16.xpose.msra.mxu0 0
      %3400 = vmatprep.subr.bf16.mxu0 0
      %3401 = vmatpush2.bf16.xpose.msra.mxu0 0
      %3402 = vmatprep.mubr.bf16.mxu0 0
      %3403 = vmatmul.mubr.bf16.gmra.mxu0 %v3359
      %v3404 = vpop.f32.mrf.mxu0
      %v3405 = vadd.f32 %v3139, %v3404
      %v3406 = vpop.f32.mrf.mxu0
      %v3407 = vpop.f32.mrf.mxu0
      %v3408 = vadd.f32 %v3140, %v3407
      %v3409 = vpop.f32.mrf.mxu0
      %3410 = vmatprep.mubr.bf16.mxu0 0
      %3411 = vmatmul.mubr.bf16.gmra.mxu0 %v3362
      %v3412 = vpop.f32.mrf.mxu0
      %v3413 = vadd.f32 %v3141, %v3412
      %v3414 = vpop.f32.mrf.mxu0
      %v3415 = vpop.f32.mrf.mxu0
      %v3416 = vadd.f32 %v3142, %v3415
      %v3417 = vpop.f32.mrf.mxu0
      %3418 = vdwg.mxu0
      %3419 = vrot.lane.b32.xlu0 %v576, 112
      %v3420 = vpop.permute.xlu0 %3419
      %3421 = vrot.lane.b32.xlu0 %v577, 112
      %v3422 = vpop.permute.xlu0 %3421
      %3423 = vrot.lane.b32.xlu0 %v576, 80
      %v3424 = vpop.permute.xlu0 %3423
      %3425 = vrot.lane.b32.xlu0 %v577, 80
      %v3426 = vpop.permute.xlu0 %3425
      %v3428 = vsel %vm281, %v3420, 0
      %v3431 = vsel %vm281, %v3422, 0
      %v3434 = vsel %vm281, %v3424, 0
      %v3437 = vsel %vm281, %v3426, 0
      %3439 = vmatprep.subr.bf16.mxu0 0
      %3440 = vmatpush1.bf16.xpose.msra.mxu0 0
      %3441 = vmatprep.subr.bf16.mxu0 0
      %3442 = vmatpush1.bf16.xpose.msra.mxu0 0
      %3443 = vmatprep.subr.bf16.mxu0 0
      %3444 = vmatpush1.bf16.xpose.msra.mxu0 0
      %3445 = vmatprep.subr.bf16.mxu0 0
      %3446 = vmatpush1.bf16.xpose.msra.mxu0 0
      %3447 = vmatprep.subr.bf16.mxu0 0
      %3448 = vmatpush1.bf16.xpose.msra.mxu0 0
      %3449 = vmatprep.subr.bf16.mxu0 0
      %3450 = vmatpush1.bf16.xpose.msra.mxu0 0
      %3451 = vmatprep.subr.bf16.mxu0 0
      %3452 = vmatpush1.bf16.xpose.msra.mxu0 %v3437
      %3453 = vmatprep.subr.bf16.mxu0 0
      %3454 = vmatpush1.bf16.xpose.msra.mxu0 %v3434
      %3455 = vmatprep.subr.bf16.mxu0 0
      %3456 = vmatpush2.bf16.xpose.msra.mxu0 0
      %3457 = vmatprep.subr.bf16.mxu0 0
      %3458 = vmatpush2.bf16.xpose.msra.mxu0 0
      %3459 = vmatprep.subr.bf16.mxu0 0
      %3460 = vmatpush2.bf16.xpose.msra.mxu0 0
      %3461 = vmatprep.subr.bf16.mxu0 0
      %3462 = vmatpush2.bf16.xpose.msra.mxu0 0
      %3463 = vmatprep.subr.bf16.mxu0 0
      %3464 = vmatpush2.bf16.xpose.msra.mxu0 0
      %3465 = vmatprep.subr.bf16.mxu0 0
      %3466 = vmatpush2.bf16.xpose.msra.mxu0 0
      %3467 = vmatprep.subr.bf16.mxu0 0
      %3468 = vmatpush2.bf16.xpose.msra.mxu0 0
      %3469 = vmatprep.subr.bf16.mxu0 0
      %3470 = vmatpush2.bf16.xpose.msra.mxu0 0
      %3471 = vmatprep.mubr.bf16.mxu0 0
      %3472 = vmatmul.mubr.bf16.gmra.mxu0 %v3428
      %v3473 = vpop.f32.mrf.mxu0
      %v3474 = vadd.f32 %v3139, %v3473
      %v3475 = vpop.f32.mrf.mxu0
      %v3476 = vpop.f32.mrf.mxu0
      %v3477 = vadd.f32 %v3140, %v3476
      %v3478 = vpop.f32.mrf.mxu0
      %3479 = vmatprep.mubr.bf16.mxu0 0
      %3480 = vmatmul.mubr.bf16.gmra.mxu0 %v3431
      %v3481 = vpop.f32.mrf.mxu0
      %v3482 = vadd.f32 %v3141, %v3481
      %v3483 = vpop.f32.mrf.mxu0
      %v3484 = vpop.f32.mrf.mxu0
      %v3485 = vadd.f32 %v3142, %v3484
      %v3486 = vpop.f32.mrf.mxu0
      %3487 = vdwg.mxu0
      %3488 = vrot.lane.b32.xlu0 %v651, 112
      %v3489 = vpop.permute.xlu0 %3488
      %3490 = vrot.lane.b32.xlu0 %v652, 112
      %v3491 = vpop.permute.xlu0 %3490
      %3492 = vrot.lane.b32.xlu0 %v651, 80
      %v3493 = vpop.permute.xlu0 %3492
      %3494 = vrot.lane.b32.xlu0 %v652, 80
      %v3495 = vpop.permute.xlu0 %3494
      %v3497 = vsel %vm281, %v3489, 0
      %v3500 = vsel %vm281, %v3491, 0
      %v3503 = vsel %vm281, %v3493, 0
      %v3506 = vsel %vm281, %v3495, 0
      %3508 = vmatprep.subr.bf16.mxu0 0
      %3509 = vmatpush1.bf16.xpose.msra.mxu0 0
      %3510 = vmatprep.subr.bf16.mxu0 0
      %3511 = vmatpush1.bf16.xpose.msra.mxu0 0
      %3512 = vmatprep.subr.bf16.mxu0 0
      %3513 = vmatpush1.bf16.xpose.msra.mxu0 0
      %3514 = vmatprep.subr.bf16.mxu0 0
      %3515 = vmatpush1.bf16.xpose.msra.mxu0 0
      %3516 = vmatprep.subr.bf16.mxu0 0
      %3517 = vmatpush1.bf16.xpose.msra.mxu0 0
      %3518 = vmatprep.subr.bf16.mxu0 0
      %3519 = vmatpush1.bf16.xpose.msra.mxu0 0
      %3520 = vmatprep.subr.bf16.mxu0 0
      %3521 = vmatpush1.bf16.xpose.msra.mxu0 %v3506
      %3522 = vmatprep.subr.bf16.mxu0 0
      %3523 = vmatpush1.bf16.xpose.msra.mxu0 %v3503
      %3524 = vmatprep.subr.bf16.mxu0 0
      %3525 = vmatpush2.bf16.xpose.msra.mxu0 0
      %3526 = vmatprep.subr.bf16.mxu0 0
      %3527 = vmatpush2.bf16.xpose.msra.mxu0 0
      %3528 = vmatprep.subr.bf16.mxu0 0
      %3529 = vmatpush2.bf16.xpose.msra.mxu0 0
      %3530 = vmatprep.subr.bf16.mxu0 0
      %3531 = vmatpush2.bf16.xpose.msra.mxu0 0
      %3532 = vmatprep.subr.bf16.mxu0 0
      %3533 = vmatpush2.bf16.xpose.msra.mxu0 0
      %3534 = vmatprep.subr.bf16.mxu0 0
      %3535 = vmatpush2.bf16.xpose.msra.mxu0 0
      %3536 = vmatprep.subr.bf16.mxu0 0
      %3537 = vmatpush2.bf16.xpose.msra.mxu0 0
      %3538 = vmatprep.subr.bf16.mxu0 0
      %3539 = vmatpush2.bf16.xpose.msra.mxu0 0
      %3540 = vmatprep.mubr.bf16.mxu0 0
      %3541 = vmatmul.mubr.bf16.gmra.mxu0 %v3497
      %v3542 = vpop.f32.mrf.mxu0
      %v3543 = vadd.f32 %v3139, %v3542
      %v3544 = vpop.f32.mrf.mxu0
      %v3545 = vpop.f32.mrf.mxu0
      %v3546 = vadd.f32 %v3140, %v3545
      %v3547 = vpop.f32.mrf.mxu0
      %3548 = vmatprep.mubr.bf16.mxu0 0
      %3549 = vmatmul.mubr.bf16.gmra.mxu0 %v3500
      %v3550 = vpop.f32.mrf.mxu0
      %v3551 = vadd.f32 %v3141, %v3550
      %v3552 = vpop.f32.mrf.mxu0
      %v3553 = vpop.f32.mrf.mxu0
      %v3554 = vadd.f32 %v3142, %v3553
      %v3555 = vpop.f32.mrf.mxu0
      %3556 = vdwg.mxu0
      %3557 = vrot.lane.b32.xlu0 %v726, 112
      %v3558 = vpop.permute.xlu0 %3557
      %3559 = vrot.lane.b32.xlu0 %v727, 112
      %v3560 = vpop.permute.xlu0 %3559
      %3561 = vrot.lane.b32.xlu0 %v726, 80
      %v3562 = vpop.permute.xlu0 %3561
      %3563 = vrot.lane.b32.xlu0 %v727, 80
      %v3564 = vpop.permute.xlu0 %3563
      %v3566 = vsel %vm281, %v3558, 0
      %v3569 = vsel %vm281, %v3560, 0
      %v3572 = vsel %vm281, %v3562, 0
      %v3575 = vsel %vm281, %v3564, 0
      %3577 = vmatprep.subr.bf16.mxu0 0
      %3578 = vmatpush1.bf16.xpose.msra.mxu0 0
      %3579 = vmatprep.subr.bf16.mxu0 0
      %3580 = vmatpush1.bf16.xpose.msra.mxu0 0
      %3581 = vmatprep.subr.bf16.mxu0 0
      %3582 = vmatpush1.bf16.xpose.msra.mxu0 0
      %3583 = vmatprep.subr.bf16.mxu0 0
      %3584 = vmatpush1.bf16.xpose.msra.mxu0 0
      %3585 = vmatprep.subr.bf16.mxu0 0
      %3586 = vmatpush1.bf16.xpose.msra.mxu0 0
      %3587 = vmatprep.subr.bf16.mxu0 0
      %3588 = vmatpush1.bf16.xpose.msra.mxu0 0
      %3589 = vmatprep.subr.bf16.mxu0 0
      %3590 = vmatpush1.bf16.xpose.msra.mxu0 %v3575
      %3591 = vmatprep.subr.bf16.mxu0 0
      %3592 = vmatpush1.bf16.xpose.msra.mxu0 %v3572
      %3593 = vmatprep.subr.bf16.mxu0 0
      %3594 = vmatpush2.bf16.xpose.msra.mxu0 0
      %3595 = vmatprep.subr.bf16.mxu0 0
      %3596 = vmatpush2.bf16.xpose.msra.mxu0 0
      %3597 = vmatprep.subr.bf16.mxu0 0
      %3598 = vmatpush2.bf16.xpose.msra.mxu0 0
      %3599 = vmatprep.subr.bf16.mxu0 0
      %3600 = vmatpush2.bf16.xpose.msra.mxu0 0
      %3601 = vmatprep.subr.bf16.mxu0 0
      %3602 = vmatpush2.bf16.xpose.msra.mxu0 0
      %3603 = vmatprep.subr.bf16.mxu0 0
      %3604 = vmatpush2.bf16.xpose.msra.mxu0 0
      %3605 = vmatprep.subr.bf16.mxu0 0
      %3606 = vmatpush2.bf16.xpose.msra.mxu0 0
      %3607 = vmatprep.subr.bf16.mxu0 0
      %3608 = vmatpush2.bf16.xpose.msra.mxu0 0
      %3609 = vmatprep.mubr.bf16.mxu0 0
      %3610 = vmatmul.mubr.bf16.gmra.mxu0 %v3566
      %v3611 = vpop.f32.mrf.mxu0
      %v3612 = vadd.f32 %v3139, %v3611
      %v3613 = vpop.f32.mrf.mxu0
      %v3614 = vpop.f32.mrf.mxu0
      %v3615 = vadd.f32 %v3140, %v3614
      %v3616 = vpop.f32.mrf.mxu0
      %3617 = vmatprep.mubr.bf16.mxu0 0
      %3618 = vmatmul.mubr.bf16.gmra.mxu0 %v3569
      %v3619 = vpop.f32.mrf.mxu0
      %v3620 = vadd.f32 %v3141, %v3619
      %v3621 = vpop.f32.mrf.mxu0
      %v3622 = vpop.f32.mrf.mxu0
      %v3623 = vadd.f32 %v3142, %v3622
      %v3624 = vpop.f32.mrf.mxu0
      %3625 = vdwg.mxu0
      %3626 = vrot.lane.b32.xlu0 %v801, 112
      %v3627 = vpop.permute.xlu0 %3626
      %3628 = vrot.lane.b32.xlu0 %v802, 112
      %v3629 = vpop.permute.xlu0 %3628
      %3630 = vrot.lane.b32.xlu0 %v801, 80
      %v3631 = vpop.permute.xlu0 %3630
      %3632 = vrot.lane.b32.xlu0 %v802, 80
      %v3633 = vpop.permute.xlu0 %3632
      %v3635 = vsel %vm281, %v3627, 0
      %v3638 = vsel %vm281, %v3629, 0
      %v3641 = vsel %vm281, %v3631, 0
      %v3644 = vsel %vm281, %v3633, 0
      %3646 = vmatprep.subr.bf16.mxu0 0
      %3647 = vmatpush1.bf16.xpose.msra.mxu0 0
      %3648 = vmatprep.subr.bf16.mxu0 0
      %3649 = vmatpush1.bf16.xpose.msra.mxu0 0
      %3650 = vmatprep.subr.bf16.mxu0 0
      %3651 = vmatpush1.bf16.xpose.msra.mxu0 0
      %3652 = vmatprep.subr.bf16.mxu0 0
      %3653 = vmatpush1.bf16.xpose.msra.mxu0 0
      %3654 = vmatprep.subr.bf16.mxu0 0
      %3655 = vmatpush1.bf16.xpose.msra.mxu0 0
      %3656 = vmatprep.subr.bf16.mxu0 0
      %3657 = vmatpush1.bf16.xpose.msra.mxu0 0
      %3658 = vmatprep.subr.bf16.mxu0 0
      %3659 = vmatpush1.bf16.xpose.msra.mxu0 %v3644
      %3660 = vmatprep.subr.bf16.mxu0 0
      %3661 = vmatpush1.bf16.xpose.msra.mxu0 %v3641
      %3662 = vmatprep.subr.bf16.mxu0 0
      %3663 = vmatpush2.bf16.xpose.msra.mxu0 0
      %3664 = vmatprep.subr.bf16.mxu0 0
      %3665 = vmatpush2.bf16.xpose.msra.mxu0 0
      %3666 = vmatprep.subr.bf16.mxu0 0
      %3667 = vmatpush2.bf16.xpose.msra.mxu0 0
      %3668 = vmatprep.subr.bf16.mxu0 0
      %3669 = vmatpush2.bf16.xpose.msra.mxu0 0
      %3670 = vmatprep.subr.bf16.mxu0 0
      %3671 = vmatpush2.bf16.xpose.msra.mxu0 0
      %3672 = vmatprep.subr.bf16.mxu0 0
      %3673 = vmatpush2.bf16.xpose.msra.mxu0 0
      %3674 = vmatprep.subr.bf16.mxu0 0
      %3675 = vmatpush2.bf16.xpose.msra.mxu0 0
      %3676 = vmatprep.subr.bf16.mxu0 0
      %3677 = vmatpush2.bf16.xpose.msra.mxu0 0
      %3678 = vmatprep.mubr.bf16.mxu0 0
      %3679 = vmatmul.mubr.bf16.gmra.mxu0 %v3635
      %v3680 = vpop.f32.mrf.mxu0
      %v3681 = vadd.f32 %v3139, %v3680
      %v3682 = vpop.f32.mrf.mxu0
      %v3683 = vpop.f32.mrf.mxu0
      %v3684 = vadd.f32 %v3140, %v3683
      %v3685 = vpop.f32.mrf.mxu0
      %3686 = vmatprep.mubr.bf16.mxu0 0
      %3687 = vmatmul.mubr.bf16.gmra.mxu0 %v3638
      %v3688 = vpop.f32.mrf.mxu0
      %v3689 = vadd.f32 %v3141, %v3688
      %v3690 = vpop.f32.mrf.mxu0
      %v3691 = vpop.f32.mrf.mxu0
      %v3692 = vadd.f32 %v3142, %v3691
      %v3693 = vpop.f32.mrf.mxu0
      %3694 = vdwg.mxu0
      %v3695 = vsel %vm868, %v3198, -inf
      %3696 = vmax.xlane.f32.xlu0 %v3695
      %v3697 = vpop.xlane.xlu0 %3696
      %v3698 = vsel %vm868, %v3201, -inf
      %3699 = vmax.xlane.f32.xlu0 %v3698
      %v3700 = vpop.xlane.xlu0 %3699
      %v3701 = vsel %vm868, %v3206, -inf
      %3702 = vmax.xlane.f32.xlu0 %v3701
      %v3703 = vpop.xlane.xlu0 %3702
      %v3704 = vsel %vm868, %v3209, -inf
      %3705 = vmax.xlane.f32.xlu0 %v3704
      %v3706 = vpop.xlane.xlu0 %3705
      %v3707 = vsel %vm868, %v3267, -inf
      %3708 = vmax.xlane.f32.xlu0 %v3707
      %v3709 = vpop.xlane.xlu0 %3708
      %v3710 = vsel %vm868, %v3270, -inf
      %3711 = vmax.xlane.f32.xlu0 %v3710
      %v3712 = vpop.xlane.xlu0 %3711
      %v3713 = vsel %vm868, %v3275, -inf
      %3714 = vmax.xlane.f32.xlu0 %v3713
      %v3715 = vpop.xlane.xlu0 %3714
      %v3716 = vsel %vm868, %v3278, -inf
      %3717 = vmax.xlane.f32.xlu0 %v3716
      %v3718 = vpop.xlane.xlu0 %3717
      %v3719 = vsel %vm868, %v3336, -inf
      %3720 = vmax.xlane.f32.xlu0 %v3719
      %v3721 = vpop.xlane.xlu0 %3720
      %v3722 = vsel %vm868, %v3339, -inf
      %3723 = vmax.xlane.f32.xlu0 %v3722
      %v3724 = vpop.xlane.xlu0 %3723
      %v3725 = vsel %vm868, %v3344, -inf
      %3726 = vmax.xlane.f32.xlu0 %v3725
      %v3727 = vpop.xlane.xlu0 %3726
      %v3728 = vsel %vm868, %v3347, -inf
      %3729 = vmax.xlane.f32.xlu0 %v3728
      %v3730 = vpop.xlane.xlu0 %3729
      %v3731 = vsel %vm868, %v3405, -inf
      %3732 = vmax.xlane.f32.xlu0 %v3731
      %v3733 = vpop.xlane.xlu0 %3732
      %v3734 = vsel %vm868, %v3408, -inf
      %3735 = vmax.xlane.f32.xlu0 %v3734
      %v3736 = vpop.xlane.xlu0 %3735
      %v3737 = vsel %vm868, %v3413, -inf
      %3738 = vmax.xlane.f32.xlu0 %v3737
      %v3739 = vpop.xlane.xlu0 %3738
      %v3740 = vsel %vm868, %v3416, -inf
      %3741 = vmax.xlane.f32.xlu0 %v3740
      %v3742 = vpop.xlane.xlu0 %3741
      %v3743 = vsel %vm868, %v3474, -inf
      %3744 = vmax.xlane.f32.xlu0 %v3743
      %v3745 = vpop.xlane.xlu0 %3744
      %v3746 = vsel %vm868, %v3477, -inf
      %3747 = vmax.xlane.f32.xlu0 %v3746
      %v3748 = vpop.xlane.xlu0 %3747
      %v3749 = vsel %vm868, %v3482, -inf
      %3750 = vmax.xlane.f32.xlu0 %v3749
      %v3751 = vpop.xlane.xlu0 %3750
      %v3752 = vsel %vm868, %v3485, -inf
      %3753 = vmax.xlane.f32.xlu0 %v3752
      %v3754 = vpop.xlane.xlu0 %3753
      %v3755 = vsel %vm868, %v3543, -inf
      %3756 = vmax.xlane.f32.xlu0 %v3755
      %v3757 = vpop.xlane.xlu0 %3756
      %v3758 = vsel %vm868, %v3546, -inf
      %3759 = vmax.xlane.f32.xlu0 %v3758
      %v3760 = vpop.xlane.xlu0 %3759
      %v3761 = vsel %vm868, %v3551, -inf
      %3762 = vmax.xlane.f32.xlu0 %v3761
      %v3763 = vpop.xlane.xlu0 %3762
      %v3764 = vsel %vm868, %v3554, -inf
      %3765 = vmax.xlane.f32.xlu0 %v3764
      %v3766 = vpop.xlane.xlu0 %3765
      %v3767 = vsel %vm868, %v3612, -inf
      %3768 = vmax.xlane.f32.xlu0 %v3767
      %v3769 = vpop.xlane.xlu0 %3768
      %v3770 = vsel %vm868, %v3615, -inf
      %3771 = vmax.xlane.f32.xlu0 %v3770
      %v3772 = vpop.xlane.xlu0 %3771
      %v3773 = vsel %vm868, %v3620, -inf
      %3774 = vmax.xlane.f32.xlu0 %v3773
      %v3775 = vpop.xlane.xlu0 %3774
      %v3776 = vsel %vm868, %v3623, -inf
      %3777 = vmax.xlane.f32.xlu0 %v3776
      %v3778 = vpop.xlane.xlu0 %3777
      %v3779 = vsel %vm868, %v3681, -inf
      %3780 = vmax.xlane.f32.xlu0 %v3779
      %v3781 = vpop.xlane.xlu0 %3780
      %v3782 = vsel %vm868, %v3684, -inf
      %3783 = vmax.xlane.f32.xlu0 %v3782
      %v3784 = vpop.xlane.xlu0 %3783
      %v3785 = vsel %vm868, %v3689, -inf
      %3786 = vmax.xlane.f32.xlu0 %v3785
      %v3787 = vpop.xlane.xlu0 %3786
      %v3788 = vsel %vm868, %v3692, -inf
      %3789 = vmax.xlane.f32.xlu0 %v3788
      %v3790 = vpop.xlane.xlu0 %3789
      %v3791 = vsub.f32 %v3198, %v3697
      %v3792 = vsub.f32 %v3201, %v3700
      %v3793 = vsub.f32 %v3206, %v3703
      %v3794 = vsub.f32 %v3209, %v3706
      %v3795 = vsub.f32 %v3267, %v3709
      %v3796 = vsub.f32 %v3270, %v3712
      %v3797 = vsub.f32 %v3275, %v3715
      %v3798 = vsub.f32 %v3278, %v3718
      %v3799 = vsub.f32 %v3336, %v3721
      %v3800 = vsub.f32 %v3339, %v3724
      %v3801 = vsub.f32 %v3344, %v3727
      %v3802 = vsub.f32 %v3347, %v3730
      %v3803 = vsub.f32 %v3405, %v3733
      %v3804 = vsub.f32 %v3408, %v3736
      %v3805 = vsub.f32 %v3413, %v3739
      %v3806 = vsub.f32 %v3416, %v3742
      %v3807 = vsub.f32 %v3474, %v3745
      %v3808 = vsub.f32 %v3477, %v3748
      %v3809 = vsub.f32 %v3482, %v3751
      %v3810 = vsub.f32 %v3485, %v3754
      %v3811 = vsub.f32 %v3543, %v3757
      %v3812 = vsub.f32 %v3546, %v3760
      %v3813 = vsub.f32 %v3551, %v3763
      %v3814 = vsub.f32 %v3554, %v3766
      %v3815 = vsub.f32 %v3612, %v3769
      %v3816 = vsub.f32 %v3615, %v3772
      %v3817 = vsub.f32 %v3620, %v3775
      %v3818 = vsub.f32 %v3623, %v3778
      %v3819 = vsub.f32 %v3681, %v3781
      %v3820 = vsub.f32 %v3684, %v3784
      %v3821 = vsub.f32 %v3689, %v3787
      %v3822 = vsub.f32 %v3692, %v3790
      %v3823 = vmul.f32 %v3791, 1.442695
      %v3824 = vpow.pop %v3823
      %v3825 = vmul.f32 %v3792, 1.442695
      %v3826 = vpow.pop %v3825
      %v3827 = vmul.f32 %v3793, 1.442695
      %v3828 = vpow.pop %v3827
      %v3829 = vmul.f32 %v3794, 1.442695
      %v3830 = vpow.pop %v3829
      %v3831 = vmul.f32 %v3795, 1.442695
      %v3832 = vpow.pop %v3831
      %v3833 = vmul.f32 %v3796, 1.442695
      %v3834 = vpow.pop %v3833
      %v3835 = vmul.f32 %v3797, 1.442695
      %v3836 = vpow.pop %v3835
      %v3837 = vmul.f32 %v3798, 1.442695
      %v3838 = vpow.pop %v3837
      %v3839 = vmul.f32 %v3799, 1.442695
      %v3840 = vpow.pop %v3839
      %v3841 = vmul.f32 %v3800, 1.442695
      %v3842 = vpow.pop %v3841
      %v3843 = vmul.f32 %v3801, 1.442695
      %v3844 = vpow.pop %v3843
      %v3845 = vmul.f32 %v3802, 1.442695
      %v3846 = vpow.pop %v3845
      %v3847 = vmul.f32 %v3803, 1.442695
      %v3848 = vpow.pop %v3847
      %v3849 = vmul.f32 %v3804, 1.442695
      %v3850 = vpow.pop %v3849
      %v3851 = vmul.f32 %v3805, 1.442695
      %v3852 = vpow.pop %v3851
      %v3853 = vmul.f32 %v3806, 1.442695
      %v3854 = vpow.pop %v3853
      %v3855 = vmul.f32 %v3807, 1.442695
      %v3856 = vpow.pop %v3855
      %v3857 = vmul.f32 %v3808, 1.442695
      %v3858 = vpow.pop %v3857
      %v3859 = vmul.f32 %v3809, 1.442695
      %v3860 = vpow.pop %v3859
      %v3861 = vmul.f32 %v3810, 1.442695
      %v3862 = vpow.pop %v3861
      %v3863 = vmul.f32 %v3811, 1.442695
      %v3864 = vpow.pop %v3863
      %v3865 = vmul.f32 %v3812, 1.442695
      %v3866 = vpow.pop %v3865
      %v3867 = vmul.f32 %v3813, 1.442695
      %v3868 = vpow.pop %v3867
      %v3869 = vmul.f32 %v3814, 1.442695
      %v3870 = vpow.pop %v3869
      %v3871 = vmul.f32 %v3815, 1.442695
      %v3872 = vpow.pop %v3871
      %v3873 = vmul.f32 %v3816, 1.442695
      %v3874 = vpow.pop %v3873
      %v3875 = vmul.f32 %v3817, 1.442695
      %v3876 = vpow.pop %v3875
      %v3877 = vmul.f32 %v3818, 1.442695
      %v3878 = vpow.pop %v3877
      %v3879 = vmul.f32 %v3819, 1.442695
      %v3880 = vpow.pop %v3879
      %v3881 = vmul.f32 %v3820, 1.442695
      %v3882 = vpow.pop %v3881
      %v3883 = vmul.f32 %v3821, 1.442695
      %v3884 = vpow.pop %v3883
      %v3885 = vmul.f32 %v3822, 1.442695
      %v3886 = vpow.pop %v3885
      %v3887 = vsel %vm868, %v3824, 0.0
      %3888 = vadd.xlane.f32.xlu0 %v3887
      %v3889 = vpop.xlane.xlu0 %3888
      %v3890 = vsel %vm868, %v3826, 0.0
      %3891 = vadd.xlane.f32.xlu0 %v3890
      %v3892 = vpop.xlane.xlu0 %3891
      %v3893 = vsel %vm868, %v3828, 0.0
      %3894 = vadd.xlane.f32.xlu0 %v3893
      %v3895 = vpop.xlane.xlu0 %3894
      %v3896 = vsel %vm868, %v3830, 0.0
      %3897 = vadd.xlane.f32.xlu0 %v3896
      %v3898 = vpop.xlane.xlu0 %3897
      %v3899 = vsel %vm868, %v3832, 0.0
      %3900 = vadd.xlane.f32.xlu0 %v3899
      %v3901 = vpop.xlane.xlu0 %3900
      %v3902 = vsel %vm868, %v3834, 0.0
      %3903 = vadd.xlane.f32.xlu0 %v3902
      %v3904 = vpop.xlane.xlu0 %3903
      %v3905 = vsel %vm868, %v3836, 0.0
      %3906 = vadd.xlane.f32.xlu0 %v3905
      %v3907 = vpop.xlane.xlu0 %3906
      %v3908 = vsel %vm868, %v3838, 0.0
      %3909 = vadd.xlane.f32.xlu0 %v3908
      %v3910 = vpop.xlane.xlu0 %3909
      %v3911 = vsel %vm868, %v3840, 0.0
      %3912 = vadd.xlane.f32.xlu0 %v3911
      %v3913 = vpop.xlane.xlu0 %3912
      %v3914 = vsel %vm868, %v3842, 0.0
      %3915 = vadd.xlane.f32.xlu0 %v3914
      %v3916 = vpop.xlane.xlu0 %3915
      %v3917 = vsel %vm868, %v3844, 0.0
      %3918 = vadd.xlane.f32.xlu0 %v3917
      %v3919 = vpop.xlane.xlu0 %3918
      %v3920 = vsel %vm868, %v3846, 0.0
      %3921 = vadd.xlane.f32.xlu0 %v3920
      %v3922 = vpop.xlane.xlu0 %3921
      %v3923 = vsel %vm868, %v3848, 0.0
      %3924 = vadd.xlane.f32.xlu0 %v3923
      %v3925 = vpop.xlane.xlu0 %3924
      %v3926 = vsel %vm868, %v3850, 0.0
      %3927 = vadd.xlane.f32.xlu0 %v3926
      %v3928 = vpop.xlane.xlu0 %3927
      %v3929 = vsel %vm868, %v3852, 0.0
      %3930 = vadd.xlane.f32.xlu0 %v3929
      %v3931 = vpop.xlane.xlu0 %3930
      %v3932 = vsel %vm868, %v3854, 0.0
      %3933 = vadd.xlane.f32.xlu0 %v3932
      %v3934 = vpop.xlane.xlu0 %3933
      %v3935 = vsel %vm868, %v3856, 0.0
      %3936 = vadd.xlane.f32.xlu0 %v3935
      %v3937 = vpop.xlane.xlu0 %3936
      %v3938 = vsel %vm868, %v3858, 0.0
      %3939 = vadd.xlane.f32.xlu0 %v3938
      %v3940 = vpop.xlane.xlu0 %3939
      %v3941 = vsel %vm868, %v3860, 0.0
      %3942 = vadd.xlane.f32.xlu0 %v3941
      %v3943 = vpop.xlane.xlu0 %3942
      %v3944 = vsel %vm868, %v3862, 0.0
      %3945 = vadd.xlane.f32.xlu0 %v3944
      %v3946 = vpop.xlane.xlu0 %3945
      %v3947 = vsel %vm868, %v3864, 0.0
      %3948 = vadd.xlane.f32.xlu0 %v3947
      %v3949 = vpop.xlane.xlu0 %3948
      %v3950 = vsel %vm868, %v3866, 0.0
      %3951 = vadd.xlane.f32.xlu0 %v3950
      %v3952 = vpop.xlane.xlu0 %3951
      %v3953 = vsel %vm868, %v3868, 0.0
      %3954 = vadd.xlane.f32.xlu0 %v3953
      %v3955 = vpop.xlane.xlu0 %3954
      %v3956 = vsel %vm868, %v3870, 0.0
      %3957 = vadd.xlane.f32.xlu0 %v3956
      %v3958 = vpop.xlane.xlu0 %3957
      %v3959 = vsel %vm868, %v3872, 0.0
      %3960 = vadd.xlane.f32.xlu0 %v3959
      %v3961 = vpop.xlane.xlu0 %3960
      %v3962 = vsel %vm868, %v3874, 0.0
      %3963 = vadd.xlane.f32.xlu0 %v3962
      %v3964 = vpop.xlane.xlu0 %3963
      %v3965 = vsel %vm868, %v3876, 0.0
      %3966 = vadd.xlane.f32.xlu0 %v3965
      %v3967 = vpop.xlane.xlu0 %3966
      %v3968 = vsel %vm868, %v3878, 0.0
      %3969 = vadd.xlane.f32.xlu0 %v3968
      %v3970 = vpop.xlane.xlu0 %3969
      %v3971 = vsel %vm868, %v3880, 0.0
      %3972 = vadd.xlane.f32.xlu0 %v3971
      %v3973 = vpop.xlane.xlu0 %3972
      %v3974 = vsel %vm868, %v3882, 0.0
      %3975 = vadd.xlane.f32.xlu0 %v3974
      %v3976 = vpop.xlane.xlu0 %3975
      %v3977 = vsel %vm868, %v3884, 0.0
      %3978 = vadd.xlane.f32.xlu0 %v3977
      %v3979 = vpop.xlane.xlu0 %3978
      %v3980 = vsel %vm868, %v3886, 0.0
      %3981 = vadd.xlane.f32.xlu0 %v3980
      %v3982 = vpop.xlane.xlu0 %3981
      %v3983 = vrcp.pop %v3889
      %v3984 = vrcp.pop %v3892
      %v3985 = vrcp.pop %v3895
      %v3986 = vrcp.pop %v3898
      %v3987 = vrcp.pop %v3901
      %v3988 = vrcp.pop %v3904
      %v3989 = vrcp.pop %v3907
      %v3990 = vrcp.pop %v3910
      %v3991 = vrcp.pop %v3913
      %v3992 = vrcp.pop %v3916
      %v3993 = vrcp.pop %v3919
      %v3994 = vrcp.pop %v3922
      %v3995 = vrcp.pop %v3925
      %v3996 = vrcp.pop %v3928
      %v3997 = vrcp.pop %v3931
      %v3998 = vrcp.pop %v3934
      %v3999 = vrcp.pop %v3937
      %v4000 = vrcp.pop %v3940
      %v4001 = vrcp.pop %v3943
      %v4002 = vrcp.pop %v3946
      %v4003 = vrcp.pop %v3949
      %v4004 = vrcp.pop %v3952
      %v4005 = vrcp.pop %v3955
      %v4006 = vrcp.pop %v3958
      %v4007 = vrcp.pop %v3961
      %v4008 = vrcp.pop %v3964
      %v4009 = vrcp.pop %v3967
      %v4010 = vrcp.pop %v3970
      %v4011 = vrcp.pop %v3973
      %v4012 = vrcp.pop %v3976
      %v4013 = vrcp.pop %v3979
      %v4014 = vrcp.pop %v3982
      %v4015 = vmul.f32 %v3824, %v3983
      %v4016 = vmul.f32 %v3826, %v3984
      %v4017 = vmul.f32 %v3828, %v3985
      %v4018 = vmul.f32 %v3830, %v3986
      %v4019 = vmul.f32 %v3832, %v3987
      %v4020 = vmul.f32 %v3834, %v3988
      %v4021 = vmul.f32 %v3836, %v3989
      %v4022 = vmul.f32 %v3838, %v3990
      %v4023 = vmul.f32 %v3840, %v3991
      %v4024 = vmul.f32 %v3842, %v3992
      %v4025 = vmul.f32 %v3844, %v3993
      %v4026 = vmul.f32 %v3846, %v3994
      %v4027 = vmul.f32 %v3848, %v3995
      %v4028 = vmul.f32 %v3850, %v3996
      %v4029 = vmul.f32 %v3852, %v3997
      %v4030 = vmul.f32 %v3854, %v3998
      %v4031 = vmul.f32 %v3856, %v3999
      %v4032 = vmul.f32 %v3858, %v4000
      %v4033 = vmul.f32 %v3860, %v4001
      %v4034 = vmul.f32 %v3862, %v4002
      %v4035 = vmul.f32 %v3864, %v4003
      %v4036 = vmul.f32 %v3866, %v4004
      %v4037 = vmul.f32 %v3868, %v4005
      %v4038 = vmul.f32 %v3870, %v4006
      %v4039 = vmul.f32 %v3872, %v4007
      %v4040 = vmul.f32 %v3874, %v4008
      %v4041 = vmul.f32 %v3876, %v4009
      %v4042 = vmul.f32 %v3878, %v4010
      %v4043 = vmul.f32 %v3880, %v4011
      %v4044 = vmul.f32 %v3882, %v4012
      %v4045 = vmul.f32 %v3884, %v4013
      %v4046 = vmul.f32 %v3886, %v4014
      %v4047 = vpack.c.bf16 %v4016, %v4015
      %v4048 = vpack.c.bf16 %v4018, %v4017
      %v4049 = vpack.c.bf16 %v4020, %v4019
      %v4050 = vpack.c.bf16 %v4022, %v4021
      %v4051 = vpack.c.bf16 %v4024, %v4023
      %v4052 = vpack.c.bf16 %v4026, %v4025
      %v4053 = vpack.c.bf16 %v4028, %v4027
      %v4054 = vpack.c.bf16 %v4030, %v4029
      %v4055 = vpack.c.bf16 %v4032, %v4031
      %v4056 = vpack.c.bf16 %v4034, %v4033
      %v4057 = vpack.c.bf16 %v4036, %v4035
      %v4058 = vpack.c.bf16 %v4038, %v4037
      %v4059 = vpack.c.bf16 %v4040, %v4039
      %v4060 = vpack.c.bf16 %v4042, %v4041
      %v4061 = vpack.c.bf16 %v4044, %v4043
      %v4062 = vpack.c.bf16 %v4046, %v4045
      %4063 = vrot.lane.b32.xlu0 %v275, 48
      %v4064 = vpop.permute.xlu0 %4063
      %4065 = vrot.lane.b32.xlu0 %v276, 48
      %v4066 = vpop.permute.xlu0 %4065
      %v4070 = vsel %vm868, %v4047, 0
      %v4073 = vsel %vm868, %v4048, 0
      %4075 = vmatprep.subr.bf16.mxu0 0
      %4076 = vmatpush1.bf16.msra.mxu0 0
      %4077 = vmatprep.subr.bf16.mxu0 0
      %4078 = vmatpush1.bf16.msra.mxu0 0
      %4079 = vmatprep.subr.bf16.mxu0 0
      %4080 = vmatpush1.bf16.msra.mxu0 0
      %4081 = vmatprep.subr.bf16.mxu0 0
      %4082 = vmatpush1.bf16.msra.mxu0 0
      %4083 = vmatprep.subr.bf16.mxu0 0
      %4084 = vmatpush1.bf16.msra.mxu0 0
      %4085 = vmatprep.subr.bf16.mxu0 0
      %4086 = vmatpush1.bf16.msra.mxu0 0
      %4087 = vmatprep.subr.bf16.mxu0 0
      %4088 = vmatpush1.bf16.msra.mxu0 %v4066
      %4089 = vmatprep.subr.bf16.mxu0 0
      %4090 = vmatpush1.bf16.msra.mxu0 %v4064
      %4091 = vmatprep.subr.bf16.mxu0 0
      %4092 = vmatpush2.bf16.msra.mxu0 0
      %4093 = vmatprep.subr.bf16.mxu0 0
      %4094 = vmatpush2.bf16.msra.mxu0 0
      %4095 = vmatprep.subr.bf16.mxu0 0
      %4096 = vmatpush2.bf16.msra.mxu0 0
      %4097 = vmatprep.subr.bf16.mxu0 0
      %4098 = vmatpush2.bf16.msra.mxu0 0
      %4099 = vmatprep.subr.bf16.mxu0 0
      %4100 = vmatpush2.bf16.msra.mxu0 0
      %4101 = vmatprep.subr.bf16.mxu0 0
      %4102 = vmatpush2.bf16.msra.mxu0 0
      %4103 = vmatprep.subr.bf16.mxu0 0
      %4104 = vmatpush2.bf16.msra.mxu0 0
      %4105 = vmatprep.subr.bf16.mxu0 0
      %4106 = vmatpush2.bf16.msra.mxu0 0
      %4107 = vmatprep.mubr.bf16.mxu0 0
      %4108 = vmatmul.mubr.bf16.gmra.mxu0 %v4070
      %v4109 = vpop.f32.mrf.mxu0
      %v4110 = vadd.f32 0.0, %v4109
      %v4111 = vpop.f32.mrf.mxu0
      %v4112 = vpop.f32.mrf.mxu0
      %v4113 = vadd.f32 0.0, %v4112
      %v4114 = vpop.f32.mrf.mxu0
      %4115 = vmatprep.mubr.bf16.mxu0 0
      %4116 = vmatmul.mubr.bf16.gmra.mxu0 %v4073
      %v4117 = vpop.f32.mrf.mxu0
      %v4118 = vadd.f32 0.0, %v4117
      %v4119 = vpop.f32.mrf.mxu0
      %v4120 = vpop.f32.mrf.mxu0
      %v4121 = vadd.f32 0.0, %v4120
      %v4122 = vpop.f32.mrf.mxu0
      %4123 = vdwg.mxu0
      %4124 = vrot.lane.b32.xlu0 %v351, 48
      %v4125 = vpop.permute.xlu0 %4124
      %4126 = vrot.lane.b32.xlu0 %v352, 48
      %v4127 = vpop.permute.xlu0 %4126
      %v4131 = vsel %vm868, %v4049, 0
      %v4134 = vsel %vm868, %v4050, 0
      %4136 = vmatprep.subr.bf16.mxu0 0
      %4137 = vmatpush1.bf16.msra.mxu0 0
      %4138 = vmatprep.subr.bf16.mxu0 0
      %4139 = vmatpush1.bf16.msra.mxu0 0
      %4140 = vmatprep.subr.bf16.mxu0 0
      %4141 = vmatpush1.bf16.msra.mxu0 0
      %4142 = vmatprep.subr.bf16.mxu0 0
      %4143 = vmatpush1.bf16.msra.mxu0 0
      %4144 = vmatprep.subr.bf16.mxu0 0
      %4145 = vmatpush1.bf16.msra.mxu0 0
      %4146 = vmatprep.subr.bf16.mxu0 0
      %4147 = vmatpush1.bf16.msra.mxu0 0
      %4148 = vmatprep.subr.bf16.mxu0 0
      %4149 = vmatpush1.bf16.msra.mxu0 %v4127
      %4150 = vmatprep.subr.bf16.mxu0 0
      %4151 = vmatpush1.bf16.msra.mxu0 %v4125
      %4152 = vmatprep.subr.bf16.mxu0 0
      %4153 = vmatpush2.bf16.msra.mxu0 0
      %4154 = vmatprep.subr.bf16.mxu0 0
      %4155 = vmatpush2.bf16.msra.mxu0 0
      %4156 = vmatprep.subr.bf16.mxu0 0
      %4157 = vmatpush2.bf16.msra.mxu0 0
      %4158 = vmatprep.subr.bf16.mxu0 0
      %4159 = vmatpush2.bf16.msra.mxu0 0
      %4160 = vmatprep.subr.bf16.mxu0 0
      %4161 = vmatpush2.bf16.msra.mxu0 0
      %4162 = vmatprep.subr.bf16.mxu0 0
      %4163 = vmatpush2.bf16.msra.mxu0 0
      %4164 = vmatprep.subr.bf16.mxu0 0
      %4165 = vmatpush2.bf16.msra.mxu0 0
      %4166 = vmatprep.subr.bf16.mxu0 0
      %4167 = vmatpush2.bf16.msra.mxu0 0
      %4168 = vmatprep.mubr.bf16.mxu0 0
      %4169 = vmatmul.mubr.bf16.gmra.mxu0 %v4131
      %v4170 = vpop.f32.mrf.mxu0
      %v4171 = vadd.f32 0.0, %v4170
      %v4172 = vpop.f32.mrf.mxu0
      %v4173 = vpop.f32.mrf.mxu0
      %v4174 = vadd.f32 0.0, %v4173
      %v4175 = vpop.f32.mrf.mxu0
      %4176 = vmatprep.mubr.bf16.mxu0 0
      %4177 = vmatmul.mubr.bf16.gmra.mxu0 %v4134
      %v4178 = vpop.f32.mrf.mxu0
      %v4179 = vadd.f32 0.0, %v4178
      %v4180 = vpop.f32.mrf.mxu0
      %v4181 = vpop.f32.mrf.mxu0
      %v4182 = vadd.f32 0.0, %v4181
      %v4183 = vpop.f32.mrf.mxu0
      %4184 = vdwg.mxu0
      %4185 = vrot.lane.b32.xlu0 %v426, 48
      %v4186 = vpop.permute.xlu0 %4185
      %4187 = vrot.lane.b32.xlu0 %v427, 48
      %v4188 = vpop.permute.xlu0 %4187
      %v4192 = vsel %vm868, %v4051, 0
      %v4195 = vsel %vm868, %v4052, 0
      %4197 = vmatprep.subr.bf16.mxu0 0
      %4198 = vmatpush1.bf16.msra.mxu0 0
      %4199 = vmatprep.subr.bf16.mxu0 0
      %4200 = vmatpush1.bf16.msra.mxu0 0
      %4201 = vmatprep.subr.bf16.mxu0 0
      %4202 = vmatpush1.bf16.msra.mxu0 0
      %4203 = vmatprep.subr.bf16.mxu0 0
      %4204 = vmatpush1.bf16.msra.mxu0 0
      %4205 = vmatprep.subr.bf16.mxu0 0
      %4206 = vmatpush1.bf16.msra.mxu0 0
      %4207 = vmatprep.subr.bf16.mxu0 0
      %4208 = vmatpush1.bf16.msra.mxu0 0
      %4209 = vmatprep.subr.bf16.mxu0 0
      %4210 = vmatpush1.bf16.msra.mxu0 %v4188
      %4211 = vmatprep.subr.bf16.mxu0 0
      %4212 = vmatpush1.bf16.msra.mxu0 %v4186
      %4213 = vmatprep.subr.bf16.mxu0 0
      %4214 = vmatpush2.bf16.msra.mxu0 0
      %4215 = vmatprep.subr.bf16.mxu0 0
      %4216 = vmatpush2.bf16.msra.mxu0 0
      %4217 = vmatprep.subr.bf16.mxu0 0
      %4218 = vmatpush2.bf16.msra.mxu0 0
      %4219 = vmatprep.subr.bf16.mxu0 0
      %4220 = vmatpush2.bf16.msra.mxu0 0
      %4221 = vmatprep.subr.bf16.mxu0 0
      %4222 = vmatpush2.bf16.msra.mxu0 0
      %4223 = vmatprep.subr.bf16.mxu0 0
      %4224 = vmatpush2.bf16.msra.mxu0 0
      %4225 = vmatprep.subr.bf16.mxu0 0
      %4226 = vmatpush2.bf16.msra.mxu0 0
      %4227 = vmatprep.subr.bf16.mxu0 0
      %4228 = vmatpush2.bf16.msra.mxu0 0
      %4229 = vmatprep.mubr.bf16.mxu0 0
      %4230 = vmatmul.mubr.bf16.gmra.mxu0 %v4192
      %v4231 = vpop.f32.mrf.mxu0
      %v4232 = vadd.f32 0.0, %v4231
      %v4233 = vpop.f32.mrf.mxu0
      %v4234 = vpop.f32.mrf.mxu0
      %v4235 = vadd.f32 0.0, %v4234
      %v4236 = vpop.f32.mrf.mxu0
      %4237 = vmatprep.mubr.bf16.mxu0 0
      %4238 = vmatmul.mubr.bf16.gmra.mxu0 %v4195
      %v4239 = vpop.f32.mrf.mxu0
      %v4240 = vadd.f32 0.0, %v4239
      %v4241 = vpop.f32.mrf.mxu0
      %v4242 = vpop.f32.mrf.mxu0
      %v4243 = vadd.f32 0.0, %v4242
      %v4244 = vpop.f32.mrf.mxu0
      %4245 = vdwg.mxu0
      %4246 = vrot.lane.b32.xlu0 %v501, 48
      %v4247 = vpop.permute.xlu0 %4246
      %4248 = vrot.lane.b32.xlu0 %v502, 48
      %v4249 = vpop.permute.xlu0 %4248
      %v4253 = vsel %vm868, %v4053, 0
      %v4256 = vsel %vm868, %v4054, 0
      %4258 = vmatprep.subr.bf16.mxu0 0
      %4259 = vmatpush1.bf16.msra.mxu0 0
      %4260 = vmatprep.subr.bf16.mxu0 0
      %4261 = vmatpush1.bf16.msra.mxu0 0
      %4262 = vmatprep.subr.bf16.mxu0 0
      %4263 = vmatpush1.bf16.msra.mxu0 0
      %4264 = vmatprep.subr.bf16.mxu0 0
      %4265 = vmatpush1.bf16.msra.mxu0 0
      %4266 = vmatprep.subr.bf16.mxu0 0
      %4267 = vmatpush1.bf16.msra.mxu0 0
      %4268 = vmatprep.subr.bf16.mxu0 0
      %4269 = vmatpush1.bf16.msra.mxu0 0
      %4270 = vmatprep.subr.bf16.mxu0 0
      %4271 = vmatpush1.bf16.msra.mxu0 %v4249
      %4272 = vmatprep.subr.bf16.mxu0 0
      %4273 = vmatpush1.bf16.msra.mxu0 %v4247
      %4274 = vmatprep.subr.bf16.mxu0 0
      %4275 = vmatpush2.bf16.msra.mxu0 0
      %4276 = vmatprep.subr.bf16.mxu0 0
      %4277 = vmatpush2.bf16.msra.mxu0 0
      %4278 = vmatprep.subr.bf16.mxu0 0
      %4279 = vmatpush2.bf16.msra.mxu0 0
      %4280 = vmatprep.subr.bf16.mxu0 0
      %4281 = vmatpush2.bf16.msra.mxu0 0
      %4282 = vmatprep.subr.bf16.mxu0 0
      %4283 = vmatpush2.bf16.msra.mxu0 0
      %4284 = vmatprep.subr.bf16.mxu0 0
      %4285 = vmatpush2.bf16.msra.mxu0 0
      %4286 = vmatprep.subr.bf16.mxu0 0
      %4287 = vmatpush2.bf16.msra.mxu0 0
      %4288 = vmatprep.subr.bf16.mxu0 0
      %4289 = vmatpush2.bf16.msra.mxu0 0
      %4290 = vmatprep.mubr.bf16.mxu0 0
      %4291 = vmatmul.mubr.bf16.gmra.mxu0 %v4253
      %v4292 = vpop.f32.mrf.mxu0
      %v4293 = vadd.f32 0.0, %v4292
      %v4294 = vpop.f32.mrf.mxu0
      %v4295 = vpop.f32.mrf.mxu0
      %v4296 = vadd.f32 0.0, %v4295
      %v4297 = vpop.f32.mrf.mxu0
      %4298 = vmatprep.mubr.bf16.mxu0 0
      %4299 = vmatmul.mubr.bf16.gmra.mxu0 %v4256
      %v4300 = vpop.f32.mrf.mxu0
      %v4301 = vadd.f32 0.0, %v4300
      %v4302 = vpop.f32.mrf.mxu0
      %v4303 = vpop.f32.mrf.mxu0
      %v4304 = vadd.f32 0.0, %v4303
      %v4305 = vpop.f32.mrf.mxu0
      %4306 = vdwg.mxu0
      %4307 = vrot.lane.b32.xlu0 %v576, 48
      %v4308 = vpop.permute.xlu0 %4307
      %4309 = vrot.lane.b32.xlu0 %v577, 48
      %v4310 = vpop.permute.xlu0 %4309
      %v4314 = vsel %vm868, %v4055, 0
      %v4317 = vsel %vm868, %v4056, 0
      %4319 = vmatprep.subr.bf16.mxu0 0
      %4320 = vmatpush1.bf16.msra.mxu0 0
      %4321 = vmatprep.subr.bf16.mxu0 0
      %4322 = vmatpush1.bf16.msra.mxu0 0
      %4323 = vmatprep.subr.bf16.mxu0 0
      %4324 = vmatpush1.bf16.msra.mxu0 0
      %4325 = vmatprep.subr.bf16.mxu0 0
      %4326 = vmatpush1.bf16.msra.mxu0 0
      %4327 = vmatprep.subr.bf16.mxu0 0
      %4328 = vmatpush1.bf16.msra.mxu0 0
      %4329 = vmatprep.subr.bf16.mxu0 0
      %4330 = vmatpush1.bf16.msra.mxu0 0
      %4331 = vmatprep.subr.bf16.mxu0 0
      %4332 = vmatpush1.bf16.msra.mxu0 %v4310
      %4333 = vmatprep.subr.bf16.mxu0 0
      %4334 = vmatpush1.bf16.msra.mxu0 %v4308
      %4335 = vmatprep.subr.bf16.mxu0 0
      %4336 = vmatpush2.bf16.msra.mxu0 0
      %4337 = vmatprep.subr.bf16.mxu0 0
      %4338 = vmatpush2.bf16.msra.mxu0 0
      %4339 = vmatprep.subr.bf16.mxu0 0
      %4340 = vmatpush2.bf16.msra.mxu0 0
      %4341 = vmatprep.subr.bf16.mxu0 0
      %4342 = vmatpush2.bf16.msra.mxu0 0
      %4343 = vmatprep.subr.bf16.mxu0 0
      %4344 = vmatpush2.bf16.msra.mxu0 0
      %4345 = vmatprep.subr.bf16.mxu0 0
      %4346 = vmatpush2.bf16.msra.mxu0 0
      %4347 = vmatprep.subr.bf16.mxu0 0
      %4348 = vmatpush2.bf16.msra.mxu0 0
      %4349 = vmatprep.subr.bf16.mxu0 0
      %4350 = vmatpush2.bf16.msra.mxu0 0
      %4351 = vmatprep.mubr.bf16.mxu0 0
      %4352 = vmatmul.mubr.bf16.gmra.mxu0 %v4314
      %v4353 = vpop.f32.mrf.mxu0
      %v4354 = vadd.f32 0.0, %v4353
      %v4355 = vpop.f32.mrf.mxu0
      %v4356 = vpop.f32.mrf.mxu0
      %v4357 = vadd.f32 0.0, %v4356
      %v4358 = vpop.f32.mrf.mxu0
      %4359 = vmatprep.mubr.bf16.mxu0 0
      %4360 = vmatmul.mubr.bf16.gmra.mxu0 %v4317
      %v4361 = vpop.f32.mrf.mxu0
      %v4362 = vadd.f32 0.0, %v4361
      %v4363 = vpop.f32.mrf.mxu0
      %v4364 = vpop.f32.mrf.mxu0
      %v4365 = vadd.f32 0.0, %v4364
      %v4366 = vpop.f32.mrf.mxu0
      %4367 = vdwg.mxu0
      %4368 = vrot.lane.b32.xlu0 %v651, 48
      %v4369 = vpop.permute.xlu0 %4368
      %4370 = vrot.lane.b32.xlu0 %v652, 48
      %v4371 = vpop.permute.xlu0 %4370
      %v4375 = vsel %vm868, %v4057, 0
      %v4378 = vsel %vm868, %v4058, 0
      %4380 = vmatprep.subr.bf16.mxu0 0
      %4381 = vmatpush1.bf16.msra.mxu0 0
      %4382 = vmatprep.subr.bf16.mxu0 0
      %4383 = vmatpush1.bf16.msra.mxu0 0
      %4384 = vmatprep.subr.bf16.mxu0 0
      %4385 = vmatpush1.bf16.msra.mxu0 0
      %4386 = vmatprep.subr.bf16.mxu0 0
      %4387 = vmatpush1.bf16.msra.mxu0 0
      %4388 = vmatprep.subr.bf16.mxu0 0
      %4389 = vmatpush1.bf16.msra.mxu0 0
      %4390 = vmatprep.subr.bf16.mxu0 0
      %4391 = vmatpush1.bf16.msra.mxu0 0
      %4392 = vmatprep.subr.bf16.mxu0 0
      %4393 = vmatpush1.bf16.msra.mxu0 %v4371
      %4394 = vmatprep.subr.bf16.mxu0 0
      %4395 = vmatpush1.bf16.msra.mxu0 %v4369
      %4396 = vmatprep.subr.bf16.mxu0 0
      %4397 = vmatpush2.bf16.msra.mxu0 0
      %4398 = vmatprep.subr.bf16.mxu0 0
      %4399 = vmatpush2.bf16.msra.mxu0 0
      %4400 = vmatprep.subr.bf16.mxu0 0
      %4401 = vmatpush2.bf16.msra.mxu0 0
      %4402 = vmatprep.subr.bf16.mxu0 0
      %4403 = vmatpush2.bf16.msra.mxu0 0
      %4404 = vmatprep.subr.bf16.mxu0 0
      %4405 = vmatpush2.bf16.msra.mxu0 0
      %4406 = vmatprep.subr.bf16.mxu0 0
      %4407 = vmatpush2.bf16.msra.mxu0 0
      %4408 = vmatprep.subr.bf16.mxu0 0
      %4409 = vmatpush2.bf16.msra.mxu0 0
      %4410 = vmatprep.subr.bf16.mxu0 0
      %4411 = vmatpush2.bf16.msra.mxu0 0
      %4412 = vmatprep.mubr.bf16.mxu0 0
      %4413 = vmatmul.mubr.bf16.gmra.mxu0 %v4375
      %v4414 = vpop.f32.mrf.mxu0
      %v4415 = vadd.f32 0.0, %v4414
      %v4416 = vpop.f32.mrf.mxu0
      %v4417 = vpop.f32.mrf.mxu0
      %v4418 = vadd.f32 0.0, %v4417
      %v4419 = vpop.f32.mrf.mxu0
      %4420 = vmatprep.mubr.bf16.mxu0 0
      %4421 = vmatmul.mubr.bf16.gmra.mxu0 %v4378
      %v4422 = vpop.f32.mrf.mxu0
      %v4423 = vadd.f32 0.0, %v4422
      %v4424 = vpop.f32.mrf.mxu0
      %v4425 = vpop.f32.mrf.mxu0
      %v4426 = vadd.f32 0.0, %v4425
      %v4427 = vpop.f32.mrf.mxu0
      %4428 = vdwg.mxu0
      %4429 = vrot.lane.b32.xlu0 %v726, 48
      %v4430 = vpop.permute.xlu0 %4429
      %4431 = vrot.lane.b32.xlu0 %v727, 48
      %v4432 = vpop.permute.xlu0 %4431
      %v4436 = vsel %vm868, %v4059, 0
      %v4439 = vsel %vm868, %v4060, 0
      %4441 = vmatprep.subr.bf16.mxu0 0
      %4442 = vmatpush1.bf16.msra.mxu0 0
      %4443 = vmatprep.subr.bf16.mxu0 0
      %4444 = vmatpush1.bf16.msra.mxu0 0
      %4445 = vmatprep.subr.bf16.mxu0 0
      %4446 = vmatpush1.bf16.msra.mxu0 0
      %4447 = vmatprep.subr.bf16.mxu0 0
      %4448 = vmatpush1.bf16.msra.mxu0 0
      %4449 = vmatprep.subr.bf16.mxu0 0
      %4450 = vmatpush1.bf16.msra.mxu0 0
      %4451 = vmatprep.subr.bf16.mxu0 0
      %4452 = vmatpush1.bf16.msra.mxu0 0
      %4453 = vmatprep.subr.bf16.mxu0 0
      %4454 = vmatpush1.bf16.msra.mxu0 %v4432
      %4455 = vmatprep.subr.bf16.mxu0 0
      %4456 = vmatpush1.bf16.msra.mxu0 %v4430
      %4457 = vmatprep.subr.bf16.mxu0 0
      %4458 = vmatpush2.bf16.msra.mxu0 0
      %4459 = vmatprep.subr.bf16.mxu0 0
      %4460 = vmatpush2.bf16.msra.mxu0 0
      %4461 = vmatprep.subr.bf16.mxu0 0
      %4462 = vmatpush2.bf16.msra.mxu0 0
      %4463 = vmatprep.subr.bf16.mxu0 0
      %4464 = vmatpush2.bf16.msra.mxu0 0
      %4465 = vmatprep.subr.bf16.mxu0 0
      %4466 = vmatpush2.bf16.msra.mxu0 0
      %4467 = vmatprep.subr.bf16.mxu0 0
      %4468 = vmatpush2.bf16.msra.mxu0 0
      %4469 = vmatprep.subr.bf16.mxu0 0
      %4470 = vmatpush2.bf16.msra.mxu0 0
      %4471 = vmatprep.subr.bf16.mxu0 0
      %4472 = vmatpush2.bf16.msra.mxu0 0
      %4473 = vmatprep.mubr.bf16.mxu0 0
      %4474 = vmatmul.mubr.bf16.gmra.mxu0 %v4436
      %v4475 = vpop.f32.mrf.mxu0
      %v4476 = vadd.f32 0.0, %v4475
      %v4477 = vpop.f32.mrf.mxu0
      %v4478 = vpop.f32.mrf.mxu0
      %v4479 = vadd.f32 0.0, %v4478
      %v4480 = vpop.f32.mrf.mxu0
      %4481 = vmatprep.mubr.bf16.mxu0 0
      %4482 = vmatmul.mubr.bf16.gmra.mxu0 %v4439
      %v4483 = vpop.f32.mrf.mxu0
      %v4484 = vadd.f32 0.0, %v4483
      %v4485 = vpop.f32.mrf.mxu0
      %v4486 = vpop.f32.mrf.mxu0
      %v4487 = vadd.f32 0.0, %v4486
      %v4488 = vpop.f32.mrf.mxu0
      %4489 = vdwg.mxu0
      %4490 = vrot.lane.b32.xlu0 %v801, 48
      %v4491 = vpop.permute.xlu0 %4490
      %4492 = vrot.lane.b32.xlu0 %v802, 48
      %v4493 = vpop.permute.xlu0 %4492
      %v4497 = vsel %vm868, %v4061, 0
      %v4500 = vsel %vm868, %v4062, 0
      %4502 = vmatprep.subr.bf16.mxu0 0
      %4503 = vmatpush1.bf16.msra.mxu0 0
      %4504 = vmatprep.subr.bf16.mxu0 0
      %4505 = vmatpush1.bf16.msra.mxu0 0
      %4506 = vmatprep.subr.bf16.mxu0 0
      %4507 = vmatpush1.bf16.msra.mxu0 0
      %4508 = vmatprep.subr.bf16.mxu0 0
      %4509 = vmatpush1.bf16.msra.mxu0 0
      %4510 = vmatprep.subr.bf16.mxu0 0
      %4511 = vmatpush1.bf16.msra.mxu0 0
      %4512 = vmatprep.subr.bf16.mxu0 0
      %4513 = vmatpush1.bf16.msra.mxu0 0
      %4514 = vmatprep.subr.bf16.mxu0 0
      %4515 = vmatpush1.bf16.msra.mxu0 %v4493
      %4516 = vmatprep.subr.bf16.mxu0 0
      %4517 = vmatpush1.bf16.msra.mxu0 %v4491
      %4518 = vmatprep.subr.bf16.mxu0 0
      %4519 = vmatpush2.bf16.msra.mxu0 0
      %4520 = vmatprep.subr.bf16.mxu0 0
      %4521 = vmatpush2.bf16.msra.mxu0 0
      %4522 = vmatprep.subr.bf16.mxu0 0
      %4523 = vmatpush2.bf16.msra.mxu0 0
      %4524 = vmatprep.subr.bf16.mxu0 0
      %4525 = vmatpush2.bf16.msra.mxu0 0
      %4526 = vmatprep.subr.bf16.mxu0 0
      %4527 = vmatpush2.bf16.msra.mxu0 0
      %4528 = vmatprep.subr.bf16.mxu0 0
      %4529 = vmatpush2.bf16.msra.mxu0 0
      %4530 = vmatprep.subr.bf16.mxu0 0
      %4531 = vmatpush2.bf16.msra.mxu0 0
      %4532 = vmatprep.subr.bf16.mxu0 0
      %4533 = vmatpush2.bf16.msra.mxu0 0
      %4534 = vmatprep.mubr.bf16.mxu0 0
      %4535 = vmatmul.mubr.bf16.gmra.mxu0 %v4497
      %v4536 = vpop.f32.mrf.mxu0
      %v4537 = vadd.f32 0.0, %v4536
      %v4538 = vpop.f32.mrf.mxu0
      %v4539 = vpop.f32.mrf.mxu0
      %v4540 = vadd.f32 0.0, %v4539
      %v4541 = vpop.f32.mrf.mxu0
      %4542 = vmatprep.mubr.bf16.mxu0 0
      %4543 = vmatmul.mubr.bf16.gmra.mxu0 %v4500
      %v4544 = vpop.f32.mrf.mxu0
      %v4545 = vadd.f32 0.0, %v4544
      %v4546 = vpop.f32.mrf.mxu0
      %v4547 = vpop.f32.mrf.mxu0
      %v4548 = vadd.f32 0.0, %v4547
      %v4549 = vpop.f32.mrf.mxu0
      %4550 = vdwg.mxu0
      %s4551 = scalar_lea.vmem %s1, 96
      %v4552 = vld [vmem:[%s4551] sm:$0xff]
      %v4553 = vld [vmem:[%s4551 + $0x8] sm:$0xff]
      %v4554 = vld [vmem:[%s4551 + $0x10] sm:$0xff]
      %v4555 = vld [vmem:[%s4551 + $0x18] sm:$0xff]
      %4556 = vrot.lane.b32.xlu0 %v275, 104
      %v4557 = vpop.permute.xlu0 %4556
      %4558 = vrot.lane.b32.xlu0 %v276, 104
      %v4559 = vpop.permute.xlu0 %4558
      %4560 = vrot.lane.b32.xlu0 %v275, 72
      %v4561 = vpop.permute.xlu0 %4560
      %4562 = vrot.lane.b32.xlu0 %v276, 72
      %v4563 = vpop.permute.xlu0 %4562
      %v4565 = vsel %vm281, %v4557, 0
      %v4568 = vsel %vm281, %v4559, 0
      %v4571 = vsel %vm281, %v4561, 0
      %v4574 = vsel %vm281, %v4563, 0
      %4576 = vmatprep.subr.bf16.mxu0 0
      %4577 = vmatpush1.bf16.xpose.msra.mxu0 0
      %4578 = vmatprep.subr.bf16.mxu0 0
      %4579 = vmatpush1.bf16.xpose.msra.mxu0 0
      %4580 = vmatprep.subr.bf16.mxu0 0
      %4581 = vmatpush1.bf16.xpose.msra.mxu0 0
      %4582 = vmatprep.subr.bf16.mxu0 0
      %4583 = vmatpush1.bf16.xpose.msra.mxu0 0
      %4584 = vmatprep.subr.bf16.mxu0 0
      %4585 = vmatpush1.bf16.xpose.msra.mxu0 0
      %4586 = vmatprep.subr.bf16.mxu0 0
      %4587 = vmatpush1.bf16.xpose.msra.mxu0 0
      %4588 = vmatprep.subr.bf16.mxu0 0
      %4589 = vmatpush1.bf16.xpose.msra.mxu0 %v4574
      %4590 = vmatprep.subr.bf16.mxu0 0
      %4591 = vmatpush1.bf16.xpose.msra.mxu0 %v4571
      %4592 = vmatprep.subr.bf16.mxu0 0
      %4593 = vmatpush2.bf16.xpose.msra.mxu0 0
      %4594 = vmatprep.subr.bf16.mxu0 0
      %4595 = vmatpush2.bf16.xpose.msra.mxu0 0
      %4596 = vmatprep.subr.bf16.mxu0 0
      %4597 = vmatpush2.bf16.xpose.msra.mxu0 0
      %4598 = vmatprep.subr.bf16.mxu0 0
      %4599 = vmatpush2.bf16.xpose.msra.mxu0 0
      %4600 = vmatprep.subr.bf16.mxu0 0
      %4601 = vmatpush2.bf16.xpose.msra.mxu0 0
      %4602 = vmatprep.subr.bf16.mxu0 0
      %4603 = vmatpush2.bf16.xpose.msra.mxu0 0
      %4604 = vmatprep.subr.bf16.mxu0 0
      %4605 = vmatpush2.bf16.xpose.msra.mxu0 0
      %4606 = vmatprep.subr.bf16.mxu0 0
      %4607 = vmatpush2.bf16.xpose.msra.mxu0 0
      %4608 = vmatprep.mubr.bf16.mxu0 0
      %4609 = vmatmul.mubr.bf16.gmra.mxu0 %v4565
      %v4610 = vpop.f32.mrf.mxu0
      %v4611 = vadd.f32 %v4552, %v4610
      %v4612 = vpop.f32.mrf.mxu0
      %v4613 = vpop.f32.mrf.mxu0
      %v4614 = vadd.f32 %v4553, %v4613
      %v4615 = vpop.f32.mrf.mxu0
      %4616 = vmatprep.mubr.bf16.mxu0 0
      %4617 = vmatmul.mubr.bf16.gmra.mxu0 %v4568
      %v4618 = vpop.f32.mrf.mxu0
      %v4619 = vadd.f32 %v4554, %v4618
      %v4620 = vpop.f32.mrf.mxu0
      %v4621 = vpop.f32.mrf.mxu0
      %v4622 = vadd.f32 %v4555, %v4621
      %v4623 = vpop.f32.mrf.mxu0
      %4624 = vdwg.mxu0
      %4625 = vrot.lane.b32.xlu0 %v351, 104
      %v4626 = vpop.permute.xlu0 %4625
      %4627 = vrot.lane.b32.xlu0 %v352, 104
      %v4628 = vpop.permute.xlu0 %4627
      %4629 = vrot.lane.b32.xlu0 %v351, 72
      %v4630 = vpop.permute.xlu0 %4629
      %4631 = vrot.lane.b32.xlu0 %v352, 72
      %v4632 = vpop.permute.xlu0 %4631
      %v4634 = vsel %vm281, %v4626, 0
      %v4637 = vsel %vm281, %v4628, 0
      %v4640 = vsel %vm281, %v4630, 0
      %v4643 = vsel %vm281, %v4632, 0
      %4645 = vmatprep.subr.bf16.mxu0 0
      %4646 = vmatpush1.bf16.xpose.msra.mxu0 0
      %4647 = vmatprep.subr.bf16.mxu0 0
      %4648 = vmatpush1.bf16.xpose.msra.mxu0 0
      %4649 = vmatprep.subr.bf16.mxu0 0
      %4650 = vmatpush1.bf16.xpose.msra.mxu0 0
      %4651 = vmatprep.subr.bf16.mxu0 0
      %4652 = vmatpush1.bf16.xpose.msra.mxu0 0
      %4653 = vmatprep.subr.bf16.mxu0 0
      %4654 = vmatpush1.bf16.xpose.msra.mxu0 0
      %4655 = vmatprep.subr.bf16.mxu0 0
      %4656 = vmatpush1.bf16.xpose.msra.mxu0 0
      %4657 = vmatprep.subr.bf16.mxu0 0
      %4658 = vmatpush1.bf16.xpose.msra.mxu0 %v4643
      %4659 = vmatprep.subr.bf16.mxu0 0
      %4660 = vmatpush1.bf16.xpose.msra.mxu0 %v4640
      %4661 = vmatprep.subr.bf16.mxu0 0
      %4662 = vmatpush2.bf16.xpose.msra.mxu0 0
      %4663 = vmatprep.subr.bf16.mxu0 0
      %4664 = vmatpush2.bf16.xpose.msra.mxu0 0
      %4665 = vmatprep.subr.bf16.mxu0 0
      %4666 = vmatpush2.bf16.xpose.msra.mxu0 0
      %4667 = vmatprep.subr.bf16.mxu0 0
      %4668 = vmatpush2.bf16.xpose.msra.mxu0 0
      %4669 = vmatprep.subr.bf16.mxu0 0
      %4670 = vmatpush2.bf16.xpose.msra.mxu0 0
      %4671 = vmatprep.subr.bf16.mxu0 0
      %4672 = vmatpush2.bf16.xpose.msra.mxu0 0
      %4673 = vmatprep.subr.bf16.mxu0 0
      %4674 = vmatpush2.bf16.xpose.msra.mxu0 0
      %4675 = vmatprep.subr.bf16.mxu0 0
      %4676 = vmatpush2.bf16.xpose.msra.mxu0 0
      %4677 = vmatprep.mubr.bf16.mxu0 0
      %4678 = vmatmul.mubr.bf16.gmra.mxu0 %v4634
      %v4679 = vpop.f32.mrf.mxu0
      %v4680 = vadd.f32 %v4552, %v4679
      %v4681 = vpop.f32.mrf.mxu0
      %v4682 = vpop.f32.mrf.mxu0
      %v4683 = vadd.f32 %v4553, %v4682
      %v4684 = vpop.f32.mrf.mxu0
      %4685 = vmatprep.mubr.bf16.mxu0 0
      %4686 = vmatmul.mubr.bf16.gmra.mxu0 %v4637
      %v4687 = vpop.f32.mrf.mxu0
      %v4688 = vadd.f32 %v4554, %v4687
      %v4689 = vpop.f32.mrf.mxu0
      %v4690 = vpop.f32.mrf.mxu0
      %v4691 = vadd.f32 %v4555, %v4690
      %v4692 = vpop.f32.mrf.mxu0
      %4693 = vdwg.mxu0
      %4694 = vrot.lane.b32.xlu0 %v426, 104
      %v4695 = vpop.permute.xlu0 %4694
      %4696 = vrot.lane.b32.xlu0 %v427, 104
      %v4697 = vpop.permute.xlu0 %4696
      %4698 = vrot.lane.b32.xlu0 %v426, 72
      %v4699 = vpop.permute.xlu0 %4698
      %4700 = vrot.lane.b32.xlu0 %v427, 72
      %v4701 = vpop.permute.xlu0 %4700
      %v4703 = vsel %vm281, %v4695, 0
      %v4706 = vsel %vm281, %v4697, 0
      %v4709 = vsel %vm281, %v4699, 0
      %v4712 = vsel %vm281, %v4701, 0
      %4714 = vmatprep.subr.bf16.mxu0 0
      %4715 = vmatpush1.bf16.xpose.msra.mxu0 0
      %4716 = vmatprep.subr.bf16.mxu0 0
      %4717 = vmatpush1.bf16.xpose.msra.mxu0 0
      %4718 = vmatprep.subr.bf16.mxu0 0
      %4719 = vmatpush1.bf16.xpose.msra.mxu0 0
      %4720 = vmatprep.subr.bf16.mxu0 0
      %4721 = vmatpush1.bf16.xpose.msra.mxu0 0
      %4722 = vmatprep.subr.bf16.mxu0 0
      %4723 = vmatpush1.bf16.xpose.msra.mxu0 0
      %4724 = vmatprep.subr.bf16.mxu0 0
      %4725 = vmatpush1.bf16.xpose.msra.mxu0 0
      %4726 = vmatprep.subr.bf16.mxu0 0
      %4727 = vmatpush1.bf16.xpose.msra.mxu0 %v4712
      %4728 = vmatprep.subr.bf16.mxu0 0
      %4729 = vmatpush1.bf16.xpose.msra.mxu0 %v4709
      %4730 = vmatprep.subr.bf16.mxu0 0
      %4731 = vmatpush2.bf16.xpose.msra.mxu0 0
      %4732 = vmatprep.subr.bf16.mxu0 0
      %4733 = vmatpush2.bf16.xpose.msra.mxu0 0
      %4734 = vmatprep.subr.bf16.mxu0 0
      %4735 = vmatpush2.bf16.xpose.msra.mxu0 0
      %4736 = vmatprep.subr.bf16.mxu0 0
      %4737 = vmatpush2.bf16.xpose.msra.mxu0 0
      %4738 = vmatprep.subr.bf16.mxu0 0
      %4739 = vmatpush2.bf16.xpose.msra.mxu0 0
      %4740 = vmatprep.subr.bf16.mxu0 0
      %4741 = vmatpush2.bf16.xpose.msra.mxu0 0
      %4742 = vmatprep.subr.bf16.mxu0 0
      %4743 = vmatpush2.bf16.xpose.msra.mxu0 0
      %4744 = vmatprep.subr.bf16.mxu0 0
      %4745 = vmatpush2.bf16.xpose.msra.mxu0 0
      %4746 = vmatprep.mubr.bf16.mxu0 0
      %4747 = vmatmul.mubr.bf16.gmra.mxu0 %v4703
      %v4748 = vpop.f32.mrf.mxu0
      %v4749 = vadd.f32 %v4552, %v4748
      %v4750 = vpop.f32.mrf.mxu0
      %v4751 = vpop.f32.mrf.mxu0
      %v4752 = vadd.f32 %v4553, %v4751
      %v4753 = vpop.f32.mrf.mxu0
      %4754 = vmatprep.mubr.bf16.mxu0 0
      %4755 = vmatmul.mubr.bf16.gmra.mxu0 %v4706
      %v4756 = vpop.f32.mrf.mxu0
      %v4757 = vadd.f32 %v4554, %v4756
      %v4758 = vpop.f32.mrf.mxu0
      %v4759 = vpop.f32.mrf.mxu0
      %v4760 = vadd.f32 %v4555, %v4759
      %v4761 = vpop.f32.mrf.mxu0
      %4762 = vdwg.mxu0
      %4763 = vrot.lane.b32.xlu0 %v501, 104
      %v4764 = vpop.permute.xlu0 %4763
      %4765 = vrot.lane.b32.xlu0 %v502, 104
      %v4766 = vpop.permute.xlu0 %4765
      %4767 = vrot.lane.b32.xlu0 %v501, 72
      %v4768 = vpop.permute.xlu0 %4767
      %4769 = vrot.lane.b32.xlu0 %v502, 72
      %v4770 = vpop.permute.xlu0 %4769
      %v4772 = vsel %vm281, %v4764, 0
      %v4775 = vsel %vm281, %v4766, 0
      %v4778 = vsel %vm281, %v4768, 0
      %v4781 = vsel %vm281, %v4770, 0
      %4783 = vmatprep.subr.bf16.mxu0 0
      %4784 = vmatpush1.bf16.xpose.msra.mxu0 0
      %4785 = vmatprep.subr.bf16.mxu0 0
      %4786 = vmatpush1.bf16.xpose.msra.mxu0 0
      %4787 = vmatprep.subr.bf16.mxu0 0
      %4788 = vmatpush1.bf16.xpose.msra.mxu0 0
      %4789 = vmatprep.subr.bf16.mxu0 0
      %4790 = vmatpush1.bf16.xpose.msra.mxu0 0
      %4791 = vmatprep.subr.bf16.mxu0 0
      %4792 = vmatpush1.bf16.xpose.msra.mxu0 0
      %4793 = vmatprep.subr.bf16.mxu0 0
      %4794 = vmatpush1.bf16.xpose.msra.mxu0 0
      %4795 = vmatprep.subr.bf16.mxu0 0
      %4796 = vmatpush1.bf16.xpose.msra.mxu0 %v4781
      %4797 = vmatprep.subr.bf16.mxu0 0
      %4798 = vmatpush1.bf16.xpose.msra.mxu0 %v4778
      %4799 = vmatprep.subr.bf16.mxu0 0
      %4800 = vmatpush2.bf16.xpose.msra.mxu0 0
      %4801 = vmatprep.subr.bf16.mxu0 0
      %4802 = vmatpush2.bf16.xpose.msra.mxu0 0
      %4803 = vmatprep.subr.bf16.mxu0 0
      %4804 = vmatpush2.bf16.xpose.msra.mxu0 0
      %4805 = vmatprep.subr.bf16.mxu0 0
      %4806 = vmatpush2.bf16.xpose.msra.mxu0 0
      %4807 = vmatprep.subr.bf16.mxu0 0
      %4808 = vmatpush2.bf16.xpose.msra.mxu0 0
      %4809 = vmatprep.subr.bf16.mxu0 0
      %4810 = vmatpush2.bf16.xpose.msra.mxu0 0
      %4811 = vmatprep.subr.bf16.mxu0 0
      %4812 = vmatpush2.bf16.xpose.msra.mxu0 0
      %4813 = vmatprep.subr.bf16.mxu0 0
      %4814 = vmatpush2.bf16.xpose.msra.mxu0 0
      %4815 = vmatprep.mubr.bf16.mxu0 0
      %4816 = vmatmul.mubr.bf16.gmra.mxu0 %v4772
      %v4817 = vpop.f32.mrf.mxu0
      %v4818 = vadd.f32 %v4552, %v4817
      %v4819 = vpop.f32.mrf.mxu0
      %v4820 = vpop.f32.mrf.mxu0
      %v4821 = vadd.f32 %v4553, %v4820
      %v4822 = vpop.f32.mrf.mxu0
      %4823 = vmatprep.mubr.bf16.mxu0 0
      %4824 = vmatmul.mubr.bf16.gmra.mxu0 %v4775
      %v4825 = vpop.f32.mrf.mxu0
      %v4826 = vadd.f32 %v4554, %v4825
      %v4827 = vpop.f32.mrf.mxu0
      %v4828 = vpop.f32.mrf.mxu0
      %v4829 = vadd.f32 %v4555, %v4828
      %v4830 = vpop.f32.mrf.mxu0
      %4831 = vdwg.mxu0
      %4832 = vrot.lane.b32.xlu0 %v576, 104
      %v4833 = vpop.permute.xlu0 %4832
      %4834 = vrot.lane.b32.xlu0 %v577, 104
      %v4835 = vpop.permute.xlu0 %4834
      %4836 = vrot.lane.b32.xlu0 %v576, 72
      %v4837 = vpop.permute.xlu0 %4836
      %4838 = vrot.lane.b32.xlu0 %v577, 72
      %v4839 = vpop.permute.xlu0 %4838
      %v4841 = vsel %vm281, %v4833, 0
      %v4844 = vsel %vm281, %v4835, 0
      %v4847 = vsel %vm281, %v4837, 0
      %v4850 = vsel %vm281, %v4839, 0
      %4852 = vmatprep.subr.bf16.mxu0 0
      %4853 = vmatpush1.bf16.xpose.msra.mxu0 0
      %4854 = vmatprep.subr.bf16.mxu0 0
      %4855 = vmatpush1.bf16.xpose.msra.mxu0 0
      %4856 = vmatprep.subr.bf16.mxu0 0
      %4857 = vmatpush1.bf16.xpose.msra.mxu0 0
      %4858 = vmatprep.subr.bf16.mxu0 0
      %4859 = vmatpush1.bf16.xpose.msra.mxu0 0
      %4860 = vmatprep.subr.bf16.mxu0 0
      %4861 = vmatpush1.bf16.xpose.msra.mxu0 0
      %4862 = vmatprep.subr.bf16.mxu0 0
      %4863 = vmatpush1.bf16.xpose.msra.mxu0 0
      %4864 = vmatprep.subr.bf16.mxu0 0
      %4865 = vmatpush1.bf16.xpose.msra.mxu0 %v4850
      %4866 = vmatprep.subr.bf16.mxu0 0
      %4867 = vmatpush1.bf16.xpose.msra.mxu0 %v4847
      %4868 = vmatprep.subr.bf16.mxu0 0
      %4869 = vmatpush2.bf16.xpose.msra.mxu0 0
      %4870 = vmatprep.subr.bf16.mxu0 0
      %4871 = vmatpush2.bf16.xpose.msra.mxu0 0
      %4872 = vmatprep.subr.bf16.mxu0 0
      %4873 = vmatpush2.bf16.xpose.msra.mxu0 0
      %4874 = vmatprep.subr.bf16.mxu0 0
      %4875 = vmatpush2.bf16.xpose.msra.mxu0 0
      %4876 = vmatprep.subr.bf16.mxu0 0
      %4877 = vmatpush2.bf16.xpose.msra.mxu0 0
      %4878 = vmatprep.subr.bf16.mxu0 0
      %4879 = vmatpush2.bf16.xpose.msra.mxu0 0
      %4880 = vmatprep.subr.bf16.mxu0 0
      %4881 = vmatpush2.bf16.xpose.msra.mxu0 0
      %4882 = vmatprep.subr.bf16.mxu0 0
      %4883 = vmatpush2.bf16.xpose.msra.mxu0 0
      %4884 = vmatprep.mubr.bf16.mxu0 0
      %4885 = vmatmul.mubr.bf16.gmra.mxu0 %v4841
      %v4886 = vpop.f32.mrf.mxu0
      %v4887 = vadd.f32 %v4552, %v4886
      %v4888 = vpop.f32.mrf.mxu0
      %v4889 = vpop.f32.mrf.mxu0
      %v4890 = vadd.f32 %v4553, %v4889
      %v4891 = vpop.f32.mrf.mxu0
      %4892 = vmatprep.mubr.bf16.mxu0 0
      %4893 = vmatmul.mubr.bf16.gmra.mxu0 %v4844
      %v4894 = vpop.f32.mrf.mxu0
      %v4895 = vadd.f32 %v4554, %v4894
      %v4896 = vpop.f32.mrf.mxu0
      %v4897 = vpop.f32.mrf.mxu0
      %v4898 = vadd.f32 %v4555, %v4897
      %v4899 = vpop.f32.mrf.mxu0
      %4900 = vdwg.mxu0
      %4901 = vrot.lane.b32.xlu0 %v651, 104
      %v4902 = vpop.permute.xlu0 %4901
      %4903 = vrot.lane.b32.xlu0 %v652, 104
      %v4904 = vpop.permute.xlu0 %4903
      %4905 = vrot.lane.b32.xlu0 %v651, 72
      %v4906 = vpop.permute.xlu0 %4905
      %4907 = vrot.lane.b32.xlu0 %v652, 72
      %v4908 = vpop.permute.xlu0 %4907
      %v4910 = vsel %vm281, %v4902, 0
      %v4913 = vsel %vm281, %v4904, 0
      %v4916 = vsel %vm281, %v4906, 0
      %v4919 = vsel %vm281, %v4908, 0
      %4921 = vmatprep.subr.bf16.mxu0 0
      %4922 = vmatpush1.bf16.xpose.msra.mxu0 0
      %4923 = vmatprep.subr.bf16.mxu0 0
      %4924 = vmatpush1.bf16.xpose.msra.mxu0 0
      %4925 = vmatprep.subr.bf16.mxu0 0
      %4926 = vmatpush1.bf16.xpose.msra.mxu0 0
      %4927 = vmatprep.subr.bf16.mxu0 0
      %4928 = vmatpush1.bf16.xpose.msra.mxu0 0
      %4929 = vmatprep.subr.bf16.mxu0 0
      %4930 = vmatpush1.bf16.xpose.msra.mxu0 0
      %4931 = vmatprep.subr.bf16.mxu0 0
      %4932 = vmatpush1.bf16.xpose.msra.mxu0 0
      %4933 = vmatprep.subr.bf16.mxu0 0
      %4934 = vmatpush1.bf16.xpose.msra.mxu0 %v4919
      %4935 = vmatprep.subr.bf16.mxu0 0
      %4936 = vmatpush1.bf16.xpose.msra.mxu0 %v4916
      %4937 = vmatprep.subr.bf16.mxu0 0
      %4938 = vmatpush2.bf16.xpose.msra.mxu0 0
      %4939 = vmatprep.subr.bf16.mxu0 0
      %4940 = vmatpush2.bf16.xpose.msra.mxu0 0
      %4941 = vmatprep.subr.bf16.mxu0 0
      %4942 = vmatpush2.bf16.xpose.msra.mxu0 0
      %4943 = vmatprep.subr.bf16.mxu0 0
      %4944 = vmatpush2.bf16.xpose.msra.mxu0 0
      %4945 = vmatprep.subr.bf16.mxu0 0
      %4946 = vmatpush2.bf16.xpose.msra.mxu0 0
      %4947 = vmatprep.subr.bf16.mxu0 0
      %4948 = vmatpush2.bf16.xpose.msra.mxu0 0
      %4949 = vmatprep.subr.bf16.mxu0 0
      %4950 = vmatpush2.bf16.xpose.msra.mxu0 0
      %4951 = vmatprep.subr.bf16.mxu0 0
      %4952 = vmatpush2.bf16.xpose.msra.mxu0 0
      %4953 = vmatprep.mubr.bf16.mxu0 0
      %4954 = vmatmul.mubr.bf16.gmra.mxu0 %v4910
      %v4955 = vpop.f32.mrf.mxu0
      %v4956 = vadd.f32 %v4552, %v4955
      %v4957 = vpop.f32.mrf.mxu0
      %v4958 = vpop.f32.mrf.mxu0
      %v4959 = vadd.f32 %v4553, %v4958
      %v4960 = vpop.f32.mrf.mxu0
      %4961 = vmatprep.mubr.bf16.mxu0 0
      %4962 = vmatmul.mubr.bf16.gmra.mxu0 %v4913
      %v4963 = vpop.f32.mrf.mxu0
      %v4964 = vadd.f32 %v4554, %v4963
      %v4965 = vpop.f32.mrf.mxu0
      %v4966 = vpop.f32.mrf.mxu0
      %v4967 = vadd.f32 %v4555, %v4966
      %v4968 = vpop.f32.mrf.mxu0
      %4969 = vdwg.mxu0
      %4970 = vrot.lane.b32.xlu0 %v726, 104
      %v4971 = vpop.permute.xlu0 %4970
      %4972 = vrot.lane.b32.xlu0 %v727, 104
      %v4973 = vpop.permute.xlu0 %4972
      %4974 = vrot.lane.b32.xlu0 %v726, 72
      %v4975 = vpop.permute.xlu0 %4974
      %4976 = vrot.lane.b32.xlu0 %v727, 72
      %v4977 = vpop.permute.xlu0 %4976
      %v4979 = vsel %vm281, %v4971, 0
      %v4982 = vsel %vm281, %v4973, 0
      %v4985 = vsel %vm281, %v4975, 0
      %v4988 = vsel %vm281, %v4977, 0
      %4990 = vmatprep.subr.bf16.mxu0 0
      %4991 = vmatpush1.bf16.xpose.msra.mxu0 0
      %4992 = vmatprep.subr.bf16.mxu0 0
      %4993 = vmatpush1.bf16.xpose.msra.mxu0 0
      %4994 = vmatprep.subr.bf16.mxu0 0
      %4995 = vmatpush1.bf16.xpose.msra.mxu0 0
      %4996 = vmatprep.subr.bf16.mxu0 0
      %4997 = vmatpush1.bf16.xpose.msra.mxu0 0
      %4998 = vmatprep.subr.bf16.mxu0 0
      %4999 = vmatpush1.bf16.xpose.msra.mxu0 0
      %5000 = vmatprep.subr.bf16.mxu0 0
      %5001 = vmatpush1.bf16.xpose.msra.mxu0 0
      %5002 = vmatprep.subr.bf16.mxu0 0
      %5003 = vmatpush1.bf16.xpose.msra.mxu0 %v4988
      %5004 = vmatprep.subr.bf16.mxu0 0
      %5005 = vmatpush1.bf16.xpose.msra.mxu0 %v4985
      %5006 = vmatprep.subr.bf16.mxu0 0
      %5007 = vmatpush2.bf16.xpose.msra.mxu0 0
      %5008 = vmatprep.subr.bf16.mxu0 0
      %5009 = vmatpush2.bf16.xpose.msra.mxu0 0
      %5010 = vmatprep.subr.bf16.mxu0 0
      %5011 = vmatpush2.bf16.xpose.msra.mxu0 0
      %5012 = vmatprep.subr.bf16.mxu0 0
      %5013 = vmatpush2.bf16.xpose.msra.mxu0 0
      %5014 = vmatprep.subr.bf16.mxu0 0
      %5015 = vmatpush2.bf16.xpose.msra.mxu0 0
      %5016 = vmatprep.subr.bf16.mxu0 0
      %5017 = vmatpush2.bf16.xpose.msra.mxu0 0
      %5018 = vmatprep.subr.bf16.mxu0 0
      %5019 = vmatpush2.bf16.xpose.msra.mxu0 0
      %5020 = vmatprep.subr.bf16.mxu0 0
      %5021 = vmatpush2.bf16.xpose.msra.mxu0 0
      %5022 = vmatprep.mubr.bf16.mxu0 0
      %5023 = vmatmul.mubr.bf16.gmra.mxu0 %v4979
      %v5024 = vpop.f32.mrf.mxu0
      %v5025 = vadd.f32 %v4552, %v5024
      %v5026 = vpop.f32.mrf.mxu0
      %v5027 = vpop.f32.mrf.mxu0
      %v5028 = vadd.f32 %v4553, %v5027
      %v5029 = vpop.f32.mrf.mxu0
      %5030 = vmatprep.mubr.bf16.mxu0 0
      %5031 = vmatmul.mubr.bf16.gmra.mxu0 %v4982
      %v5032 = vpop.f32.mrf.mxu0
      %v5033 = vadd.f32 %v4554, %v5032
      %v5034 = vpop.f32.mrf.mxu0
      %v5035 = vpop.f32.mrf.mxu0
      %v5036 = vadd.f32 %v4555, %v5035
      %v5037 = vpop.f32.mrf.mxu0
      %5038 = vdwg.mxu0
      %5039 = vrot.lane.b32.xlu0 %v801, 104
      %v5040 = vpop.permute.xlu0 %5039
      %5041 = vrot.lane.b32.xlu0 %v802, 104
      %v5042 = vpop.permute.xlu0 %5041
      %5043 = vrot.lane.b32.xlu0 %v801, 72
      %v5044 = vpop.permute.xlu0 %5043
      %5045 = vrot.lane.b32.xlu0 %v802, 72
      %v5046 = vpop.permute.xlu0 %5045
      %v5048 = vsel %vm281, %v5040, 0
      %v5051 = vsel %vm281, %v5042, 0
      %v5054 = vsel %vm281, %v5044, 0
      %v5057 = vsel %vm281, %v5046, 0
      %5059 = vmatprep.subr.bf16.mxu0 0
      %5060 = vmatpush1.bf16.xpose.msra.mxu0 0
      %5061 = vmatprep.subr.bf16.mxu0 0
      %5062 = vmatpush1.bf16.xpose.msra.mxu0 0
      %5063 = vmatprep.subr.bf16.mxu0 0
      %5064 = vmatpush1.bf16.xpose.msra.mxu0 0
      %5065 = vmatprep.subr.bf16.mxu0 0
      %5066 = vmatpush1.bf16.xpose.msra.mxu0 0
      %5067 = vmatprep.subr.bf16.mxu0 0
      %5068 = vmatpush1.bf16.xpose.msra.mxu0 0
      %5069 = vmatprep.subr.bf16.mxu0 0
      %5070 = vmatpush1.bf16.xpose.msra.mxu0 0
      %5071 = vmatprep.subr.bf16.mxu0 0
      %5072 = vmatpush1.bf16.xpose.msra.mxu0 %v5057
      %5073 = vmatprep.subr.bf16.mxu0 0
      %5074 = vmatpush1.bf16.xpose.msra.mxu0 %v5054
      %5075 = vmatprep.subr.bf16.mxu0 0
      %5076 = vmatpush2.bf16.xpose.msra.mxu0 0
      %5077 = vmatprep.subr.bf16.mxu0 0
      %5078 = vmatpush2.bf16.xpose.msra.mxu0 0
      %5079 = vmatprep.subr.bf16.mxu0 0
      %5080 = vmatpush2.bf16.xpose.msra.mxu0 0
      %5081 = vmatprep.subr.bf16.mxu0 0
      %5082 = vmatpush2.bf16.xpose.msra.mxu0 0
      %5083 = vmatprep.subr.bf16.mxu0 0
      %5084 = vmatpush2.bf16.xpose.msra.mxu0 0
      %5085 = vmatprep.subr.bf16.mxu0 0
      %5086 = vmatpush2.bf16.xpose.msra.mxu0 0
      %5087 = vmatprep.subr.bf16.mxu0 0
      %5088 = vmatpush2.bf16.xpose.msra.mxu0 0
      %5089 = vmatprep.subr.bf16.mxu0 0
      %5090 = vmatpush2.bf16.xpose.msra.mxu0 0
      %5091 = vmatprep.mubr.bf16.mxu0 0
      %5092 = vmatmul.mubr.bf16.gmra.mxu0 %v5048
      %v5093 = vpop.f32.mrf.mxu0
      %v5094 = vadd.f32 %v4552, %v5093
      %v5095 = vpop.f32.mrf.mxu0
      %v5096 = vpop.f32.mrf.mxu0
      %v5097 = vadd.f32 %v4553, %v5096
      %v5098 = vpop.f32.mrf.mxu0
      %5099 = vmatprep.mubr.bf16.mxu0 0
      %5100 = vmatmul.mubr.bf16.gmra.mxu0 %v5051
      %v5101 = vpop.f32.mrf.mxu0
      %v5102 = vadd.f32 %v4554, %v5101
      %v5103 = vpop.f32.mrf.mxu0
      %v5104 = vpop.f32.mrf.mxu0
      %v5105 = vadd.f32 %v4555, %v5104
      %v5106 = vpop.f32.mrf.mxu0
      %5107 = vdwg.mxu0
      %v5108 = vsel %vm868, %v4611, -inf
      %5109 = vmax.xlane.f32.xlu0 %v5108
      %v5110 = vpop.xlane.xlu0 %5109
      %v5111 = vsel %vm868, %v4614, -inf
      %5112 = vmax.xlane.f32.xlu0 %v5111
      %v5113 = vpop.xlane.xlu0 %5112
      %v5114 = vsel %vm868, %v4619, -inf
      %5115 = vmax.xlane.f32.xlu0 %v5114
      %v5116 = vpop.xlane.xlu0 %5115
      %v5117 = vsel %vm868, %v4622, -inf
      %5118 = vmax.xlane.f32.xlu0 %v5117
      %v5119 = vpop.xlane.xlu0 %5118
      %v5120 = vsel %vm868, %v4680, -inf
      %5121 = vmax.xlane.f32.xlu0 %v5120
      %v5122 = vpop.xlane.xlu0 %5121
      %v5123 = vsel %vm868, %v4683, -inf
      %5124 = vmax.xlane.f32.xlu0 %v5123
      %v5125 = vpop.xlane.xlu0 %5124
      %v5126 = vsel %vm868, %v4688, -inf
      %5127 = vmax.xlane.f32.xlu0 %v5126
      %v5128 = vpop.xlane.xlu0 %5127
      %v5129 = vsel %vm868, %v4691, -inf
      %5130 = vmax.xlane.f32.xlu0 %v5129
      %v5131 = vpop.xlane.xlu0 %5130
      %v5132 = vsel %vm868, %v4749, -inf
      %5133 = vmax.xlane.f32.xlu0 %v5132
      %v5134 = vpop.xlane.xlu0 %5133
      %v5135 = vsel %vm868, %v4752, -inf
      %5136 = vmax.xlane.f32.xlu0 %v5135
      %v5137 = vpop.xlane.xlu0 %5136
      %v5138 = vsel %vm868, %v4757, -inf
      %5139 = vmax.xlane.f32.xlu0 %v5138
      %v5140 = vpop.xlane.xlu0 %5139
      %v5141 = vsel %vm868, %v4760, -inf
      %5142 = vmax.xlane.f32.xlu0 %v5141
      %v5143 = vpop.xlane.xlu0 %5142
      %v5144 = vsel %vm868, %v4818, -inf
      %5145 = vmax.xlane.f32.xlu0 %v5144
      %v5146 = vpop.xlane.xlu0 %5145
      %v5147 = vsel %vm868, %v4821, -inf
      %5148 = vmax.xlane.f32.xlu0 %v5147
      %v5149 = vpop.xlane.xlu0 %5148
      %v5150 = vsel %vm868, %v4826, -inf
      %5151 = vmax.xlane.f32.xlu0 %v5150
      %v5152 = vpop.xlane.xlu0 %5151
      %v5153 = vsel %vm868, %v4829, -inf
      %5154 = vmax.xlane.f32.xlu0 %v5153
      %v5155 = vpop.xlane.xlu0 %5154
      %v5156 = vsel %vm868, %v4887, -inf
      %5157 = vmax.xlane.f32.xlu0 %v5156
      %v5158 = vpop.xlane.xlu0 %5157
      %v5159 = vsel %vm868, %v4890, -inf
      %5160 = vmax.xlane.f32.xlu0 %v5159
      %v5161 = vpop.xlane.xlu0 %5160
      %v5162 = vsel %vm868, %v4895, -inf
      %5163 = vmax.xlane.f32.xlu0 %v5162
      %v5164 = vpop.xlane.xlu0 %5163
      %v5165 = vsel %vm868, %v4898, -inf
      %5166 = vmax.xlane.f32.xlu0 %v5165
      %v5167 = vpop.xlane.xlu0 %5166
      %v5168 = vsel %vm868, %v4956, -inf
      %5169 = vmax.xlane.f32.xlu0 %v5168
      %v5170 = vpop.xlane.xlu0 %5169
      %v5171 = vsel %vm868, %v4959, -inf
      %5172 = vmax.xlane.f32.xlu0 %v5171
      %v5173 = vpop.xlane.xlu0 %5172
      %v5174 = vsel %vm868, %v4964, -inf
      %5175 = vmax.xlane.f32.xlu0 %v5174
      %v5176 = vpop.xlane.xlu0 %5175
      %v5177 = vsel %vm868, %v4967, -inf
      %5178 = vmax.xlane.f32.xlu0 %v5177
      %v5179 = vpop.xlane.xlu0 %5178
      %v5180 = vsel %vm868, %v5025, -inf
      %5181 = vmax.xlane.f32.xlu0 %v5180
      %v5182 = vpop.xlane.xlu0 %5181
      %v5183 = vsel %vm868, %v5028, -inf
      %5184 = vmax.xlane.f32.xlu0 %v5183
      %v5185 = vpop.xlane.xlu0 %5184
      %v5186 = vsel %vm868, %v5033, -inf
      %5187 = vmax.xlane.f32.xlu0 %v5186
      %v5188 = vpop.xlane.xlu0 %5187
      %v5189 = vsel %vm868, %v5036, -inf
      %5190 = vmax.xlane.f32.xlu0 %v5189
      %v5191 = vpop.xlane.xlu0 %5190
      %v5192 = vsel %vm868, %v5094, -inf
      %5193 = vmax.xlane.f32.xlu0 %v5192
      %v5194 = vpop.xlane.xlu0 %5193
      %v5195 = vsel %vm868, %v5097, -inf
      %5196 = vmax.xlane.f32.xlu0 %v5195
      %v5197 = vpop.xlane.xlu0 %5196
      %v5198 = vsel %vm868, %v5102, -inf
      %5199 = vmax.xlane.f32.xlu0 %v5198
      %v5200 = vpop.xlane.xlu0 %5199
      %v5201 = vsel %vm868, %v5105, -inf
      %5202 = vmax.xlane.f32.xlu0 %v5201
      %v5203 = vpop.xlane.xlu0 %5202
      %v5204 = vsub.f32 %v4611, %v5110
      %v5205 = vsub.f32 %v4614, %v5113
      %v5206 = vsub.f32 %v4619, %v5116
      %v5207 = vsub.f32 %v4622, %v5119
      %v5208 = vsub.f32 %v4680, %v5122
      %v5209 = vsub.f32 %v4683, %v5125
      %v5210 = vsub.f32 %v4688, %v5128
      %v5211 = vsub.f32 %v4691, %v5131
      %v5212 = vsub.f32 %v4749, %v5134
      %v5213 = vsub.f32 %v4752, %v5137
      %v5214 = vsub.f32 %v4757, %v5140
      %v5215 = vsub.f32 %v4760, %v5143
      %v5216 = vsub.f32 %v4818, %v5146
      %v5217 = vsub.f32 %v4821, %v5149
      %v5218 = vsub.f32 %v4826, %v5152
      %v5219 = vsub.f32 %v4829, %v5155
      %v5220 = vsub.f32 %v4887, %v5158
      %v5221 = vsub.f32 %v4890, %v5161
      %v5222 = vsub.f32 %v4895, %v5164
      %v5223 = vsub.f32 %v4898, %v5167
      %v5224 = vsub.f32 %v4956, %v5170
      %v5225 = vsub.f32 %v4959, %v5173
      %v5226 = vsub.f32 %v4964, %v5176
      %v5227 = vsub.f32 %v4967, %v5179
      %v5228 = vsub.f32 %v5025, %v5182
      %v5229 = vsub.f32 %v5028, %v5185
      %v5230 = vsub.f32 %v5033, %v5188
      %v5231 = vsub.f32 %v5036, %v5191
      %v5232 = vsub.f32 %v5094, %v5194
      %v5233 = vsub.f32 %v5097, %v5197
      %v5234 = vsub.f32 %v5102, %v5200
      %v5235 = vsub.f32 %v5105, %v5203
      %v5236 = vmul.f32 %v5204, 1.442695
      %v5237 = vpow.pop %v5236
      %v5238 = vmul.f32 %v5205, 1.442695
      %v5239 = vpow.pop %v5238
      %v5240 = vmul.f32 %v5206, 1.442695
      %v5241 = vpow.pop %v5240
      %v5242 = vmul.f32 %v5207, 1.442695
      %v5243 = vpow.pop %v5242
      %v5244 = vmul.f32 %v5208, 1.442695
      %v5245 = vpow.pop %v5244
      %v5246 = vmul.f32 %v5209, 1.442695
      %v5247 = vpow.pop %v5246
      %v5248 = vmul.f32 %v5210, 1.442695
      %v5249 = vpow.pop %v5248
      %v5250 = vmul.f32 %v5211, 1.442695
      %v5251 = vpow.pop %v5250
      %v5252 = vmul.f32 %v5212, 1.442695
      %v5253 = vpow.pop %v5252
      %v5254 = vmul.f32 %v5213, 1.442695
      %v5255 = vpow.pop %v5254
      %v5256 = vmul.f32 %v5214, 1.442695
      %v5257 = vpow.pop %v5256
      %v5258 = vmul.f32 %v5215, 1.442695
      %v5259 = vpow.pop %v5258
      %v5260 = vmul.f32 %v5216, 1.442695
      %v5261 = vpow.pop %v5260
      %v5262 = vmul.f32 %v5217, 1.442695
      %v5263 = vpow.pop %v5262
      %v5264 = vmul.f32 %v5218, 1.442695
      %v5265 = vpow.pop %v5264
      %v5266 = vmul.f32 %v5219, 1.442695
      %v5267 = vpow.pop %v5266
      %v5268 = vmul.f32 %v5220, 1.442695
      %v5269 = vpow.pop %v5268
      %v5270 = vmul.f32 %v5221, 1.442695
      %v5271 = vpow.pop %v5270
      %v5272 = vmul.f32 %v5222, 1.442695
      %v5273 = vpow.pop %v5272
      %v5274 = vmul.f32 %v5223, 1.442695
      %v5275 = vpow.pop %v5274
      %v5276 = vmul.f32 %v5224, 1.442695
      %v5277 = vpow.pop %v5276
      %v5278 = vmul.f32 %v5225, 1.442695
      %v5279 = vpow.pop %v5278
      %v5280 = vmul.f32 %v5226, 1.442695
      %v5281 = vpow.pop %v5280
      %v5282 = vmul.f32 %v5227, 1.442695
      %v5283 = vpow.pop %v5282
      %v5284 = vmul.f32 %v5228, 1.442695
      %v5285 = vpow.pop %v5284
      %v5286 = vmul.f32 %v5229, 1.442695
      %v5287 = vpow.pop %v5286
      %v5288 = vmul.f32 %v5230, 1.442695
      %v5289 = vpow.pop %v5288
      %v5290 = vmul.f32 %v5231, 1.442695
      %v5291 = vpow.pop %v5290
      %v5292 = vmul.f32 %v5232, 1.442695
      %v5293 = vpow.pop %v5292
      %v5294 = vmul.f32 %v5233, 1.442695
      %v5295 = vpow.pop %v5294
      %v5296 = vmul.f32 %v5234, 1.442695
      %v5297 = vpow.pop %v5296
      %v5298 = vmul.f32 %v5235, 1.442695
      %v5299 = vpow.pop %v5298
      %v5300 = vsel %vm868, %v5237, 0.0
      %5301 = vadd.xlane.f32.xlu0 %v5300
      %v5302 = vpop.xlane.xlu0 %5301
      %v5303 = vsel %vm868, %v5239, 0.0
      %5304 = vadd.xlane.f32.xlu0 %v5303
      %v5305 = vpop.xlane.xlu0 %5304
      %v5306 = vsel %vm868, %v5241, 0.0
      %5307 = vadd.xlane.f32.xlu0 %v5306
      %v5308 = vpop.xlane.xlu0 %5307
      %v5309 = vsel %vm868, %v5243, 0.0
      %5310 = vadd.xlane.f32.xlu0 %v5309
      %v5311 = vpop.xlane.xlu0 %5310
      %v5312 = vsel %vm868, %v5245, 0.0
      %5313 = vadd.xlane.f32.xlu0 %v5312
      %v5314 = vpop.xlane.xlu0 %5313
      %v5315 = vsel %vm868, %v5247, 0.0
      %5316 = vadd.xlane.f32.xlu0 %v5315
      %v5317 = vpop.xlane.xlu0 %5316
      %v5318 = vsel %vm868, %v5249, 0.0
      %5319 = vadd.xlane.f32.xlu0 %v5318
      %v5320 = vpop.xlane.xlu0 %5319
      %v5321 = vsel %vm868, %v5251, 0.0
      %5322 = vadd.xlane.f32.xlu0 %v5321
      %v5323 = vpop.xlane.xlu0 %5322
      %v5324 = vsel %vm868, %v5253, 0.0
      %5325 = vadd.xlane.f32.xlu0 %v5324
      %v5326 = vpop.xlane.xlu0 %5325
      %v5327 = vsel %vm868, %v5255, 0.0
      %5328 = vadd.xlane.f32.xlu0 %v5327
      %v5329 = vpop.xlane.xlu0 %5328
      %v5330 = vsel %vm868, %v5257, 0.0
      %5331 = vadd.xlane.f32.xlu0 %v5330
      %v5332 = vpop.xlane.xlu0 %5331
      %v5333 = vsel %vm868, %v5259, 0.0
      %5334 = vadd.xlane.f32.xlu0 %v5333
      %v5335 = vpop.xlane.xlu0 %5334
      %v5336 = vsel %vm868, %v5261, 0.0
      %5337 = vadd.xlane.f32.xlu0 %v5336
      %v5338 = vpop.xlane.xlu0 %5337
      %v5339 = vsel %vm868, %v5263, 0.0
      %5340 = vadd.xlane.f32.xlu0 %v5339
      %v5341 = vpop.xlane.xlu0 %5340
      %v5342 = vsel %vm868, %v5265, 0.0
      %5343 = vadd.xlane.f32.xlu0 %v5342
      %v5344 = vpop.xlane.xlu0 %5343
      %v5345 = vsel %vm868, %v5267, 0.0
      %5346 = vadd.xlane.f32.xlu0 %v5345
      %v5347 = vpop.xlane.xlu0 %5346
      %v5348 = vsel %vm868, %v5269, 0.0
      %5349 = vadd.xlane.f32.xlu0 %v5348
      %v5350 = vpop.xlane.xlu0 %5349
      %v5351 = vsel %vm868, %v5271, 0.0
      %5352 = vadd.xlane.f32.xlu0 %v5351
      %v5353 = vpop.xlane.xlu0 %5352
      %v5354 = vsel %vm868, %v5273, 0.0
      %5355 = vadd.xlane.f32.xlu0 %v5354
      %v5356 = vpop.xlane.xlu0 %5355
      %v5357 = vsel %vm868, %v5275, 0.0
      %5358 = vadd.xlane.f32.xlu0 %v5357
      %v5359 = vpop.xlane.xlu0 %5358
      %v5360 = vsel %vm868, %v5277, 0.0
      %5361 = vadd.xlane.f32.xlu0 %v5360
      %v5362 = vpop.xlane.xlu0 %5361
      %v5363 = vsel %vm868, %v5279, 0.0
      %5364 = vadd.xlane.f32.xlu0 %v5363
      %v5365 = vpop.xlane.xlu0 %5364
      %v5366 = vsel %vm868, %v5281, 0.0
      %5367 = vadd.xlane.f32.xlu0 %v5366
      %v5368 = vpop.xlane.xlu0 %5367
      %v5369 = vsel %vm868, %v5283, 0.0
      %5370 = vadd.xlane.f32.xlu0 %v5369
      %v5371 = vpop.xlane.xlu0 %5370
      %v5372 = vsel %vm868, %v5285, 0.0
      %5373 = vadd.xlane.f32.xlu0 %v5372
      %v5374 = vpop.xlane.xlu0 %5373
      %v5375 = vsel %vm868, %v5287, 0.0
      %5376 = vadd.xlane.f32.xlu0 %v5375
      %v5377 = vpop.xlane.xlu0 %5376
      %v5378 = vsel %vm868, %v5289, 0.0
      %5379 = vadd.xlane.f32.xlu0 %v5378
      %v5380 = vpop.xlane.xlu0 %5379
      %v5381 = vsel %vm868, %v5291, 0.0
      %5382 = vadd.xlane.f32.xlu0 %v5381
      %v5383 = vpop.xlane.xlu0 %5382
      %v5384 = vsel %vm868, %v5293, 0.0
      %5385 = vadd.xlane.f32.xlu0 %v5384
      %v5386 = vpop.xlane.xlu0 %5385
      %v5387 = vsel %vm868, %v5295, 0.0
      %5388 = vadd.xlane.f32.xlu0 %v5387
      %v5389 = vpop.xlane.xlu0 %5388
      %v5390 = vsel %vm868, %v5297, 0.0
      %5391 = vadd.xlane.f32.xlu0 %v5390
      %v5392 = vpop.xlane.xlu0 %5391
      %v5393 = vsel %vm868, %v5299, 0.0
      %5394 = vadd.xlane.f32.xlu0 %v5393
      %v5395 = vpop.xlane.xlu0 %5394
      %v5396 = vrcp.pop %v5302
      %v5397 = vrcp.pop %v5305
      %v5398 = vrcp.pop %v5308
      %v5399 = vrcp.pop %v5311
      %v5400 = vrcp.pop %v5314
      %v5401 = vrcp.pop %v5317
      %v5402 = vrcp.pop %v5320
      %v5403 = vrcp.pop %v5323
      %v5404 = vrcp.pop %v5326
      %v5405 = vrcp.pop %v5329
      %v5406 = vrcp.pop %v5332
      %v5407 = vrcp.pop %v5335
      %v5408 = vrcp.pop %v5338
      %v5409 = vrcp.pop %v5341
      %v5410 = vrcp.pop %v5344
      %v5411 = vrcp.pop %v5347
      %v5412 = vrcp.pop %v5350
      %v5413 = vrcp.pop %v5353
      %v5414 = vrcp.pop %v5356
      %v5415 = vrcp.pop %v5359
      %v5416 = vrcp.pop %v5362
      %v5417 = vrcp.pop %v5365
      %v5418 = vrcp.pop %v5368
      %v5419 = vrcp.pop %v5371
      %v5420 = vrcp.pop %v5374
      %v5421 = vrcp.pop %v5377
      %v5422 = vrcp.pop %v5380
      %v5423 = vrcp.pop %v5383
      %v5424 = vrcp.pop %v5386
      %v5425 = vrcp.pop %v5389
      %v5426 = vrcp.pop %v5392
      %v5427 = vrcp.pop %v5395
      %v5428 = vmul.f32 %v5237, %v5396
      %v5429 = vmul.f32 %v5239, %v5397
      %v5430 = vmul.f32 %v5241, %v5398
      %v5431 = vmul.f32 %v5243, %v5399
      %v5432 = vmul.f32 %v5245, %v5400
      %v5433 = vmul.f32 %v5247, %v5401
      %v5434 = vmul.f32 %v5249, %v5402
      %v5435 = vmul.f32 %v5251, %v5403
      %v5436 = vmul.f32 %v5253, %v5404
      %v5437 = vmul.f32 %v5255, %v5405
      %v5438 = vmul.f32 %v5257, %v5406
      %v5439 = vmul.f32 %v5259, %v5407
      %v5440 = vmul.f32 %v5261, %v5408
      %v5441 = vmul.f32 %v5263, %v5409
      %v5442 = vmul.f32 %v5265, %v5410
      %v5443 = vmul.f32 %v5267, %v5411
      %v5444 = vmul.f32 %v5269, %v5412
      %v5445 = vmul.f32 %v5271, %v5413
      %v5446 = vmul.f32 %v5273, %v5414
      %v5447 = vmul.f32 %v5275, %v5415
      %v5448 = vmul.f32 %v5277, %v5416
      %v5449 = vmul.f32 %v5279, %v5417
      %v5450 = vmul.f32 %v5281, %v5418
      %v5451 = vmul.f32 %v5283, %v5419
      %v5452 = vmul.f32 %v5285, %v5420
      %v5453 = vmul.f32 %v5287, %v5421
      %v5454 = vmul.f32 %v5289, %v5422
      %v5455 = vmul.f32 %v5291, %v5423
      %v5456 = vmul.f32 %v5293, %v5424
      %v5457 = vmul.f32 %v5295, %v5425
      %v5458 = vmul.f32 %v5297, %v5426
      %v5459 = vmul.f32 %v5299, %v5427
      %v5460 = vpack.c.bf16 %v5429, %v5428
      %v5461 = vpack.c.bf16 %v5431, %v5430
      %v5462 = vpack.c.bf16 %v5433, %v5432
      %v5463 = vpack.c.bf16 %v5435, %v5434
      %v5464 = vpack.c.bf16 %v5437, %v5436
      %v5465 = vpack.c.bf16 %v5439, %v5438
      %v5466 = vpack.c.bf16 %v5441, %v5440
      %v5467 = vpack.c.bf16 %v5443, %v5442
      %v5468 = vpack.c.bf16 %v5445, %v5444
      %v5469 = vpack.c.bf16 %v5447, %v5446
      %v5470 = vpack.c.bf16 %v5449, %v5448
      %v5471 = vpack.c.bf16 %v5451, %v5450
      %v5472 = vpack.c.bf16 %v5453, %v5452
      %v5473 = vpack.c.bf16 %v5455, %v5454
      %v5474 = vpack.c.bf16 %v5457, %v5456
      %v5475 = vpack.c.bf16 %v5459, %v5458
      %5476 = vrot.lane.b32.xlu0 %v275, 40
      %v5477 = vpop.permute.xlu0 %5476
      %5478 = vrot.lane.b32.xlu0 %v276, 40
      %v5479 = vpop.permute.xlu0 %5478
      %v5483 = vsel %vm868, %v5460, 0
      %v5486 = vsel %vm868, %v5461, 0
      %5488 = vmatprep.subr.bf16.mxu0 0
      %5489 = vmatpush1.bf16.msra.mxu0 0
      %5490 = vmatprep.subr.bf16.mxu0 0
      %5491 = vmatpush1.bf16.msra.mxu0 0
      %5492 = vmatprep.subr.bf16.mxu0 0
      %5493 = vmatpush1.bf16.msra.mxu0 0
      %5494 = vmatprep.subr.bf16.mxu0 0
      %5495 = vmatpush1.bf16.msra.mxu0 0
      %5496 = vmatprep.subr.bf16.mxu0 0
      %5497 = vmatpush1.bf16.msra.mxu0 0
      %5498 = vmatprep.subr.bf16.mxu0 0
      %5499 = vmatpush1.bf16.msra.mxu0 0
      %5500 = vmatprep.subr.bf16.mxu0 0
      %5501 = vmatpush1.bf16.msra.mxu0 %v5479
      %5502 = vmatprep.subr.bf16.mxu0 0
      %5503 = vmatpush1.bf16.msra.mxu0 %v5477
      %5504 = vmatprep.subr.bf16.mxu0 0
      %5505 = vmatpush2.bf16.msra.mxu0 0
      %5506 = vmatprep.subr.bf16.mxu0 0
      %5507 = vmatpush2.bf16.msra.mxu0 0
      %5508 = vmatprep.subr.bf16.mxu0 0
      %5509 = vmatpush2.bf16.msra.mxu0 0
      %5510 = vmatprep.subr.bf16.mxu0 0
      %5511 = vmatpush2.bf16.msra.mxu0 0
      %5512 = vmatprep.subr.bf16.mxu0 0
      %5513 = vmatpush2.bf16.msra.mxu0 0
      %5514 = vmatprep.subr.bf16.mxu0 0
      %5515 = vmatpush2.bf16.msra.mxu0 0
      %5516 = vmatprep.subr.bf16.mxu0 0
      %5517 = vmatpush2.bf16.msra.mxu0 0
      %5518 = vmatprep.subr.bf16.mxu0 0
      %5519 = vmatpush2.bf16.msra.mxu0 0
      %5520 = vmatprep.mubr.bf16.mxu0 0
      %5521 = vmatmul.mubr.bf16.gmra.mxu0 %v5483
      %v5522 = vpop.f32.mrf.mxu0
      %v5523 = vadd.f32 0.0, %v5522
      %v5524 = vpop.f32.mrf.mxu0
      %v5525 = vpop.f32.mrf.mxu0
      %v5526 = vadd.f32 0.0, %v5525
      %v5527 = vpop.f32.mrf.mxu0
      %5528 = vmatprep.mubr.bf16.mxu0 0
      %5529 = vmatmul.mubr.bf16.gmra.mxu0 %v5486
      %v5530 = vpop.f32.mrf.mxu0
      %v5531 = vadd.f32 0.0, %v5530
      %v5532 = vpop.f32.mrf.mxu0
      %v5533 = vpop.f32.mrf.mxu0
      %v5534 = vadd.f32 0.0, %v5533
      %v5535 = vpop.f32.mrf.mxu0
      %5536 = vdwg.mxu0
      %5537 = vrot.lane.b32.xlu0 %v351, 40
      %v5538 = vpop.permute.xlu0 %5537
      %5539 = vrot.lane.b32.xlu0 %v352, 40
      %v5540 = vpop.permute.xlu0 %5539
      %v5544 = vsel %vm868, %v5462, 0
      %v5547 = vsel %vm868, %v5463, 0
      %5549 = vmatprep.subr.bf16.mxu0 0
      %5550 = vmatpush1.bf16.msra.mxu0 0
      %5551 = vmatprep.subr.bf16.mxu0 0
      %5552 = vmatpush1.bf16.msra.mxu0 0
      %5553 = vmatprep.subr.bf16.mxu0 0
      %5554 = vmatpush1.bf16.msra.mxu0 0
      %5555 = vmatprep.subr.bf16.mxu0 0
      %5556 = vmatpush1.bf16.msra.mxu0 0
      %5557 = vmatprep.subr.bf16.mxu0 0
      %5558 = vmatpush1.bf16.msra.mxu0 0
      %5559 = vmatprep.subr.bf16.mxu0 0
      %5560 = vmatpush1.bf16.msra.mxu0 0
      %5561 = vmatprep.subr.bf16.mxu0 0
      %5562 = vmatpush1.bf16.msra.mxu0 %v5540
      %5563 = vmatprep.subr.bf16.mxu0 0
      %5564 = vmatpush1.bf16.msra.mxu0 %v5538
      %5565 = vmatprep.subr.bf16.mxu0 0
      %5566 = vmatpush2.bf16.msra.mxu0 0
      %5567 = vmatprep.subr.bf16.mxu0 0
      %5568 = vmatpush2.bf16.msra.mxu0 0
      %5569 = vmatprep.subr.bf16.mxu0 0
      %5570 = vmatpush2.bf16.msra.mxu0 0
      %5571 = vmatprep.subr.bf16.mxu0 0
      %5572 = vmatpush2.bf16.msra.mxu0 0
      %5573 = vmatprep.subr.bf16.mxu0 0
      %5574 = vmatpush2.bf16.msra.mxu0 0
      %5575 = vmatprep.subr.bf16.mxu0 0
      %5576 = vmatpush2.bf16.msra.mxu0 0
      %5577 = vmatprep.subr.bf16.mxu0 0
      %5578 = vmatpush2.bf16.msra.mxu0 0
      %5579 = vmatprep.subr.bf16.mxu0 0
      %5580 = vmatpush2.bf16.msra.mxu0 0
      %5581 = vmatprep.mubr.bf16.mxu0 0
      %5582 = vmatmul.mubr.bf16.gmra.mxu0 %v5544
      %v5583 = vpop.f32.mrf.mxu0
      %v5584 = vadd.f32 0.0, %v5583
      %v5585 = vpop.f32.mrf.mxu0
      %v5586 = vpop.f32.mrf.mxu0
      %v5587 = vadd.f32 0.0, %v5586
      %v5588 = vpop.f32.mrf.mxu0
      %5589 = vmatprep.mubr.bf16.mxu0 0
      %5590 = vmatmul.mubr.bf16.gmra.mxu0 %v5547
      %v5591 = vpop.f32.mrf.mxu0
      %v5592 = vadd.f32 0.0, %v5591
      %v5593 = vpop.f32.mrf.mxu0
      %v5594 = vpop.f32.mrf.mxu0
      %v5595 = vadd.f32 0.0, %v5594
      %v5596 = vpop.f32.mrf.mxu0
      %5597 = vdwg.mxu0
      %5598 = vrot.lane.b32.xlu0 %v426, 40
      %v5599 = vpop.permute.xlu0 %5598
      %5600 = vrot.lane.b32.xlu0 %v427, 40
      %v5601 = vpop.permute.xlu0 %5600
      %v5605 = vsel %vm868, %v5464, 0
      %v5608 = vsel %vm868, %v5465, 0
      %5610 = vmatprep.subr.bf16.mxu0 0
      %5611 = vmatpush1.bf16.msra.mxu0 0
      %5612 = vmatprep.subr.bf16.mxu0 0
      %5613 = vmatpush1.bf16.msra.mxu0 0
      %5614 = vmatprep.subr.bf16.mxu0 0
      %5615 = vmatpush1.bf16.msra.mxu0 0
      %5616 = vmatprep.subr.bf16.mxu0 0
      %5617 = vmatpush1.bf16.msra.mxu0 0
      %5618 = vmatprep.subr.bf16.mxu0 0
      %5619 = vmatpush1.bf16.msra.mxu0 0
      %5620 = vmatprep.subr.bf16.mxu0 0
      %5621 = vmatpush1.bf16.msra.mxu0 0
      %5622 = vmatprep.subr.bf16.mxu0 0
      %5623 = vmatpush1.bf16.msra.mxu0 %v5601
      %5624 = vmatprep.subr.bf16.mxu0 0
      %5625 = vmatpush1.bf16.msra.mxu0 %v5599
      %5626 = vmatprep.subr.bf16.mxu0 0
      %5627 = vmatpush2.bf16.msra.mxu0 0
      %5628 = vmatprep.subr.bf16.mxu0 0
      %5629 = vmatpush2.bf16.msra.mxu0 0
      %5630 = vmatprep.subr.bf16.mxu0 0
      %5631 = vmatpush2.bf16.msra.mxu0 0
      %5632 = vmatprep.subr.bf16.mxu0 0
      %5633 = vmatpush2.bf16.msra.mxu0 0
      %5634 = vmatprep.subr.bf16.mxu0 0
      %5635 = vmatpush2.bf16.msra.mxu0 0
      %5636 = vmatprep.subr.bf16.mxu0 0
      %5637 = vmatpush2.bf16.msra.mxu0 0
      %5638 = vmatprep.subr.bf16.mxu0 0
      %5639 = vmatpush2.bf16.msra.mxu0 0
      %5640 = vmatprep.subr.bf16.mxu0 0
      %5641 = vmatpush2.bf16.msra.mxu0 0
      %5642 = vmatprep.mubr.bf16.mxu0 0
      %5643 = vmatmul.mubr.bf16.gmra.mxu0 %v5605
      %v5644 = vpop.f32.mrf.mxu0
      %v5645 = vadd.f32 0.0, %v5644
      %v5646 = vpop.f32.mrf.mxu0
      %v5647 = vpop.f32.mrf.mxu0
      %v5648 = vadd.f32 0.0, %v5647
      %v5649 = vpop.f32.mrf.mxu0
      %5650 = vmatprep.mubr.bf16.mxu0 0
      %5651 = vmatmul.mubr.bf16.gmra.mxu0 %v5608
      %v5652 = vpop.f32.mrf.mxu0
      %v5653 = vadd.f32 0.0, %v5652
      %v5654 = vpop.f32.mrf.mxu0
      %v5655 = vpop.f32.mrf.mxu0
      %v5656 = vadd.f32 0.0, %v5655
      %v5657 = vpop.f32.mrf.mxu0
      %5658 = vdwg.mxu0
      %5659 = vrot.lane.b32.xlu0 %v501, 40
      %v5660 = vpop.permute.xlu0 %5659
      %5661 = vrot.lane.b32.xlu0 %v502, 40
      %v5662 = vpop.permute.xlu0 %5661
      %v5666 = vsel %vm868, %v5466, 0
      %v5669 = vsel %vm868, %v5467, 0
      %5671 = vmatprep.subr.bf16.mxu0 0
      %5672 = vmatpush1.bf16.msra.mxu0 0
      %5673 = vmatprep.subr.bf16.mxu0 0
      %5674 = vmatpush1.bf16.msra.mxu0 0
      %5675 = vmatprep.subr.bf16.mxu0 0
      %5676 = vmatpush1.bf16.msra.mxu0 0
      %5677 = vmatprep.subr.bf16.mxu0 0
      %5678 = vmatpush1.bf16.msra.mxu0 0
      %5679 = vmatprep.subr.bf16.mxu0 0
      %5680 = vmatpush1.bf16.msra.mxu0 0
      %5681 = vmatprep.subr.bf16.mxu0 0
      %5682 = vmatpush1.bf16.msra.mxu0 0
      %5683 = vmatprep.subr.bf16.mxu0 0
      %5684 = vmatpush1.bf16.msra.mxu0 %v5662
      %5685 = vmatprep.subr.bf16.mxu0 0
      %5686 = vmatpush1.bf16.msra.mxu0 %v5660
      %5687 = vmatprep.subr.bf16.mxu0 0
      %5688 = vmatpush2.bf16.msra.mxu0 0
      %5689 = vmatprep.subr.bf16.mxu0 0
      %5690 = vmatpush2.bf16.msra.mxu0 0
      %5691 = vmatprep.subr.bf16.mxu0 0
      %5692 = vmatpush2.bf16.msra.mxu0 0
      %5693 = vmatprep.subr.bf16.mxu0 0
      %5694 = vmatpush2.bf16.msra.mxu0 0
      %5695 = vmatprep.subr.bf16.mxu0 0
      %5696 = vmatpush2.bf16.msra.mxu0 0
      %5697 = vmatprep.subr.bf16.mxu0 0
      %5698 = vmatpush2.bf16.msra.mxu0 0
      %5699 = vmatprep.subr.bf16.mxu0 0
      %5700 = vmatpush2.bf16.msra.mxu0 0
      %5701 = vmatprep.subr.bf16.mxu0 0
      %5702 = vmatpush2.bf16.msra.mxu0 0
      %5703 = vmatprep.mubr.bf16.mxu0 0
      %5704 = vmatmul.mubr.bf16.gmra.mxu0 %v5666
      %v5705 = vpop.f32.mrf.mxu0
      %v5706 = vadd.f32 0.0, %v5705
      %v5707 = vpop.f32.mrf.mxu0
      %v5708 = vpop.f32.mrf.mxu0
      %v5709 = vadd.f32 0.0, %v5708
      %v5710 = vpop.f32.mrf.mxu0
      %5711 = vmatprep.mubr.bf16.mxu0 0
      %5712 = vmatmul.mubr.bf16.gmra.mxu0 %v5669
      %v5713 = vpop.f32.mrf.mxu0
      %v5714 = vadd.f32 0.0, %v5713
      %v5715 = vpop.f32.mrf.mxu0
      %v5716 = vpop.f32.mrf.mxu0
      %v5717 = vadd.f32 0.0, %v5716
      %v5718 = vpop.f32.mrf.mxu0
      %5719 = vdwg.mxu0
      %5720 = vrot.lane.b32.xlu0 %v576, 40
      %v5721 = vpop.permute.xlu0 %5720
      %5722 = vrot.lane.b32.xlu0 %v577, 40
      %v5723 = vpop.permute.xlu0 %5722
      %v5727 = vsel %vm868, %v5468, 0
      %v5730 = vsel %vm868, %v5469, 0
      %5732 = vmatprep.subr.bf16.mxu0 0
      %5733 = vmatpush1.bf16.msra.mxu0 0
      %5734 = vmatprep.subr.bf16.mxu0 0
      %5735 = vmatpush1.bf16.msra.mxu0 0
      %5736 = vmatprep.subr.bf16.mxu0 0
      %5737 = vmatpush1.bf16.msra.mxu0 0
      %5738 = vmatprep.subr.bf16.mxu0 0
      %5739 = vmatpush1.bf16.msra.mxu0 0
      %5740 = vmatprep.subr.bf16.mxu0 0
      %5741 = vmatpush1.bf16.msra.mxu0 0
      %5742 = vmatprep.subr.bf16.mxu0 0
      %5743 = vmatpush1.bf16.msra.mxu0 0
      %5744 = vmatprep.subr.bf16.mxu0 0
      %5745 = vmatpush1.bf16.msra.mxu0 %v5723
      %5746 = vmatprep.subr.bf16.mxu0 0
      %5747 = vmatpush1.bf16.msra.mxu0 %v5721
      %5748 = vmatprep.subr.bf16.mxu0 0
      %5749 = vmatpush2.bf16.msra.mxu0 0
      %5750 = vmatprep.subr.bf16.mxu0 0
      %5751 = vmatpush2.bf16.msra.mxu0 0
      %5752 = vmatprep.subr.bf16.mxu0 0
      %5753 = vmatpush2.bf16.msra.mxu0 0
      %5754 = vmatprep.subr.bf16.mxu0 0
      %5755 = vmatpush2.bf16.msra.mxu0 0
      %5756 = vmatprep.subr.bf16.mxu0 0
      %5757 = vmatpush2.bf16.msra.mxu0 0
      %5758 = vmatprep.subr.bf16.mxu0 0
      %5759 = vmatpush2.bf16.msra.mxu0 0
      %5760 = vmatprep.subr.bf16.mxu0 0
      %5761 = vmatpush2.bf16.msra.mxu0 0
      %5762 = vmatprep.subr.bf16.mxu0 0
      %5763 = vmatpush2.bf16.msra.mxu0 0
      %5764 = vmatprep.mubr.bf16.mxu0 0
      %5765 = vmatmul.mubr.bf16.gmra.mxu0 %v5727
      %v5766 = vpop.f32.mrf.mxu0
      %v5767 = vadd.f32 0.0, %v5766
      %v5768 = vpop.f32.mrf.mxu0
      %v5769 = vpop.f32.mrf.mxu0
      %v5770 = vadd.f32 0.0, %v5769
      %v5771 = vpop.f32.mrf.mxu0
      %5772 = vmatprep.mubr.bf16.mxu0 0
      %5773 = vmatmul.mubr.bf16.gmra.mxu0 %v5730
      %v5774 = vpop.f32.mrf.mxu0
      %v5775 = vadd.f32 0.0, %v5774
      %v5776 = vpop.f32.mrf.mxu0
      %v5777 = vpop.f32.mrf.mxu0
      %v5778 = vadd.f32 0.0, %v5777
      %v5779 = vpop.f32.mrf.mxu0
      %5780 = vdwg.mxu0
      %5781 = vrot.lane.b32.xlu0 %v651, 40
      %v5782 = vpop.permute.xlu0 %5781
      %5783 = vrot.lane.b32.xlu0 %v652, 40
      %v5784 = vpop.permute.xlu0 %5783
      %v5788 = vsel %vm868, %v5470, 0
      %v5791 = vsel %vm868, %v5471, 0
      %5793 = vmatprep.subr.bf16.mxu0 0
      %5794 = vmatpush1.bf16.msra.mxu0 0
      %5795 = vmatprep.subr.bf16.mxu0 0
      %5796 = vmatpush1.bf16.msra.mxu0 0
      %5797 = vmatprep.subr.bf16.mxu0 0
      %5798 = vmatpush1.bf16.msra.mxu0 0
      %5799 = vmatprep.subr.bf16.mxu0 0
      %5800 = vmatpush1.bf16.msra.mxu0 0
      %5801 = vmatprep.subr.bf16.mxu0 0
      %5802 = vmatpush1.bf16.msra.mxu0 0
      %5803 = vmatprep.subr.bf16.mxu0 0
      %5804 = vmatpush1.bf16.msra.mxu0 0
      %5805 = vmatprep.subr.bf16.mxu0 0
      %5806 = vmatpush1.bf16.msra.mxu0 %v5784
      %5807 = vmatprep.subr.bf16.mxu0 0
      %5808 = vmatpush1.bf16.msra.mxu0 %v5782
      %5809 = vmatprep.subr.bf16.mxu0 0
      %5810 = vmatpush2.bf16.msra.mxu0 0
      %5811 = vmatprep.subr.bf16.mxu0 0
      %5812 = vmatpush2.bf16.msra.mxu0 0
      %5813 = vmatprep.subr.bf16.mxu0 0
      %5814 = vmatpush2.bf16.msra.mxu0 0
      %5815 = vmatprep.subr.bf16.mxu0 0
      %5816 = vmatpush2.bf16.msra.mxu0 0
      %5817 = vmatprep.subr.bf16.mxu0 0
      %5818 = vmatpush2.bf16.msra.mxu0 0
      %5819 = vmatprep.subr.bf16.mxu0 0
      %5820 = vmatpush2.bf16.msra.mxu0 0
      %5821 = vmatprep.subr.bf16.mxu0 0
      %5822 = vmatpush2.bf16.msra.mxu0 0
      %5823 = vmatprep.subr.bf16.mxu0 0
      %5824 = vmatpush2.bf16.msra.mxu0 0
      %5825 = vmatprep.mubr.bf16.mxu0 0
      %5826 = vmatmul.mubr.bf16.gmra.mxu0 %v5788
      %v5827 = vpop.f32.mrf.mxu0
      %v5828 = vadd.f32 0.0, %v5827
      %v5829 = vpop.f32.mrf.mxu0
      %v5830 = vpop.f32.mrf.mxu0
      %v5831 = vadd.f32 0.0, %v5830
      %v5832 = vpop.f32.mrf.mxu0
      %5833 = vmatprep.mubr.bf16.mxu0 0
      %5834 = vmatmul.mubr.bf16.gmra.mxu0 %v5791
      %v5835 = vpop.f32.mrf.mxu0
      %v5836 = vadd.f32 0.0, %v5835
      %v5837 = vpop.f32.mrf.mxu0
      %v5838 = vpop.f32.mrf.mxu0
      %v5839 = vadd.f32 0.0, %v5838
      %v5840 = vpop.f32.mrf.mxu0
      %5841 = vdwg.mxu0
      %5842 = vrot.lane.b32.xlu0 %v726, 40
      %v5843 = vpop.permute.xlu0 %5842
      %5844 = vrot.lane.b32.xlu0 %v727, 40
      %v5845 = vpop.permute.xlu0 %5844
      %v5849 = vsel %vm868, %v5472, 0
      %v5852 = vsel %vm868, %v5473, 0
      %5854 = vmatprep.subr.bf16.mxu0 0
      %5855 = vmatpush1.bf16.msra.mxu0 0
      %5856 = vmatprep.subr.bf16.mxu0 0
      %5857 = vmatpush1.bf16.msra.mxu0 0
      %5858 = vmatprep.subr.bf16.mxu0 0
      %5859 = vmatpush1.bf16.msra.mxu0 0
      %5860 = vmatprep.subr.bf16.mxu0 0
      %5861 = vmatpush1.bf16.msra.mxu0 0
      %5862 = vmatprep.subr.bf16.mxu0 0
      %5863 = vmatpush1.bf16.msra.mxu0 0
      %5864 = vmatprep.subr.bf16.mxu0 0
      %5865 = vmatpush1.bf16.msra.mxu0 0
      %5866 = vmatprep.subr.bf16.mxu0 0
      %5867 = vmatpush1.bf16.msra.mxu0 %v5845
      %5868 = vmatprep.subr.bf16.mxu0 0
      %5869 = vmatpush1.bf16.msra.mxu0 %v5843
      %5870 = vmatprep.subr.bf16.mxu0 0
      %5871 = vmatpush2.bf16.msra.mxu0 0
      %5872 = vmatprep.subr.bf16.mxu0 0
      %5873 = vmatpush2.bf16.msra.mxu0 0
      %5874 = vmatprep.subr.bf16.mxu0 0
      %5875 = vmatpush2.bf16.msra.mxu0 0
      %5876 = vmatprep.subr.bf16.mxu0 0
      %5877 = vmatpush2.bf16.msra.mxu0 0
      %5878 = vmatprep.subr.bf16.mxu0 0
      %5879 = vmatpush2.bf16.msra.mxu0 0
      %5880 = vmatprep.subr.bf16.mxu0 0
      %5881 = vmatpush2.bf16.msra.mxu0 0
      %5882 = vmatprep.subr.bf16.mxu0 0
      %5883 = vmatpush2.bf16.msra.mxu0 0
      %5884 = vmatprep.subr.bf16.mxu0 0
      %5885 = vmatpush2.bf16.msra.mxu0 0
      %5886 = vmatprep.mubr.bf16.mxu0 0
      %5887 = vmatmul.mubr.bf16.gmra.mxu0 %v5849
      %v5888 = vpop.f32.mrf.mxu0
      %v5889 = vadd.f32 0.0, %v5888
      %v5890 = vpop.f32.mrf.mxu0
      %v5891 = vpop.f32.mrf.mxu0
      %v5892 = vadd.f32 0.0, %v5891
      %v5893 = vpop.f32.mrf.mxu0
      %5894 = vmatprep.mubr.bf16.mxu0 0
      %5895 = vmatmul.mubr.bf16.gmra.mxu0 %v5852
      %v5896 = vpop.f32.mrf.mxu0
      %v5897 = vadd.f32 0.0, %v5896
      %v5898 = vpop.f32.mrf.mxu0
      %v5899 = vpop.f32.mrf.mxu0
      %v5900 = vadd.f32 0.0, %v5899
      %v5901 = vpop.f32.mrf.mxu0
      %5902 = vdwg.mxu0
      %5903 = vrot.lane.b32.xlu0 %v801, 40
      %v5904 = vpop.permute.xlu0 %5903
      %5905 = vrot.lane.b32.xlu0 %v802, 40
      %v5906 = vpop.permute.xlu0 %5905
      %v5910 = vsel %vm868, %v5474, 0
      %v5913 = vsel %vm868, %v5475, 0
      %5915 = vmatprep.subr.bf16.mxu0 0
      %5916 = vmatpush1.bf16.msra.mxu0 0
      %5917 = vmatprep.subr.bf16.mxu0 0
      %5918 = vmatpush1.bf16.msra.mxu0 0
      %5919 = vmatprep.subr.bf16.mxu0 0
      %5920 = vmatpush1.bf16.msra.mxu0 0
      %5921 = vmatprep.subr.bf16.mxu0 0
      %5922 = vmatpush1.bf16.msra.mxu0 0
      %5923 = vmatprep.subr.bf16.mxu0 0
      %5924 = vmatpush1.bf16.msra.mxu0 0
      %5925 = vmatprep.subr.bf16.mxu0 0
      %5926 = vmatpush1.bf16.msra.mxu0 0
      %5927 = vmatprep.subr.bf16.mxu0 0
      %5928 = vmatpush1.bf16.msra.mxu0 %v5906
      %5929 = vmatprep.subr.bf16.mxu0 0
      %5930 = vmatpush1.bf16.msra.mxu0 %v5904
      %5931 = vmatprep.subr.bf16.mxu0 0
      %5932 = vmatpush2.bf16.msra.mxu0 0
      %5933 = vmatprep.subr.bf16.mxu0 0
      %5934 = vmatpush2.bf16.msra.mxu0 0
      %5935 = vmatprep.subr.bf16.mxu0 0
      %5936 = vmatpush2.bf16.msra.mxu0 0
      %5937 = vmatprep.subr.bf16.mxu0 0
      %5938 = vmatpush2.bf16.msra.mxu0 0
      %5939 = vmatprep.subr.bf16.mxu0 0
      %5940 = vmatpush2.bf16.msra.mxu0 0
      %5941 = vmatprep.subr.bf16.mxu0 0
      %5942 = vmatpush2.bf16.msra.mxu0 0
      %5943 = vmatprep.subr.bf16.mxu0 0
      %5944 = vmatpush2.bf16.msra.mxu0 0
      %5945 = vmatprep.subr.bf16.mxu0 0
      %5946 = vmatpush2.bf16.msra.mxu0 0
      %5947 = vmatprep.mubr.bf16.mxu0 0
      %5948 = vmatmul.mubr.bf16.gmra.mxu0 %v5910
      %v5949 = vpop.f32.mrf.mxu0
      %v5950 = vadd.f32 0.0, %v5949
      %v5951 = vpop.f32.mrf.mxu0
      %v5952 = vpop.f32.mrf.mxu0
      %v5953 = vadd.f32 0.0, %v5952
      %v5954 = vpop.f32.mrf.mxu0
      %5955 = vmatprep.mubr.bf16.mxu0 0
      %5956 = vmatmul.mubr.bf16.gmra.mxu0 %v5913
      %v5957 = vpop.f32.mrf.mxu0
      %v5958 = vadd.f32 0.0, %v5957
      %v5959 = vpop.f32.mrf.mxu0
      %v5960 = vpop.f32.mrf.mxu0
      %v5961 = vadd.f32 0.0, %v5960
      %v5962 = vpop.f32.mrf.mxu0
      %5963 = vdwg.mxu0
      %5996 = vrot.lane.b32.xlu0 %v2697, 8
      %v5997 = vpop.permute.xlu0 %5996
      %5998 = vrot.lane.b32.xlu0 %v2700, 8
      %v5999 = vpop.permute.xlu0 %5998
      %6000 = vrot.lane.b32.xlu0 %v2705, 8
      %v6001 = vpop.permute.xlu0 %6000
      %6002 = vrot.lane.b32.xlu0 %v2708, 8
      %v6003 = vpop.permute.xlu0 %6002
      %6004 = vrot.lane.b32.xlu0 %v2758, 8
      %v6005 = vpop.permute.xlu0 %6004
      %6006 = vrot.lane.b32.xlu0 %v2761, 8
      %v6007 = vpop.permute.xlu0 %6006
      %6008 = vrot.lane.b32.xlu0 %v2766, 8
      %v6009 = vpop.permute.xlu0 %6008
      %6010 = vrot.lane.b32.xlu0 %v2769, 8
      %v6011 = vpop.permute.xlu0 %6010
      %6012 = vrot.lane.b32.xlu0 %v2819, 8
      %v6013 = vpop.permute.xlu0 %6012
      %6014 = vrot.lane.b32.xlu0 %v2822, 8
      %v6015 = vpop.permute.xlu0 %6014
      %6016 = vrot.lane.b32.xlu0 %v2827, 8
      %v6017 = vpop.permute.xlu0 %6016
      %6018 = vrot.lane.b32.xlu0 %v2830, 8
      %v6019 = vpop.permute.xlu0 %6018
      %6020 = vrot.lane.b32.xlu0 %v2880, 8
      %v6021 = vpop.permute.xlu0 %6020
      %6022 = vrot.lane.b32.xlu0 %v2883, 8
      %v6023 = vpop.permute.xlu0 %6022
      %6024 = vrot.lane.b32.xlu0 %v2888, 8
      %v6025 = vpop.permute.xlu0 %6024
      %6026 = vrot.lane.b32.xlu0 %v2891, 8
      %v6027 = vpop.permute.xlu0 %6026
      %6028 = vrot.lane.b32.xlu0 %v2941, 8
      %v6029 = vpop.permute.xlu0 %6028
      %6030 = vrot.lane.b32.xlu0 %v2944, 8
      %v6031 = vpop.permute.xlu0 %6030
      %6032 = vrot.lane.b32.xlu0 %v2949, 8
      %v6033 = vpop.permute.xlu0 %6032
      %6034 = vrot.lane.b32.xlu0 %v2952, 8
      %v6035 = vpop.permute.xlu0 %6034
      %6036 = vrot.lane.b32.xlu0 %v3002, 8
      %v6037 = vpop.permute.xlu0 %6036
      %6038 = vrot.lane.b32.xlu0 %v3005, 8
      %v6039 = vpop.permute.xlu0 %6038
      %6040 = vrot.lane.b32.xlu0 %v3010, 8
      %v6041 = vpop.permute.xlu0 %6040
      %6042 = vrot.lane.b32.xlu0 %v3013, 8
      %v6043 = vpop.permute.xlu0 %6042
      %6044 = vrot.lane.b32.xlu0 %v3063, 8
      %v6045 = vpop.permute.xlu0 %6044
      %6046 = vrot.lane.b32.xlu0 %v3066, 8
      %v6047 = vpop.permute.xlu0 %6046
      %6048 = vrot.lane.b32.xlu0 %v3071, 8
      %v6049 = vpop.permute.xlu0 %6048
      %6050 = vrot.lane.b32.xlu0 %v3074, 8
      %v6051 = vpop.permute.xlu0 %6050
      %6052 = vrot.lane.b32.xlu0 %v3124, 8
      %v6053 = vpop.permute.xlu0 %6052
      %6054 = vrot.lane.b32.xlu0 %v3127, 8
      %v6055 = vpop.permute.xlu0 %6054
      %6056 = vrot.lane.b32.xlu0 %v3132, 8
      %v6057 = vpop.permute.xlu0 %6056
      %6058 = vrot.lane.b32.xlu0 %v3135, 8
      %v6059 = vpop.permute.xlu0 %6058
      %6124 = vrot.lane.b32.xlu0 %v4110, 16
      %v6125 = vpop.permute.xlu0 %6124
      %6126 = vrot.lane.b32.xlu0 %v4113, 16
      %v6127 = vpop.permute.xlu0 %6126
      %6128 = vrot.lane.b32.xlu0 %v4118, 16
      %v6129 = vpop.permute.xlu0 %6128
      %6130 = vrot.lane.b32.xlu0 %v4121, 16
      %v6131 = vpop.permute.xlu0 %6130
      %6132 = vrot.lane.b32.xlu0 %v4171, 16
      %v6133 = vpop.permute.xlu0 %6132
      %6134 = vrot.lane.b32.xlu0 %v4174, 16
      %v6135 = vpop.permute.xlu0 %6134
      %6136 = vrot.lane.b32.xlu0 %v4179, 16
      %v6137 = vpop.permute.xlu0 %6136
      %6138 = vrot.lane.b32.xlu0 %v4182, 16
      %v6139 = vpop.permute.xlu0 %6138
      %6140 = vrot.lane.b32.xlu0 %v4232, 16
      %v6141 = vpop.permute.xlu0 %6140
      %6142 = vrot.lane.b32.xlu0 %v4235, 16
      %v6143 = vpop.permute.xlu0 %6142
      %6144 = vrot.lane.b32.xlu0 %v4240, 16
      %v6145 = vpop.permute.xlu0 %6144
      %6146 = vrot.lane.b32.xlu0 %v4243, 16
      %v6147 = vpop.permute.xlu0 %6146
      %6148 = vrot.lane.b32.xlu0 %v4293, 16
      %v6149 = vpop.permute.xlu0 %6148
      %6150 = vrot.lane.b32.xlu0 %v4296, 16
      %v6151 = vpop.permute.xlu0 %6150
      %6152 = vrot.lane.b32.xlu0 %v4301, 16
      %v6153 = vpop.permute.xlu0 %6152
      %6154 = vrot.lane.b32.xlu0 %v4304, 16
      %v6155 = vpop.permute.xlu0 %6154
      %6156 = vrot.lane.b32.xlu0 %v4354, 16
      %v6157 = vpop.permute.xlu0 %6156
      %6158 = vrot.lane.b32.xlu0 %v4357, 16
      %v6159 = vpop.permute.xlu0 %6158
      %6160 = vrot.lane.b32.xlu0 %v4362, 16
      %v6161 = vpop.permute.xlu0 %6160
      %6162 = vrot.lane.b32.xlu0 %v4365, 16
      %v6163 = vpop.permute.xlu0 %6162
      %6164 = vrot.lane.b32.xlu0 %v4415, 16
      %v6165 = vpop.permute.xlu0 %6164
      %6166 = vrot.lane.b32.xlu0 %v4418, 16
      %v6167 = vpop.permute.xlu0 %6166
      %6168 = vrot.lane.b32.xlu0 %v4423, 16
      %v6169 = vpop.permute.xlu0 %6168
      %6170 = vrot.lane.b32.xlu0 %v4426, 16
      %v6171 = vpop.permute.xlu0 %6170
      %6172 = vrot.lane.b32.xlu0 %v4476, 16
      %v6173 = vpop.permute.xlu0 %6172
      %6174 = vrot.lane.b32.xlu0 %v4479, 16
      %v6175 = vpop.permute.xlu0 %6174
      %6176 = vrot.lane.b32.xlu0 %v4484, 16
      %v6177 = vpop.permute.xlu0 %6176
      %6178 = vrot.lane.b32.xlu0 %v4487, 16
      %v6179 = vpop.permute.xlu0 %6178
      %6180 = vrot.lane.b32.xlu0 %v4537, 16
      %v6181 = vpop.permute.xlu0 %6180
      %6182 = vrot.lane.b32.xlu0 %v4540, 16
      %v6183 = vpop.permute.xlu0 %6182
      %6184 = vrot.lane.b32.xlu0 %v4545, 16
      %v6185 = vpop.permute.xlu0 %6184
      %6186 = vrot.lane.b32.xlu0 %v4548, 16
      %v6187 = vpop.permute.xlu0 %6186
      %6252 = vrot.lane.b32.xlu0 %v5523, 24
      %v6253 = vpop.permute.xlu0 %6252
      %6254 = vrot.lane.b32.xlu0 %v5526, 24
      %v6255 = vpop.permute.xlu0 %6254
      %6256 = vrot.lane.b32.xlu0 %v5531, 24
      %v6257 = vpop.permute.xlu0 %6256
      %6258 = vrot.lane.b32.xlu0 %v5534, 24
      %v6259 = vpop.permute.xlu0 %6258
      %6260 = vrot.lane.b32.xlu0 %v5584, 24
      %v6261 = vpop.permute.xlu0 %6260
      %6262 = vrot.lane.b32.xlu0 %v5587, 24
      %v6263 = vpop.permute.xlu0 %6262
      %6264 = vrot.lane.b32.xlu0 %v5592, 24
      %v6265 = vpop.permute.xlu0 %6264
      %6266 = vrot.lane.b32.xlu0 %v5595, 24
      %v6267 = vpop.permute.xlu0 %6266
      %6268 = vrot.lane.b32.xlu0 %v5645, 24
      %v6269 = vpop.permute.xlu0 %6268
      %6270 = vrot.lane.b32.xlu0 %v5648, 24
      %v6271 = vpop.permute.xlu0 %6270
      %6272 = vrot.lane.b32.xlu0 %v5653, 24
      %v6273 = vpop.permute.xlu0 %6272
      %6274 = vrot.lane.b32.xlu0 %v5656, 24
      %v6275 = vpop.permute.xlu0 %6274
      %6276 = vrot.lane.b32.xlu0 %v5706, 24
      %v6277 = vpop.permute.xlu0 %6276
      %6278 = vrot.lane.b32.xlu0 %v5709, 24
      %v6279 = vpop.permute.xlu0 %6278
      %6280 = vrot.lane.b32.xlu0 %v5714, 24
      %v6281 = vpop.permute.xlu0 %6280
      %6282 = vrot.lane.b32.xlu0 %v5717, 24
      %v6283 = vpop.permute.xlu0 %6282
      %6284 = vrot.lane.b32.xlu0 %v5767, 24
      %v6285 = vpop.permute.xlu0 %6284
      %6286 = vrot.lane.b32.xlu0 %v5770, 24
      %v6287 = vpop.permute.xlu0 %6286
      %6288 = vrot.lane.b32.xlu0 %v5775, 24
      %v6289 = vpop.permute.xlu0 %6288
      %6290 = vrot.lane.b32.xlu0 %v5778, 24
      %v6291 = vpop.permute.xlu0 %6290
      %6292 = vrot.lane.b32.xlu0 %v5828, 24
      %v6293 = vpop.permute.xlu0 %6292
      %6294 = vrot.lane.b32.xlu0 %v5831, 24
      %v6295 = vpop.permute.xlu0 %6294
      %6296 = vrot.lane.b32.xlu0 %v5836, 24
      %v6297 = vpop.permute.xlu0 %6296
      %6298 = vrot.lane.b32.xlu0 %v5839, 24
      %v6299 = vpop.permute.xlu0 %6298
      %6300 = vrot.lane.b32.xlu0 %v5889, 24
      %v6301 = vpop.permute.xlu0 %6300
      %6302 = vrot.lane.b32.xlu0 %v5892, 24
      %v6303 = vpop.permute.xlu0 %6302
      %6304 = vrot.lane.b32.xlu0 %v5897, 24
      %v6305 = vpop.permute.xlu0 %6304
      %6306 = vrot.lane.b32.xlu0 %v5900, 24
      %v6307 = vpop.permute.xlu0 %6306
      %6308 = vrot.lane.b32.xlu0 %v5950, 24
      %v6309 = vpop.permute.xlu0 %6308
      %6310 = vrot.lane.b32.xlu0 %v5953, 24
      %v6311 = vpop.permute.xlu0 %6310
      %6312 = vrot.lane.b32.xlu0 %v5958, 24
      %v6313 = vpop.permute.xlu0 %6312
      %6314 = vrot.lane.b32.xlu0 %v5961, 24
      %v6315 = vpop.permute.xlu0 %6314
      %v6348 = vsel %vm281, %v1284, %v5997
      %v6349 = vsel %vm281, %v1287, %v5999
      %v6350 = vsel %vm281, %v1292, %v6001
      %v6351 = vsel %vm281, %v1295, %v6003
      %v6352 = vsel %vm281, %v1345, %v6005
      %v6353 = vsel %vm281, %v1348, %v6007
      %v6354 = vsel %vm281, %v1353, %v6009
      %v6355 = vsel %vm281, %v1356, %v6011
      %v6356 = vsel %vm281, %v1406, %v6013
      %v6357 = vsel %vm281, %v1409, %v6015
      %v6358 = vsel %vm281, %v1414, %v6017
      %v6359 = vsel %vm281, %v1417, %v6019
      %v6360 = vsel %vm281, %v1467, %v6021
      %v6361 = vsel %vm281, %v1470, %v6023
      %v6362 = vsel %vm281, %v1475, %v6025
      %v6363 = vsel %vm281, %v1478, %v6027
      %v6364 = vsel %vm281, %v1528, %v6029
      %v6365 = vsel %vm281, %v1531, %v6031
      %v6366 = vsel %vm281, %v1536, %v6033
      %v6367 = vsel %vm281, %v1539, %v6035
      %v6368 = vsel %vm281, %v1589, %v6037
      %v6369 = vsel %vm281, %v1592, %v6039
      %v6370 = vsel %vm281, %v1597, %v6041
      %v6371 = vsel %vm281, %v1600, %v6043
      %v6372 = vsel %vm281, %v1650, %v6045
      %v6373 = vsel %vm281, %v1653, %v6047
      %v6374 = vsel %vm281, %v1658, %v6049
      %v6375 = vsel %vm281, %v1661, %v6051
      %v6376 = vsel %vm281, %v1711, %v6053
      %v6377 = vsel %vm281, %v1714, %v6055
      %v6378 = vsel %vm281, %v1719, %v6057
      %v6379 = vsel %vm281, %v1722, %v6059
      %vm6380 = vcmask 130048
      %v6381 = vsel %vm6380, %v6348, %v6125
      %v6382 = vsel %vm6380, %v6349, %v6127
      %v6383 = vsel %vm6380, %v6350, %v6129
      %v6384 = vsel %vm6380, %v6351, %v6131
      %v6385 = vsel %vm6380, %v6352, %v6133
      %v6386 = vsel %vm6380, %v6353, %v6135
      %v6387 = vsel %vm6380, %v6354, %v6137
      %v6388 = vsel %vm6380, %v6355, %v6139
      %v6389 = vsel %vm6380, %v6356, %v6141
      %v6390 = vsel %vm6380, %v6357, %v6143
      %v6391 = vsel %vm6380, %v6358, %v6145
      %v6392 = vsel %vm6380, %v6359, %v6147
      %v6393 = vsel %vm6380, %v6360, %v6149
      %v6394 = vsel %vm6380, %v6361, %v6151
      %v6395 = vsel %vm6380, %v6362, %v6153
      %v6396 = vsel %vm6380, %v6363, %v6155
      %v6397 = vsel %vm6380, %v6364, %v6157
      %v6398 = vsel %vm6380, %v6365, %v6159
      %v6399 = vsel %vm6380, %v6366, %v6161
      %v6400 = vsel %vm6380, %v6367, %v6163
      %v6401 = vsel %vm6380, %v6368, %v6165
      %v6402 = vsel %vm6380, %v6369, %v6167
      %v6403 = vsel %vm6380, %v6370, %v6169
      %v6404 = vsel %vm6380, %v6371, %v6171
      %v6405 = vsel %vm6380, %v6372, %v6173
      %v6406 = vsel %vm6380, %v6373, %v6175
      %v6407 = vsel %vm6380, %v6374, %v6177
      %v6408 = vsel %vm6380, %v6375, %v6179
      %v6409 = vsel %vm6380, %v6376, %v6181
      %v6410 = vsel %vm6380, %v6377, %v6183
      %v6411 = vsel %vm6380, %v6378, %v6185
      %v6412 = vsel %vm6380, %v6379, %v6187
      %vm6413 = vcmask 195584
      %v6414 = vsel %vm6413, %v6381, %v6253
      %v6415 = vsel %vm6413, %v6382, %v6255
      %v6416 = vsel %vm6413, %v6383, %v6257
      %v6417 = vsel %vm6413, %v6384, %v6259
      %v6418 = vsel %vm6413, %v6385, %v6261
      %v6419 = vsel %vm6413, %v6386, %v6263
      %v6420 = vsel %vm6413, %v6387, %v6265
      %v6421 = vsel %vm6413, %v6388, %v6267
      %v6422 = vsel %vm6413, %v6389, %v6269
      %v6423 = vsel %vm6413, %v6390, %v6271
      %v6424 = vsel %vm6413, %v6391, %v6273
      %v6425 = vsel %vm6413, %v6392, %v6275
      %v6426 = vsel %vm6413, %v6393, %v6277
      %v6427 = vsel %vm6413, %v6394, %v6279
      %v6428 = vsel %vm6413, %v6395, %v6281
      %v6429 = vsel %vm6413, %v6396, %v6283
      %v6430 = vsel %vm6413, %v6397, %v6285
      %v6431 = vsel %vm6413, %v6398, %v6287
      %v6432 = vsel %vm6413, %v6399, %v6289
      %v6433 = vsel %vm6413, %v6400, %v6291
      %v6434 = vsel %vm6413, %v6401, %v6293
      %v6435 = vsel %vm6413, %v6402, %v6295
      %v6436 = vsel %vm6413, %v6403, %v6297
      %v6437 = vsel %vm6413, %v6404, %v6299
      %v6438 = vsel %vm6413, %v6405, %v6301
      %v6439 = vsel %vm6413, %v6406, %v6303
      %v6440 = vsel %vm6413, %v6407, %v6305
      %v6441 = vsel %vm6413, %v6408, %v6307
      %v6442 = vsel %vm6413, %v6409, %v6309
      %v6443 = vsel %vm6413, %v6410, %v6311
      %v6444 = vsel %vm6413, %v6411, %v6313
      %v6445 = vsel %vm6413, %v6412, %v6315
      %v6446 = vpack.c.bf16 %v6415, %v6414
      %v6447 = vpack.c.bf16 %v6417, %v6416
      %v6448 = vpack.c.bf16 %v6419, %v6418
      %v6449 = vpack.c.bf16 %v6421, %v6420
      %v6450 = vpack.c.bf16 %v6423, %v6422
      %v6451 = vpack.c.bf16 %v6425, %v6424
      %v6452 = vpack.c.bf16 %v6427, %v6426
      %v6453 = vpack.c.bf16 %v6429, %v6428
      %v6454 = vpack.c.bf16 %v6431, %v6430
      %v6455 = vpack.c.bf16 %v6433, %v6432
      %v6456 = vpack.c.bf16 %v6435, %v6434
      %v6457 = vpack.c.bf16 %v6437, %v6436
      %v6458 = vpack.c.bf16 %v6439, %v6438
      %v6459 = vpack.c.bf16 %v6441, %v6440
      %v6460 = vpack.c.bf16 %v6443, %v6442
      %v6461 = vpack.c.bf16 %v6445, %v6444
      %v6462 = vld [vmem:[%s2] sm:$0xf]
      %v6463 = vld [vmem:[%s2 + $0x4] sm:$0xf]
      %v6464 = vld [vmem:[%s2 + $0x8] sm:$0xf]
      %v6465 = vld [vmem:[%s2 + $0xc] sm:$0xf]
      %v6466 = vld [vmem:[%s3] sm:$0x1]
      %v6468 = vlaneseq
      %v6469 = vshrl.u32 %v6468, 7
      %v6470 = vsub.s32 0, %v6469
      %v6471 = vrot.slane %v6466, %v6470
      %v6477 = vunpack.c.l.b16 %v6462
      %v6478 = vunpack.c.l.b16 %v6463
      %v6479 = vunpack.c.l.b16 %v6464
      %v6480 = vunpack.c.l.b16 %v6465
      %v6481 = vpack.c.b16 %v6478, %v6477
      %v6482 = vpack.c.b16 %v6480, %v6479
      %v6486 = vsel %vm868, %v6446, 0
      %v6489 = vsel %vm868, %v6447, 0
      %v6492 = vsel %vm868, %v6448, 0
      %v6495 = vsel %vm868, %v6449, 0
      %v6498 = vsel %vm868, %v6450, 0
      %v6501 = vsel %vm868, %v6451, 0
      %v6504 = vsel %vm868, %v6452, 0
      %v6507 = vsel %vm868, %v6453, 0
      %v6510 = vsel %vm868, %v6454, 0
      %v6513 = vsel %vm868, %v6455, 0
      %v6516 = vsel %vm868, %v6456, 0
      %v6519 = vsel %vm868, %v6457, 0
      %v6522 = vsel %vm868, %v6458, 0
      %v6525 = vsel %vm868, %v6459, 0
      %v6528 = vsel %vm868, %v6460, 0
      %v6531 = vsel %vm868, %v6461, 0
      %6533 = vmatprep.subr.bf16.mxu0 0
      %6534 = vmatpush1.bf16.msra.mxu0 0
      %6535 = vmatprep.subr.bf16.mxu0 0
      %6536 = vmatpush1.bf16.msra.mxu0 0
      %6537 = vmatprep.subr.bf16.mxu0 0
      %6538 = vmatpush1.bf16.msra.mxu0 0
      %6539 = vmatprep.subr.bf16.mxu0 0
      %6540 = vmatpush1.bf16.msra.mxu0 0
      %6541 = vmatprep.subr.bf16.mxu0 0
      %6542 = vmatpush1.bf16.msra.mxu0 0
      %6543 = vmatprep.subr.bf16.mxu0 0
      %6544 = vmatpush1.bf16.msra.mxu0 0
      %6545 = vmatprep.subr.bf16.mxu0 0
      %6546 = vmatpush1.bf16.msra.mxu0 %v6482
      %6547 = vmatprep.subr.bf16.mxu0 0
      %6548 = vmatpush1.bf16.msra.mxu0 %v6481
      %6549 = vmatprep.subr.bf16.mxu0 0
      %6550 = vmatpush2.bf16.msra.mxu0 0
      %6551 = vmatprep.subr.bf16.mxu0 0
      %6552 = vmatpush2.bf16.msra.mxu0 0
      %6553 = vmatprep.subr.bf16.mxu0 0
      %6554 = vmatpush2.bf16.msra.mxu0 0
      %6555 = vmatprep.subr.bf16.mxu0 0
      %6556 = vmatpush2.bf16.msra.mxu0 0
      %6557 = vmatprep.subr.bf16.mxu0 0
      %6558 = vmatpush2.bf16.msra.mxu0 0
      %6559 = vmatprep.subr.bf16.mxu0 0
      %6560 = vmatpush2.bf16.msra.mxu0 0
      %6561 = vmatprep.subr.bf16.mxu0 0
      %6562 = vmatpush2.bf16.msra.mxu0 0
      %6563 = vmatprep.subr.bf16.mxu0 0
      %6564 = vmatpush2.bf16.msra.mxu0 0
      %6565 = vmatprep.mubr.bf16.mxu0 0
      %6566 = vmatmul.mubr.bf16.gmra.mxu0 %v6486
      %v6567 = vpop.f32.mrf.mxu0
      %v6568 = vadd.f32 %v6471, %v6567
      %v6569 = vpop.f32.mrf.mxu0
      %v6570 = vpop.f32.mrf.mxu0
      %v6571 = vadd.f32 %v6471, %v6570
      %v6572 = vpop.f32.mrf.mxu0
      %6573 = vmatprep.mubr.bf16.mxu0 0
      %6574 = vmatmul.mubr.bf16.gmra.mxu0 %v6489
      %v6575 = vpop.f32.mrf.mxu0
      %v6576 = vadd.f32 %v6471, %v6575
      %v6577 = vpop.f32.mrf.mxu0
      %v6578 = vpop.f32.mrf.mxu0
      %v6579 = vadd.f32 %v6471, %v6578
      %v6580 = vpop.f32.mrf.mxu0
      %6581 = vmatprep.mubr.bf16.mxu0 0
      %6582 = vmatmul.mubr.bf16.gmra.mxu0 %v6492
      %v6583 = vpop.f32.mrf.mxu0
      %v6584 = vadd.f32 %v6471, %v6583
      %v6585 = vpop.f32.mrf.mxu0
      %v6586 = vpop.f32.mrf.mxu0
      %v6587 = vadd.f32 %v6471, %v6586
      %v6588 = vpop.f32.mrf.mxu0
      %6589 = vmatprep.mubr.bf16.mxu0 0
      %6590 = vmatmul.mubr.bf16.gmra.mxu0 %v6495
      %v6591 = vpop.f32.mrf.mxu0
      %v6592 = vadd.f32 %v6471, %v6591
      %v6593 = vpop.f32.mrf.mxu0
      %v6594 = vpop.f32.mrf.mxu0
      %v6595 = vadd.f32 %v6471, %v6594
      %v6596 = vpop.f32.mrf.mxu0
      %6597 = vmatprep.mubr.bf16.mxu0 0
      %6598 = vmatmul.mubr.bf16.gmra.mxu0 %v6498
      %v6599 = vpop.f32.mrf.mxu0
      %v6600 = vadd.f32 %v6471, %v6599
      %v6601 = vpop.f32.mrf.mxu0
      %v6602 = vpop.f32.mrf.mxu0
      %v6603 = vadd.f32 %v6471, %v6602
      %v6604 = vpop.f32.mrf.mxu0
      %6605 = vmatprep.mubr.bf16.mxu0 0
      %6606 = vmatmul.mubr.bf16.gmra.mxu0 %v6501
      %v6607 = vpop.f32.mrf.mxu0
      %v6608 = vadd.f32 %v6471, %v6607
      %v6609 = vpop.f32.mrf.mxu0
      %v6610 = vpop.f32.mrf.mxu0
      %v6611 = vadd.f32 %v6471, %v6610
      %v6612 = vpop.f32.mrf.mxu0
      %6613 = vmatprep.mubr.bf16.mxu0 0
      %6614 = vmatmul.mubr.bf16.gmra.mxu0 %v6504
      %v6615 = vpop.f32.mrf.mxu0
      %v6616 = vadd.f32 %v6471, %v6615
      %v6617 = vpop.f32.mrf.mxu0
      %v6618 = vpop.f32.mrf.mxu0
      %v6619 = vadd.f32 %v6471, %v6618
      %v6620 = vpop.f32.mrf.mxu0
      %6621 = vmatprep.mubr.bf16.mxu0 0
      %6622 = vmatmul.mubr.bf16.gmra.mxu0 %v6507
      %v6623 = vpop.f32.mrf.mxu0
      %v6624 = vadd.f32 %v6471, %v6623
      %v6625 = vpop.f32.mrf.mxu0
      %v6626 = vpop.f32.mrf.mxu0
      %v6627 = vadd.f32 %v6471, %v6626
      %v6628 = vpop.f32.mrf.mxu0
      %6629 = vmatprep.mubr.bf16.mxu0 0
      %6630 = vmatmul.mubr.bf16.gmra.mxu0 %v6510
      %v6631 = vpop.f32.mrf.mxu0
      %v6632 = vadd.f32 %v6471, %v6631
      %v6633 = vpop.f32.mrf.mxu0
      %v6634 = vpop.f32.mrf.mxu0
      %v6635 = vadd.f32 %v6471, %v6634
      %v6636 = vpop.f32.mrf.mxu0
      %6637 = vmatprep.mubr.bf16.mxu0 0
      %6638 = vmatmul.mubr.bf16.gmra.mxu0 %v6513
      %v6639 = vpop.f32.mrf.mxu0
      %v6640 = vadd.f32 %v6471, %v6639
      %v6641 = vpop.f32.mrf.mxu0
      %v6642 = vpop.f32.mrf.mxu0
      %v6643 = vadd.f32 %v6471, %v6642
      %v6644 = vpop.f32.mrf.mxu0
      %6645 = vmatprep.mubr.bf16.mxu0 0
      %6646 = vmatmul.mubr.bf16.gmra.mxu0 %v6516
      %v6647 = vpop.f32.mrf.mxu0
      %v6648 = vadd.f32 %v6471, %v6647
      %v6649 = vpop.f32.mrf.mxu0
      %v6650 = vpop.f32.mrf.mxu0
      %v6651 = vadd.f32 %v6471, %v6650
      %v6652 = vpop.f32.mrf.mxu0
      %6653 = vmatprep.mubr.bf16.mxu0 0
      %6654 = vmatmul.mubr.bf16.gmra.mxu0 %v6519
      %v6655 = vpop.f32.mrf.mxu0
      %v6656 = vadd.f32 %v6471, %v6655
      %v6657 = vpop.f32.mrf.mxu0
      %v6658 = vpop.f32.mrf.mxu0
      %v6659 = vadd.f32 %v6471, %v6658
      %v6660 = vpop.f32.mrf.mxu0
      %6661 = vmatprep.mubr.bf16.mxu0 0
      %6662 = vmatmul.mubr.bf16.gmra.mxu0 %v6522
      %v6663 = vpop.f32.mrf.mxu0
      %v6664 = vadd.f32 %v6471, %v6663
      %v6665 = vpop.f32.mrf.mxu0
      %v6666 = vpop.f32.mrf.mxu0
      %v6667 = vadd.f32 %v6471, %v6666
      %v6668 = vpop.f32.mrf.mxu0
      %6669 = vmatprep.mubr.bf16.mxu0 0
      %6670 = vmatmul.mubr.bf16.gmra.mxu0 %v6525
      %v6671 = vpop.f32.mrf.mxu0
      %v6672 = vadd.f32 %v6471, %v6671
      %v6673 = vpop.f32.mrf.mxu0
      %v6674 = vpop.f32.mrf.mxu0
      %v6675 = vadd.f32 %v6471, %v6674
      %v6676 = vpop.f32.mrf.mxu0
      %6677 = vmatprep.mubr.bf16.mxu0 0
      %6678 = vmatmul.mubr.bf16.gmra.mxu0 %v6528
      %v6679 = vpop.f32.mrf.mxu0
      %v6680 = vadd.f32 %v6471, %v6679
      %v6681 = vpop.f32.mrf.mxu0
      %v6682 = vpop.f32.mrf.mxu0
      %v6683 = vadd.f32 %v6471, %v6682
      %v6684 = vpop.f32.mrf.mxu0
      %6685 = vmatprep.mubr.bf16.mxu0 0
      %6686 = vmatmul.mubr.bf16.gmra.mxu0 %v6531
      %v6687 = vpop.f32.mrf.mxu0
      %v6688 = vadd.f32 %v6471, %v6687
      %v6689 = vpop.f32.mrf.mxu0
      %v6690 = vpop.f32.mrf.mxu0
      %v6691 = vadd.f32 %v6471, %v6690
      %v6692 = vpop.f32.mrf.mxu0
      %6693 = vdwg.mxu0
      %v6694 = vpack.c.bf16 %v6571, %v6568
      %v6695 = vpack.c.bf16 %v6579, %v6576
      %v6696 = vpack.c.bf16 %v6587, %v6584
      %v6697 = vpack.c.bf16 %v6595, %v6592
      %v6698 = vpack.c.bf16 %v6603, %v6600
      %v6699 = vpack.c.bf16 %v6611, %v6608
      %v6700 = vpack.c.bf16 %v6619, %v6616
      %v6701 = vpack.c.bf16 %v6627, %v6624
      %v6702 = vpack.c.bf16 %v6635, %v6632
      %v6703 = vpack.c.bf16 %v6643, %v6640
      %v6704 = vpack.c.bf16 %v6651, %v6648
      %v6705 = vpack.c.bf16 %v6659, %v6656
      %v6706 = vpack.c.bf16 %v6667, %v6664
      %v6707 = vpack.c.bf16 %v6675, %v6672
      %v6708 = vpack.c.bf16 %v6683, %v6680
      %v6709 = vpack.c.bf16 %v6691, %v6688
      %v6726 = vunpack.c.l.b16 %v6694
      %v6727 = vunpack.c.h.b16 %v6694
      %v6728 = vunpack.c.l.b16 %v6695
      %v6729 = vunpack.c.h.b16 %v6695
      %v6730 = vunpack.c.l.b16 %v6696
      %v6731 = vunpack.c.h.b16 %v6696
      %v6732 = vunpack.c.l.b16 %v6697
      %v6733 = vunpack.c.h.b16 %v6697
      %v6734 = vunpack.c.l.b16 %v6698
      %v6735 = vunpack.c.h.b16 %v6698
      %v6736 = vunpack.c.l.b16 %v6699
      %v6737 = vunpack.c.h.b16 %v6699
      %v6738 = vunpack.c.l.b16 %v6700
      %v6739 = vunpack.c.h.b16 %v6700
      %v6740 = vunpack.c.l.b16 %v6701
      %v6741 = vunpack.c.h.b16 %v6701
      %v6742 = vunpack.c.l.b16 %v6702
      %v6743 = vunpack.c.h.b16 %v6702
      %v6744 = vunpack.c.l.b16 %v6703
      %v6745 = vunpack.c.h.b16 %v6703
      %v6746 = vunpack.c.l.b16 %v6704
      %v6747 = vunpack.c.h.b16 %v6704
      %v6748 = vunpack.c.l.b16 %v6705
      %v6749 = vunpack.c.h.b16 %v6705
      %v6750 = vunpack.c.l.b16 %v6706
      %v6751 = vunpack.c.h.b16 %v6706
      %v6752 = vunpack.c.l.b16 %v6707
      %v6753 = vunpack.c.h.b16 %v6707
      %v6754 = vunpack.c.l.b16 %v6708
      %v6755 = vunpack.c.h.b16 %v6708
      %v6756 = vunpack.c.l.b16 %v6709
      %v6757 = vunpack.c.h.b16 %v6709
      %v6758 = vpack.c.b16 %v6726, %v6726
      %v6759 = vpack.c.b16 %v6727, %v6727
      %v6760 = vpack.c.b16 %v6728, %v6728
      %v6761 = vpack.c.b16 %v6729, %v6729
      %v6762 = vpack.c.b16 %v6730, %v6730
      %v6763 = vpack.c.b16 %v6731, %v6731
      %v6764 = vpack.c.b16 %v6732, %v6732
      %v6765 = vpack.c.b16 %v6733, %v6733
      %v6766 = vpack.c.b16 %v6734, %v6734
      %v6767 = vpack.c.b16 %v6735, %v6735
      %v6768 = vpack.c.b16 %v6736, %v6736
      %v6769 = vpack.c.b16 %v6737, %v6737
      %v6770 = vpack.c.b16 %v6738, %v6738
      %v6771 = vpack.c.b16 %v6739, %v6739
      %v6772 = vpack.c.b16 %v6740, %v6740
      %v6773 = vpack.c.b16 %v6741, %v6741
      %v6774 = vpack.c.b16 %v6742, %v6742
      %v6775 = vpack.c.b16 %v6743, %v6743
      %v6776 = vpack.c.b16 %v6744, %v6744
      %v6777 = vpack.c.b16 %v6745, %v6745
      %v6778 = vpack.c.b16 %v6746, %v6746
      %v6779 = vpack.c.b16 %v6747, %v6747
      %v6780 = vpack.c.b16 %v6748, %v6748
      %v6781 = vpack.c.b16 %v6749, %v6749
      %v6782 = vpack.c.b16 %v6750, %v6750
      %v6783 = vpack.c.b16 %v6751, %v6751
      %v6784 = vpack.c.b16 %v6752, %v6752
      %v6785 = vpack.c.b16 %v6753, %v6753
      %v6786 = vpack.c.b16 %v6754, %v6754
      %v6787 = vpack.c.b16 %v6755, %v6755
      %v6788 = vpack.c.b16 %v6756, %v6756
      %v6789 = vpack.c.b16 %v6757, %v6757
      %vm6822 = vcmask 257024
      %6823 = vst.msk [vmem:[%s227] sm:$0xf] %vm6822, %v6758
      %6824 = vst.msk [vmem:[%s227 + $0x4] sm:$0xf] %vm6822, %v6759
      %6825 = vst.msk [vmem:[%s227 + $0x8] sm:$0xf] %vm6822, %v6760
      %6826 = vst.msk [vmem:[%s227 + $0xc] sm:$0xf] %vm6822, %v6761
      %6827 = vst.msk [vmem:[%s227 + $0x10] sm:$0xf] %vm6822, %v6762
      %6828 = vst.msk [vmem:[%s227 + $0x14] sm:$0xf] %vm6822, %v6763
      %6829 = vst.msk [vmem:[%s227 + $0x18] sm:$0xf] %vm6822, %v6764
      %6830 = vst.msk [vmem:[%s227 + $0x1c] sm:$0xf] %vm6822, %v6765
      %6831 = vst.msk [vmem:[%s227 + $0x20] sm:$0xf] %vm6822, %v6766
      %6832 = vst.msk [vmem:[%s227 + $0x24] sm:$0xf] %vm6822, %v6767
      %6833 = vst.msk [vmem:[%s227 + $0x28] sm:$0xf] %vm6822, %v6768
      %6834 = vst.msk [vmem:[%s227 + $0x2c] sm:$0xf] %vm6822, %v6769
      %6835 = vst.msk [vmem:[%s227 + $0x30] sm:$0xf] %vm6822, %v6770
      %6836 = vst.msk [vmem:[%s227 + $0x34] sm:$0xf] %vm6822, %v6771
      %6837 = vst.msk [vmem:[%s227 + $0x38] sm:$0xf] %vm6822, %v6772
      %6838 = vst.msk [vmem:[%s227 + $0x3c] sm:$0xf] %vm6822, %v6773
      %6839 = vst.msk [vmem:[%s227 + $0x40] sm:$0xf] %vm6822, %v6774
      %6840 = vst.msk [vmem:[%s227 + $0x44] sm:$0xf] %vm6822, %v6775
      %6841 = vst.msk [vmem:[%s227 + $0x48] sm:$0xf] %vm6822, %v6776
      %6842 = vst.msk [vmem:[%s227 + $0x4c] sm:$0xf] %vm6822, %v6777
      %6843 = vst.msk [vmem:[%s227 + $0x50] sm:$0xf] %vm6822, %v6778
      %6844 = vst.msk [vmem:[%s227 + $0x54] sm:$0xf] %vm6822, %v6779
      %6845 = vst.msk [vmem:[%s227 + $0x58] sm:$0xf] %vm6822, %v6780
      %6846 = vst.msk [vmem:[%s227 + $0x5c] sm:$0xf] %vm6822, %v6781
      %6847 = vst.msk [vmem:[%s227 + $0x60] sm:$0xf] %vm6822, %v6782
      %6848 = vst.msk [vmem:[%s227 + $0x64] sm:$0xf] %vm6822, %v6783
      %6849 = vst.msk [vmem:[%s227 + $0x68] sm:$0xf] %vm6822, %v6784
      %6850 = vst.msk [vmem:[%s227 + $0x6c] sm:$0xf] %vm6822, %v6785
      %6851 = vst.msk [vmem:[%s227 + $0x70] sm:$0xf] %vm6822, %v6786
      %6852 = vst.msk [vmem:[%s227 + $0x74] sm:$0xf] %vm6822, %v6787
      %6853 = vst.msk [vmem:[%s227 + $0x78] sm:$0xf] %vm6822, %v6788
      %6854 = vst.msk [vmem:[%s227 + $0x7c] sm:$0xf] %vm6822, %v6789
      %s6855 = sadd.s32 %s20, %s19
      %s6856 = smul.u32 8, %s6855
      %p6857 = scmp.lt.s32.totalorder %s6856, 15
      %s6858 = scalar_select %p6857, %s6856, 15
      %s6859 = smul.addr %s6858, 4
      %s6860 = smul.addr %s6859, 4
      %s6861 = scalar_lea.vmem %s4, %s6860
      // Predicated region
      $region37: #{swin_block_forward.6} parent=35 // pred_check
        %p6862 = pneg %p138
      $region38: #{swin_block_forward.6} parent=35 // pred_check_branch
        %6864 = sbr.rel (%p6862) target = $region40
      $region39: #{swin_block_forward.6} parent=35 // pred_region
        %s6865 = sadd.s32 %s20, %s19
        %s6866 = smul.u32 8, %s6865
      $region40: #{swin_block_forward.6} parent=35 // pred_fallthru
        _
    $region36: #{swin_block_forward.6} parent=5 // pred_fallthru
      _
    %p6867 = scmp.le.s32.totalorder 2, %s10
    // Predicated region
    $region41: #{swin_block_forward.6} parent=5 // pred_check
      %p6868 = pneg %p6867
    $region42: #{swin_block_forward.6} parent=5 // pred_check_branch
      %6870 = sbr.rel (%p6868) target = $region44
    $region43: #{swin_block_forward.6} parent=5 // pred_region
      %s6871 = ssub.s32 %s10, 2
      // Predicated region
      $region45: #{swin_block_forward.6} parent=43 // pred_check
        %p6872 = pneg %p144
      $region46: #{swin_block_forward.6} parent=43 // pred_check_branch
        %6874 = sbr.rel (%p6872) target = $region48
      $region47: #{swin_block_forward.6} parent=43 // pred_region
        %s6875 = sadd.s32 %s22, %s21
        %s6876 = smul.u32 8, %s6875
        %p6877 = scmp.lt.s32.totalorder %s6876, 15
        %s6878 = scalar_select %p6877, %s6876, 15
        %s6879 = smul.addr %s6878, 4
        %s6880 = smul.addr %s6879, 4
        %s6881 = scalar_lea.vmem %s4, %s6880
      $region48: #{swin_block_forward.6} parent=43 // pred_fallthru
        _
    $region44: #{swin_block_forward.6} parent=5 // pred_fallthru
      _
  $region6: #{swin_block_forward.6} parent=0 // loop_footer
    %s14 = sadd.s32 1, %s10
  $region7: #{swin_block_forward.6} parent=0 // loop_footer_branch
    %9 = sbr.rel target = $region3
  $region8: #{swin_block_forward.6} parent=0 // loop_exit
    _

</llo_original>
